<compile_context>
chip_gen: v7x
topology: tpu7x:2x2x1
jax: 0.10.0
libtpu: 0.0.40
codegen_flags: <defaults>
</compile_context>

<pallas_src>
import math
import functools

import jax
import jax.numpy as jnp
from jax.experimental import pallas as pl
from jax.experimental.pallas import tpu as pltpu

SCALE1 = 2.0 * 8.0 / 256.0
SCALE2 = 2.0 * 3.0 / 256.0
TM_MAX = 512          # up to this many rows -> single grid step


def _round_up(x, m):
    return (x + m - 1) // m * m


# ----------------------------- Pallas kernels -----------------------------
def _mm_kernel(a_ref, b_ref, o_ref):
    o_ref[...] = jnp.dot(a_ref[...], b_ref[...],
                         preferred_element_type=jnp.float32)


def _mm_bias_kernel(a_ref, b_ref, bias_ref, o_ref):
    o_ref[...] = jnp.dot(a_ref[...], b_ref[...],
                         preferred_element_type=jnp.float32) + bias_ref[...]


def _mm_bias_tanh_kernel(a_ref, b_ref, bias_ref, o_ref, *, scale):
    acc = jnp.dot(a_ref[...], b_ref[...],
                  preferred_element_type=jnp.float32) + bias_ref[...]
    o_ref[...] = jnp.tanh(acc) * scale


def matmul_pallas(a, w_p, bias_p=None, activation=None, scale=1.0):
    """a: (M,K) f32. w_p: (Kp,Op) bf16 pre-padded. bias_p: (1,Op) f32 or None.
    Returns (M, Op) f32; caller slices the valid output columns."""
    M, K = a.shape
    Kp, Op = w_p.shape

    if M <= TM_MAX:                       # whole problem in one grid step
        tm = _round_up(max(M, 8), 16)     # 16: bf16 sublane packing
        Mp = tm
    else:
        tm = TM_MAX
        Mp = _round_up(M, tm)

    a_bf = a.astype(jnp.bfloat16)
    if (Mp, Kp) != (M, K):                # pad only when actually needed
        a_bf = jnp.pad(a_bf, ((0, Mp - M), (0, Kp - K)))
    grid_m = Mp // tm

    if bias_p is None:
        assert activation is None
        kernel = _mm_kernel
        in_specs = [pl.BlockSpec((tm, Kp), lambda i: (i, 0)),
                    pl.BlockSpec((Kp, Op), lambda i: (0, 0))]
        operands = (a_bf, w_p)
    else:
        if activation == 'tanh':
            kernel = functools.partial(_mm_bias_tanh_kernel, scale=scale)
        else:
            kernel = _mm_bias_kernel
        in_specs = [pl.BlockSpec((tm, Kp), lambda i: (i, 0)),
                    pl.BlockSpec((Kp, Op), lambda i: (0, 0)),
                    pl.BlockSpec((1, Op), lambda i: (0, 0))]
        operands = (a_bf, w_p, bias_p)

    out = pl.pallas_call(
        kernel,
        out_shape=jax.ShapeDtypeStruct((Mp, Op), jnp.float32),
        grid_spec=pltpu.PrefetchScalarGridSpec(
            num_scalar_prefetch=0,
            grid=(grid_m,),
            in_specs=in_specs,
            out_specs=pl.BlockSpec((tm, Op), lambda i: (i, 0)),
        ),
        compiler_params=pltpu.CompilerParams(
            dimension_semantics=("parallel",)),
    )(*operands)
    return out[:M]


def conv2d_nhwc(x, pc, stride=1, padding=0, activation=None, scale=1.0):
    """x: (N,H,W,C) f32; pc: prepped conv dict. Returns (N,Ho,Wo,O) f32."""
    N, H, W, C = x.shape
    kh, kw, O = pc['kh'], pc['kw'], pc['O']
    Ho = (H + 2 * padding - kh) // stride + 1
    Wo = (W + 2 * padding - kw) // stride + 1
    if kh == 1 and kw == 1 and padding == 0:
        A = x[:, ::stride, ::stride, :].reshape(N * Ho * Wo, C)
    else:
        xp = jnp.pad(x, ((0, 0), (padding, padding), (padding, padding), (0, 0)))
        cols = []
        for i in range(kh):
            for j in range(kw):
                cols.append(xp[:, i:i + stride * (Ho - 1) + 1:stride,
                                  j:j + stride * (Wo - 1) + 1:stride, :])
        patches = jnp.stack(cols, axis=3)          # (N,Ho,Wo,kh*kw,C), C last
        A = patches.reshape(N * Ho * Wo, kh * kw * C)
    out = matmul_pallas(A, pc['w'], pc['b'], activation=activation, scale=scale)
    return out[:, :O].reshape(N, Ho, Wo, O)


# ----------------------------- weight preparation -----------------------------
def _prep_conv(w, b=None):
    """(O,C,kh,kw) PyTorch-layout weight -> MXU-ready (Kp,Op) bf16 matrix with
    K ordered (kh,kw,C) to match the channel-last im2col; bias padded once."""
    O, C, kh, kw = w.shape
    K = kh * kw * C
    Kp = _round_up(K, 128)
    Op = _round_up(O, 128)
    wm = jnp.transpose(w, (2, 3, 1, 0)).reshape(K, O)
    wm = jnp.pad(wm, ((0, Kp - K), (0, Op - O))).astype(jnp.bfloat16)
    bp = None
    if b is not None:
        bp = jnp.pad(b.astype(jnp.float32), (0, Op - O))[None, :]
    return {'w': wm, 'b': bp, 'O': O, 'kh': kh, 'kw': kw}


def _block_diag2(w_a, w_b):
    Oa, Ca, kh, kw = w_a.shape
    Ob, Cb = w_b.shape[:2]
    top = jnp.concatenate([w_a, jnp.zeros((Oa, Cb, kh, kw), w_a.dtype)], axis=1)
    bot = jnp.concatenate([jnp.zeros((Ob, Ca, kh, kw), w_b.dtype), w_b], axis=1)
    return jnp.concatenate([top, bot], axis=0)


def _cat_bn(*bns):
    return {'g': jnp.concatenate([p['g'] for p in bns]),
            'b': jnp.concatenate([p['b'] for p in bns])}


def prepare_params(p):
    """One-time conversion: reshape/pad/bf16-cast weights, fuse the four head
    c1 convs along output channels, block-diag-fuse the twin heads."""
    h4, h4_, h3, h3_ = p['off4'], p['off4_'], p['off3'], p['off3_']
    return {
        'cc1': _prep_conv(p['cc1_w']),               'bn1a': p['bn1a'],
        'cc2': _prep_conv(p['cc2_w']),               'bn1b': p['bn1b'],
        'rb_c1': _prep_conv(p['rb_c1_w'], p['rb_c1_b']), 'rb_bn': p['rb_bn'],
        'rb_c2': _prep_conv(p['rb_c2_w'], p['rb_c2_b']), 'bn2': p['bn2'],
        # fused first conv of all 4 heads: [off4 | off4_ | off3 | off3_], O=256
        'heads_c1': _prep_conv(
            jnp.concatenate([h4['c1_w'], h4_['c1_w'], h3['c1_w'], h3_['c1_w']], 0),
            jnp.concatenate([h4['c1_b'], h4_['c1_b'], h3['c1_b'], h3_['c1_b']])),
        'heads_bn1': _cat_bn(h4['bn1'], h4_['bn1'], h3['bn1'], h3_['bn1']),
        # twin heads fused with block-diag weights (ch 0-63 plain, 64-127 "_")
        'h4_c2': _prep_conv(_block_diag2(h4['c2_w'], h4_['c2_w']),
                            jnp.concatenate([h4['c2_b'], h4_['c2_b']])),
        'h4_bn2': _cat_bn(h4['bn2'], h4_['bn2']),
        'h4_c3': _prep_conv(_block_diag2(h4['c3_w'], h4_['c3_w']),
                            jnp.concatenate([h4['c3_b'], h4_['c3_b']])),
        'h4_bn3': _cat_bn(h4['bn3'], h4_['bn3']),
        'h4_c4': _prep_conv(_block_diag2(h4['c4_w'], h4_['c4_w']),
                            jnp.concatenate([h4['c4_b'], h4_['c4_b']])),
        'h3_c2': _prep_conv(_block_diag2(h3['c2_w'], h3_['c2_w']),
                            jnp.concatenate([h3['c2_b'], h3_['c2_b']])),
    }


# ----------------------------- JAX glue -----------------------------
def batchnorm_nhwc(x, p, eps=1e-5):
    # PyTorch BatchNorm2d train mode: biased batch statistics over (N,H,W)
    mean = jnp.mean(x, axis=(0, 1, 2), keepdims=True)
    var = jnp.var(x, axis=(0, 1, 2), keepdims=True)
    xn = (x - mean) / jnp.sqrt(var + eps)
    return xn * p['g'][None, None, None, :] + p['b'][None, None, None, :]


def make_coords(S, r=4):
    """AddCoords2d channels (S,S,4), channel order [xx, xx_, yy, yy_]."""
    fs = S // r
    rng = jnp.arange(S, dtype=jnp.float32) / (S - 1)
    base = jnp.repeat(jnp.arange(fs, dtype=jnp.float32) / (fs - 1), S // fs)
    xx = jnp.broadcast_to((rng - base)[:, None], (S, S))
    xx_ = jnp.broadcast_to(base[:, None], (S, S))
    yy = jnp.broadcast_to((rng - base)[None, :], (S, S))
    yy_ = jnp.broadcast_to(base[None, :], (S, S))
    return jnp.stack([xx, xx_, yy, yy_], axis=-1) * 2.0 - 1.0


def _upsample_matrix(out_size, in_size):
    """Row-stochastic (out,in) matrix implementing align_corners=True bilinear."""
    if out_size == 1:
        s = jnp.zeros((1,), jnp.float32)
    else:
        s = jnp.arange(out_size, dtype=jnp.float32) * \
            ((in_size - 1) / (out_size - 1))
    i0 = jnp.clip(jnp.floor(s).astype(jnp.int32), 0, in_size - 1)
    i1 = jnp.clip(i0 + 1, 0, in_size - 1)
    w = s - i0.astype(jnp.float32)
    return ((1.0 - w)[:, None] * jax.nn.one_hot(i0, in_size, dtype=jnp.float32)
            + w[:, None] * jax.nn.one_hot(i1, in_size, dtype=jnp.float32))


def interpolate_bilinear_nhwc(x, out_h, out_w):
    # F.interpolate(mode='bilinear', align_corners=True) as two constant
    # matmuls (no gathers); matrices are trace-time constants.
    N, Hin, Win, C = x.shape
    Uh = _upsample_matrix(out_h, Hin)
    Uw = _upsample_matrix(out_w, Win)
    t = jnp.einsum('ph,nhwc->npwc', Uh, x)
    return jnp.einsum('qw,npwc->npqc', Uw, t)


def grid_sample_bilinear(x, grid):
    # TODO(synk): grid_sample (data-dependent gather, align_corners=True) kept
    # in plain JAX; a Pallas DMA gather does not pay off at this size.
    N, C, H, W = x.shape
    ix = (grid[..., 0] + 1.0) * 0.5 * (W - 1)
    iy = (grid[..., 1] + 1.0) * 0.5 * (H - 1)
    ix0 = jnp.floor(ix)
    iy0 = jnp.floor(iy)
    wx = (ix - ix0)[:, None]
    wy = (iy - iy0)[:, None]
    ix0i = jnp.clip(ix0.astype(jnp.int32), 0, W - 1)
    ix1i = jnp.clip(ix0.astype(jnp.int32) + 1, 0, W - 1)
    iy0i = jnp.clip(iy0.astype(jnp.int32), 0, H - 1)
    iy1i = jnp.clip(iy0.astype(jnp.int32) + 1, 0, H - 1)

    def gather(xn, yi, xi):
        return xn[:, yi, xi]                       # (C, Ho, Wo)

    v00 = jax.vmap(gather)(x, iy0i, ix0i)
    v01 = jax.vmap(gather)(x, iy0i, ix1i)
    v10 = jax.vmap(gather)(x, iy1i, ix0i)
    v11 = jax.vmap(gather)(x, iy1i, ix1i)
    top = v00 * (1.0 - wx) + v01 * wx
    bot = v10 * (1.0 - wx) + v11 * wx
    return top * (1.0 - wy) + bot * wy


def smooth_loss_sum(offsets, ks=3):
    """Sum of Smooth_Loss over a list of (N,H,W,2) offsets: a batched VPU
    stencil (9 shifted adds). The original conv has O=1, K=18 so an MXU
    lowering would be >99% zero padding."""
    X = jnp.concatenate(offsets, axis=0)          # (len*N, H, W, 2)
    s = jnp.sum(X, axis=-1)                       # same filter on both channels
    H, W = s.shape[1], s.shape[2]
    sp = jnp.pad(s, ((0, 0), (ks // 2, ks // 2), (ks // 2, ks // 2)))
    off_c = -1.0 / (ks * ks - 1)
    out = jnp.zeros_like(s)
    for i in range(ks):
        for j in range(ks):
            coef = 1.0 if (i == ks // 2 and j == ks // 2) else off_c
            out = out + coef * sp[:, i:i + H, j:j + W]
    # equal-sized tensors: sum of per-tensor means == len * mean(concat)
    return float(len(offsets)) * jnp.mean(jnp.abs(out))


# ----------------------------- OffsetNet forward -----------------------------
def offsetnet_forward(prep, x, gamma=1.0):
    bs, c, w, h = x.shape
    assert w == h, "OffsetNet (like the original expand() calls) needs square input"
    S = w
    xh = jnp.transpose(x, (0, 2, 3, 1))                        # NHWC internally
    coords_b = jnp.broadcast_to(make_coords(S, 4)[None], (bs, S, S, 4))

    # conv_offset1: (CoordConv -> BN -> ReLU) x 2, coordconvs have no bias
    t = conv2d_nhwc(jnp.concatenate([xh, coords_b], -1), prep['cc1'], 1, 1)
    t = jax.nn.relu(batchnorm_nhwc(t, prep['bn1a']))
    t = conv2d_nhwc(jnp.concatenate([t, coords_b], -1), prep['cc2'], 1, 1)
    x1 = jax.nn.relu(batchnorm_nhwc(t, prep['bn1b']))

    # conv_offset2: ResBlock(64,64,bn=True) then BN(64)
    r = jax.nn.relu(x1)
    r = conv2d_nhwc(r, prep['rb_c1'], 1, 1)
    r = jax.nn.relu(batchnorm_nhwc(r, prep['rb_bn']))
    r = conv2d_nhwc(r, prep['rb_c2'], 1, 0)
    res = batchnorm_nhwc(x1 + r, prep['bn2'])
    x2 = jnp.concatenate([res, x1], axis=-1)                   # (bs,S,S,128)

    # offset heads: fused c1 of all four heads (stride 2), O=256
    y = conv2d_nhwc(x2, prep['heads_c1'], 2, 1)
    y = jax.nn.relu(batchnorm_nhwc(y, prep['heads_bn1']))
    y4, y3 = y[..., :128], y[..., 128:]          # [off4|off4_], [off3|off3_]

    # off4 / off4_ twins (block-diagonal weights, channel-disjoint => exact)
    t4 = conv2d_nhwc(y4, prep['h4_c2'], 2, 1)
    t4 = jax.nn.relu(batchnorm_nhwc(t4, prep['h4_bn2']))
    t4 = conv2d_nhwc(t4, prep['h4_c3'], 2, 1)
    t4 = jax.nn.relu(batchnorm_nhwc(t4, prep['h4_bn3']))
    o4 = conv2d_nhwc(t4, prep['h4_c4'], 1, 1,
                     activation='tanh', scale=SCALE1)          # (bs,S/8,S/8,4)

    # off3 / off3_ twins
    o3 = conv2d_nhwc(y3, prep['h3_c2'], 1, 1,
                     activation='tanh', scale=SCALE2)          # (bs,S/2,S/2,4)

    # bilinear upsample to (w,h); NHWC already == the PyTorch .permute(0,2,3,1)
    o4u = interpolate_bilinear_nhwc(o4, w, h)
    o3u = interpolate_bilinear_nhwc(o3, w, h)
    offset1, offset1_ = o4u[..., 0:2], o4u[..., 2:4]
    offset2, offset2_ = o3u[..., 0:2], o3u[..., 2:4]

    lin = jnp.linspace(-1.0, 1.0, S, dtype=jnp.float32)
    gridX = jnp.broadcast_to(lin[None, None, :, None], (bs, S, S, 1))
    gridY = jnp.broadcast_to(lin[None, :, None, None], (bs, S, S, 1))
    grid = jnp.concatenate([gridX, gridY], axis=3)

    grid1 = jnp.clip(offset1 + grid, -1.0, 1.0)
    grid2 = jnp.clip(offset2 + grid, -1.0, 1.0)
    grid1_ = jnp.clip(offset1_ + grid, -1.0, 1.0)
    grid2_ = jnp.clip(offset2_ + grid, -1.0, 1.0)

    out1 = grid_sample_bilinear(x, grid1)
    out2 = grid_sample_bilinear(out1, grid2)
    transposed = grid_sample_bilinear(
        grid_sample_bilinear(out2, grid2_), grid1_)

    def off_norm_mean(o):
        return jnp.mean(jnp.sqrt(jnp.sum(o ** 2, axis=-1)))

    offset_loss = (off_norm_mean(offset1) + off_norm_mean(offset2)
                   + smooth_loss_sum([offset1, offset2, offset1_, offset2_])
                   + jnp.mean((transposed - x) ** 2) * gamma)
    return out1, out2, offset_loss


# ----------------------------- parameter init -----------------------------
def init_params(key, n_channel=3):
    keys = iter(jax.random.split(key, 64))

    def cw(o, i, k):
        return jax.random.normal(next(keys), (o, i, k, k),
                                 jnp.float32) / math.sqrt(i * k * k)

    def cb(o):
        return jnp.zeros((o,), jnp.float32)

    def bn(cch):
        return {'g': jnp.ones((cch,), jnp.float32),
                'b': jnp.zeros((cch,), jnp.float32)}

    def head3_p():
        return {'c1_w': cw(64, 128, 3), 'c1_b': cb(64), 'bn1': bn(64),
                'c2_w': cw(2, 64, 3), 'c2_b': cb(2)}

    def head4_p():
        return {'c1_w': cw(64, 128, 3), 'c1_b': cb(64), 'bn1': bn(64),
                'c2_w': cw(64, 64, 3), 'c2_b': cb(64), 'bn2': bn(64),
                'c3_w': cw(64, 64, 3), 'c3_b': cb(64), 'bn3': bn(64),
                'c4_w': cw(2, 64, 3), 'c4_b': cb(2)}

    return {
        'cc1_w': cw(64, n_channel + 4, 3), 'bn1a': bn(64),
        'cc2_w': cw(64, 64 + 4, 3), 'bn1b': bn(64),
        'rb_c1_w': cw(64, 64, 3), 'rb_c1_b': cb(64), 'rb_bn': bn(64),
        'rb_c2_w': cw(64, 64, 1), 'rb_c2_b': cb(64), 'bn2': bn(64),
        'off3': head3_p(), 'off4': head4_p(),
        'off3_': head3_p(), 'off4_': head4_p(),
    }


if __name__ == "__main__":
    key = jax.random.PRNGKey(0)
    pkey, xkey = jax.random.split(key)
    params = init_params(pkey, n_channel=3)
    prep = prepare_params(params)       # one-time weight reshape/pad/bf16 cast
    x = jax.random.normal(xkey, (2, 3, 16, 16), jnp.float32)

    fwd = jax.jit(lambda inp: offsetnet_forward(prep, inp, gamma=1.0))
    out1, out2, offset_loss = fwd(x)
    jax.block_until_ready((out1, out2, offset_loss))
    assert out1.shape == (2, 3, 16, 16) and out2.shape == (2, 3, 16, 16)
    assert offset_loss.shape == ()
    assert bool(jnp.isfinite(offset_loss))
    print("KERNEL_OK")
</pallas_src>

<mosaic_0001>
module attributes {stable_mosaic.version = 11 : i64} {
  func.func @_mm_kernel(%arg0: i32, %arg1: memref<512x128xbf16, #tpu.memory_space<vmem>>, %arg2: memref<128x128xbf16, #tpu.memory_space<vmem>>, %arg3: memref<512x128xf32, #tpu.memory_space<vmem>>) attributes {dimension_semantics = [#tpu.dimension_semantics<parallel>], iteration_bounds = array<i64: 1>, scalar_prefetch = 0 : i64, scratch_operands = 0 : i64, tpu.core_type = #tpu.core_type<tc>, window_params = [{transform_indices = @transform_0, window_bounds = array<i64: 512, 128>}, {pipeline_mode = #tpu.pipeline_mode<synchronous>, transform_indices = @transform_1, window_bounds = array<i64: 128, 128>}, {transform_indices = @transform_2, window_bounds = array<i64: 512, 128>}]} {
    %c0 = arith.constant 0 : index
    %c0_0 = arith.constant 0 : index
    %0 = vector.load %arg1[%c0, %c0_0] : memref<512x128xbf16, #tpu.memory_space<vmem>>, vector<512x128xbf16>
    %c0_1 = arith.constant 0 : index
    %c0_2 = arith.constant 0 : index
    %1 = vector.load %arg2[%c0_1, %c0_2] : memref<128x128xbf16, #tpu.memory_space<vmem>>, vector<128x128xbf16>
    %cst = arith.constant dense<0.000000e+00> : vector<512x128xf32>
    %2 = tpu.matmul %0, %1, %cst {dimension_numbers = #tpu.dot_dimension_numbers<[1], [0], [0], [1], [0, 0, 1, 1], [], []>} : vector<512x128xbf16>, vector<128x128xbf16>, vector<512x128xf32> -> vector<512x128xf32>
    %c0_3 = arith.constant 0 : index
    %c0_4 = arith.constant 0 : index
    %3 = vector.load %arg3[%c0_3, %c0_4] : memref<512x128xf32, #tpu.memory_space<vmem>>, vector<512x128xf32>
    tpu.vector_store %arg3[%c0_3, %c0_4], %2 {strides = array<i32>} : memref<512x128xf32, #tpu.memory_space<vmem>>, vector<512x128xf32>,
    return
  }
  func.func @transform_0(%arg0: i32) -> (i32, i32) {
    %c0_i32 = arith.constant 0 : i32
    %c0_i32_0 = arith.constant 0 : i32
    return %arg0, %c0_i32 : i32, i32
  }
  func.func @transform_1(%arg0: i32) -> (i32, i32) {
    %c0_i32 = arith.constant 0 : i32
    %c0_i32_0 = arith.constant 0 : i32
    %c0_i32_1 = arith.constant 0 : i32
    return %c0_i32, %c0_i32_0 : i32, i32
  }
  func.func @transform_2(%arg0: i32) -> (i32, i32) {
    %c0_i32 = arith.constant 0 : i32
    %c0_i32_0 = arith.constant 0 : i32
    return %arg0, %c0_i32 : i32, i32
  }
}

module attributes {stable_mosaic.version = 11 : i64} {
  func.func @_mm_kernel(%arg0: i32, %arg1: memref<512x640xbf16, #tpu.memory_space<vmem>>, %arg2: memref<640x128xbf16, #tpu.memory_space<vmem>>, %arg3: memref<512x128xf32, #tpu.memory_space<vmem>>) attributes {dimension_semantics = [#tpu.dimension_semantics<parallel>], iteration_bounds = array<i64: 1>, scalar_prefetch = 0 : i64, scratch_operands = 0 : i64, tpu.core_type = #tpu.core_type<tc>, window_params = [{transform_indices = @transform_0, window_bounds = array<i64: 512, 640>}, {pipeline_mode = #tpu.pipeline_mode<synchronous>, transform_indices = @transform_1, window_bounds = array<i64: 640, 128>}, {transform_indices = @transform_2, window_bounds = array<i64: 512, 128>}]} {
    %c0 = arith.constant 0 : index
    %c0_0 = arith.constant 0 : index
    %0 = vector.load %arg1[%c0, %c0_0] : memref<512x640xbf16, #tpu.memory_space<vmem>>, vector<512x640xbf16>
    %c0_1 = arith.constant 0 : index
    %c0_2 = arith.constant 0 : index
    %1 = vector.load %arg2[%c0_1, %c0_2] : memref<640x128xbf16, #tpu.memory_space<vmem>>, vector<640x128xbf16>
    %cst = arith.constant dense<0.000000e+00> : vector<512x128xf32>
    %2 = tpu.matmul %0, %1, %cst {dimension_numbers = #tpu.dot_dimension_numbers<[1], [0], [0], [1], [0, 0, 1, 1], [], []>} : vector<512x640xbf16>, vector<640x128xbf16>, vector<512x128xf32> -> vector<512x128xf32>
    %c0_3 = arith.constant 0 : index
    %c0_4 = arith.constant 0 : index
    %3 = vector.load %arg3[%c0_3, %c0_4] : memref<512x128xf32, #tpu.memory_space<vmem>>, vector<512x128xf32>
    tpu.vector_store %arg3[%c0_3, %c0_4], %2 {strides = array<i32>} : memref<512x128xf32, #tpu.memory_space<vmem>>, vector<512x128xf32>,
    return
  }
  func.func @transform_0(%arg0: i32) -> (i32, i32) {
    %c0_i32 = arith.constant 0 : i32
    %c0_i32_0 = arith.constant 0 : i32
    return %arg0, %c0_i32 : i32, i32
  }
  func.func @transform_1(%arg0: i32) -> (i32, i32) {
    %c0_i32 = arith.constant 0 : i32
    %c0_i32_0 = arith.constant 0 : i32
    %c0_i32_1 = arith.constant 0 : i32
    return %c0_i32, %c0_i32_0 : i32, i32
  }
  func.func @transform_2(%arg0: i32) -> (i32, i32) {
    %c0_i32 = arith.constant 0 : i32
    %c0_i32_0 = arith.constant 0 : i32
    return %arg0, %c0_i32 : i32, i32
  }
}

module attributes {stable_mosaic.version = 11 : i64} {
  func.func @_mm_bias_kernel(%arg0: i32, %arg1: memref<512x640xbf16, #tpu.memory_space<vmem>>, %arg2: memref<640x128xbf16, #tpu.memory_space<vmem>>, %arg3: memref<1x128xf32, #tpu.memory_space<vmem>>, %arg4: memref<512x128xf32, #tpu.memory_space<vmem>>) attributes {dimension_semantics = [#tpu.dimension_semantics<parallel>], iteration_bounds = array<i64: 1>, scalar_prefetch = 0 : i64, scratch_operands = 0 : i64, tpu.core_type = #tpu.core_type<tc>, window_params = [{transform_indices = @transform_0, window_bounds = array<i64: 512, 640>}, {pipeline_mode = #tpu.pipeline_mode<synchronous>, transform_indices = @transform_1, window_bounds = array<i64: 640, 128>}, {pipeline_mode = #tpu.pipeline_mode<synchronous>, transform_indices = @transform_2, window_bounds = array<i64: 1, 128>}, {transform_indices = @transform_3, window_bounds = array<i64: 512, 128>}]} {
    %c0 = arith.constant 0 : index
    %c0_0 = arith.constant 0 : index
    %0 = vector.load %arg1[%c0, %c0_0] : memref<512x640xbf16, #tpu.memory_space<vmem>>, vector<512x640xbf16>
    %c0_1 = arith.constant 0 : index
    %c0_2 = arith.constant 0 : index
    %1 = vector.load %arg2[%c0_1, %c0_2] : memref<640x128xbf16, #tpu.memory_space<vmem>>, vector<640x128xbf16>
    %cst = arith.constant dense<0.000000e+00> : vector<512x128xf32>
    %2 = tpu.matmul %0, %1, %cst {dimension_numbers = #tpu.dot_dimension_numbers<[1], [0], [0], [1], [0, 0, 1, 1], [], []>} : vector<512x640xbf16>, vector<640x128xbf16>, vector<512x128xf32> -> vector<512x128xf32>
    %c0_3 = arith.constant 0 : index
    %c0_4 = arith.constant 0 : index
    %3 = vector.load %arg3[%c0_3, %c0_4] : memref<1x128xf32, #tpu.memory_space<vmem>>, vector<1x128xf32>
    %4 = vector.broadcast %3 : vector<1x128xf32> to vector<512x128xf32>
    %5 = arith.addf %2, %4 : vector<512x128xf32>
    %c0_5 = arith.constant 0 : index
    %c0_6 = arith.constant 0 : index
    %6 = vector.load %arg4[%c0_5, %c0_6] : memref<512x128xf32, #tpu.memory_space<vmem>>, vector<512x128xf32>
    tpu.vector_store %arg4[%c0_5, %c0_6], %5 {strides = array<i32>} : memref<512x128xf32, #tpu.memory_space<vmem>>, vector<512x128xf32>,
    return
  }
  func.func @transform_0(%arg0: i32) -> (i32, i32) {
    %c0_i32 = arith.constant 0 : i32
    %c0_i32_0 = arith.constant 0 : i32
    return %arg0, %c0_i32 : i32, i32
  }
  func.func @transform_1(%arg0: i32) -> (i32, i32) {
    %c0_i32 = arith.constant 0 : i32
    %c0_i32_0 = arith.constant 0 : i32
    %c0_i32_1 = arith.constant 0 : i32
    return %c0_i32, %c0_i32_0 : i32, i32
  }
  func.func @transform_2(%arg0: i32) -> (i32, i32) {
    %c0_i32 = arith.constant 0 : i32
    %c0_i32_0 = arith.constant 0 : i32
    %c0_i32_1 = arith.constant 0 : i32
    return %c0_i32, %c0_i32_0 : i32, i32
  }
  func.func @transform_3(%arg0: i32) -> (i32, i32) {
    %c0_i32 = arith.constant 0 : i32
    %c0_i32_0 = arith.constant 0 : i32
    return %arg0, %c0_i32 : i32, i32
  }
}

module attributes {stable_mosaic.version = 11 : i64} {
  func.func @_mm_bias_kernel(%arg0: i32, %arg1: memref<512x128xbf16, #tpu.memory_space<vmem>>, %arg2: memref<128x128xbf16, #tpu.memory_space<vmem>>, %arg3: memref<1x128xf32, #tpu.memory_space<vmem>>, %arg4: memref<512x128xf32, #tpu.memory_space<vmem>>) attributes {dimension_semantics = [#tpu.dimension_semantics<parallel>], iteration_bounds = array<i64: 1>, scalar_prefetch = 0 : i64, scratch_operands = 0 : i64, tpu.core_type = #tpu.core_type<tc>, window_params = [{transform_indices = @transform_0, window_bounds = array<i64: 512, 128>}, {pipeline_mode = #tpu.pipeline_mode<synchronous>, transform_indices = @transform_1, window_bounds = array<i64: 128, 128>}, {pipeline_mode = #tpu.pipeline_mode<synchronous>, transform_indices = @transform_2, window_bounds = array<i64: 1, 128>}, {transform_indices = @transform_3, window_bounds = array<i64: 512, 128>}]} {
    %c0 = arith.constant 0 : index
    %c0_0 = arith.constant 0 : index
    %0 = vector.load %arg1[%c0, %c0_0] : memref<512x128xbf16, #tpu.memory_space<vmem>>, vector<512x128xbf16>
    %c0_1 = arith.constant 0 : index
    %c0_2 = arith.constant 0 : index
    %1 = vector.load %arg2[%c0_1, %c0_2] : memref<128x128xbf16, #tpu.memory_space<vmem>>, vector<128x128xbf16>
    %cst = arith.constant dense<0.000000e+00> : vector<512x128xf32>
    %2 = tpu.matmul %0, %1, %cst {dimension_numbers = #tpu.dot_dimension_numbers<[1], [0], [0], [1], [0, 0, 1, 1], [], []>} : vector<512x128xbf16>, vector<128x128xbf16>, vector<512x128xf32> -> vector<512x128xf32>
    %c0_3 = arith.constant 0 : index
    %c0_4 = arith.constant 0 : index
    %3 = vector.load %arg3[%c0_3, %c0_4] : memref<1x128xf32, #tpu.memory_space<vmem>>, vector<1x128xf32>
    %4 = vector.broadcast %3 : vector<1x128xf32> to vector<512x128xf32>
    %5 = arith.addf %2, %4 : vector<512x128xf32>
    %c0_5 = arith.constant 0 : index
    %c0_6 = arith.constant 0 : index
    %6 = vector.load %arg4[%c0_5, %c0_6] : memref<512x128xf32, #tpu.memory_space<vmem>>, vector<512x128xf32>
    tpu.vector_store %arg4[%c0_5, %c0_6], %5 {strides = array<i32>} : memref<512x128xf32, #tpu.memory_space<vmem>>, vector<512x128xf32>,
    return
  }
  func.func @transform_0(%arg0: i32) -> (i32, i32) {
    %c0_i32 = arith.constant 0 : i32
    %c0_i32_0 = arith.constant 0 : i32
    return %arg0, %c0_i32 : i32, i32
  }
  func.func @transform_1(%arg0: i32) -> (i32, i32) {
    %c0_i32 = arith.constant 0 : i32
    %c0_i32_0 = arith.constant 0 : i32
    %c0_i32_1 = arith.constant 0 : i32
    return %c0_i32, %c0_i32_0 : i32, i32
  }
  func.func @transform_2(%arg0: i32) -> (i32, i32) {
    %c0_i32 = arith.constant 0 : i32
    %c0_i32_0 = arith.constant 0 : i32
    %c0_i32_1 = arith.constant 0 : i32
    return %c0_i32, %c0_i32_0 : i32, i32
  }
  func.func @transform_3(%arg0: i32) -> (i32, i32) {
    %c0_i32 = arith.constant 0 : i32
    %c0_i32_0 = arith.constant 0 : i32
    return %arg0, %c0_i32 : i32, i32
  }
}

module attributes {stable_mosaic.version = 11 : i64} {
  func.func @_mm_bias_kernel(%arg0: i32, %arg1: memref<128x1152xbf16, #tpu.memory_space<vmem>>, %arg2: memref<1152x256xbf16, #tpu.memory_space<vmem>>, %arg3: memref<1x256xf32, #tpu.memory_space<vmem>>, %arg4: memref<128x256xf32, #tpu.memory_space<vmem>>) attributes {dimension_semantics = [#tpu.dimension_semantics<parallel>], iteration_bounds = array<i64: 1>, scalar_prefetch = 0 : i64, scratch_operands = 0 : i64, tpu.core_type = #tpu.core_type<tc>, window_params = [{transform_indices = @transform_0, window_bounds = array<i64: 128, 1152>}, {pipeline_mode = #tpu.pipeline_mode<synchronous>, transform_indices = @transform_1, window_bounds = array<i64: 1152, 256>}, {pipeline_mode = #tpu.pipeline_mode<synchronous>, transform_indices = @transform_2, window_bounds = array<i64: 1, 256>}, {transform_indices = @transform_3, window_bounds = array<i64: 128, 256>}]} {
    %c0 = arith.constant 0 : index
    %c0_0 = arith.constant 0 : index
    %0 = vector.load %arg1[%c0, %c0_0] : memref<128x1152xbf16, #tpu.memory_space<vmem>>, vector<128x1152xbf16>
    %c0_1 = arith.constant 0 : index
    %c0_2 = arith.constant 0 : index
    %1 = vector.load %arg2[%c0_1, %c0_2] : memref<1152x256xbf16, #tpu.memory_space<vmem>>, vector<1152x256xbf16>
    %cst = arith.constant dense<0.000000e+00> : vector<128x256xf32>
    %2 = tpu.matmul %0, %1, %cst {dimension_numbers = #tpu.dot_dimension_numbers<[1], [0], [0], [1], [0, 0, 1, 1], [], []>} : vector<128x1152xbf16>, vector<1152x256xbf16>, vector<128x256xf32> -> vector<128x256xf32>
    %c0_3 = arith.constant 0 : index
    %c0_4 = arith.constant 0 : index
    %3 = vector.load %arg3[%c0_3, %c0_4] : memref<1x256xf32, #tpu.memory_space<vmem>>, vector<1x256xf32>
    %4 = vector.broadcast %3 : vector<1x256xf32> to vector<128x256xf32>
    %5 = arith.addf %2, %4 : vector<128x256xf32>
    %c0_5 = arith.constant 0 : index
    %c0_6 = arith.constant 0 : index
    %6 = vector.load %arg4[%c0_5, %c0_6] : memref<128x256xf32, #tpu.memory_space<vmem>>, vector<128x256xf32>
    tpu.vector_store %arg4[%c0_5, %c0_6], %5 {strides = array<i32>} : memref<128x256xf32, #tpu.memory_space<vmem>>, vector<128x256xf32>,
    return
  }
  func.func @transform_0(%arg0: i32) -> (i32, i32) {
    %c0_i32 = arith.constant 0 : i32
    %c0_i32_0 = arith.constant 0 : i32
    return %arg0, %c0_i32 : i32, i32
  }
  func.func @transform_1(%arg0: i32) -> (i32, i32) {
    %c0_i32 = arith.constant 0 : i32
    %c0_i32_0 = arith.constant 0 : i32
    %c0_i32_1 = arith.constant 0 : i32
    return %c0_i32, %c0_i32_0 : i32, i32
  }
  func.func @transform_2(%arg0: i32) -> (i32, i32) {
    %c0_i32 = arith.constant 0 : i32
    %c0_i32_0 = arith.constant 0 : i32
    %c0_i32_1 = arith.constant 0 : i32
    return %c0_i32, %c0_i32_0 : i32, i32
  }
  func.func @transform_3(%arg0: i32) -> (i32, i32) {
    %c0_i32 = arith.constant 0 : i32
    %c0_i32_0 = arith.constant 0 : i32
    return %arg0, %c0_i32 : i32, i32
  }
}

module attributes {stable_mosaic.version = 11 : i64} {
  func.func @_mm_bias_kernel(%arg0: i32, %arg1: memref<32x1152xbf16, #tpu.memory_space<vmem>>, %arg2: memref<1152x128xbf16, #tpu.memory_space<vmem>>, %arg3: memref<1x128xf32, #tpu.memory_space<vmem>>, %arg4: memref<32x128xf32, #tpu.memory_space<vmem>>) attributes {dimension_semantics = [#tpu.dimension_semantics<parallel>], iteration_bounds = array<i64: 1>, scalar_prefetch = 0 : i64, scratch_operands = 0 : i64, tpu.core_type = #tpu.core_type<tc>, window_params = [{transform_indices = @transform_0, window_bounds = array<i64: 32, 1152>}, {pipeline_mode = #tpu.pipeline_mode<synchronous>, transform_indices = @transform_1, window_bounds = array<i64: 1152, 128>}, {pipeline_mode = #tpu.pipeline_mode<synchronous>, transform_indices = @transform_2, window_bounds = array<i64: 1, 128>}, {transform_indices = @transform_3, window_bounds = array<i64: 32, 128>}]} {
    %c0 = arith.constant 0 : index
    %c0_0 = arith.constant 0 : index
    %0 = vector.load %arg1[%c0, %c0_0] : memref<32x1152xbf16, #tpu.memory_space<vmem>>, vector<32x1152xbf16>
    %c0_1 = arith.constant 0 : index
    %c0_2 = arith.constant 0 : index
    %1 = vector.load %arg2[%c0_1, %c0_2] : memref<1152x128xbf16, #tpu.memory_space<vmem>>, vector<1152x128xbf16>
    %cst = arith.constant dense<0.000000e+00> : vector<32x128xf32>
    %2 = tpu.matmul %0, %1, %cst {dimension_numbers = #tpu.dot_dimension_numbers<[1], [0], [0], [1], [0, 0, 1, 1], [], []>} : vector<32x1152xbf16>, vector<1152x128xbf16>, vector<32x128xf32> -> vector<32x128xf32>
    %c0_3 = arith.constant 0 : index
    %c0_4 = arith.constant 0 : index
    %3 = vector.load %arg3[%c0_3, %c0_4] : memref<1x128xf32, #tpu.memory_space<vmem>>, vector<1x128xf32>
    %4 = vector.broadcast %3 : vector<1x128xf32> to vector<32x128xf32>
    %5 = arith.addf %2, %4 : vector<32x128xf32>
    %c0_5 = arith.constant 0 : index
    %c0_6 = arith.constant 0 : index
    %6 = vector.load %arg4[%c0_5, %c0_6] : memref<32x128xf32, #tpu.memory_space<vmem>>, vector<32x128xf32>
    tpu.vector_store %arg4[%c0_5, %c0_6], %5 {strides = array<i32>} : memref<32x128xf32, #tpu.memory_space<vmem>>, vector<32x128xf32>,
    return
  }
  func.func @transform_0(%arg0: i32) -> (i32, i32) {
    %c0_i32 = arith.constant 0 : i32
    %c0_i32_0 = arith.constant 0 : i32
    return %arg0, %c0_i32 : i32, i32
  }
  func.func @transform_1(%arg0: i32) -> (i32, i32) {
    %c0_i32 = arith.constant 0 : i32
    %c0_i32_0 = arith.constant 0 : i32
    %c0_i32_1 = arith.constant 0 : i32
    return %c0_i32, %c0_i32_0 : i32, i32
  }
  func.func @transform_2(%arg0: i32) -> (i32, i32) {
    %c0_i32 = arith.constant 0 : i32
    %c0_i32_0 = arith.constant 0 : i32
    %c0_i32_1 = arith.constant 0 : i32
    return %c0_i32, %c0_i32_0 : i32, i32
  }
  func.func @transform_3(%arg0: i32) -> (i32, i32) {
    %c0_i32 = arith.constant 0 : i32
    %c0_i32_0 = arith.constant 0 : i32
    return %arg0, %c0_i32 : i32, i32
  }
}

module attributes {stable_mosaic.version = 11 : i64} {
  func.func @_mm_bias_kernel(%arg0: i32, %arg1: memref<16x1152xbf16, #tpu.memory_space<vmem>>, %arg2: memref<1152x128xbf16, #tpu.memory_space<vmem>>, %arg3: memref<1x128xf32, #tpu.memory_space<vmem>>, %arg4: memref<16x128xf32, #tpu.memory_space<vmem>>) attributes {dimension_semantics = [#tpu.dimension_semantics<parallel>], iteration_bounds = array<i64: 1>, scalar_prefetch = 0 : i64, scratch_operands = 0 : i64, tpu.core_type = #tpu.core_type<tc>, window_params = [{transform_indices = @transform_0, window_bounds = array<i64: 16, 1152>}, {pipeline_mode = #tpu.pipeline_mode<synchronous>, transform_indices = @transform_1, window_bounds = array<i64: 1152, 128>}, {pipeline_mode = #tpu.pipeline_mode<synchronous>, transform_indices = @transform_2, window_bounds = array<i64: 1, 128>}, {transform_indices = @transform_3, window_bounds = array<i64: 16, 128>}]} {
    %c0 = arith.constant 0 : index
    %c0_0 = arith.constant 0 : index
    %0 = vector.load %arg1[%c0, %c0_0] : memref<16x1152xbf16, #tpu.memory_space<vmem>>, vector<16x1152xbf16>
    %c0_1 = arith.constant 0 : index
    %c0_2 = arith.constant 0 : index
    %1 = vector.load %arg2[%c0_1, %c0_2] : memref<1152x128xbf16, #tpu.memory_space<vmem>>, vector<1152x128xbf16>
    %cst = arith.constant dense<0.000000e+00> : vector<16x128xf32>
    %2 = tpu.matmul %0, %1, %cst {dimension_numbers = #tpu.dot_dimension_numbers<[1], [0], [0], [1], [0, 0, 1, 1], [], []>} : vector<16x1152xbf16>, vector<1152x128xbf16>, vector<16x128xf32> -> vector<16x128xf32>
    %c0_3 = arith.constant 0 : index
    %c0_4 = arith.constant 0 : index
    %3 = vector.load %arg3[%c0_3, %c0_4] : memref<1x128xf32, #tpu.memory_space<vmem>>, vector<1x128xf32>
    %4 = vector.broadcast %3 : vector<1x128xf32> to vector<16x128xf32>
    %5 = arith.addf %2, %4 : vector<16x128xf32>
    %c0_5 = arith.constant 0 : index
    %c0_6 = arith.constant 0 : index
    %6 = vector.load %arg4[%c0_5, %c0_6] : memref<16x128xf32, #tpu.memory_space<vmem>>, vector<16x128xf32>
    tpu.vector_store %arg4[%c0_5, %c0_6], %5 {strides = array<i32>} : memref<16x128xf32, #tpu.memory_space<vmem>>, vector<16x128xf32>,
    return
  }
  func.func @transform_0(%arg0: i32) -> (i32, i32) {
    %c0_i32 = arith.constant 0 : i32
    %c0_i32_0 = arith.constant 0 : i32
    return %arg0, %c0_i32 : i32, i32
  }
  func.func @transform_1(%arg0: i32) -> (i32, i32) {
    %c0_i32 = arith.constant 0 : i32
    %c0_i32_0 = arith.constant 0 : i32
    %c0_i32_1 = arith.constant 0 : i32
    return %c0_i32, %c0_i32_0 : i32, i32
  }
  func.func @transform_2(%arg0: i32) -> (i32, i32) {
    %c0_i32 = arith.constant 0 : i32
    %c0_i32_0 = arith.constant 0 : i32
    %c0_i32_1 = arith.constant 0 : i32
    return %c0_i32, %c0_i32_0 : i32, i32
  }
  func.func @transform_3(%arg0: i32) -> (i32, i32) {
    %c0_i32 = arith.constant 0 : i32
    %c0_i32_0 = arith.constant 0 : i32
    return %arg0, %c0_i32 : i32, i32
  }
}

module attributes {stable_mosaic.version = 11 : i64} {
  func.func @_mm_bias_tanh_kernel(%arg0: i32, %arg1: memref<16x1152xbf16, #tpu.memory_space<vmem>>, %arg2: memref<1152x128xbf16, #tpu.memory_space<vmem>>, %arg3: memref<1x128xf32, #tpu.memory_space<vmem>>, %arg4: memref<16x128xf32, #tpu.memory_space<vmem>>) attributes {dimension_semantics = [#tpu.dimension_semantics<parallel>], iteration_bounds = array<i64: 1>, scalar_prefetch = 0 : i64, scratch_operands = 0 : i64, tpu.core_type = #tpu.core_type<tc>, window_params = [{transform_indices = @transform_0, window_bounds = array<i64: 16, 1152>}, {pipeline_mode = #tpu.pipeline_mode<synchronous>, transform_indices = @transform_1, window_bounds = array<i64: 1152, 128>}, {pipeline_mode = #tpu.pipeline_mode<synchronous>, transform_indices = @transform_2, window_bounds = array<i64: 1, 128>}, {transform_indices = @transform_3, window_bounds = array<i64: 16, 128>}]} {
    %c0 = arith.constant 0 : index
    %c0_0 = arith.constant 0 : index
    %0 = vector.load %arg1[%c0, %c0_0] : memref<16x1152xbf16, #tpu.memory_space<vmem>>, vector<16x1152xbf16>
    %c0_1 = arith.constant 0 : index
    %c0_2 = arith.constant 0 : index
    %1 = vector.load %arg2[%c0_1, %c0_2] : memref<1152x128xbf16, #tpu.memory_space<vmem>>, vector<1152x128xbf16>
    %cst = arith.constant dense<0.000000e+00> : vector<16x128xf32>
    %2 = tpu.matmul %0, %1, %cst {dimension_numbers = #tpu.dot_dimension_numbers<[1], [0], [0], [1], [0, 0, 1, 1], [], []>} : vector<16x1152xbf16>, vector<1152x128xbf16>, vector<16x128xf32> -> vector<16x128xf32>
    %c0_3 = arith.constant 0 : index
    %c0_4 = arith.constant 0 : index
    %3 = vector.load %arg3[%c0_3, %c0_4] : memref<1x128xf32, #tpu.memory_space<vmem>>, vector<1x128xf32>
    %4 = vector.broadcast %3 : vector<1x128xf32> to vector<16x128xf32>
    %5 = arith.addf %2, %4 : vector<16x128xf32>
    %6 = math.tanh %5 : vector<16x128xf32>
    %cst_5 = arith.constant 6.250000e-02 : f32
    %7 = vector.broadcast %cst_5 : f32 to vector<16x128xf32>
    %8 = arith.mulf %6, %7 : vector<16x128xf32>
    %c0_6 = arith.constant 0 : index
    %c0_7 = arith.constant 0 : index
    %9 = vector.load %arg4[%c0_6, %c0_7] : memref<16x128xf32, #tpu.memory_space<vmem>>, vector<16x128xf32>
    tpu.vector_store %arg4[%c0_6, %c0_7], %8 {strides = array<i32>} : memref<16x128xf32, #tpu.memory_space<vmem>>, vector<16x128xf32>,
    return
  }
  func.func @transform_0(%arg0: i32) -> (i32, i32) {
    %c0_i32 = arith.constant 0 : i32
    %c0_i32_0 = arith.constant 0 : i32
    return %arg0, %c0_i32 : i32, i32
  }
  func.func @transform_1(%arg0: i32) -> (i32, i32) {
    %c0_i32 = arith.constant 0 : i32
    %c0_i32_0 = arith.constant 0 : i32
    %c0_i32_1 = arith.constant 0 : i32
    return %c0_i32, %c0_i32_0 : i32, i32
  }
  func.func @transform_2(%arg0: i32) -> (i32, i32) {
    %c0_i32 = arith.constant 0 : i32
    %c0_i32_0 = arith.constant 0 : i32
    %c0_i32_1 = arith.constant 0 : i32
    return %c0_i32, %c0_i32_0 : i32, i32
  }
  func.func @transform_3(%arg0: i32) -> (i32, i32) {
    %c0_i32 = arith.constant 0 : i32
    %c0_i32_0 = arith.constant 0 : i32
    return %arg0, %c0_i32 : i32, i32
  }
}

module attributes {stable_mosaic.version = 11 : i64} {
  func.func @_mm_bias_tanh_kernel(%arg0: i32, %arg1: memref<128x1152xbf16, #tpu.memory_space<vmem>>, %arg2: memref<1152x128xbf16, #tpu.memory_space<vmem>>, %arg3: memref<1x128xf32, #tpu.memory_space<vmem>>, %arg4: memref<128x128xf32, #tpu.memory_space<vmem>>) attributes {dimension_semantics = [#tpu.dimension_semantics<parallel>], iteration_bounds = array<i64: 1>, scalar_prefetch = 0 : i64, scratch_operands = 0 : i64, tpu.core_type = #tpu.core_type<tc>, window_params = [{transform_indices = @transform_0, window_bounds = array<i64: 128, 1152>}, {pipeline_mode = #tpu.pipeline_mode<synchronous>, transform_indices = @transform_1, window_bounds = array<i64: 1152, 128>}, {pipeline_mode = #tpu.pipeline_mode<synchronous>, transform_indices = @transform_2, window_bounds = array<i64: 1, 128>}, {transform_indices = @transform_3, window_bounds = array<i64: 128, 128>}]} {
    %c0 = arith.constant 0 : index
    %c0_0 = arith.constant 0 : index
    %0 = vector.load %arg1[%c0, %c0_0] : memref<128x1152xbf16, #tpu.memory_space<vmem>>, vector<128x1152xbf16>
    %c0_1 = arith.constant 0 : index
    %c0_2 = arith.constant 0 : index
    %1 = vector.load %arg2[%c0_1, %c0_2] : memref<1152x128xbf16, #tpu.memory_space<vmem>>, vector<1152x128xbf16>
    %cst = arith.constant dense<0.000000e+00> : vector<128x128xf32>
    %2 = tpu.matmul %0, %1, %cst {dimension_numbers = #tpu.dot_dimension_numbers<[1], [0], [0], [1], [0, 0, 1, 1], [], []>} : vector<128x1152xbf16>, vector<1152x128xbf16>, vector<128x128xf32> -> vector<128x128xf32>
    %c0_3 = arith.constant 0 : index
    %c0_4 = arith.constant 0 : index
    %3 = vector.load %arg3[%c0_3, %c0_4] : memref<1x128xf32, #tpu.memory_space<vmem>>, vector<1x128xf32>
    %4 = vector.broadcast %3 : vector<1x128xf32> to vector<128x128xf32>
    %5 = arith.addf %2, %4 : vector<128x128xf32>
    %6 = math.tanh %5 : vector<128x128xf32>
    %cst_5 = arith.constant 2.343750e-02 : f32
    %7 = vector.broadcast %cst_5 : f32 to vector<128x128xf32>
    %8 = arith.mulf %6, %7 : vector<128x128xf32>
    %c0_6 = arith.constant 0 : index
    %c0_7 = arith.constant 0 : index
    %9 = vector.load %arg4[%c0_6, %c0_7] : memref<128x128xf32, #tpu.memory_space<vmem>>, vector<128x128xf32>
    tpu.vector_store %arg4[%c0_6, %c0_7], %8 {strides = array<i32>} : memref<128x128xf32, #tpu.memory_space<vmem>>, vector<128x128xf32>,
    return
  }
  func.func @transform_0(%arg0: i32) -> (i32, i32) {
    %c0_i32 = arith.constant 0 : i32
    %c0_i32_0 = arith.constant 0 : i32
    return %arg0, %c0_i32 : i32, i32
  }
  func.func @transform_1(%arg0: i32) -> (i32, i32) {
    %c0_i32 = arith.constant 0 : i32
    %c0_i32_0 = arith.constant 0 : i32
    %c0_i32_1 = arith.constant 0 : i32
    return %c0_i32, %c0_i32_0 : i32, i32
  }
  func.func @transform_2(%arg0: i32) -> (i32, i32) {
    %c0_i32 = arith.constant 0 : i32
    %c0_i32_0 = arith.constant 0 : i32
    %c0_i32_1 = arith.constant 0 : i32
    return %c0_i32, %c0_i32_0 : i32, i32
  }
  func.func @transform_3(%arg0: i32) -> (i32, i32) {
    %c0_i32 = arith.constant 0 : i32
    %c0_i32_0 = arith.constant 0 : i32
    return %arg0, %c0_i32 : i32, i32
  }
}

</mosaic_0001>

<llo_original>
// kernel: _lambda_.9
$region0: #{_lambda_.9}
  #allocation0 [shape = 'u32[]', space=smem, size = 0x4, offset = 0x4, fixed_abs, tag = 'smem constant byte address 0x4 - core index']
  #allocation1 [shape = 'u32[144,128]{1,0:T(1,128)}', space=vmem, size = 0x12000, scoped, tag = 'internal scratch']
  %s0 = inlined_call_operand.vmem [shape: bf16[512,128], index: 0, kind: input, shape index: {}]
  %s1 = inlined_call_operand.vmem [shape: bf16[128,128], index: 1, kind: input, shape index: {}]
  %s2 = inlined_call_operand.vmem [shape: f32[512,128], index: 2, kind: output, shape index: {}]
  %s3 = sld [smem:[#allocation0]]
  $region18: #{_lambda_.9} parent=0
    _
  %s5 = ssub.s32 1, %s3
  %s6 = scalar_select 0, %s5, %s3
  // Predicated region
  $region2: #{_lambda_.9} parent=0 // pred_check
    _
  $region3: #{_lambda_.9} parent=0 // pred_check_branch
    %8 = sbr.rel (0) target = $region5
  $region4: #{_lambda_.9} parent=0 // pred_region
    _
  $region5: #{_lambda_.9} parent=0 // pred_fallthru
    _
  // Predicated region
  $region6: #{_lambda_.9} parent=0 // pred_check
    _
  $region7: #{_lambda_.9} parent=0 // pred_check_branch
    %10 = sbr.rel (0) target = $region9
  $region8: #{_lambda_.9} parent=0 // pred_region
    _
  $region9: #{_lambda_.9} parent=0 // pred_fallthru
    _
  %v12 = vld [vmem:[%s0] sm:$0xf]
  %v13 = vld [vmem:[%s0 + $0x4] sm:$0xf]
  %v14 = vld [vmem:[%s0 + $0x8] sm:$0xf]
  %v15 = vld [vmem:[%s0 + $0xc] sm:$0xf]
  %v16 = vld [vmem:[%s0 + $0x10] sm:$0xf]
  %v17 = vld [vmem:[%s0 + $0x14] sm:$0xf]
  %v18 = vld [vmem:[%s0 + $0x18] sm:$0xf]
  %v19 = vld [vmem:[%s0 + $0x1c] sm:$0xf]
  %v20 = vld [vmem:[%s0 + $0x20] sm:$0xf]
  %v21 = vld [vmem:[%s0 + $0x24] sm:$0xf]
  %v22 = vld [vmem:[%s0 + $0x28] sm:$0xf]
  %v23 = vld [vmem:[%s0 + $0x2c] sm:$0xf]
  %v24 = vld [vmem:[%s0 + $0x30] sm:$0xf]
  %v25 = vld [vmem:[%s0 + $0x34] sm:$0xf]
  %v26 = vld [vmem:[%s0 + $0x38] sm:$0xf]
  %v27 = vld [vmem:[%s0 + $0x3c] sm:$0xf]
  %v28 = vld [vmem:[%s0 + $0x40] sm:$0xf]
  %v29 = vld [vmem:[%s0 + $0x44] sm:$0xf]
  %v30 = vld [vmem:[%s0 + $0x48] sm:$0xf]
  %v31 = vld [vmem:[%s0 + $0x4c] sm:$0xf]
  %v32 = vld [vmem:[%s0 + $0x50] sm:$0xf]
  %v33 = vld [vmem:[%s0 + $0x54] sm:$0xf]
  %v34 = vld [vmem:[%s0 + $0x58] sm:$0xf]
  %v35 = vld [vmem:[%s0 + $0x5c] sm:$0xf]
  %v36 = vld [vmem:[%s0 + $0x60] sm:$0xf]
  %v37 = vld [vmem:[%s0 + $0x64] sm:$0xf]
  %v38 = vld [vmem:[%s0 + $0x68] sm:$0xf]
  %v39 = vld [vmem:[%s0 + $0x6c] sm:$0xf]
  %v40 = vld [vmem:[%s0 + $0x70] sm:$0xf]
  %v41 = vld [vmem:[%s0 + $0x74] sm:$0xf]
  %v42 = vld [vmem:[%s0 + $0x78] sm:$0xf]
  %v43 = vld [vmem:[%s0 + $0x7c] sm:$0xf]
  %v44 = vld [vmem:[%s0 + $0x80] sm:$0xf]
  %v45 = vld [vmem:[%s0 + $0x84] sm:$0xf]
  %v46 = vld [vmem:[%s0 + $0x88] sm:$0xf]
  %v47 = vld [vmem:[%s0 + $0x8c] sm:$0xf]
  %v48 = vld [vmem:[%s0 + $0x90] sm:$0xf]
  %v49 = vld [vmem:[%s0 + $0x94] sm:$0xf]
  %v50 = vld [vmem:[%s0 + $0x98] sm:$0xf]
  %v51 = vld [vmem:[%s0 + $0x9c] sm:$0xf]
  %v52 = vld [vmem:[%s0 + $0xa0] sm:$0xf]
  %v53 = vld [vmem:[%s0 + $0xa4] sm:$0xf]
  %v54 = vld [vmem:[%s0 + $0xa8] sm:$0xf]
  %v55 = vld [vmem:[%s0 + $0xac] sm:$0xf]
  %v56 = vld [vmem:[%s0 + $0xb0] sm:$0xf]
  %v57 = vld [vmem:[%s0 + $0xb4] sm:$0xf]
  %v58 = vld [vmem:[%s0 + $0xb8] sm:$0xf]
  %v59 = vld [vmem:[%s0 + $0xbc] sm:$0xf]
  %v60 = vld [vmem:[%s0 + $0xc0] sm:$0xf]
  %v61 = vld [vmem:[%s0 + $0xc4] sm:$0xf]
  %v62 = vld [vmem:[%s0 + $0xc8] sm:$0xf]
  %v63 = vld [vmem:[%s0 + $0xcc] sm:$0xf]
  %v64 = vld [vmem:[%s0 + $0xd0] sm:$0xf]
  %v65 = vld [vmem:[%s0 + $0xd4] sm:$0xf]
  %v66 = vld [vmem:[%s0 + $0xd8] sm:$0xf]
  %v67 = vld [vmem:[%s0 + $0xdc] sm:$0xf]
  %v68 = vld [vmem:[%s0 + $0xe0] sm:$0xf]
  %v69 = vld [vmem:[%s0 + $0xe4] sm:$0xf]
  %v70 = vld [vmem:[%s0 + $0xe8] sm:$0xf]
  %v71 = vld [vmem:[%s0 + $0xec] sm:$0xf]
  %v72 = vld [vmem:[%s0 + $0xf0] sm:$0xf]
  %v73 = vld [vmem:[%s0 + $0xf4] sm:$0xf]
  %v74 = vld [vmem:[%s0 + $0xf8] sm:$0xf]
  %v75 = vld [vmem:[%s0 + $0xfc] sm:$0xf]
  %v76 = vld [vmem:[%s1] sm:$0xf]
  %v77 = vld [vmem:[%s1 + $0x4] sm:$0xf]
  %v78 = vld [vmem:[%s1 + $0x8] sm:$0xf]
  %v79 = vld [vmem:[%s1 + $0xc] sm:$0xf]
  %v80 = vld [vmem:[%s1 + $0x10] sm:$0xf]
  %v81 = vld [vmem:[%s1 + $0x14] sm:$0xf]
  %v82 = vld [vmem:[%s1 + $0x18] sm:$0xf]
  %v83 = vld [vmem:[%s1 + $0x1c] sm:$0xf]
  %v84 = vld [vmem:[%s1 + $0x20] sm:$0xf]
  %v85 = vld [vmem:[%s1 + $0x24] sm:$0xf]
  %v86 = vld [vmem:[%s1 + $0x28] sm:$0xf]
  %v87 = vld [vmem:[%s1 + $0x2c] sm:$0xf]
  %v88 = vld [vmem:[%s1 + $0x30] sm:$0xf]
  %v89 = vld [vmem:[%s1 + $0x34] sm:$0xf]
  %v90 = vld [vmem:[%s1 + $0x38] sm:$0xf]
  %v91 = vld [vmem:[%s1 + $0x3c] sm:$0xf]
  %v156 = vunpack.c.l.b16 %v12
  %v157 = vunpack.c.l.b16 %v13
  %v158 = vunpack.c.l.b16 %v14
  %v159 = vunpack.c.l.b16 %v15
  %v160 = vunpack.c.l.b16 %v16
  %v161 = vunpack.c.l.b16 %v17
  %v162 = vunpack.c.l.b16 %v18
  %v163 = vunpack.c.l.b16 %v19
  %v164 = vunpack.c.l.b16 %v20
  %v165 = vunpack.c.l.b16 %v21
  %v166 = vunpack.c.l.b16 %v22
  %v167 = vunpack.c.l.b16 %v23
  %v168 = vunpack.c.l.b16 %v24
  %v169 = vunpack.c.l.b16 %v25
  %v170 = vunpack.c.l.b16 %v26
  %v171 = vunpack.c.l.b16 %v27
  %v172 = vunpack.c.l.b16 %v28
  %v173 = vunpack.c.l.b16 %v29
  %v174 = vunpack.c.l.b16 %v30
  %v175 = vunpack.c.l.b16 %v31
  %v176 = vunpack.c.l.b16 %v32
  %v177 = vunpack.c.l.b16 %v33
  %v178 = vunpack.c.l.b16 %v34
  %v179 = vunpack.c.l.b16 %v35
  %v180 = vunpack.c.l.b16 %v36
  %v181 = vunpack.c.l.b16 %v37
  %v182 = vunpack.c.l.b16 %v38
  %v183 = vunpack.c.l.b16 %v39
  %v184 = vunpack.c.l.b16 %v40
  %v185 = vunpack.c.l.b16 %v41
  %v186 = vunpack.c.l.b16 %v42
  %v187 = vunpack.c.l.b16 %v43
  %v188 = vunpack.c.l.b16 %v44
  %v189 = vunpack.c.l.b16 %v45
  %v190 = vunpack.c.l.b16 %v46
  %v191 = vunpack.c.l.b16 %v47
  %v192 = vunpack.c.l.b16 %v48
  %v193 = vunpack.c.l.b16 %v49
  %v194 = vunpack.c.l.b16 %v50
  %v195 = vunpack.c.l.b16 %v51
  %v196 = vunpack.c.l.b16 %v52
  %v197 = vunpack.c.l.b16 %v53
  %v198 = vunpack.c.l.b16 %v54
  %v199 = vunpack.c.l.b16 %v55
  %v200 = vunpack.c.l.b16 %v56
  %v201 = vunpack.c.l.b16 %v57
  %v202 = vunpack.c.l.b16 %v58
  %v203 = vunpack.c.l.b16 %v59
  %v204 = vunpack.c.l.b16 %v60
  %v205 = vunpack.c.l.b16 %v61
  %v206 = vunpack.c.l.b16 %v62
  %v207 = vunpack.c.l.b16 %v63
  %v208 = vunpack.c.l.b16 %v64
  %v209 = vunpack.c.l.b16 %v65
  %v210 = vunpack.c.l.b16 %v66
  %v211 = vunpack.c.l.b16 %v67
  %v212 = vunpack.c.l.b16 %v68
  %v213 = vunpack.c.l.b16 %v69
  %v214 = vunpack.c.l.b16 %v70
  %v215 = vunpack.c.l.b16 %v71
  %v216 = vunpack.c.l.b16 %v72
  %v217 = vunpack.c.l.b16 %v73
  %v218 = vunpack.c.l.b16 %v74
  %v219 = vunpack.c.l.b16 %v75
  %v220 = vpack.c.b16 %v157, %v156
  %v221 = vpack.c.b16 %v159, %v158
  %v222 = vpack.c.b16 %v161, %v160
  %v223 = vpack.c.b16 %v163, %v162
  %v224 = vpack.c.b16 %v165, %v164
  %v225 = vpack.c.b16 %v167, %v166
  %v226 = vpack.c.b16 %v169, %v168
  %v227 = vpack.c.b16 %v171, %v170
  %v228 = vpack.c.b16 %v173, %v172
  %v229 = vpack.c.b16 %v175, %v174
  %v230 = vpack.c.b16 %v177, %v176
  %v231 = vpack.c.b16 %v179, %v178
  %v232 = vpack.c.b16 %v181, %v180
  %v233 = vpack.c.b16 %v183, %v182
  %v234 = vpack.c.b16 %v185, %v184
  %v235 = vpack.c.b16 %v187, %v186
  %v236 = vpack.c.b16 %v189, %v188
  %v237 = vpack.c.b16 %v191, %v190
  %v238 = vpack.c.b16 %v193, %v192
  %v239 = vpack.c.b16 %v195, %v194
  %v240 = vpack.c.b16 %v197, %v196
  %v241 = vpack.c.b16 %v199, %v198
  %v242 = vpack.c.b16 %v201, %v200
  %v243 = vpack.c.b16 %v203, %v202
  %v244 = vpack.c.b16 %v205, %v204
  %v245 = vpack.c.b16 %v207, %v206
  %v246 = vpack.c.b16 %v209, %v208
  %v247 = vpack.c.b16 %v211, %v210
  %v248 = vpack.c.b16 %v213, %v212
  %v249 = vpack.c.b16 %v215, %v214
  %v250 = vpack.c.b16 %v217, %v216
  %v251 = vpack.c.b16 %v219, %v218
  %v300 = vunpack.c.l.b16 %v76
  %v301 = vunpack.c.l.b16 %v77
  %v302 = vunpack.c.l.b16 %v78
  %v303 = vunpack.c.l.b16 %v79
  %v304 = vunpack.c.l.b16 %v80
  %v305 = vunpack.c.l.b16 %v81
  %v306 = vunpack.c.l.b16 %v82
  %v307 = vunpack.c.l.b16 %v83
  %v308 = vunpack.c.l.b16 %v84
  %v309 = vunpack.c.l.b16 %v85
  %v310 = vunpack.c.l.b16 %v86
  %v311 = vunpack.c.l.b16 %v87
  %v312 = vunpack.c.l.b16 %v88
  %v313 = vunpack.c.l.b16 %v89
  %v314 = vunpack.c.l.b16 %v90
  %v315 = vunpack.c.l.b16 %v91
  %v316 = vpack.c.b16 %v301, %v300
  %v317 = vpack.c.b16 %v303, %v302
  %v318 = vpack.c.b16 %v305, %v304
  %v319 = vpack.c.b16 %v307, %v306
  %v320 = vpack.c.b16 %v309, %v308
  %v321 = vpack.c.b16 %v311, %v310
  %v322 = vpack.c.b16 %v313, %v312
  %v323 = vpack.c.b16 %v315, %v314
  %332 = vmatprep.subr.bf16.mxu0 0
  %333 = vmatpush1.bf16.msra.mxu0 %v316
  %334 = vmatprep.subr.bf16.mxu0 0
  %335 = vmatpush1.bf16.msra.mxu0 %v317
  %336 = vmatprep.subr.bf16.mxu0 0
  %337 = vmatpush1.bf16.msra.mxu0 %v318
  %338 = vmatprep.subr.bf16.mxu0 0
  %339 = vmatpush1.bf16.msra.mxu0 %v319
  %340 = vmatprep.subr.bf16.mxu0 0
  %341 = vmatpush1.bf16.msra.mxu0 %v320
  %342 = vmatprep.subr.bf16.mxu0 0
  %343 = vmatpush1.bf16.msra.mxu0 %v321
  %344 = vmatprep.subr.bf16.mxu0 0
  %345 = vmatpush1.bf16.msra.mxu0 %v322
  %346 = vmatprep.subr.bf16.mxu0 0
  %347 = vmatpush1.bf16.msra.mxu0 %v323
  %348 = vmatprep.subr.bf16.mxu0 0
  %349 = vmatpush1.bf16.msra.mxu0 0
  %350 = vmatprep.subr.bf16.mxu0 0
  %351 = vmatpush1.bf16.msra.mxu0 0
  %352 = vmatprep.subr.bf16.mxu0 0
  %353 = vmatpush1.bf16.msra.mxu0 0
  %354 = vmatprep.subr.bf16.mxu0 0
  %355 = vmatpush1.bf16.msra.mxu0 0
  %356 = vmatprep.subr.bf16.mxu0 0
  %357 = vmatpush1.bf16.msra.mxu0 0
  %358 = vmatprep.subr.bf16.mxu0 0
  %359 = vmatpush1.bf16.msra.mxu0 0
  %360 = vmatprep.subr.bf16.mxu0 0
  %361 = vmatpush1.bf16.msra.mxu0 0
  %362 = vmatprep.subr.bf16.mxu0 0
  %363 = vmatpush1.bf16.msra.mxu0 0
  %364 = vmatprep.mubr.bf16.mxu0 0
  %365 = vmatmul.mubr.bf16.gmra.mrb[0].mxu0 %v220
  %v366 = vpop.f32.mrb[0].mxu0
  %v367 = vadd.f32 0.0, %v366
  %v368 = vpop.f32.mrb[0].mxu0
  %v369 = vpop.f32.mrb[0].mxu0
  %v370 = vadd.f32 0.0, %v369
  %v371 = vpop.f32.mrb[0].mxu0
  %372 = vmatprep.mubr.bf16.mxu0 0
  %373 = vmatmul.mubr.bf16.gmra.mrb[0].mxu0 %v221
  %v374 = vpop.f32.mrb[0].mxu0
  %v375 = vadd.f32 0.0, %v374
  %v376 = vpop.f32.mrb[0].mxu0
  %v377 = vpop.f32.mrb[0].mxu0
  %v378 = vadd.f32 0.0, %v377
  %v379 = vpop.f32.mrb[0].mxu0
  %380 = vmatprep.mubr.bf16.mxu0 0
  %381 = vmatmul.mubr.bf16.gmra.mrb[0].mxu0 %v222
  %v382 = vpop.f32.mrb[0].mxu0
  %v383 = vadd.f32 0.0, %v382
  %v384 = vpop.f32.mrb[0].mxu0
  %v385 = vpop.f32.mrb[0].mxu0
  %v386 = vadd.f32 0.0, %v385
  %v387 = vpop.f32.mrb[0].mxu0
  %388 = vmatprep.mubr.bf16.mxu0 0
  %389 = vmatmul.mubr.bf16.gmra.mrb[0].mxu0 %v223
  %v390 = vpop.f32.mrb[0].mxu0
  %v391 = vadd.f32 0.0, %v390
  %v392 = vpop.f32.mrb[0].mxu0
  %v393 = vpop.f32.mrb[0].mxu0
  %v394 = vadd.f32 0.0, %v393
  %v395 = vpop.f32.mrb[0].mxu0
  %396 = vmatprep.mubr.bf16.mxu0 0
  %397 = vmatmul.mubr.bf16.gmra.mrb[0].mxu0 %v224
  %v398 = vpop.f32.mrb[0].mxu0
  %v399 = vadd.f32 0.0, %v398
  %v400 = vpop.f32.mrb[0].mxu0
  %v401 = vpop.f32.mrb[0].mxu0
  %v402 = vadd.f32 0.0, %v401
  %v403 = vpop.f32.mrb[0].mxu0
  %404 = vmatprep.mubr.bf16.mxu0 0
  %405 = vmatmul.mubr.bf16.gmra.mrb[0].mxu0 %v225
  %v406 = vpop.f32.mrb[0].mxu0
  %v407 = vadd.f32 0.0, %v406
  %v408 = vpop.f32.mrb[0].mxu0
  %v409 = vpop.f32.mrb[0].mxu0
  %v410 = vadd.f32 0.0, %v409
  %v411 = vpop.f32.mrb[0].mxu0
  %412 = vmatprep.mubr.bf16.mxu0 0
  %413 = vmatmul.mubr.bf16.gmra.mrb[0].mxu0 %v226
  %v414 = vpop.f32.mrb[0].mxu0
  %v415 = vadd.f32 0.0, %v414
  %v416 = vpop.f32.mrb[0].mxu0
  %v417 = vpop.f32.mrb[0].mxu0
  %v418 = vadd.f32 0.0, %v417
  %v419 = vpop.f32.mrb[0].mxu0
  %420 = vmatprep.mubr.bf16.mxu0 0
  %421 = vmatmul.mubr.bf16.gmra.mrb[0].mxu0 %v227
  %v422 = vpop.f32.mrb[0].mxu0
  %v423 = vadd.f32 0.0, %v422
  %v424 = vpop.f32.mrb[0].mxu0
  %v425 = vpop.f32.mrb[0].mxu0
  %v426 = vadd.f32 0.0, %v425
  %v427 = vpop.f32.mrb[0].mxu0
  %428 = vmatprep.mubr.bf16.mxu0 0
  %429 = vmatmul.mubr.bf16.gmra.mrb[0].mxu0 %v228
  %v430 = vpop.f32.mrb[0].mxu0
  %v431 = vadd.f32 0.0, %v430
  %v432 = vpop.f32.mrb[0].mxu0
  %v433 = vpop.f32.mrb[0].mxu0
  %v434 = vadd.f32 0.0, %v433
  %v435 = vpop.f32.mrb[0].mxu0
  %436 = vmatprep.mubr.bf16.mxu0 0
  %437 = vmatmul.mubr.bf16.gmra.mrb[0].mxu0 %v229
  %v438 = vpop.f32.mrb[0].mxu0
  %v439 = vadd.f32 0.0, %v438
  %v440 = vpop.f32.mrb[0].mxu0
  %v441 = vpop.f32.mrb[0].mxu0
  %v442 = vadd.f32 0.0, %v441
  %v443 = vpop.f32.mrb[0].mxu0
  %444 = vmatprep.mubr.bf16.mxu0 0
  %445 = vmatmul.mubr.bf16.gmra.mrb[0].mxu0 %v230
  %v446 = vpop.f32.mrb[0].mxu0
  %v447 = vadd.f32 0.0, %v446
  %v448 = vpop.f32.mrb[0].mxu0
  %v449 = vpop.f32.mrb[0].mxu0
  %v450 = vadd.f32 0.0, %v449
  %v451 = vpop.f32.mrb[0].mxu0
  %452 = vmatprep.mubr.bf16.mxu0 0
  %453 = vmatmul.mubr.bf16.gmra.mrb[0].mxu0 %v231
  %v454 = vpop.f32.mrb[0].mxu0
  %v455 = vadd.f32 0.0, %v454
  %v456 = vpop.f32.mrb[0].mxu0
  %v457 = vpop.f32.mrb[0].mxu0
  %v458 = vadd.f32 0.0, %v457
  %v459 = vpop.f32.mrb[0].mxu0
  %460 = vmatprep.mubr.bf16.mxu0 0
  %461 = vmatmul.mubr.bf16.gmra.mrb[0].mxu0 %v232
  %v462 = vpop.f32.mrb[0].mxu0
  %v463 = vadd.f32 0.0, %v462
  %v464 = vpop.f32.mrb[0].mxu0
  %v465 = vpop.f32.mrb[0].mxu0
  %v466 = vadd.f32 0.0, %v465
  %v467 = vpop.f32.mrb[0].mxu0
  %468 = vmatprep.mubr.bf16.mxu0 0
  %469 = vmatmul.mubr.bf16.gmra.mrb[0].mxu0 %v233
  %v470 = vpop.f32.mrb[0].mxu0
  %v471 = vadd.f32 0.0, %v470
  %v472 = vpop.f32.mrb[0].mxu0
  %v473 = vpop.f32.mrb[0].mxu0
  %v474 = vadd.f32 0.0, %v473
  %v475 = vpop.f32.mrb[0].mxu0
  %476 = vmatprep.mubr.bf16.mxu0 0
  %477 = vmatmul.mubr.bf16.gmra.mrb[0].mxu0 %v234
  %v478 = vpop.f32.mrb[0].mxu0
  %v479 = vadd.f32 0.0, %v478
  %v480 = vpop.f32.mrb[0].mxu0
  %v481 = vpop.f32.mrb[0].mxu0
  %v482 = vadd.f32 0.0, %v481
  %v483 = vpop.f32.mrb[0].mxu0
  %484 = vmatprep.mubr.bf16.mxu0 0
  %485 = vmatmul.mubr.bf16.gmra.mrb[0].mxu0 %v235
  %v486 = vpop.f32.mrb[0].mxu0
  %v487 = vadd.f32 0.0, %v486
  %v488 = vpop.f32.mrb[0].mxu0
  %v489 = vpop.f32.mrb[0].mxu0
  %v490 = vadd.f32 0.0, %v489
  %v491 = vpop.f32.mrb[0].mxu0
  %492 = vmatprep.mubr.bf16.mxu0 0
  %493 = vmatmul.mubr.bf16.gmra.mrb[0].mxu0 %v236
  %v494 = vpop.f32.mrb[0].mxu0
  %v495 = vadd.f32 0.0, %v494
  %v496 = vpop.f32.mrb[0].mxu0
  %v497 = vpop.f32.mrb[0].mxu0
  %v498 = vadd.f32 0.0, %v497
  %v499 = vpop.f32.mrb[0].mxu0
  %500 = vmatprep.mubr.bf16.mxu0 0
  %501 = vmatmul.mubr.bf16.gmra.mrb[0].mxu0 %v237
  %v502 = vpop.f32.mrb[0].mxu0
  %v503 = vadd.f32 0.0, %v502
  %v504 = vpop.f32.mrb[0].mxu0
  %v505 = vpop.f32.mrb[0].mxu0
  %v506 = vadd.f32 0.0, %v505
  %v507 = vpop.f32.mrb[0].mxu0
  %508 = vmatprep.mubr.bf16.mxu0 0
  %509 = vmatmul.mubr.bf16.gmra.mrb[0].mxu0 %v238
  %v510 = vpop.f32.mrb[0].mxu0
  %v511 = vadd.f32 0.0, %v510
  %v512 = vpop.f32.mrb[0].mxu0
  %v513 = vpop.f32.mrb[0].mxu0
  %v514 = vadd.f32 0.0, %v513
  %v515 = vpop.f32.mrb[0].mxu0
  %516 = vmatprep.mubr.bf16.mxu0 0
  %517 = vmatmul.mubr.bf16.gmra.mrb[0].mxu0 %v239
  %v518 = vpop.f32.mrb[0].mxu0
  %v519 = vadd.f32 0.0, %v518
  %v520 = vpop.f32.mrb[0].mxu0
  %v521 = vpop.f32.mrb[0].mxu0
  %v522 = vadd.f32 0.0, %v521
  %v523 = vpop.f32.mrb[0].mxu0
  %524 = vmatprep.mubr.bf16.mxu0 0
  %525 = vmatmul.mubr.bf16.gmra.mrb[0].mxu0 %v240
  %v526 = vpop.f32.mrb[0].mxu0
  %v527 = vadd.f32 0.0, %v526
  %v528 = vpop.f32.mrb[0].mxu0
  %v529 = vpop.f32.mrb[0].mxu0
  %v530 = vadd.f32 0.0, %v529
  %v531 = vpop.f32.mrb[0].mxu0
  %532 = vmatprep.mubr.bf16.mxu0 0
  %533 = vmatmul.mubr.bf16.gmra.mrb[0].mxu0 %v241
  %v534 = vpop.f32.mrb[0].mxu0
  %v535 = vadd.f32 0.0, %v534
  %v536 = vpop.f32.mrb[0].mxu0
  %v537 = vpop.f32.mrb[0].mxu0
  %v538 = vadd.f32 0.0, %v537
  %v539 = vpop.f32.mrb[0].mxu0
  %540 = vmatprep.mubr.bf16.mxu0 0
  %541 = vmatmul.mubr.bf16.gmra.mrb[0].mxu0 %v242
  %v542 = vpop.f32.mrb[0].mxu0
  %v543 = vadd.f32 0.0, %v542
  %v544 = vpop.f32.mrb[0].mxu0
  %v545 = vpop.f32.mrb[0].mxu0
  %v546 = vadd.f32 0.0, %v545
  %v547 = vpop.f32.mrb[0].mxu0
  %548 = vmatprep.mubr.bf16.mxu0 0
  %549 = vmatmul.mubr.bf16.gmra.mrb[0].mxu0 %v243
  %v550 = vpop.f32.mrb[0].mxu0
  %v551 = vadd.f32 0.0, %v550
  %v552 = vpop.f32.mrb[0].mxu0
  %v553 = vpop.f32.mrb[0].mxu0
  %v554 = vadd.f32 0.0, %v553
  %v555 = vpop.f32.mrb[0].mxu0
  %556 = vmatprep.mubr.bf16.mxu0 0
  %557 = vmatmul.mubr.bf16.gmra.mrb[0].mxu0 %v244
  %v558 = vpop.f32.mrb[0].mxu0
  %v559 = vadd.f32 0.0, %v558
  %v560 = vpop.f32.mrb[0].mxu0
  %v561 = vpop.f32.mrb[0].mxu0
  %v562 = vadd.f32 0.0, %v561
  %v563 = vpop.f32.mrb[0].mxu0
  %564 = vmatprep.mubr.bf16.mxu0 0
  %565 = vmatmul.mubr.bf16.gmra.mrb[0].mxu0 %v245
  %v566 = vpop.f32.mrb[0].mxu0
  %v567 = vadd.f32 0.0, %v566
  %v568 = vpop.f32.mrb[0].mxu0
  %v569 = vpop.f32.mrb[0].mxu0
  %v570 = vadd.f32 0.0, %v569
  %v571 = vpop.f32.mrb[0].mxu0
  %572 = vmatprep.mubr.bf16.mxu0 0
  %573 = vmatmul.mubr.bf16.gmra.mrb[0].mxu0 %v246
  %v574 = vpop.f32.mrb[0].mxu0
  %v575 = vadd.f32 0.0, %v574
  %v576 = vpop.f32.mrb[0].mxu0
  %v577 = vpop.f32.mrb[0].mxu0
  %v578 = vadd.f32 0.0, %v577
  %v579 = vpop.f32.mrb[0].mxu0
  %580 = vmatprep.mubr.bf16.mxu0 0
  %581 = vmatmul.mubr.bf16.gmra.mrb[0].mxu0 %v247
  %v582 = vpop.f32.mrb[0].mxu0
  %v583 = vadd.f32 0.0, %v582
  %v584 = vpop.f32.mrb[0].mxu0
  %v585 = vpop.f32.mrb[0].mxu0
  %v586 = vadd.f32 0.0, %v585
  %v587 = vpop.f32.mrb[0].mxu0
  %588 = vmatprep.mubr.bf16.mxu0 0
  %589 = vmatmul.mubr.bf16.gmra.mrb[0].mxu0 %v248
  %v590 = vpop.f32.mrb[0].mxu0
  %v591 = vadd.f32 0.0, %v590
  %v592 = vpop.f32.mrb[0].mxu0
  %v593 = vpop.f32.mrb[0].mxu0
  %v594 = vadd.f32 0.0, %v593
  %v595 = vpop.f32.mrb[0].mxu0
  %596 = vmatprep.mubr.bf16.mxu0 0
  %597 = vmatmul.mubr.bf16.gmra.mrb[0].mxu0 %v249
  %v598 = vpop.f32.mrb[0].mxu0
  %v599 = vadd.f32 0.0, %v598
  %v600 = vpop.f32.mrb[0].mxu0
  %v601 = vpop.f32.mrb[0].mxu0
  %v602 = vadd.f32 0.0, %v601
  %v603 = vpop.f32.mrb[0].mxu0
  %604 = vmatprep.mubr.bf16.mxu0 0
  %605 = vmatmul.mubr.bf16.gmra.mrb[0].mxu0 %v250
  %v606 = vpop.f32.mrb[0].mxu0
  %v607 = vadd.f32 0.0, %v606
  %v608 = vpop.f32.mrb[0].mxu0
  %v609 = vpop.f32.mrb[0].mxu0
  %v610 = vadd.f32 0.0, %v609
  %v611 = vpop.f32.mrb[0].mxu0
  %612 = vmatprep.mubr.bf16.mxu0 0
  %613 = vmatmul.mubr.bf16.gmra.mrb[0].mxu0 %v251
  %v614 = vpop.f32.mrb[0].mxu0
  %v615 = vadd.f32 0.0, %v614
  %v616 = vpop.f32.mrb[0].mxu0
  %v617 = vpop.f32.mrb[0].mxu0
  %v618 = vadd.f32 0.0, %v617
  %v619 = vpop.f32.mrb[0].mxu0
  %620 = vdwg.mxu0
  %621 = vst [vmem:[%s2] sm:$0xff] %v367
  %622 = vst [vmem:[%s2 + $0x8] sm:$0xff] %v370
  %623 = vst [vmem:[%s2 + $0x10] sm:$0xff] %v375
  %624 = vst [vmem:[%s2 + $0x18] sm:$0xff] %v378
  %625 = vst [vmem:[%s2 + $0x20] sm:$0xff] %v383
  %626 = vst [vmem:[%s2 + $0x28] sm:$0xff] %v386
  %627 = vst [vmem:[%s2 + $0x30] sm:$0xff] %v391
  %628 = vst [vmem:[%s2 + $0x38] sm:$0xff] %v394
  %629 = vst [vmem:[%s2 + $0x40] sm:$0xff] %v399
  %630 = vst [vmem:[%s2 + $0x48] sm:$0xff] %v402
  %631 = vst [vmem:[%s2 + $0x50] sm:$0xff] %v407
  %632 = vst [vmem:[%s2 + $0x58] sm:$0xff] %v410
  %633 = vst [vmem:[%s2 + $0x60] sm:$0xff] %v415
  %634 = vst [vmem:[%s2 + $0x68] sm:$0xff] %v418
  %635 = vst [vmem:[%s2 + $0x70] sm:$0xff] %v423
  %636 = vst [vmem:[%s2 + $0x78] sm:$0xff] %v426
  %637 = vst [vmem:[%s2 + $0x80] sm:$0xff] %v431
  %638 = vst [vmem:[%s2 + $0x88] sm:$0xff] %v434
  %639 = vst [vmem:[%s2 + $0x90] sm:$0xff] %v439
  %640 = vst [vmem:[%s2 + $0x98] sm:$0xff] %v442
  %641 = vst [vmem:[%s2 + $0xa0] sm:$0xff] %v447
  %642 = vst [vmem:[%s2 + $0xa8] sm:$0xff] %v450
  %643 = vst [vmem:[%s2 + $0xb0] sm:$0xff] %v455
  %644 = vst [vmem:[%s2 + $0xb8] sm:$0xff] %v458
  %645 = vst [vmem:[%s2 + $0xc0] sm:$0xff] %v463
  %646 = vst [vmem:[%s2 + $0xc8] sm:$0xff] %v466
  %647 = vst [vmem:[%s2 + $0xd0] sm:$0xff] %v471
  %648 = vst [vmem:[%s2 + $0xd8] sm:$0xff] %v474
  %649 = vst [vmem:[%s2 + $0xe0] sm:$0xff] %v479
  %650 = vst [vmem:[%s2 + $0xe8] sm:$0xff] %v482
  %651 = vst [vmem:[%s2 + $0xf0] sm:$0xff] %v487
  %652 = vst [vmem:[%s2 + $0xf8] sm:$0xff] %v490
  %653 = vst [vmem:[%s2 + $0x100] sm:$0xff] %v495
  %654 = vst [vmem:[%s2 + $0x108] sm:$0xff] %v498
  %655 = vst [vmem:[%s2 + $0x110] sm:$0xff] %v503
  %656 = vst [vmem:[%s2 + $0x118] sm:$0xff] %v506
  %657 = vst [vmem:[%s2 + $0x120] sm:$0xff] %v511
  %658 = vst [vmem:[%s2 + $0x128] sm:$0xff] %v514
  %659 = vst [vmem:[%s2 + $0x130] sm:$0xff] %v519
  %660 = vst [vmem:[%s2 + $0x138] sm:$0xff] %v522
  %661 = vst [vmem:[%s2 + $0x140] sm:$0xff] %v527
  %662 = vst [vmem:[%s2 + $0x148] sm:$0xff] %v530
  %663 = vst [vmem:[%s2 + $0x150] sm:$0xff] %v535
  %664 = vst [vmem:[%s2 + $0x158] sm:$0xff] %v538
  %665 = vst [vmem:[%s2 + $0x160] sm:$0xff] %v543
  %666 = vst [vmem:[%s2 + $0x168] sm:$0xff] %v546
  %667 = vst [vmem:[%s2 + $0x170] sm:$0xff] %v551
  %668 = vst [vmem:[%s2 + $0x178] sm:$0xff] %v554
  %669 = vst [vmem:[%s2 + $0x180] sm:$0xff] %v559
  %670 = vst [vmem:[%s2 + $0x188] sm:$0xff] %v562
  %671 = vst [vmem:[%s2 + $0x190] sm:$0xff] %v567
  %672 = vst [vmem:[%s2 + $0x198] sm:$0xff] %v570
  %673 = vst [vmem:[%s2 + $0x1a0] sm:$0xff] %v575
  %674 = vst [vmem:[%s2 + $0x1a8] sm:$0xff] %v578
  %675 = vst [vmem:[%s2 + $0x1b0] sm:$0xff] %v583
  %676 = vst [vmem:[%s2 + $0x1b8] sm:$0xff] %v586
  %677 = vst [vmem:[%s2 + $0x1c0] sm:$0xff] %v591
  %678 = vst [vmem:[%s2 + $0x1c8] sm:$0xff] %v594
  %679 = vst [vmem:[%s2 + $0x1d0] sm:$0xff] %v599
  %680 = vst [vmem:[%s2 + $0x1d8] sm:$0xff] %v602
  %681 = vst [vmem:[%s2 + $0x1e0] sm:$0xff] %v607
  %682 = vst [vmem:[%s2 + $0x1e8] sm:$0xff] %v610
  %683 = vst [vmem:[%s2 + $0x1f0] sm:$0xff] %v615
  %684 = vst [vmem:[%s2 + $0x1f8] sm:$0xff] %v618
  // Predicated region
  $region10: #{_lambda_.9} parent=0 // pred_check
    _
  $region11: #{_lambda_.9} parent=0 // pred_check_branch
    %686 = sbr.rel (0) target = $region13
  $region12: #{_lambda_.9} parent=0 // pred_region
    _
  $region13: #{_lambda_.9} parent=0 // pred_fallthru
    _
  // Predicated region
  $region14: #{_lambda_.9} parent=0 // pred_check
    _
  $region15: #{_lambda_.9} parent=0 // pred_check_branch
    %688 = sbr.rel (0) target = $region17
  $region16: #{_lambda_.9} parent=0 // pred_region
    _
  $region17: #{_lambda_.9} parent=0 // pred_fallthru
    _

// kernel: _lambda_.10
$region0: #{_lambda_.10}
  #allocation0 [shape = 'u32[]', space=smem, size = 0x4, offset = 0x4, fixed_abs, tag = 'smem constant byte address 0x4 - core index']
  #allocation1 [shape = 'u32[144,128]{1,0:T(1,128)}', space=vmem, size = 0x12000, scoped, tag = 'internal scratch']
  %s0 = inlined_call_operand.vmem [shape: bf16[512,640], index: 0, kind: input, shape index: {}]
  %s1 = inlined_call_operand.vmem [shape: bf16[640,128], index: 1, kind: input, shape index: {}]
  %s2 = inlined_call_operand.vmem [shape: f32[512,128], index: 2, kind: output, shape index: {}]
  %s3 = sld [smem:[#allocation0]]
  $region18: #{_lambda_.10} parent=0
    _
  %s5 = ssub.s32 1, %s3
  %s6 = scalar_select 0, %s5, %s3
  // Predicated region
  $region2: #{_lambda_.10} parent=0 // pred_check
    _
  $region3: #{_lambda_.10} parent=0 // pred_check_branch
    %8 = sbr.rel (0) target = $region5
  $region4: #{_lambda_.10} parent=0 // pred_region
    _
  $region5: #{_lambda_.10} parent=0 // pred_fallthru
    _
  // Predicated region
  $region6: #{_lambda_.10} parent=0 // pred_check
    _
  $region7: #{_lambda_.10} parent=0 // pred_check_branch
    %10 = sbr.rel (0) target = $region9
  $region8: #{_lambda_.10} parent=0 // pred_region
    _
  $region9: #{_lambda_.10} parent=0 // pred_fallthru
    _
  %v12 = vld [vmem:[%s0] sm:$0xff]
  %v13 = vld [vmem:[%s0 + $0x8] sm:$0xff]
  %v14 = vld [vmem:[%s0 + $0x10] sm:$0xf]
  %v15 = vld [vmem:[%s0 + $0x14] sm:$0xff]
  %v16 = vld [vmem:[%s0 + $0x1c] sm:$0xff]
  %v17 = vld [vmem:[%s0 + $0x24] sm:$0xf]
  %v18 = vld [vmem:[%s0 + $0x28] sm:$0xff]
  %v19 = vld [vmem:[%s0 + $0x30] sm:$0xff]
  %v20 = vld [vmem:[%s0 + $0x38] sm:$0xf]
  %v21 = vld [vmem:[%s0 + $0x3c] sm:$0xff]
  %v22 = vld [vmem:[%s0 + $0x44] sm:$0xff]
  %v23 = vld [vmem:[%s0 + $0x4c] sm:$0xf]
  %v24 = vld [vmem:[%s0 + $0x50] sm:$0xff]
  %v25 = vld [vmem:[%s0 + $0x58] sm:$0xff]
  %v26 = vld [vmem:[%s0 + $0x60] sm:$0xf]
  %v27 = vld [vmem:[%s0 + $0x64] sm:$0xff]
  %v28 = vld [vmem:[%s0 + $0x6c] sm:$0xff]
  %v29 = vld [vmem:[%s0 + $0x74] sm:$0xf]
  %v30 = vld [vmem:[%s0 + $0x78] sm:$0xff]
  %v31 = vld [vmem:[%s0 + $0x80] sm:$0xff]
  %v32 = vld [vmem:[%s0 + $0x88] sm:$0xf]
  %v33 = vld [vmem:[%s0 + $0x8c] sm:$0xff]
  %v34 = vld [vmem:[%s0 + $0x94] sm:$0xff]
  %v35 = vld [vmem:[%s0 + $0x9c] sm:$0xf]
  %v36 = vld [vmem:[%s0 + $0xa0] sm:$0xff]
  %v37 = vld [vmem:[%s0 + $0xa8] sm:$0xff]
  %v38 = vld [vmem:[%s0 + $0xb0] sm:$0xf]
  %v39 = vld [vmem:[%s0 + $0xb4] sm:$0xff]
  %v40 = vld [vmem:[%s0 + $0xbc] sm:$0xff]
  %v41 = vld [vmem:[%s0 + $0xc4] sm:$0xf]
  %v42 = vld [vmem:[%s0 + $0xc8] sm:$0xff]
  %v43 = vld [vmem:[%s0 + $0xd0] sm:$0xff]
  %v44 = vld [vmem:[%s0 + $0xd8] sm:$0xf]
  %v45 = vld [vmem:[%s0 + $0xdc] sm:$0xff]
  %v46 = vld [vmem:[%s0 + $0xe4] sm:$0xff]
  %v47 = vld [vmem:[%s0 + $0xec] sm:$0xf]
  %v48 = vld [vmem:[%s0 + $0xf0] sm:$0xff]
  %v49 = vld [vmem:[%s0 + $0xf8] sm:$0xff]
  %v50 = vld [vmem:[%s0 + $0x100] sm:$0xf]
  %v51 = vld [vmem:[%s0 + $0x104] sm:$0xff]
  %v52 = vld [vmem:[%s0 + $0x10c] sm:$0xff]
  %v53 = vld [vmem:[%s0 + $0x114] sm:$0xf]
  %v54 = vld [vmem:[%s0 + $0x118] sm:$0xff]
  %v55 = vld [vmem:[%s0 + $0x120] sm:$0xff]
  %v56 = vld [vmem:[%s0 + $0x128] sm:$0xf]
  %v57 = vld [vmem:[%s0 + $0x12c] sm:$0xff]
  %v58 = vld [vmem:[%s0 + $0x134] sm:$0xff]
  %v59 = vld [vmem:[%s0 + $0x13c] sm:$0xf]
  %v60 = vld [vmem:[%s0 + $0x140] sm:$0xff]
  %v61 = vld [vmem:[%s0 + $0x148] sm:$0xff]
  %v62 = vld [vmem:[%s0 + $0x150] sm:$0xf]
  %v63 = vld [vmem:[%s0 + $0x154] sm:$0xff]
  %v64 = vld [vmem:[%s0 + $0x15c] sm:$0xff]
  %v65 = vld [vmem:[%s0 + $0x164] sm:$0xf]
  %v66 = vld [vmem:[%s0 + $0x168] sm:$0xff]
  %v67 = vld [vmem:[%s0 + $0x170] sm:$0xff]
  %v68 = vld [vmem:[%s0 + $0x178] sm:$0xf]
  %v69 = vld [vmem:[%s0 + $0x17c] sm:$0xff]
  %v70 = vld [vmem:[%s0 + $0x184] sm:$0xff]
  %v71 = vld [vmem:[%s0 + $0x18c] sm:$0xf]
  %v72 = vld [vmem:[%s0 + $0x190] sm:$0xff]
  %v73 = vld [vmem:[%s0 + $0x198] sm:$0xff]
  %v74 = vld [vmem:[%s0 + $0x1a0] sm:$0xf]
  %v75 = vld [vmem:[%s0 + $0x1a4] sm:$0xff]
  %v76 = vld [vmem:[%s0 + $0x1ac] sm:$0xff]
  %v77 = vld [vmem:[%s0 + $0x1b4] sm:$0xf]
  %v78 = vld [vmem:[%s0 + $0x1b8] sm:$0xff]
  %v79 = vld [vmem:[%s0 + $0x1c0] sm:$0xff]
  %v80 = vld [vmem:[%s0 + $0x1c8] sm:$0xf]
  %v81 = vld [vmem:[%s0 + $0x1cc] sm:$0xff]
  %v82 = vld [vmem:[%s0 + $0x1d4] sm:$0xff]
  %v83 = vld [vmem:[%s0 + $0x1dc] sm:$0xf]
  %v84 = vld [vmem:[%s0 + $0x1e0] sm:$0xff]
  %v85 = vld [vmem:[%s0 + $0x1e8] sm:$0xff]
  %v86 = vld [vmem:[%s0 + $0x1f0] sm:$0xf]
  %v87 = vld [vmem:[%s0 + $0x1f4] sm:$0xff]
  %v88 = vld [vmem:[%s0 + $0x1fc] sm:$0xff]
  %v89 = vld [vmem:[%s0 + $0x204] sm:$0xf]
  %v90 = vld [vmem:[%s0 + $0x208] sm:$0xff]
  %v91 = vld [vmem:[%s0 + $0x210] sm:$0xff]
  %v92 = vld [vmem:[%s0 + $0x218] sm:$0xf]
  %v93 = vld [vmem:[%s0 + $0x21c] sm:$0xff]
  %v94 = vld [vmem:[%s0 + $0x224] sm:$0xff]
  %v95 = vld [vmem:[%s0 + $0x22c] sm:$0xf]
  %v96 = vld [vmem:[%s0 + $0x230] sm:$0xff]
  %v97 = vld [vmem:[%s0 + $0x238] sm:$0xff]
  %v98 = vld [vmem:[%s0 + $0x240] sm:$0xf]
  %v99 = vld [vmem:[%s0 + $0x244] sm:$0xff]
  %v100 = vld [vmem:[%s0 + $0x24c] sm:$0xff]
  %v101 = vld [vmem:[%s0 + $0x254] sm:$0xf]
  %v102 = vld [vmem:[%s0 + $0x258] sm:$0xff]
  %v103 = vld [vmem:[%s0 + $0x260] sm:$0xff]
  %v104 = vld [vmem:[%s0 + $0x268] sm:$0xf]
  %v105 = vld [vmem:[%s0 + $0x26c] sm:$0xff]
  %v106 = vld [vmem:[%s0 + $0x274] sm:$0xff]
  %v107 = vld [vmem:[%s0 + $0x27c] sm:$0xf]
  %v108 = vld [vmem:[%s0 + $0x280] sm:$0xff]
  %v109 = vld [vmem:[%s0 + $0x288] sm:$0xff]
  %v110 = vld [vmem:[%s0 + $0x290] sm:$0xf]
  %v111 = vld [vmem:[%s0 + $0x294] sm:$0xff]
  %v112 = vld [vmem:[%s0 + $0x29c] sm:$0xff]
  %v113 = vld [vmem:[%s0 + $0x2a4] sm:$0xf]
  %v114 = vld [vmem:[%s0 + $0x2a8] sm:$0xff]
  %v115 = vld [vmem:[%s0 + $0x2b0] sm:$0xff]
  %v116 = vld [vmem:[%s0 + $0x2b8] sm:$0xf]
  %v117 = vld [vmem:[%s0 + $0x2bc] sm:$0xff]
  %v118 = vld [vmem:[%s0 + $0x2c4] sm:$0xff]
  %v119 = vld [vmem:[%s0 + $0x2cc] sm:$0xf]
  %v120 = vld [vmem:[%s0 + $0x2d0] sm:$0xff]
  %v121 = vld [vmem:[%s0 + $0x2d8] sm:$0xff]
  %v122 = vld [vmem:[%s0 + $0x2e0] sm:$0xf]
  %v123 = vld [vmem:[%s0 + $0x2e4] sm:$0xff]
  %v124 = vld [vmem:[%s0 + $0x2ec] sm:$0xff]
  %v125 = vld [vmem:[%s0 + $0x2f4] sm:$0xf]
  %v126 = vld [vmem:[%s0 + $0x2f8] sm:$0xff]
  %v127 = vld [vmem:[%s0 + $0x300] sm:$0xff]
  %v128 = vld [vmem:[%s0 + $0x308] sm:$0xf]
  %v129 = vld [vmem:[%s0 + $0x30c] sm:$0xff]
  %v130 = vld [vmem:[%s0 + $0x314] sm:$0xff]
  %v131 = vld [vmem:[%s0 + $0x31c] sm:$0xf]
  %v132 = vld [vmem:[%s0 + $0x320] sm:$0xff]
  %v133 = vld [vmem:[%s0 + $0x328] sm:$0xff]
  %v134 = vld [vmem:[%s0 + $0x330] sm:$0xf]
  %v135 = vld [vmem:[%s0 + $0x334] sm:$0xff]
  %v136 = vld [vmem:[%s0 + $0x33c] sm:$0xff]
  %v137 = vld [vmem:[%s0 + $0x344] sm:$0xf]
  %v138 = vld [vmem:[%s0 + $0x348] sm:$0xff]
  %v139 = vld [vmem:[%s0 + $0x350] sm:$0xff]
  %v140 = vld [vmem:[%s0 + $0x358] sm:$0xf]
  %v141 = vld [vmem:[%s0 + $0x35c] sm:$0xff]
  %v142 = vld [vmem:[%s0 + $0x364] sm:$0xff]
  %v143 = vld [vmem:[%s0 + $0x36c] sm:$0xf]
  %v144 = vld [vmem:[%s0 + $0x370] sm:$0xff]
  %v145 = vld [vmem:[%s0 + $0x378] sm:$0xff]
  %v146 = vld [vmem:[%s0 + $0x380] sm:$0xf]
  %v147 = vld [vmem:[%s0 + $0x384] sm:$0xff]
  %v148 = vld [vmem:[%s0 + $0x38c] sm:$0xff]
  %v149 = vld [vmem:[%s0 + $0x394] sm:$0xf]
  %v150 = vld [vmem:[%s0 + $0x398] sm:$0xff]
  %v151 = vld [vmem:[%s0 + $0x3a0] sm:$0xff]
  %v152 = vld [vmem:[%s0 + $0x3a8] sm:$0xf]
  %v153 = vld [vmem:[%s0 + $0x3ac] sm:$0xff]
  %v154 = vld [vmem:[%s0 + $0x3b4] sm:$0xff]
  %v155 = vld [vmem:[%s0 + $0x3bc] sm:$0xf]
  %v156 = vld [vmem:[%s0 + $0x3c0] sm:$0xff]
  %v157 = vld [vmem:[%s0 + $0x3c8] sm:$0xff]
  %v158 = vld [vmem:[%s0 + $0x3d0] sm:$0xf]
  %v159 = vld [vmem:[%s0 + $0x3d4] sm:$0xff]
  %v160 = vld [vmem:[%s0 + $0x3dc] sm:$0xff]
  %v161 = vld [vmem:[%s0 + $0x3e4] sm:$0xf]
  %v162 = vld [vmem:[%s0 + $0x3e8] sm:$0xff]
  %v163 = vld [vmem:[%s0 + $0x3f0] sm:$0xff]
  %v164 = vld [vmem:[%s0 + $0x3f8] sm:$0xf]
  %v165 = vld [vmem:[%s0 + $0x3fc] sm:$0xff]
  %v166 = vld [vmem:[%s0 + $0x404] sm:$0xff]
  %v167 = vld [vmem:[%s0 + $0x40c] sm:$0xf]
  %v168 = vld [vmem:[%s0 + $0x410] sm:$0xff]
  %v169 = vld [vmem:[%s0 + $0x418] sm:$0xff]
  %v170 = vld [vmem:[%s0 + $0x420] sm:$0xf]
  %v171 = vld [vmem:[%s0 + $0x424] sm:$0xff]
  %v172 = vld [vmem:[%s0 + $0x42c] sm:$0xff]
  %v173 = vld [vmem:[%s0 + $0x434] sm:$0xf]
  %v174 = vld [vmem:[%s0 + $0x438] sm:$0xff]
  %v175 = vld [vmem:[%s0 + $0x440] sm:$0xff]
  %v176 = vld [vmem:[%s0 + $0x448] sm:$0xf]
  %v177 = vld [vmem:[%s0 + $0x44c] sm:$0xff]
  %v178 = vld [vmem:[%s0 + $0x454] sm:$0xff]
  %v179 = vld [vmem:[%s0 + $0x45c] sm:$0xf]
  %v180 = vld [vmem:[%s0 + $0x460] sm:$0xff]
  %v181 = vld [vmem:[%s0 + $0x468] sm:$0xff]
  %v182 = vld [vmem:[%s0 + $0x470] sm:$0xf]
  %v183 = vld [vmem:[%s0 + $0x474] sm:$0xff]
  %v184 = vld [vmem:[%s0 + $0x47c] sm:$0xff]
  %v185 = vld [vmem:[%s0 + $0x484] sm:$0xf]
  %v186 = vld [vmem:[%s0 + $0x488] sm:$0xff]
  %v187 = vld [vmem:[%s0 + $0x490] sm:$0xff]
  %v188 = vld [vmem:[%s0 + $0x498] sm:$0xf]
  %v189 = vld [vmem:[%s0 + $0x49c] sm:$0xff]
  %v190 = vld [vmem:[%s0 + $0x4a4] sm:$0xff]
  %v191 = vld [vmem:[%s0 + $0x4ac] sm:$0xf]
  %v192 = vld [vmem:[%s0 + $0x4b0] sm:$0xff]
  %v193 = vld [vmem:[%s0 + $0x4b8] sm:$0xff]
  %v194 = vld [vmem:[%s0 + $0x4c0] sm:$0xf]
  %v195 = vld [vmem:[%s0 + $0x4c4] sm:$0xff]
  %v196 = vld [vmem:[%s0 + $0x4cc] sm:$0xff]
  %v197 = vld [vmem:[%s0 + $0x4d4] sm:$0xf]
  %v198 = vld [vmem:[%s0 + $0x4d8] sm:$0xff]
  %v199 = vld [vmem:[%s0 + $0x4e0] sm:$0xff]
  %v200 = vld [vmem:[%s0 + $0x4e8] sm:$0xf]
  %v201 = vld [vmem:[%s0 + $0x4ec] sm:$0xff]
  %v202 = vld [vmem:[%s0 + $0x4f4] sm:$0xff]
  %v203 = vld [vmem:[%s0 + $0x4fc] sm:$0xf]
  %v204 = vld [vmem:[%s1] sm:$0xf]
  %v205 = vld [vmem:[%s1 + $0x4] sm:$0xf]
  %v206 = vld [vmem:[%s1 + $0x8] sm:$0xf]
  %v207 = vld [vmem:[%s1 + $0xc] sm:$0xf]
  %v208 = vld [vmem:[%s1 + $0x10] sm:$0xf]
  %v209 = vld [vmem:[%s1 + $0x14] sm:$0xf]
  %v210 = vld [vmem:[%s1 + $0x18] sm:$0xf]
  %v211 = vld [vmem:[%s1 + $0x1c] sm:$0xf]
  %v212 = vld [vmem:[%s1 + $0x20] sm:$0xf]
  %v213 = vld [vmem:[%s1 + $0x24] sm:$0xf]
  %v214 = vld [vmem:[%s1 + $0x28] sm:$0xf]
  %v215 = vld [vmem:[%s1 + $0x2c] sm:$0xf]
  %v216 = vld [vmem:[%s1 + $0x30] sm:$0xf]
  %v217 = vld [vmem:[%s1 + $0x34] sm:$0xf]
  %v218 = vld [vmem:[%s1 + $0x38] sm:$0xf]
  %v219 = vld [vmem:[%s1 + $0x3c] sm:$0xf]
  %v220 = vld [vmem:[%s1 + $0x40] sm:$0xf]
  %v221 = vld [vmem:[%s1 + $0x44] sm:$0xf]
  %v222 = vld [vmem:[%s1 + $0x48] sm:$0xf]
  %v223 = vld [vmem:[%s1 + $0x4c] sm:$0xf]
  %v224 = vld [vmem:[%s1 + $0x50] sm:$0xf]
  %v225 = vld [vmem:[%s1 + $0x54] sm:$0xf]
  %v226 = vld [vmem:[%s1 + $0x58] sm:$0xf]
  %v227 = vld [vmem:[%s1 + $0x5c] sm:$0xf]
  %v228 = vld [vmem:[%s1 + $0x60] sm:$0xf]
  %v229 = vld [vmem:[%s1 + $0x64] sm:$0xf]
  %v230 = vld [vmem:[%s1 + $0x68] sm:$0xf]
  %v231 = vld [vmem:[%s1 + $0x6c] sm:$0xf]
  %v232 = vld [vmem:[%s1 + $0x70] sm:$0xf]
  %v233 = vld [vmem:[%s1 + $0x74] sm:$0xf]
  %v234 = vld [vmem:[%s1 + $0x78] sm:$0xf]
  %v235 = vld [vmem:[%s1 + $0x7c] sm:$0xf]
  %v236 = vld [vmem:[%s1 + $0x80] sm:$0xf]
  %v237 = vld [vmem:[%s1 + $0x84] sm:$0xf]
  %v238 = vld [vmem:[%s1 + $0x88] sm:$0xf]
  %v239 = vld [vmem:[%s1 + $0x8c] sm:$0xf]
  %v240 = vld [vmem:[%s1 + $0x90] sm:$0xf]
  %v241 = vld [vmem:[%s1 + $0x94] sm:$0xf]
  %v242 = vld [vmem:[%s1 + $0x98] sm:$0xf]
  %v243 = vld [vmem:[%s1 + $0x9c] sm:$0xf]
  %v244 = vld [vmem:[%s1 + $0xa0] sm:$0xf]
  %v245 = vld [vmem:[%s1 + $0xa4] sm:$0xf]
  %v246 = vld [vmem:[%s1 + $0xa8] sm:$0xf]
  %v247 = vld [vmem:[%s1 + $0xac] sm:$0xf]
  %v248 = vld [vmem:[%s1 + $0xb0] sm:$0xf]
  %v249 = vld [vmem:[%s1 + $0xb4] sm:$0xf]
  %v250 = vld [vmem:[%s1 + $0xb8] sm:$0xf]
  %v251 = vld [vmem:[%s1 + $0xbc] sm:$0xf]
  %v252 = vld [vmem:[%s1 + $0xc0] sm:$0xf]
  %v253 = vld [vmem:[%s1 + $0xc4] sm:$0xf]
  %v254 = vld [vmem:[%s1 + $0xc8] sm:$0xf]
  %v255 = vld [vmem:[%s1 + $0xcc] sm:$0xf]
  %v256 = vld [vmem:[%s1 + $0xd0] sm:$0xf]
  %v257 = vld [vmem:[%s1 + $0xd4] sm:$0xf]
  %v258 = vld [vmem:[%s1 + $0xd8] sm:$0xf]
  %v259 = vld [vmem:[%s1 + $0xdc] sm:$0xf]
  %v260 = vld [vmem:[%s1 + $0xe0] sm:$0xf]
  %v261 = vld [vmem:[%s1 + $0xe4] sm:$0xf]
  %v262 = vld [vmem:[%s1 + $0xe8] sm:$0xf]
  %v263 = vld [vmem:[%s1 + $0xec] sm:$0xf]
  %v264 = vld [vmem:[%s1 + $0xf0] sm:$0xf]
  %v265 = vld [vmem:[%s1 + $0xf4] sm:$0xf]
  %v266 = vld [vmem:[%s1 + $0xf8] sm:$0xf]
  %v267 = vld [vmem:[%s1 + $0xfc] sm:$0xf]
  %v268 = vld [vmem:[%s1 + $0x100] sm:$0xf]
  %v269 = vld [vmem:[%s1 + $0x104] sm:$0xf]
  %v270 = vld [vmem:[%s1 + $0x108] sm:$0xf]
  %v271 = vld [vmem:[%s1 + $0x10c] sm:$0xf]
  %v272 = vld [vmem:[%s1 + $0x110] sm:$0xf]
  %v273 = vld [vmem:[%s1 + $0x114] sm:$0xf]
  %v274 = vld [vmem:[%s1 + $0x118] sm:$0xf]
  %v275 = vld [vmem:[%s1 + $0x11c] sm:$0xf]
  %v276 = vld [vmem:[%s1 + $0x120] sm:$0xf]
  %v277 = vld [vmem:[%s1 + $0x124] sm:$0xf]
  %v278 = vld [vmem:[%s1 + $0x128] sm:$0xf]
  %v279 = vld [vmem:[%s1 + $0x12c] sm:$0xf]
  %v280 = vld [vmem:[%s1 + $0x130] sm:$0xf]
  %v281 = vld [vmem:[%s1 + $0x134] sm:$0xf]
  %v282 = vld [vmem:[%s1 + $0x138] sm:$0xf]
  %v283 = vld [vmem:[%s1 + $0x13c] sm:$0xf]
  %v476 = vunpack.c.l.b16 %v12
  %v477 = vunpack.c.h.b16 %v12
  %v478 = vunpack.c.l.b16 %v13
  %v479 = vunpack.c.h.b16 %v13
  %v480 = vunpack.c.l.b16 %v14
  %v481 = vunpack.c.l.b16 %v15
  %v482 = vunpack.c.h.b16 %v15
  %v483 = vunpack.c.l.b16 %v16
  %v484 = vunpack.c.h.b16 %v16
  %v485 = vunpack.c.l.b16 %v17
  %v486 = vunpack.c.l.b16 %v18
  %v487 = vunpack.c.h.b16 %v18
  %v488 = vunpack.c.l.b16 %v19
  %v489 = vunpack.c.h.b16 %v19
  %v490 = vunpack.c.l.b16 %v20
  %v491 = vunpack.c.l.b16 %v21
  %v492 = vunpack.c.h.b16 %v21
  %v493 = vunpack.c.l.b16 %v22
  %v494 = vunpack.c.h.b16 %v22
  %v495 = vunpack.c.l.b16 %v23
  %v496 = vunpack.c.l.b16 %v24
  %v497 = vunpack.c.h.b16 %v24
  %v498 = vunpack.c.l.b16 %v25
  %v499 = vunpack.c.h.b16 %v25
  %v500 = vunpack.c.l.b16 %v26
  %v501 = vunpack.c.l.b16 %v27
  %v502 = vunpack.c.h.b16 %v27
  %v503 = vunpack.c.l.b16 %v28
  %v504 = vunpack.c.h.b16 %v28
  %v505 = vunpack.c.l.b16 %v29
  %v506 = vunpack.c.l.b16 %v30
  %v507 = vunpack.c.h.b16 %v30
  %v508 = vunpack.c.l.b16 %v31
  %v509 = vunpack.c.h.b16 %v31
  %v510 = vunpack.c.l.b16 %v32
  %v511 = vunpack.c.l.b16 %v33
  %v512 = vunpack.c.h.b16 %v33
  %v513 = vunpack.c.l.b16 %v34
  %v514 = vunpack.c.h.b16 %v34
  %v515 = vunpack.c.l.b16 %v35
  %v516 = vunpack.c.l.b16 %v36
  %v517 = vunpack.c.h.b16 %v36
  %v518 = vunpack.c.l.b16 %v37
  %v519 = vunpack.c.h.b16 %v37
  %v520 = vunpack.c.l.b16 %v38
  %v521 = vunpack.c.l.b16 %v39
  %v522 = vunpack.c.h.b16 %v39
  %v523 = vunpack.c.l.b16 %v40
  %v524 = vunpack.c.h.b16 %v40
  %v525 = vunpack.c.l.b16 %v41
  %v526 = vunpack.c.l.b16 %v42
  %v527 = vunpack.c.h.b16 %v42
  %v528 = vunpack.c.l.b16 %v43
  %v529 = vunpack.c.h.b16 %v43
  %v530 = vunpack.c.l.b16 %v44
  %v531 = vunpack.c.l.b16 %v45
  %v532 = vunpack.c.h.b16 %v45
  %v533 = vunpack.c.l.b16 %v46
  %v534 = vunpack.c.h.b16 %v46
  %v535 = vunpack.c.l.b16 %v47
  %v536 = vunpack.c.l.b16 %v48
  %v537 = vunpack.c.h.b16 %v48
  %v538 = vunpack.c.l.b16 %v49
  %v539 = vunpack.c.h.b16 %v49
  %v540 = vunpack.c.l.b16 %v50
  %v541 = vunpack.c.l.b16 %v51
  %v542 = vunpack.c.h.b16 %v51
  %v543 = vunpack.c.l.b16 %v52
  %v544 = vunpack.c.h.b16 %v52
  %v545 = vunpack.c.l.b16 %v53
  %v546 = vunpack.c.l.b16 %v54
  %v547 = vunpack.c.h.b16 %v54
  %v548 = vunpack.c.l.b16 %v55
  %v549 = vunpack.c.h.b16 %v55
  %v550 = vunpack.c.l.b16 %v56
  %v551 = vunpack.c.l.b16 %v57
  %v552 = vunpack.c.h.b16 %v57
  %v553 = vunpack.c.l.b16 %v58
  %v554 = vunpack.c.h.b16 %v58
  %v555 = vunpack.c.l.b16 %v59
  %v556 = vunpack.c.l.b16 %v60
  %v557 = vunpack.c.h.b16 %v60
  %v558 = vunpack.c.l.b16 %v61
  %v559 = vunpack.c.h.b16 %v61
  %v560 = vunpack.c.l.b16 %v62
  %v561 = vunpack.c.l.b16 %v63
  %v562 = vunpack.c.h.b16 %v63
  %v563 = vunpack.c.l.b16 %v64
  %v564 = vunpack.c.h.b16 %v64
  %v565 = vunpack.c.l.b16 %v65
  %v566 = vunpack.c.l.b16 %v66
  %v567 = vunpack.c.h.b16 %v66
  %v568 = vunpack.c.l.b16 %v67
  %v569 = vunpack.c.h.b16 %v67
  %v570 = vunpack.c.l.b16 %v68
  %v571 = vunpack.c.l.b16 %v69
  %v572 = vunpack.c.h.b16 %v69
  %v573 = vunpack.c.l.b16 %v70
  %v574 = vunpack.c.h.b16 %v70
  %v575 = vunpack.c.l.b16 %v71
  %v576 = vunpack.c.l.b16 %v72
  %v577 = vunpack.c.h.b16 %v72
  %v578 = vunpack.c.l.b16 %v73
  %v579 = vunpack.c.h.b16 %v73
  %v580 = vunpack.c.l.b16 %v74
  %v581 = vunpack.c.l.b16 %v75
  %v582 = vunpack.c.h.b16 %v75
  %v583 = vunpack.c.l.b16 %v76
  %v584 = vunpack.c.h.b16 %v76
  %v585 = vunpack.c.l.b16 %v77
  %v586 = vunpack.c.l.b16 %v78
  %v587 = vunpack.c.h.b16 %v78
  %v588 = vunpack.c.l.b16 %v79
  %v589 = vunpack.c.h.b16 %v79
  %v590 = vunpack.c.l.b16 %v80
  %v591 = vunpack.c.l.b16 %v81
  %v592 = vunpack.c.h.b16 %v81
  %v593 = vunpack.c.l.b16 %v82
  %v594 = vunpack.c.h.b16 %v82
  %v595 = vunpack.c.l.b16 %v83
  %v596 = vunpack.c.l.b16 %v84
  %v597 = vunpack.c.h.b16 %v84
  %v598 = vunpack.c.l.b16 %v85
  %v599 = vunpack.c.h.b16 %v85
  %v600 = vunpack.c.l.b16 %v86
  %v601 = vunpack.c.l.b16 %v87
  %v602 = vunpack.c.h.b16 %v87
  %v603 = vunpack.c.l.b16 %v88
  %v604 = vunpack.c.h.b16 %v88
  %v605 = vunpack.c.l.b16 %v89
  %v606 = vunpack.c.l.b16 %v90
  %v607 = vunpack.c.h.b16 %v90
  %v608 = vunpack.c.l.b16 %v91
  %v609 = vunpack.c.h.b16 %v91
  %v610 = vunpack.c.l.b16 %v92
  %v611 = vunpack.c.l.b16 %v93
  %v612 = vunpack.c.h.b16 %v93
  %v613 = vunpack.c.l.b16 %v94
  %v614 = vunpack.c.h.b16 %v94
  %v615 = vunpack.c.l.b16 %v95
  %v616 = vunpack.c.l.b16 %v96
  %v617 = vunpack.c.h.b16 %v96
  %v618 = vunpack.c.l.b16 %v97
  %v619 = vunpack.c.h.b16 %v97
  %v620 = vunpack.c.l.b16 %v98
  %v621 = vunpack.c.l.b16 %v99
  %v622 = vunpack.c.h.b16 %v99
  %v623 = vunpack.c.l.b16 %v100
  %v624 = vunpack.c.h.b16 %v100
  %v625 = vunpack.c.l.b16 %v101
  %v626 = vunpack.c.l.b16 %v102
  %v627 = vunpack.c.h.b16 %v102
  %v628 = vunpack.c.l.b16 %v103
  %v629 = vunpack.c.h.b16 %v103
  %v630 = vunpack.c.l.b16 %v104
  %v631 = vunpack.c.l.b16 %v105
  %v632 = vunpack.c.h.b16 %v105
  %v633 = vunpack.c.l.b16 %v106
  %v634 = vunpack.c.h.b16 %v106
  %v635 = vunpack.c.l.b16 %v107
  %v636 = vunpack.c.l.b16 %v108
  %v637 = vunpack.c.h.b16 %v108
  %v638 = vunpack.c.l.b16 %v109
  %v639 = vunpack.c.h.b16 %v109
  %v640 = vunpack.c.l.b16 %v110
  %v641 = vunpack.c.l.b16 %v111
  %v642 = vunpack.c.h.b16 %v111
  %v643 = vunpack.c.l.b16 %v112
  %v644 = vunpack.c.h.b16 %v112
  %v645 = vunpack.c.l.b16 %v113
  %v646 = vunpack.c.l.b16 %v114
  %v647 = vunpack.c.h.b16 %v114
  %v648 = vunpack.c.l.b16 %v115
  %v649 = vunpack.c.h.b16 %v115
  %v650 = vunpack.c.l.b16 %v116
  %v651 = vunpack.c.l.b16 %v117
  %v652 = vunpack.c.h.b16 %v117
  %v653 = vunpack.c.l.b16 %v118
  %v654 = vunpack.c.h.b16 %v118
  %v655 = vunpack.c.l.b16 %v119
  %v656 = vunpack.c.l.b16 %v120
  %v657 = vunpack.c.h.b16 %v120
  %v658 = vunpack.c.l.b16 %v121
  %v659 = vunpack.c.h.b16 %v121
  %v660 = vunpack.c.l.b16 %v122
  %v661 = vunpack.c.l.b16 %v123
  %v662 = vunpack.c.h.b16 %v123
  %v663 = vunpack.c.l.b16 %v124
  %v664 = vunpack.c.h.b16 %v124
  %v665 = vunpack.c.l.b16 %v125
  %v666 = vunpack.c.l.b16 %v126
  %v667 = vunpack.c.h.b16 %v126
  %v668 = vunpack.c.l.b16 %v127
  %v669 = vunpack.c.h.b16 %v127
  %v670 = vunpack.c.l.b16 %v128
  %v671 = vunpack.c.l.b16 %v129
  %v672 = vunpack.c.h.b16 %v129
  %v673 = vunpack.c.l.b16 %v130
  %v674 = vunpack.c.h.b16 %v130
  %v675 = vunpack.c.l.b16 %v131
  %v676 = vunpack.c.l.b16 %v132
  %v677 = vunpack.c.h.b16 %v132
  %v678 = vunpack.c.l.b16 %v133
  %v679 = vunpack.c.h.b16 %v133
  %v680 = vunpack.c.l.b16 %v134
  %v681 = vunpack.c.l.b16 %v135
  %v682 = vunpack.c.h.b16 %v135
  %v683 = vunpack.c.l.b16 %v136
  %v684 = vunpack.c.h.b16 %v136
  %v685 = vunpack.c.l.b16 %v137
  %v686 = vunpack.c.l.b16 %v138
  %v687 = vunpack.c.h.b16 %v138
  %v688 = vunpack.c.l.b16 %v139
  %v689 = vunpack.c.h.b16 %v139
  %v690 = vunpack.c.l.b16 %v140
  %v691 = vunpack.c.l.b16 %v141
  %v692 = vunpack.c.h.b16 %v141
  %v693 = vunpack.c.l.b16 %v142
  %v694 = vunpack.c.h.b16 %v142
  %v695 = vunpack.c.l.b16 %v143
  %v696 = vunpack.c.l.b16 %v144
  %v697 = vunpack.c.h.b16 %v144
  %v698 = vunpack.c.l.b16 %v145
  %v699 = vunpack.c.h.b16 %v145
  %v700 = vunpack.c.l.b16 %v146
  %v701 = vunpack.c.l.b16 %v147
  %v702 = vunpack.c.h.b16 %v147
  %v703 = vunpack.c.l.b16 %v148
  %v704 = vunpack.c.h.b16 %v148
  %v705 = vunpack.c.l.b16 %v149
  %v706 = vunpack.c.l.b16 %v150
  %v707 = vunpack.c.h.b16 %v150
  %v708 = vunpack.c.l.b16 %v151
  %v709 = vunpack.c.h.b16 %v151
  %v710 = vunpack.c.l.b16 %v152
  %v711 = vunpack.c.l.b16 %v153
  %v712 = vunpack.c.h.b16 %v153
  %v713 = vunpack.c.l.b16 %v154
  %v714 = vunpack.c.h.b16 %v154
  %v715 = vunpack.c.l.b16 %v155
  %v716 = vunpack.c.l.b16 %v156
  %v717 = vunpack.c.h.b16 %v156
  %v718 = vunpack.c.l.b16 %v157
  %v719 = vunpack.c.h.b16 %v157
  %v720 = vunpack.c.l.b16 %v158
  %v721 = vunpack.c.l.b16 %v159
  %v722 = vunpack.c.h.b16 %v159
  %v723 = vunpack.c.l.b16 %v160
  %v724 = vunpack.c.h.b16 %v160
  %v725 = vunpack.c.l.b16 %v161
  %v726 = vunpack.c.l.b16 %v162
  %v727 = vunpack.c.h.b16 %v162
  %v728 = vunpack.c.l.b16 %v163
  %v729 = vunpack.c.h.b16 %v163
  %v730 = vunpack.c.l.b16 %v164
  %v731 = vunpack.c.l.b16 %v165
  %v732 = vunpack.c.h.b16 %v165
  %v733 = vunpack.c.l.b16 %v166
  %v734 = vunpack.c.h.b16 %v166
  %v735 = vunpack.c.l.b16 %v167
  %v736 = vunpack.c.l.b16 %v168
  %v737 = vunpack.c.h.b16 %v168
  %v738 = vunpack.c.l.b16 %v169
  %v739 = vunpack.c.h.b16 %v169
  %v740 = vunpack.c.l.b16 %v170
  %v741 = vunpack.c.l.b16 %v171
  %v742 = vunpack.c.h.b16 %v171
  %v743 = vunpack.c.l.b16 %v172
  %v744 = vunpack.c.h.b16 %v172
  %v745 = vunpack.c.l.b16 %v173
  %v746 = vunpack.c.l.b16 %v174
  %v747 = vunpack.c.h.b16 %v174
  %v748 = vunpack.c.l.b16 %v175
  %v749 = vunpack.c.h.b16 %v175
  %v750 = vunpack.c.l.b16 %v176
  %v751 = vunpack.c.l.b16 %v177
  %v752 = vunpack.c.h.b16 %v177
  %v753 = vunpack.c.l.b16 %v178
  %v754 = vunpack.c.h.b16 %v178
  %v755 = vunpack.c.l.b16 %v179
  %v756 = vunpack.c.l.b16 %v180
  %v757 = vunpack.c.h.b16 %v180
  %v758 = vunpack.c.l.b16 %v181
  %v759 = vunpack.c.h.b16 %v181
  %v760 = vunpack.c.l.b16 %v182
  %v761 = vunpack.c.l.b16 %v183
  %v762 = vunpack.c.h.b16 %v183
  %v763 = vunpack.c.l.b16 %v184
  %v764 = vunpack.c.h.b16 %v184
  %v765 = vunpack.c.l.b16 %v185
  %v766 = vunpack.c.l.b16 %v186
  %v767 = vunpack.c.h.b16 %v186
  %v768 = vunpack.c.l.b16 %v187
  %v769 = vunpack.c.h.b16 %v187
  %v770 = vunpack.c.l.b16 %v188
  %v771 = vunpack.c.l.b16 %v189
  %v772 = vunpack.c.h.b16 %v189
  %v773 = vunpack.c.l.b16 %v190
  %v774 = vunpack.c.h.b16 %v190
  %v775 = vunpack.c.l.b16 %v191
  %v776 = vunpack.c.l.b16 %v192
  %v777 = vunpack.c.h.b16 %v192
  %v778 = vunpack.c.l.b16 %v193
  %v779 = vunpack.c.h.b16 %v193
  %v780 = vunpack.c.l.b16 %v194
  %v781 = vunpack.c.l.b16 %v195
  %v782 = vunpack.c.h.b16 %v195
  %v783 = vunpack.c.l.b16 %v196
  %v784 = vunpack.c.h.b16 %v196
  %v785 = vunpack.c.l.b16 %v197
  %v786 = vunpack.c.l.b16 %v198
  %v787 = vunpack.c.h.b16 %v198
  %v788 = vunpack.c.l.b16 %v199
  %v789 = vunpack.c.h.b16 %v199
  %v790 = vunpack.c.l.b16 %v200
  %v791 = vunpack.c.l.b16 %v201
  %v792 = vunpack.c.h.b16 %v201
  %v793 = vunpack.c.l.b16 %v202
  %v794 = vunpack.c.h.b16 %v202
  %v795 = vunpack.c.l.b16 %v203
  %v796 = vpack.c.b16 %v481, %v476
  %v797 = vpack.c.b16 %v482, %v477
  %v798 = vpack.c.b16 %v483, %v478
  %v799 = vpack.c.b16 %v484, %v479
  %v800 = vpack.c.b16 %v485, %v480
  %v801 = vpack.c.b16 %v491, %v486
  %v802 = vpack.c.b16 %v492, %v487
  %v803 = vpack.c.b16 %v493, %v488
  %v804 = vpack.c.b16 %v494, %v489
  %v805 = vpack.c.b16 %v495, %v490
  %v806 = vpack.c.b16 %v501, %v496
  %v807 = vpack.c.b16 %v502, %v497
  %v808 = vpack.c.b16 %v503, %v498
  %v809 = vpack.c.b16 %v504, %v499
  %v810 = vpack.c.b16 %v505, %v500
  %v811 = vpack.c.b16 %v511, %v506
  %v812 = vpack.c.b16 %v512, %v507
  %v813 = vpack.c.b16 %v513, %v508
  %v814 = vpack.c.b16 %v514, %v509
  %v815 = vpack.c.b16 %v515, %v510
  %v816 = vpack.c.b16 %v521, %v516
  %v817 = vpack.c.b16 %v522, %v517
  %v818 = vpack.c.b16 %v523, %v518
  %v819 = vpack.c.b16 %v524, %v519
  %v820 = vpack.c.b16 %v525, %v520
  %v821 = vpack.c.b16 %v531, %v526
  %v822 = vpack.c.b16 %v532, %v527
  %v823 = vpack.c.b16 %v533, %v528
  %v824 = vpack.c.b16 %v534, %v529
  %v825 = vpack.c.b16 %v535, %v530
  %v826 = vpack.c.b16 %v541, %v536
  %v827 = vpack.c.b16 %v542, %v537
  %v828 = vpack.c.b16 %v543, %v538
  %v829 = vpack.c.b16 %v544, %v539
  %v830 = vpack.c.b16 %v545, %v540
  %v831 = vpack.c.b16 %v551, %v546
  %v832 = vpack.c.b16 %v552, %v547
  %v833 = vpack.c.b16 %v553, %v548
  %v834 = vpack.c.b16 %v554, %v549
  %v835 = vpack.c.b16 %v555, %v550
  %v836 = vpack.c.b16 %v561, %v556
  %v837 = vpack.c.b16 %v562, %v557
  %v838 = vpack.c.b16 %v563, %v558
  %v839 = vpack.c.b16 %v564, %v559
  %v840 = vpack.c.b16 %v565, %v560
  %v841 = vpack.c.b16 %v571, %v566
  %v842 = vpack.c.b16 %v572, %v567
  %v843 = vpack.c.b16 %v573, %v568
  %v844 = vpack.c.b16 %v574, %v569
  %v845 = vpack.c.b16 %v575, %v570
  %v846 = vpack.c.b16 %v581, %v576
  %v847 = vpack.c.b16 %v582, %v577
  %v848 = vpack.c.b16 %v583, %v578
  %v849 = vpack.c.b16 %v584, %v579
  %v850 = vpack.c.b16 %v585, %v580
  %v851 = vpack.c.b16 %v591, %v586
  %v852 = vpack.c.b16 %v592, %v587
  %v853 = vpack.c.b16 %v593, %v588
  %v854 = vpack.c.b16 %v594, %v589
  %v855 = vpack.c.b16 %v595, %v590
  %v856 = vpack.c.b16 %v601, %v596
  %v857 = vpack.c.b16 %v602, %v597
  %v858 = vpack.c.b16 %v603, %v598
  %v859 = vpack.c.b16 %v604, %v599
  %v860 = vpack.c.b16 %v605, %v600
  %v861 = vpack.c.b16 %v611, %v606
  %v862 = vpack.c.b16 %v612, %v607
  %v863 = vpack.c.b16 %v613, %v608
  %v864 = vpack.c.b16 %v614, %v609
  %v865 = vpack.c.b16 %v615, %v610
  %v866 = vpack.c.b16 %v621, %v616
  %v867 = vpack.c.b16 %v622, %v617
  %v868 = vpack.c.b16 %v623, %v618
  %v869 = vpack.c.b16 %v624, %v619
  %v870 = vpack.c.b16 %v625, %v620
  %v871 = vpack.c.b16 %v631, %v626
  %v872 = vpack.c.b16 %v632, %v627
  %v873 = vpack.c.b16 %v633, %v628
  %v874 = vpack.c.b16 %v634, %v629
  %v875 = vpack.c.b16 %v635, %v630
  %v876 = vpack.c.b16 %v641, %v636
  %v877 = vpack.c.b16 %v642, %v637
  %v878 = vpack.c.b16 %v643, %v638
  %v879 = vpack.c.b16 %v644, %v639
  %v880 = vpack.c.b16 %v645, %v640
  %v881 = vpack.c.b16 %v651, %v646
  %v882 = vpack.c.b16 %v652, %v647
  %v883 = vpack.c.b16 %v653, %v648
  %v884 = vpack.c.b16 %v654, %v649
  %v885 = vpack.c.b16 %v655, %v650
  %v886 = vpack.c.b16 %v661, %v656
  %v887 = vpack.c.b16 %v662, %v657
  %v888 = vpack.c.b16 %v663, %v658
  %v889 = vpack.c.b16 %v664, %v659
  %v890 = vpack.c.b16 %v665, %v660
  %v891 = vpack.c.b16 %v671, %v666
  %v892 = vpack.c.b16 %v672, %v667
  %v893 = vpack.c.b16 %v673, %v668
  %v894 = vpack.c.b16 %v674, %v669
  %v895 = vpack.c.b16 %v675, %v670
  %v896 = vpack.c.b16 %v681, %v676
  %v897 = vpack.c.b16 %v682, %v677
  %v898 = vpack.c.b16 %v683, %v678
  %v899 = vpack.c.b16 %v684, %v679
  %v900 = vpack.c.b16 %v685, %v680
  %v901 = vpack.c.b16 %v691, %v686
  %v902 = vpack.c.b16 %v692, %v687
  %v903 = vpack.c.b16 %v693, %v688
  %v904 = vpack.c.b16 %v694, %v689
  %v905 = vpack.c.b16 %v695, %v690
  %v906 = vpack.c.b16 %v701, %v696
  %v907 = vpack.c.b16 %v702, %v697
  %v908 = vpack.c.b16 %v703, %v698
  %v909 = vpack.c.b16 %v704, %v699
  %v910 = vpack.c.b16 %v705, %v700
  %v911 = vpack.c.b16 %v711, %v706
  %v912 = vpack.c.b16 %v712, %v707
  %v913 = vpack.c.b16 %v713, %v708
  %v914 = vpack.c.b16 %v714, %v709
  %v915 = vpack.c.b16 %v715, %v710
  %v916 = vpack.c.b16 %v721, %v716
  %v917 = vpack.c.b16 %v722, %v717
  %v918 = vpack.c.b16 %v723, %v718
  %v919 = vpack.c.b16 %v724, %v719
  %v920 = vpack.c.b16 %v725, %v720
  %v921 = vpack.c.b16 %v731, %v726
  %v922 = vpack.c.b16 %v732, %v727
  %v923 = vpack.c.b16 %v733, %v728
  %v924 = vpack.c.b16 %v734, %v729
  %v925 = vpack.c.b16 %v735, %v730
  %v926 = vpack.c.b16 %v741, %v736
  %v927 = vpack.c.b16 %v742, %v737
  %v928 = vpack.c.b16 %v743, %v738
  %v929 = vpack.c.b16 %v744, %v739
  %v930 = vpack.c.b16 %v745, %v740
  %v931 = vpack.c.b16 %v751, %v746
  %v932 = vpack.c.b16 %v752, %v747
  %v933 = vpack.c.b16 %v753, %v748
  %v934 = vpack.c.b16 %v754, %v749
  %v935 = vpack.c.b16 %v755, %v750
  %v936 = vpack.c.b16 %v761, %v756
  %v937 = vpack.c.b16 %v762, %v757
  %v938 = vpack.c.b16 %v763, %v758
  %v939 = vpack.c.b16 %v764, %v759
  %v940 = vpack.c.b16 %v765, %v760
  %v941 = vpack.c.b16 %v771, %v766
  %v942 = vpack.c.b16 %v772, %v767
  %v943 = vpack.c.b16 %v773, %v768
  %v944 = vpack.c.b16 %v774, %v769
  %v945 = vpack.c.b16 %v775, %v770
  %v946 = vpack.c.b16 %v781, %v776
  %v947 = vpack.c.b16 %v782, %v777
  %v948 = vpack.c.b16 %v783, %v778
  %v949 = vpack.c.b16 %v784, %v779
  %v950 = vpack.c.b16 %v785, %v780
  %v951 = vpack.c.b16 %v791, %v786
  %v952 = vpack.c.b16 %v792, %v787
  %v953 = vpack.c.b16 %v793, %v788
  %v954 = vpack.c.b16 %v794, %v789
  %v955 = vpack.c.b16 %v795, %v790
  %v1196 = vunpack.c.l.b16 %v204
  %v1197 = vunpack.c.l.b16 %v205
  %v1198 = vunpack.c.l.b16 %v206
  %v1199 = vunpack.c.l.b16 %v207
  %v1200 = vunpack.c.l.b16 %v208
  %v1201 = vunpack.c.l.b16 %v209
  %v1202 = vunpack.c.l.b16 %v210
  %v1203 = vunpack.c.l.b16 %v211
  %v1204 = vunpack.c.l.b16 %v212
  %v1205 = vunpack.c.l.b16 %v213
  %v1206 = vunpack.c.l.b16 %v214
  %v1207 = vunpack.c.l.b16 %v215
  %v1208 = vunpack.c.l.b16 %v216
  %v1209 = vunpack.c.l.b16 %v217
  %v1210 = vunpack.c.l.b16 %v218
  %v1211 = vunpack.c.l.b16 %v219
  %v1212 = vunpack.c.l.b16 %v220
  %v1213 = vunpack.c.l.b16 %v221
  %v1214 = vunpack.c.l.b16 %v222
  %v1215 = vunpack.c.l.b16 %v223
  %v1216 = vunpack.c.l.b16 %v224
  %v1217 = vunpack.c.l.b16 %v225
  %v1218 = vunpack.c.l.b16 %v226
  %v1219 = vunpack.c.l.b16 %v227
  %v1220 = vunpack.c.l.b16 %v228
  %v1221 = vunpack.c.l.b16 %v229
  %v1222 = vunpack.c.l.b16 %v230
  %v1223 = vunpack.c.l.b16 %v231
  %v1224 = vunpack.c.l.b16 %v232
  %v1225 = vunpack.c.l.b16 %v233
  %v1226 = vunpack.c.l.b16 %v234
  %v1227 = vunpack.c.l.b16 %v235
  %v1228 = vunpack.c.l.b16 %v236
  %v1229 = vunpack.c.l.b16 %v237
  %v1230 = vunpack.c.l.b16 %v238
  %v1231 = vunpack.c.l.b16 %v239
  %v1232 = vunpack.c.l.b16 %v240
  %v1233 = vunpack.c.l.b16 %v241
  %v1234 = vunpack.c.l.b16 %v242
  %v1235 = vunpack.c.l.b16 %v243
  %v1236 = vunpack.c.l.b16 %v244
  %v1237 = vunpack.c.l.b16 %v245
  %v1238 = vunpack.c.l.b16 %v246
  %v1239 = vunpack.c.l.b16 %v247
  %v1240 = vunpack.c.l.b16 %v248
  %v1241 = vunpack.c.l.b16 %v249
  %v1242 = vunpack.c.l.b16 %v250
  %v1243 = vunpack.c.l.b16 %v251
  %v1244 = vunpack.c.l.b16 %v252
  %v1245 = vunpack.c.l.b16 %v253
  %v1246 = vunpack.c.l.b16 %v254
  %v1247 = vunpack.c.l.b16 %v255
  %v1248 = vunpack.c.l.b16 %v256
  %v1249 = vunpack.c.l.b16 %v257
  %v1250 = vunpack.c.l.b16 %v258
  %v1251 = vunpack.c.l.b16 %v259
  %v1252 = vunpack.c.l.b16 %v260
  %v1253 = vunpack.c.l.b16 %v261
  %v1254 = vunpack.c.l.b16 %v262
  %v1255 = vunpack.c.l.b16 %v263
  %v1256 = vunpack.c.l.b16 %v264
  %v1257 = vunpack.c.l.b16 %v265
  %v1258 = vunpack.c.l.b16 %v266
  %v1259 = vunpack.c.l.b16 %v267
  %v1260 = vunpack.c.l.b16 %v268
  %v1261 = vunpack.c.l.b16 %v269
  %v1262 = vunpack.c.l.b16 %v270
  %v1263 = vunpack.c.l.b16 %v271
  %v1264 = vunpack.c.l.b16 %v272
  %v1265 = vunpack.c.l.b16 %v273
  %v1266 = vunpack.c.l.b16 %v274
  %v1267 = vunpack.c.l.b16 %v275
  %v1268 = vunpack.c.l.b16 %v276
  %v1269 = vunpack.c.l.b16 %v277
  %v1270 = vunpack.c.l.b16 %v278
  %v1271 = vunpack.c.l.b16 %v279
  %v1272 = vunpack.c.l.b16 %v280
  %v1273 = vunpack.c.l.b16 %v281
  %v1274 = vunpack.c.l.b16 %v282
  %v1275 = vunpack.c.l.b16 %v283
  %v1276 = vpack.c.b16 %v1197, %v1196
  %v1277 = vpack.c.b16 %v1199, %v1198
  %v1278 = vpack.c.b16 %v1201, %v1200
  %v1279 = vpack.c.b16 %v1203, %v1202
  %v1280 = vpack.c.b16 %v1205, %v1204
  %v1281 = vpack.c.b16 %v1207, %v1206
  %v1282 = vpack.c.b16 %v1209, %v1208
  %v1283 = vpack.c.b16 %v1211, %v1210
  %v1284 = vpack.c.b16 %v1213, %v1212
  %v1285 = vpack.c.b16 %v1215, %v1214
  %v1286 = vpack.c.b16 %v1217, %v1216
  %v1287 = vpack.c.b16 %v1219, %v1218
  %v1288 = vpack.c.b16 %v1221, %v1220
  %v1289 = vpack.c.b16 %v1223, %v1222
  %v1290 = vpack.c.b16 %v1225, %v1224
  %v1291 = vpack.c.b16 %v1227, %v1226
  %v1292 = vpack.c.b16 %v1229, %v1228
  %v1293 = vpack.c.b16 %v1231, %v1230
  %v1294 = vpack.c.b16 %v1233, %v1232
  %v1295 = vpack.c.b16 %v1235, %v1234
  %v1296 = vpack.c.b16 %v1237, %v1236
  %v1297 = vpack.c.b16 %v1239, %v1238
  %v1298 = vpack.c.b16 %v1241, %v1240
  %v1299 = vpack.c.b16 %v1243, %v1242
  %v1300 = vpack.c.b16 %v1245, %v1244
  %v1301 = vpack.c.b16 %v1247, %v1246
  %v1302 = vpack.c.b16 %v1249, %v1248
  %v1303 = vpack.c.b16 %v1251, %v1250
  %v1304 = vpack.c.b16 %v1253, %v1252
  %v1305 = vpack.c.b16 %v1255, %v1254
  %v1306 = vpack.c.b16 %v1257, %v1256
  %v1307 = vpack.c.b16 %v1259, %v1258
  %v1308 = vpack.c.b16 %v1261, %v1260
  %v1309 = vpack.c.b16 %v1263, %v1262
  %v1310 = vpack.c.b16 %v1265, %v1264
  %v1311 = vpack.c.b16 %v1267, %v1266
  %v1312 = vpack.c.b16 %v1269, %v1268
  %v1313 = vpack.c.b16 %v1271, %v1270
  %v1314 = vpack.c.b16 %v1273, %v1272
  %v1315 = vpack.c.b16 %v1275, %v1274
  %1356 = vmatprep.subr.bf16.mxu0 0
  %1357 = vmatpush1.bf16.msra.mxu0 %v1276
  %1358 = vmatprep.subr.bf16.mxu0 0
  %1359 = vmatpush1.bf16.msra.mxu0 %v1277
  %1360 = vmatprep.subr.bf16.mxu0 0
  %1361 = vmatpush1.bf16.msra.mxu0 %v1278
  %1362 = vmatprep.subr.bf16.mxu0 0
  %1363 = vmatpush1.bf16.msra.mxu0 %v1279
  %1364 = vmatprep.subr.bf16.mxu0 0
  %1365 = vmatpush1.bf16.msra.mxu0 %v1280
  %1366 = vmatprep.subr.bf16.mxu0 0
  %1367 = vmatpush1.bf16.msra.mxu0 %v1281
  %1368 = vmatprep.subr.bf16.mxu0 0
  %1369 = vmatpush1.bf16.msra.mxu0 %v1282
  %1370 = vmatprep.subr.bf16.mxu0 0
  %1371 = vmatpush1.bf16.msra.mxu0 %v1283
  %1372 = vmatprep.subr.bf16.mxu0 0
  %1373 = vmatpush1.bf16.msra.mxu0 %v1284
  %1374 = vmatprep.subr.bf16.mxu0 0
  %1375 = vmatpush1.bf16.msra.mxu0 %v1285
  %1376 = vmatprep.subr.bf16.mxu0 0
  %1377 = vmatpush1.bf16.msra.mxu0 %v1286
  %1378 = vmatprep.subr.bf16.mxu0 0
  %1379 = vmatpush1.bf16.msra.mxu0 %v1287
  %1380 = vmatprep.subr.bf16.mxu0 0
  %1381 = vmatpush1.bf16.msra.mxu0 %v1288
  %1382 = vmatprep.subr.bf16.mxu0 0
  %1383 = vmatpush1.bf16.msra.mxu0 %v1289
  %1384 = vmatprep.subr.bf16.mxu0 0
  %1385 = vmatpush1.bf16.msra.mxu0 %v1290
  %1386 = vmatprep.subr.bf16.mxu0 0
  %1387 = vmatpush1.bf16.msra.mxu0 %v1291
  %1388 = vmatprep.mubr.bf16.mxu0 %v797
  %1389 = vmatmul.mubr.bf16.gmra.mrb[0].mxu0 %v796
  %v1390 = vpop.f32.mrb[0].mxu0
  %v1391 = vadd.f32 0.0, %v1390
  %v1392 = vpop.f32.mrb[0].mxu0
  %v1393 = vpop.f32.mrb[0].mxu0
  %v1394 = vadd.f32 0.0, %v1393
  %v1395 = vpop.f32.mrb[0].mxu0
  %1396 = vmatprep.mubr.bf16.mxu0 %v802
  %1397 = vmatmul.mubr.bf16.gmra.mrb[0].mxu0 %v801
  %v1398 = vpop.f32.mrb[0].mxu0
  %v1399 = vadd.f32 0.0, %v1398
  %v1400 = vpop.f32.mrb[0].mxu0
  %v1401 = vpop.f32.mrb[0].mxu0
  %v1402 = vadd.f32 0.0, %v1401
  %v1403 = vpop.f32.mrb[0].mxu0
  %1404 = vmatprep.mubr.bf16.mxu0 %v807
  %1405 = vmatmul.mubr.bf16.gmra.mrb[0].mxu0 %v806
  %v1406 = vpop.f32.mrb[0].mxu0
  %v1407 = vadd.f32 0.0, %v1406
  %v1408 = vpop.f32.mrb[0].mxu0
  %v1409 = vpop.f32.mrb[0].mxu0
  %v1410 = vadd.f32 0.0, %v1409
  %v1411 = vpop.f32.mrb[0].mxu0
  %1412 = vmatprep.mubr.bf16.mxu0 %v812
  %1413 = vmatmul.mubr.bf16.gmra.mrb[0].mxu0 %v811
  %v1414 = vpop.f32.mrb[0].mxu0
  %v1415 = vadd.f32 0.0, %v1414
  %v1416 = vpop.f32.mrb[0].mxu0
  %v1417 = vpop.f32.mrb[0].mxu0
  %v1418 = vadd.f32 0.0, %v1417
  %v1419 = vpop.f32.mrb[0].mxu0
  %1420 = vmatprep.mubr.bf16.mxu0 %v817
  %1421 = vmatmul.mubr.bf16.gmra.mrb[0].mxu0 %v816
  %v1422 = vpop.f32.mrb[0].mxu0
  %v1423 = vadd.f32 0.0, %v1422
  %v1424 = vpop.f32.mrb[0].mxu0
  %v1425 = vpop.f32.mrb[0].mxu0
  %v1426 = vadd.f32 0.0, %v1425
  %v1427 = vpop.f32.mrb[0].mxu0
  %1428 = vmatprep.mubr.bf16.mxu0 %v822
  %1429 = vmatmul.mubr.bf16.gmra.mrb[0].mxu0 %v821
  %v1430 = vpop.f32.mrb[0].mxu0
  %v1431 = vadd.f32 0.0, %v1430
  %v1432 = vpop.f32.mrb[0].mxu0
  %v1433 = vpop.f32.mrb[0].mxu0
  %v1434 = vadd.f32 0.0, %v1433
  %v1435 = vpop.f32.mrb[0].mxu0
  %1436 = vmatprep.mubr.bf16.mxu0 %v827
  %1437 = vmatmul.mubr.bf16.gmra.mrb[0].mxu0 %v826
  %v1438 = vpop.f32.mrb[0].mxu0
  %v1439 = vadd.f32 0.0, %v1438
  %v1440 = vpop.f32.mrb[0].mxu0
  %v1441 = vpop.f32.mrb[0].mxu0
  %v1442 = vadd.f32 0.0, %v1441
  %v1443 = vpop.f32.mrb[0].mxu0
  %1444 = vmatprep.mubr.bf16.mxu0 %v832
  %1445 = vmatmul.mubr.bf16.gmra.mrb[0].mxu0 %v831
  %v1446 = vpop.f32.mrb[0].mxu0
  %v1447 = vadd.f32 0.0, %v1446
  %v1448 = vpop.f32.mrb[0].mxu0
  %v1449 = vpop.f32.mrb[0].mxu0
  %v1450 = vadd.f32 0.0, %v1449
  %v1451 = vpop.f32.mrb[0].mxu0
  %1452 = vmatprep.mubr.bf16.mxu0 %v837
  %1453 = vmatmul.mubr.bf16.gmra.mrb[0].mxu0 %v836
  %v1454 = vpop.f32.mrb[0].mxu0
  %v1455 = vadd.f32 0.0, %v1454
  %v1456 = vpop.f32.mrb[0].mxu0
  %v1457 = vpop.f32.mrb[0].mxu0
  %v1458 = vadd.f32 0.0, %v1457
  %v1459 = vpop.f32.mrb[0].mxu0
  %1460 = vmatprep.mubr.bf16.mxu0 %v842
  %1461 = vmatmul.mubr.bf16.gmra.mrb[0].mxu0 %v841
  %v1462 = vpop.f32.mrb[0].mxu0
  %v1463 = vadd.f32 0.0, %v1462
  %v1464 = vpop.f32.mrb[0].mxu0
  %v1465 = vpop.f32.mrb[0].mxu0
  %v1466 = vadd.f32 0.0, %v1465
  %v1467 = vpop.f32.mrb[0].mxu0
  %1468 = vmatprep.mubr.bf16.mxu0 %v847
  %1469 = vmatmul.mubr.bf16.gmra.mrb[0].mxu0 %v846
  %v1470 = vpop.f32.mrb[0].mxu0
  %v1471 = vadd.f32 0.0, %v1470
  %v1472 = vpop.f32.mrb[0].mxu0
  %v1473 = vpop.f32.mrb[0].mxu0
  %v1474 = vadd.f32 0.0, %v1473
  %v1475 = vpop.f32.mrb[0].mxu0
  %1476 = vmatprep.mubr.bf16.mxu0 %v852
  %1477 = vmatmul.mubr.bf16.gmra.mrb[0].mxu0 %v851
  %v1478 = vpop.f32.mrb[0].mxu0
  %v1479 = vadd.f32 0.0, %v1478
  %v1480 = vpop.f32.mrb[0].mxu0
  %v1481 = vpop.f32.mrb[0].mxu0
  %v1482 = vadd.f32 0.0, %v1481
  %v1483 = vpop.f32.mrb[0].mxu0
  %1484 = vmatprep.mubr.bf16.mxu0 %v857
  %1485 = vmatmul.mubr.bf16.gmra.mrb[0].mxu0 %v856
  %v1486 = vpop.f32.mrb[0].mxu0
  %v1487 = vadd.f32 0.0, %v1486
  %v1488 = vpop.f32.mrb[0].mxu0
  %v1489 = vpop.f32.mrb[0].mxu0
  %v1490 = vadd.f32 0.0, %v1489
  %v1491 = vpop.f32.mrb[0].mxu0
  %1492 = vmatprep.mubr.bf16.mxu0 %v862
  %1493 = vmatmul.mubr.bf16.gmra.mrb[0].mxu0 %v861
  %v1494 = vpop.f32.mrb[0].mxu0
  %v1495 = vadd.f32 0.0, %v1494
  %v1496 = vpop.f32.mrb[0].mxu0
  %v1497 = vpop.f32.mrb[0].mxu0
  %v1498 = vadd.f32 0.0, %v1497
  %v1499 = vpop.f32.mrb[0].mxu0
  %1500 = vmatprep.mubr.bf16.mxu0 %v867
  %1501 = vmatmul.mubr.bf16.gmra.mrb[0].mxu0 %v866
  %v1502 = vpop.f32.mrb[0].mxu0
  %v1503 = vadd.f32 0.0, %v1502
  %v1504 = vpop.f32.mrb[0].mxu0
  %v1505 = vpop.f32.mrb[0].mxu0
  %v1506 = vadd.f32 0.0, %v1505
  %v1507 = vpop.f32.mrb[0].mxu0
  %1508 = vmatprep.mubr.bf16.mxu0 %v872
  %1509 = vmatmul.mubr.bf16.gmra.mrb[0].mxu0 %v871
  %v1510 = vpop.f32.mrb[0].mxu0
  %v1511 = vadd.f32 0.0, %v1510
  %v1512 = vpop.f32.mrb[0].mxu0
  %v1513 = vpop.f32.mrb[0].mxu0
  %v1514 = vadd.f32 0.0, %v1513
  %v1515 = vpop.f32.mrb[0].mxu0
  %1516 = vmatprep.mubr.bf16.mxu0 %v877
  %1517 = vmatmul.mubr.bf16.gmra.mrb[0].mxu0 %v876
  %v1518 = vpop.f32.mrb[0].mxu0
  %v1519 = vadd.f32 0.0, %v1518
  %v1520 = vpop.f32.mrb[0].mxu0
  %v1521 = vpop.f32.mrb[0].mxu0
  %v1522 = vadd.f32 0.0, %v1521
  %v1523 = vpop.f32.mrb[0].mxu0
  %1524 = vmatprep.mubr.bf16.mxu0 %v882
  %1525 = vmatmul.mubr.bf16.gmra.mrb[0].mxu0 %v881
  %v1526 = vpop.f32.mrb[0].mxu0
  %v1527 = vadd.f32 0.0, %v1526
  %v1528 = vpop.f32.mrb[0].mxu0
  %v1529 = vpop.f32.mrb[0].mxu0
  %v1530 = vadd.f32 0.0, %v1529
  %v1531 = vpop.f32.mrb[0].mxu0
  %1532 = vmatprep.mubr.bf16.mxu0 %v887
  %1533 = vmatmul.mubr.bf16.gmra.mrb[0].mxu0 %v886
  %v1534 = vpop.f32.mrb[0].mxu0
  %v1535 = vadd.f32 0.0, %v1534
  %v1536 = vpop.f32.mrb[0].mxu0
  %v1537 = vpop.f32.mrb[0].mxu0
  %v1538 = vadd.f32 0.0, %v1537
  %v1539 = vpop.f32.mrb[0].mxu0
  %1540 = vmatprep.mubr.bf16.mxu0 %v892
  %1541 = vmatmul.mubr.bf16.gmra.mrb[0].mxu0 %v891
  %v1542 = vpop.f32.mrb[0].mxu0
  %v1543 = vadd.f32 0.0, %v1542
  %v1544 = vpop.f32.mrb[0].mxu0
  %v1545 = vpop.f32.mrb[0].mxu0
  %v1546 = vadd.f32 0.0, %v1545
  %v1547 = vpop.f32.mrb[0].mxu0
  %1548 = vmatprep.mubr.bf16.mxu0 %v897
  %1549 = vmatmul.mubr.bf16.gmra.mrb[0].mxu0 %v896
  %v1550 = vpop.f32.mrb[0].mxu0
  %v1551 = vadd.f32 0.0, %v1550
  %v1552 = vpop.f32.mrb[0].mxu0
  %v1553 = vpop.f32.mrb[0].mxu0
  %v1554 = vadd.f32 0.0, %v1553
  %v1555 = vpop.f32.mrb[0].mxu0
  %1556 = vmatprep.mubr.bf16.mxu0 %v902
  %1557 = vmatmul.mubr.bf16.gmra.mrb[0].mxu0 %v901
  %v1558 = vpop.f32.mrb[0].mxu0
  %v1559 = vadd.f32 0.0, %v1558
  %v1560 = vpop.f32.mrb[0].mxu0
  %v1561 = vpop.f32.mrb[0].mxu0
  %v1562 = vadd.f32 0.0, %v1561
  %v1563 = vpop.f32.mrb[0].mxu0
  %1564 = vmatprep.mubr.bf16.mxu0 %v907
  %1565 = vmatmul.mubr.bf16.gmra.mrb[0].mxu0 %v906
  %v1566 = vpop.f32.mrb[0].mxu0
  %v1567 = vadd.f32 0.0, %v1566
  %v1568 = vpop.f32.mrb[0].mxu0
  %v1569 = vpop.f32.mrb[0].mxu0
  %v1570 = vadd.f32 0.0, %v1569
  %v1571 = vpop.f32.mrb[0].mxu0
  %1572 = vmatprep.mubr.bf16.mxu0 %v912
  %1573 = vmatmul.mubr.bf16.gmra.mrb[0].mxu0 %v911
  %v1574 = vpop.f32.mrb[0].mxu0
  %v1575 = vadd.f32 0.0, %v1574
  %v1576 = vpop.f32.mrb[0].mxu0
  %v1577 = vpop.f32.mrb[0].mxu0
  %v1578 = vadd.f32 0.0, %v1577
  %v1579 = vpop.f32.mrb[0].mxu0
  %1580 = vmatprep.mubr.bf16.mxu0 %v917
  %1581 = vmatmul.mubr.bf16.gmra.mrb[0].mxu0 %v916
  %v1582 = vpop.f32.mrb[0].mxu0
  %v1583 = vadd.f32 0.0, %v1582
  %v1584 = vpop.f32.mrb[0].mxu0
  %v1585 = vpop.f32.mrb[0].mxu0
  %v1586 = vadd.f32 0.0, %v1585
  %v1587 = vpop.f32.mrb[0].mxu0
  %1588 = vmatprep.mubr.bf16.mxu0 %v922
  %1589 = vmatmul.mubr.bf16.gmra.mrb[0].mxu0 %v921
  %v1590 = vpop.f32.mrb[0].mxu0
  %v1591 = vadd.f32 0.0, %v1590
  %v1592 = vpop.f32.mrb[0].mxu0
  %v1593 = vpop.f32.mrb[0].mxu0
  %v1594 = vadd.f32 0.0, %v1593
  %v1595 = vpop.f32.mrb[0].mxu0
  %1596 = vmatprep.mubr.bf16.mxu0 %v927
  %1597 = vmatmul.mubr.bf16.gmra.mrb[0].mxu0 %v926
  %v1598 = vpop.f32.mrb[0].mxu0
  %v1599 = vadd.f32 0.0, %v1598
  %v1600 = vpop.f32.mrb[0].mxu0
  %v1601 = vpop.f32.mrb[0].mxu0
  %v1602 = vadd.f32 0.0, %v1601
  %v1603 = vpop.f32.mrb[0].mxu0
  %1604 = vmatprep.mubr.bf16.mxu0 %v932
  %1605 = vmatmul.mubr.bf16.gmra.mrb[0].mxu0 %v931
  %v1606 = vpop.f32.mrb[0].mxu0
  %v1607 = vadd.f32 0.0, %v1606
  %v1608 = vpop.f32.mrb[0].mxu0
  %v1609 = vpop.f32.mrb[0].mxu0
  %v1610 = vadd.f32 0.0, %v1609
  %v1611 = vpop.f32.mrb[0].mxu0
  %1612 = vmatprep.mubr.bf16.mxu0 %v937
  %1613 = vmatmul.mubr.bf16.gmra.mrb[0].mxu0 %v936
  %v1614 = vpop.f32.mrb[0].mxu0
  %v1615 = vadd.f32 0.0, %v1614
  %v1616 = vpop.f32.mrb[0].mxu0
  %v1617 = vpop.f32.mrb[0].mxu0
  %v1618 = vadd.f32 0.0, %v1617
  %v1619 = vpop.f32.mrb[0].mxu0
  %1620 = vmatprep.mubr.bf16.mxu0 %v942
  %1621 = vmatmul.mubr.bf16.gmra.mrb[0].mxu0 %v941
  %v1622 = vpop.f32.mrb[0].mxu0
  %v1623 = vadd.f32 0.0, %v1622
  %v1624 = vpop.f32.mrb[0].mxu0
  %v1625 = vpop.f32.mrb[0].mxu0
  %v1626 = vadd.f32 0.0, %v1625
  %v1627 = vpop.f32.mrb[0].mxu0
  %1628 = vmatprep.mubr.bf16.mxu0 %v947
  %1629 = vmatmul.mubr.bf16.gmra.mrb[0].mxu0 %v946
  %v1630 = vpop.f32.mrb[0].mxu0
  %v1631 = vadd.f32 0.0, %v1630
  %v1632 = vpop.f32.mrb[0].mxu0
  %v1633 = vpop.f32.mrb[0].mxu0
  %v1634 = vadd.f32 0.0, %v1633
  %v1635 = vpop.f32.mrb[0].mxu0
  %1636 = vmatprep.mubr.bf16.mxu0 %v952
  %1637 = vmatmul.mubr.bf16.gmra.mrb[0].mxu0 %v951
  %v1638 = vpop.f32.mrb[0].mxu0
  %v1639 = vadd.f32 0.0, %v1638
  %v1640 = vpop.f32.mrb[0].mxu0
  %v1641 = vpop.f32.mrb[0].mxu0
  %v1642 = vadd.f32 0.0, %v1641
  %v1643 = vpop.f32.mrb[0].mxu0
  %1644 = vdwg.mxu0
  %1645 = vmatprep.subr.bf16.mxu0 0
  %1646 = vmatpush1.bf16.msra.mxu0 %v1292
  %1647 = vmatprep.subr.bf16.mxu0 0
  %1648 = vmatpush1.bf16.msra.mxu0 %v1293
  %1649 = vmatprep.subr.bf16.mxu0 0
  %1650 = vmatpush1.bf16.msra.mxu0 %v1294
  %1651 = vmatprep.subr.bf16.mxu0 0
  %1652 = vmatpush1.bf16.msra.mxu0 %v1295
  %1653 = vmatprep.subr.bf16.mxu0 0
  %1654 = vmatpush1.bf16.msra.mxu0 %v1296
  %1655 = vmatprep.subr.bf16.mxu0 0
  %1656 = vmatpush1.bf16.msra.mxu0 %v1297
  %1657 = vmatprep.subr.bf16.mxu0 0
  %1658 = vmatpush1.bf16.msra.mxu0 %v1298
  %1659 = vmatprep.subr.bf16.mxu0 0
  %1660 = vmatpush1.bf16.msra.mxu0 %v1299
  %1661 = vmatprep.subr.bf16.mxu0 0
  %1662 = vmatpush1.bf16.msra.mxu0 %v1300
  %1663 = vmatprep.subr.bf16.mxu0 0
  %1664 = vmatpush1.bf16.msra.mxu0 %v1301
  %1665 = vmatprep.subr.bf16.mxu0 0
  %1666 = vmatpush1.bf16.msra.mxu0 %v1302
  %1667 = vmatprep.subr.bf16.mxu0 0
  %1668 = vmatpush1.bf16.msra.mxu0 %v1303
  %1669 = vmatprep.subr.bf16.mxu0 0
  %1670 = vmatpush1.bf16.msra.mxu0 %v1304
  %1671 = vmatprep.subr.bf16.mxu0 0
  %1672 = vmatpush1.bf16.msra.mxu0 %v1305
  %1673 = vmatprep.subr.bf16.mxu0 0
  %1674 = vmatpush1.bf16.msra.mxu0 %v1306
  %1675 = vmatprep.subr.bf16.mxu0 0
  %1676 = vmatpush1.bf16.msra.mxu0 %v1307
  %1677 = vmatprep.mubr.bf16.mxu0 %v799
  %1678 = vmatmul.mubr.bf16.gmra.mrb[0].mxu0 %v798
  %v1679 = vpop.f32.mrb[0].mxu0
  %v1680 = vadd.f32 %v1391, %v1679
  %v1681 = vpop.f32.mrb[0].mxu0
  %v1682 = vpop.f32.mrb[0].mxu0
  %v1683 = vadd.f32 %v1394, %v1682
  %v1684 = vpop.f32.mrb[0].mxu0
  %1685 = vmatprep.mubr.bf16.mxu0 %v804
  %1686 = vmatmul.mubr.bf16.gmra.mrb[0].mxu0 %v803
  %v1687 = vpop.f32.mrb[0].mxu0
  %v1688 = vadd.f32 %v1399, %v1687
  %v1689 = vpop.f32.mrb[0].mxu0
  %v1690 = vpop.f32.mrb[0].mxu0
  %v1691 = vadd.f32 %v1402, %v1690
  %v1692 = vpop.f32.mrb[0].mxu0
  %1693 = vmatprep.mubr.bf16.mxu0 %v809
  %1694 = vmatmul.mubr.bf16.gmra.mrb[0].mxu0 %v808
  %v1695 = vpop.f32.mrb[0].mxu0
  %v1696 = vadd.f32 %v1407, %v1695
  %v1697 = vpop.f32.mrb[0].mxu0
  %v1698 = vpop.f32.mrb[0].mxu0
  %v1699 = vadd.f32 %v1410, %v1698
  %v1700 = vpop.f32.mrb[0].mxu0
  %1701 = vmatprep.mubr.bf16.mxu0 %v814
  %1702 = vmatmul.mubr.bf16.gmra.mrb[0].mxu0 %v813
  %v1703 = vpop.f32.mrb[0].mxu0
  %v1704 = vadd.f32 %v1415, %v1703
  %v1705 = vpop.f32.mrb[0].mxu0
  %v1706 = vpop.f32.mrb[0].mxu0
  %v1707 = vadd.f32 %v1418, %v1706
  %v1708 = vpop.f32.mrb[0].mxu0
  %1709 = vmatprep.mubr.bf16.mxu0 %v819
  %1710 = vmatmul.mubr.bf16.gmra.mrb[0].mxu0 %v818
  %v1711 = vpop.f32.mrb[0].mxu0
  %v1712 = vadd.f32 %v1423, %v1711
  %v1713 = vpop.f32.mrb[0].mxu0
  %v1714 = vpop.f32.mrb[0].mxu0
  %v1715 = vadd.f32 %v1426, %v1714
  %v1716 = vpop.f32.mrb[0].mxu0
  %1717 = vmatprep.mubr.bf16.mxu0 %v824
  %1718 = vmatmul.mubr.bf16.gmra.mrb[0].mxu0 %v823
  %v1719 = vpop.f32.mrb[0].mxu0
  %v1720 = vadd.f32 %v1431, %v1719
  %v1721 = vpop.f32.mrb[0].mxu0
  %v1722 = vpop.f32.mrb[0].mxu0
  %v1723 = vadd.f32 %v1434, %v1722
  %v1724 = vpop.f32.mrb[0].mxu0
  %1725 = vmatprep.mubr.bf16.mxu0 %v829
  %1726 = vmatmul.mubr.bf16.gmra.mrb[0].mxu0 %v828
  %v1727 = vpop.f32.mrb[0].mxu0
  %v1728 = vadd.f32 %v1439, %v1727
  %v1729 = vpop.f32.mrb[0].mxu0
  %v1730 = vpop.f32.mrb[0].mxu0
  %v1731 = vadd.f32 %v1442, %v1730
  %v1732 = vpop.f32.mrb[0].mxu0
  %1733 = vmatprep.mubr.bf16.mxu0 %v834
  %1734 = vmatmul.mubr.bf16.gmra.mrb[0].mxu0 %v833
  %v1735 = vpop.f32.mrb[0].mxu0
  %v1736 = vadd.f32 %v1447, %v1735
  %v1737 = vpop.f32.mrb[0].mxu0
  %v1738 = vpop.f32.mrb[0].mxu0
  %v1739 = vadd.f32 %v1450, %v1738
  %v1740 = vpop.f32.mrb[0].mxu0
  %1741 = vmatprep.mubr.bf16.mxu0 %v839
  %1742 = vmatmul.mubr.bf16.gmra.mrb[0].mxu0 %v838
  %v1743 = vpop.f32.mrb[0].mxu0
  %v1744 = vadd.f32 %v1455, %v1743
  %v1745 = vpop.f32.mrb[0].mxu0
  %v1746 = vpop.f32.mrb[0].mxu0
  %v1747 = vadd.f32 %v1458, %v1746
  %v1748 = vpop.f32.mrb[0].mxu0
  %1749 = vmatprep.mubr.bf16.mxu0 %v844
  %1750 = vmatmul.mubr.bf16.gmra.mrb[0].mxu0 %v843
  %v1751 = vpop.f32.mrb[0].mxu0
  %v1752 = vadd.f32 %v1463, %v1751
  %v1753 = vpop.f32.mrb[0].mxu0
  %v1754 = vpop.f32.mrb[0].mxu0
  %v1755 = vadd.f32 %v1466, %v1754
  %v1756 = vpop.f32.mrb[0].mxu0
  %1757 = vmatprep.mubr.bf16.mxu0 %v849
  %1758 = vmatmul.mubr.bf16.gmra.mrb[0].mxu0 %v848
  %v1759 = vpop.f32.mrb[0].mxu0
  %v1760 = vadd.f32 %v1471, %v1759
  %v1761 = vpop.f32.mrb[0].mxu0
  %v1762 = vpop.f32.mrb[0].mxu0
  %v1763 = vadd.f32 %v1474, %v1762
  %v1764 = vpop.f32.mrb[0].mxu0
  %1765 = vmatprep.mubr.bf16.mxu0 %v854
  %1766 = vmatmul.mubr.bf16.gmra.mrb[0].mxu0 %v853
  %v1767 = vpop.f32.mrb[0].mxu0
  %v1768 = vadd.f32 %v1479, %v1767
  %v1769 = vpop.f32.mrb[0].mxu0
  %v1770 = vpop.f32.mrb[0].mxu0
  %v1771 = vadd.f32 %v1482, %v1770
  %v1772 = vpop.f32.mrb[0].mxu0
  %1773 = vmatprep.mubr.bf16.mxu0 %v859
  %1774 = vmatmul.mubr.bf16.gmra.mrb[0].mxu0 %v858
  %v1775 = vpop.f32.mrb[0].mxu0
  %v1776 = vadd.f32 %v1487, %v1775
  %v1777 = vpop.f32.mrb[0].mxu0
  %v1778 = vpop.f32.mrb[0].mxu0
  %v1779 = vadd.f32 %v1490, %v1778
  %v1780 = vpop.f32.mrb[0].mxu0
  %1781 = vmatprep.mubr.bf16.mxu0 %v864
  %1782 = vmatmul.mubr.bf16.gmra.mrb[0].mxu0 %v863
  %v1783 = vpop.f32.mrb[0].mxu0
  %v1784 = vadd.f32 %v1495, %v1783
  %v1785 = vpop.f32.mrb[0].mxu0
  %v1786 = vpop.f32.mrb[0].mxu0
  %v1787 = vadd.f32 %v1498, %v1786
  %v1788 = vpop.f32.mrb[0].mxu0
  %1789 = vmatprep.mubr.bf16.mxu0 %v869
  %1790 = vmatmul.mubr.bf16.gmra.mrb[0].mxu0 %v868
  %v1791 = vpop.f32.mrb[0].mxu0
  %v1792 = vadd.f32 %v1503, %v1791
  %v1793 = vpop.f32.mrb[0].mxu0
  %v1794 = vpop.f32.mrb[0].mxu0
  %v1795 = vadd.f32 %v1506, %v1794
  %v1796 = vpop.f32.mrb[0].mxu0
  %1797 = vmatprep.mubr.bf16.mxu0 %v874
  %1798 = vmatmul.mubr.bf16.gmra.mrb[0].mxu0 %v873
  %v1799 = vpop.f32.mrb[0].mxu0
  %v1800 = vadd.f32 %v1511, %v1799
  %v1801 = vpop.f32.mrb[0].mxu0
  %v1802 = vpop.f32.mrb[0].mxu0
  %v1803 = vadd.f32 %v1514, %v1802
  %v1804 = vpop.f32.mrb[0].mxu0
  %1805 = vmatprep.mubr.bf16.mxu0 %v879
  %1806 = vmatmul.mubr.bf16.gmra.mrb[0].mxu0 %v878
  %v1807 = vpop.f32.mrb[0].mxu0
  %v1808 = vadd.f32 %v1519, %v1807
  %v1809 = vpop.f32.mrb[0].mxu0
  %v1810 = vpop.f32.mrb[0].mxu0
  %v1811 = vadd.f32 %v1522, %v1810
  %v1812 = vpop.f32.mrb[0].mxu0
  %1813 = vmatprep.mubr.bf16.mxu0 %v884
  %1814 = vmatmul.mubr.bf16.gmra.mrb[0].mxu0 %v883
  %v1815 = vpop.f32.mrb[0].mxu0
  %v1816 = vadd.f32 %v1527, %v1815
  %v1817 = vpop.f32.mrb[0].mxu0
  %v1818 = vpop.f32.mrb[0].mxu0
  %v1819 = vadd.f32 %v1530, %v1818
  %v1820 = vpop.f32.mrb[0].mxu0
  %1821 = vmatprep.mubr.bf16.mxu0 %v889
  %1822 = vmatmul.mubr.bf16.gmra.mrb[0].mxu0 %v888
  %v1823 = vpop.f32.mrb[0].mxu0
  %v1824 = vadd.f32 %v1535, %v1823
  %v1825 = vpop.f32.mrb[0].mxu0
  %v1826 = vpop.f32.mrb[0].mxu0
  %v1827 = vadd.f32 %v1538, %v1826
  %v1828 = vpop.f32.mrb[0].mxu0
  %1829 = vmatprep.mubr.bf16.mxu0 %v894
  %1830 = vmatmul.mubr.bf16.gmra.mrb[0].mxu0 %v893
  %v1831 = vpop.f32.mrb[0].mxu0
  %v1832 = vadd.f32 %v1543, %v1831
  %v1833 = vpop.f32.mrb[0].mxu0
  %v1834 = vpop.f32.mrb[0].mxu0
  %v1835 = vadd.f32 %v1546, %v1834
  %v1836 = vpop.f32.mrb[0].mxu0
  %1837 = vmatprep.mubr.bf16.mxu0 %v899
  %1838 = vmatmul.mubr.bf16.gmra.mrb[0].mxu0 %v898
  %v1839 = vpop.f32.mrb[0].mxu0
  %v1840 = vadd.f32 %v1551, %v1839
  %v1841 = vpop.f32.mrb[0].mxu0
  %v1842 = vpop.f32.mrb[0].mxu0
  %v1843 = vadd.f32 %v1554, %v1842
  %v1844 = vpop.f32.mrb[0].mxu0
  %1845 = vmatprep.mubr.bf16.mxu0 %v904
  %1846 = vmatmul.mubr.bf16.gmra.mrb[0].mxu0 %v903
  %v1847 = vpop.f32.mrb[0].mxu0
  %v1848 = vadd.f32 %v1559, %v1847
  %v1849 = vpop.f32.mrb[0].mxu0
  %v1850 = vpop.f32.mrb[0].mxu0
  %v1851 = vadd.f32 %v1562, %v1850
  %v1852 = vpop.f32.mrb[0].mxu0
  %1853 = vmatprep.mubr.bf16.mxu0 %v909
  %1854 = vmatmul.mubr.bf16.gmra.mrb[0].mxu0 %v908
  %v1855 = vpop.f32.mrb[0].mxu0
  %v1856 = vadd.f32 %v1567, %v1855
  %v1857 = vpop.f32.mrb[0].mxu0
  %v1858 = vpop.f32.mrb[0].mxu0
  %v1859 = vadd.f32 %v1570, %v1858
  %v1860 = vpop.f32.mrb[0].mxu0
  %1861 = vmatprep.mubr.bf16.mxu0 %v914
  %1862 = vmatmul.mubr.bf16.gmra.mrb[0].mxu0 %v913
  %v1863 = vpop.f32.mrb[0].mxu0
  %v1864 = vadd.f32 %v1575, %v1863
  %v1865 = vpop.f32.mrb[0].mxu0
  %v1866 = vpop.f32.mrb[0].mxu0
  %v1867 = vadd.f32 %v1578, %v1866
  %v1868 = vpop.f32.mrb[0].mxu0
  %1869 = vmatprep.mubr.bf16.mxu0 %v919
  %1870 = vmatmul.mubr.bf16.gmra.mrb[0].mxu0 %v918
  %v1871 = vpop.f32.mrb[0].mxu0
  %v1872 = vadd.f32 %v1583, %v1871
  %v1873 = vpop.f32.mrb[0].mxu0
  %v1874 = vpop.f32.mrb[0].mxu0
  %v1875 = vadd.f32 %v1586, %v1874
  %v1876 = vpop.f32.mrb[0].mxu0
  %1877 = vmatprep.mubr.bf16.mxu0 %v924
  %1878 = vmatmul.mubr.bf16.gmra.mrb[0].mxu0 %v923
  %v1879 = vpop.f32.mrb[0].mxu0
  %v1880 = vadd.f32 %v1591, %v1879
  %v1881 = vpop.f32.mrb[0].mxu0
  %v1882 = vpop.f32.mrb[0].mxu0
  %v1883 = vadd.f32 %v1594, %v1882
  %v1884 = vpop.f32.mrb[0].mxu0
  %1885 = vmatprep.mubr.bf16.mxu0 %v929
  %1886 = vmatmul.mubr.bf16.gmra.mrb[0].mxu0 %v928
  %v1887 = vpop.f32.mrb[0].mxu0
  %v1888 = vadd.f32 %v1599, %v1887
  %v1889 = vpop.f32.mrb[0].mxu0
  %v1890 = vpop.f32.mrb[0].mxu0
  %v1891 = vadd.f32 %v1602, %v1890
  %v1892 = vpop.f32.mrb[0].mxu0
  %1893 = vmatprep.mubr.bf16.mxu0 %v934
  %1894 = vmatmul.mubr.bf16.gmra.mrb[0].mxu0 %v933
  %v1895 = vpop.f32.mrb[0].mxu0
  %v1896 = vadd.f32 %v1607, %v1895
  %v1897 = vpop.f32.mrb[0].mxu0
  %v1898 = vpop.f32.mrb[0].mxu0
  %v1899 = vadd.f32 %v1610, %v1898
  %v1900 = vpop.f32.mrb[0].mxu0
  %1901 = vmatprep.mubr.bf16.mxu0 %v939
  %1902 = vmatmul.mubr.bf16.gmra.mrb[0].mxu0 %v938
  %v1903 = vpop.f32.mrb[0].mxu0
  %v1904 = vadd.f32 %v1615, %v1903
  %v1905 = vpop.f32.mrb[0].mxu0
  %v1906 = vpop.f32.mrb[0].mxu0
  %v1907 = vadd.f32 %v1618, %v1906
  %v1908 = vpop.f32.mrb[0].mxu0
  %1909 = vmatprep.mubr.bf16.mxu0 %v944
  %1910 = vmatmul.mubr.bf16.gmra.mrb[0].mxu0 %v943
  %v1911 = vpop.f32.mrb[0].mxu0
  %v1912 = vadd.f32 %v1623, %v1911
  %v1913 = vpop.f32.mrb[0].mxu0
  %v1914 = vpop.f32.mrb[0].mxu0
  %v1915 = vadd.f32 %v1626, %v1914
  %v1916 = vpop.f32.mrb[0].mxu0
  %1917 = vmatprep.mubr.bf16.mxu0 %v949
  %1918 = vmatmul.mubr.bf16.gmra.mrb[0].mxu0 %v948
  %v1919 = vpop.f32.mrb[0].mxu0
  %v1920 = vadd.f32 %v1631, %v1919
  %v1921 = vpop.f32.mrb[0].mxu0
  %v1922 = vpop.f32.mrb[0].mxu0
  %v1923 = vadd.f32 %v1634, %v1922
  %v1924 = vpop.f32.mrb[0].mxu0
  %1925 = vmatprep.mubr.bf16.mxu0 %v954
  %1926 = vmatmul.mubr.bf16.gmra.mrb[0].mxu0 %v953
  %v1927 = vpop.f32.mrb[0].mxu0
  %v1928 = vadd.f32 %v1639, %v1927
  %v1929 = vpop.f32.mrb[0].mxu0
  %v1930 = vpop.f32.mrb[0].mxu0
  %v1931 = vadd.f32 %v1642, %v1930
  %v1932 = vpop.f32.mrb[0].mxu0
  %1933 = vdwg.mxu0
  %1934 = vmatprep.subr.bf16.mxu0 0
  %1935 = vmatpush1.bf16.msra.mxu0 %v1308
  %1936 = vmatprep.subr.bf16.mxu0 0
  %1937 = vmatpush1.bf16.msra.mxu0 %v1309
  %1938 = vmatprep.subr.bf16.mxu0 0
  %1939 = vmatpush1.bf16.msra.mxu0 %v1310
  %1940 = vmatprep.subr.bf16.mxu0 0
  %1941 = vmatpush1.bf16.msra.mxu0 %v1311
  %1942 = vmatprep.subr.bf16.mxu0 0
  %1943 = vmatpush1.bf16.msra.mxu0 %v1312
  %1944 = vmatprep.subr.bf16.mxu0 0
  %1945 = vmatpush1.bf16.msra.mxu0 %v1313
  %1946 = vmatprep.subr.bf16.mxu0 0
  %1947 = vmatpush1.bf16.msra.mxu0 %v1314
  %1948 = vmatprep.subr.bf16.mxu0 0
  %1949 = vmatpush1.bf16.msra.mxu0 %v1315
  %1950 = vmatprep.subr.bf16.mxu0 0
  %1951 = vmatpush1.bf16.msra.mxu0 0
  %1952 = vmatprep.subr.bf16.mxu0 0
  %1953 = vmatpush1.bf16.msra.mxu0 0
  %1954 = vmatprep.subr.bf16.mxu0 0
  %1955 = vmatpush1.bf16.msra.mxu0 0
  %1956 = vmatprep.subr.bf16.mxu0 0
  %1957 = vmatpush1.bf16.msra.mxu0 0
  %1958 = vmatprep.subr.bf16.mxu0 0
  %1959 = vmatpush1.bf16.msra.mxu0 0
  %1960 = vmatprep.subr.bf16.mxu0 0
  %1961 = vmatpush1.bf16.msra.mxu0 0
  %1962 = vmatprep.subr.bf16.mxu0 0
  %1963 = vmatpush1.bf16.msra.mxu0 0
  %1964 = vmatprep.subr.bf16.mxu0 0
  %1965 = vmatpush1.bf16.msra.mxu0 0
  %1966 = vmatprep.mubr.bf16.mxu0 0
  %1967 = vmatmul.mubr.bf16.gmra.mrb[0].mxu0 %v800
  %v1968 = vpop.f32.mrb[0].mxu0
  %v1969 = vadd.f32 %v1680, %v1968
  %v1970 = vpop.f32.mrb[0].mxu0
  %v1971 = vpop.f32.mrb[0].mxu0
  %v1972 = vadd.f32 %v1683, %v1971
  %v1973 = vpop.f32.mrb[0].mxu0
  %1974 = vmatprep.mubr.bf16.mxu0 0
  %1975 = vmatmul.mubr.bf16.gmra.mrb[0].mxu0 %v805
  %v1976 = vpop.f32.mrb[0].mxu0
  %v1977 = vadd.f32 %v1688, %v1976
  %v1978 = vpop.f32.mrb[0].mxu0
  %v1979 = vpop.f32.mrb[0].mxu0
  %v1980 = vadd.f32 %v1691, %v1979
  %v1981 = vpop.f32.mrb[0].mxu0
  %1982 = vmatprep.mubr.bf16.mxu0 0
  %1983 = vmatmul.mubr.bf16.gmra.mrb[0].mxu0 %v810
  %v1984 = vpop.f32.mrb[0].mxu0
  %v1985 = vadd.f32 %v1696, %v1984
  %v1986 = vpop.f32.mrb[0].mxu0
  %v1987 = vpop.f32.mrb[0].mxu0
  %v1988 = vadd.f32 %v1699, %v1987
  %v1989 = vpop.f32.mrb[0].mxu0
  %1990 = vmatprep.mubr.bf16.mxu0 0
  %1991 = vmatmul.mubr.bf16.gmra.mrb[0].mxu0 %v815
  %v1992 = vpop.f32.mrb[0].mxu0
  %v1993 = vadd.f32 %v1704, %v1992
  %v1994 = vpop.f32.mrb[0].mxu0
  %v1995 = vpop.f32.mrb[0].mxu0
  %v1996 = vadd.f32 %v1707, %v1995
  %v1997 = vpop.f32.mrb[0].mxu0
  %1998 = vmatprep.mubr.bf16.mxu0 0
  %1999 = vmatmul.mubr.bf16.gmra.mrb[0].mxu0 %v820
  %v2000 = vpop.f32.mrb[0].mxu0
  %v2001 = vadd.f32 %v1712, %v2000
  %v2002 = vpop.f32.mrb[0].mxu0
  %v2003 = vpop.f32.mrb[0].mxu0
  %v2004 = vadd.f32 %v1715, %v2003
  %v2005 = vpop.f32.mrb[0].mxu0
  %2006 = vmatprep.mubr.bf16.mxu0 0
  %2007 = vmatmul.mubr.bf16.gmra.mrb[0].mxu0 %v825
  %v2008 = vpop.f32.mrb[0].mxu0
  %v2009 = vadd.f32 %v1720, %v2008
  %v2010 = vpop.f32.mrb[0].mxu0
  %v2011 = vpop.f32.mrb[0].mxu0
  %v2012 = vadd.f32 %v1723, %v2011
  %v2013 = vpop.f32.mrb[0].mxu0
  %2014 = vmatprep.mubr.bf16.mxu0 0
  %2015 = vmatmul.mubr.bf16.gmra.mrb[0].mxu0 %v830
  %v2016 = vpop.f32.mrb[0].mxu0
  %v2017 = vadd.f32 %v1728, %v2016
  %v2018 = vpop.f32.mrb[0].mxu0
  %v2019 = vpop.f32.mrb[0].mxu0
  %v2020 = vadd.f32 %v1731, %v2019
  %v2021 = vpop.f32.mrb[0].mxu0
  %2022 = vmatprep.mubr.bf16.mxu0 0
  %2023 = vmatmul.mubr.bf16.gmra.mrb[0].mxu0 %v835
  %v2024 = vpop.f32.mrb[0].mxu0
  %v2025 = vadd.f32 %v1736, %v2024
  %v2026 = vpop.f32.mrb[0].mxu0
  %v2027 = vpop.f32.mrb[0].mxu0
  %v2028 = vadd.f32 %v1739, %v2027
  %v2029 = vpop.f32.mrb[0].mxu0
  %2030 = vmatprep.mubr.bf16.mxu0 0
  %2031 = vmatmul.mubr.bf16.gmra.mrb[0].mxu0 %v840
  %v2032 = vpop.f32.mrb[0].mxu0
  %v2033 = vadd.f32 %v1744, %v2032
  %v2034 = vpop.f32.mrb[0].mxu0
  %v2035 = vpop.f32.mrb[0].mxu0
  %v2036 = vadd.f32 %v1747, %v2035
  %v2037 = vpop.f32.mrb[0].mxu0
  %2038 = vmatprep.mubr.bf16.mxu0 0
  %2039 = vmatmul.mubr.bf16.gmra.mrb[0].mxu0 %v845
  %v2040 = vpop.f32.mrb[0].mxu0
  %v2041 = vadd.f32 %v1752, %v2040
  %v2042 = vpop.f32.mrb[0].mxu0
  %v2043 = vpop.f32.mrb[0].mxu0
  %v2044 = vadd.f32 %v1755, %v2043
  %v2045 = vpop.f32.mrb[0].mxu0
  %2046 = vmatprep.mubr.bf16.mxu0 0
  %2047 = vmatmul.mubr.bf16.gmra.mrb[0].mxu0 %v850
  %v2048 = vpop.f32.mrb[0].mxu0
  %v2049 = vadd.f32 %v1760, %v2048
  %v2050 = vpop.f32.mrb[0].mxu0
  %v2051 = vpop.f32.mrb[0].mxu0
  %v2052 = vadd.f32 %v1763, %v2051
  %v2053 = vpop.f32.mrb[0].mxu0
  %2054 = vmatprep.mubr.bf16.mxu0 0
  %2055 = vmatmul.mubr.bf16.gmra.mrb[0].mxu0 %v855
  %v2056 = vpop.f32.mrb[0].mxu0
  %v2057 = vadd.f32 %v1768, %v2056
  %v2058 = vpop.f32.mrb[0].mxu0
  %v2059 = vpop.f32.mrb[0].mxu0
  %v2060 = vadd.f32 %v1771, %v2059
  %v2061 = vpop.f32.mrb[0].mxu0
  %2062 = vmatprep.mubr.bf16.mxu0 0
  %2063 = vmatmul.mubr.bf16.gmra.mrb[0].mxu0 %v860
  %v2064 = vpop.f32.mrb[0].mxu0
  %v2065 = vadd.f32 %v1776, %v2064
  %v2066 = vpop.f32.mrb[0].mxu0
  %v2067 = vpop.f32.mrb[0].mxu0
  %v2068 = vadd.f32 %v1779, %v2067
  %v2069 = vpop.f32.mrb[0].mxu0
  %2070 = vmatprep.mubr.bf16.mxu0 0
  %2071 = vmatmul.mubr.bf16.gmra.mrb[0].mxu0 %v865
  %v2072 = vpop.f32.mrb[0].mxu0
  %v2073 = vadd.f32 %v1784, %v2072
  %v2074 = vpop.f32.mrb[0].mxu0
  %v2075 = vpop.f32.mrb[0].mxu0
  %v2076 = vadd.f32 %v1787, %v2075
  %v2077 = vpop.f32.mrb[0].mxu0
  %2078 = vmatprep.mubr.bf16.mxu0 0
  %2079 = vmatmul.mubr.bf16.gmra.mrb[0].mxu0 %v870
  %v2080 = vpop.f32.mrb[0].mxu0
  %v2081 = vadd.f32 %v1792, %v2080
  %v2082 = vpop.f32.mrb[0].mxu0
  %v2083 = vpop.f32.mrb[0].mxu0
  %v2084 = vadd.f32 %v1795, %v2083
  %v2085 = vpop.f32.mrb[0].mxu0
  %2086 = vmatprep.mubr.bf16.mxu0 0
  %2087 = vmatmul.mubr.bf16.gmra.mrb[0].mxu0 %v875
  %v2088 = vpop.f32.mrb[0].mxu0
  %v2089 = vadd.f32 %v1800, %v2088
  %v2090 = vpop.f32.mrb[0].mxu0
  %v2091 = vpop.f32.mrb[0].mxu0
  %v2092 = vadd.f32 %v1803, %v2091
  %v2093 = vpop.f32.mrb[0].mxu0
  %2094 = vmatprep.mubr.bf16.mxu0 0
  %2095 = vmatmul.mubr.bf16.gmra.mrb[0].mxu0 %v880
  %v2096 = vpop.f32.mrb[0].mxu0
  %v2097 = vadd.f32 %v1808, %v2096
  %v2098 = vpop.f32.mrb[0].mxu0
  %v2099 = vpop.f32.mrb[0].mxu0
  %v2100 = vadd.f32 %v1811, %v2099
  %v2101 = vpop.f32.mrb[0].mxu0
  %2102 = vmatprep.mubr.bf16.mxu0 0
  %2103 = vmatmul.mubr.bf16.gmra.mrb[0].mxu0 %v885
  %v2104 = vpop.f32.mrb[0].mxu0
  %v2105 = vadd.f32 %v1816, %v2104
  %v2106 = vpop.f32.mrb[0].mxu0
  %v2107 = vpop.f32.mrb[0].mxu0
  %v2108 = vadd.f32 %v1819, %v2107
  %v2109 = vpop.f32.mrb[0].mxu0
  %2110 = vmatprep.mubr.bf16.mxu0 0
  %2111 = vmatmul.mubr.bf16.gmra.mrb[0].mxu0 %v890
  %v2112 = vpop.f32.mrb[0].mxu0
  %v2113 = vadd.f32 %v1824, %v2112
  %v2114 = vpop.f32.mrb[0].mxu0
  %v2115 = vpop.f32.mrb[0].mxu0
  %v2116 = vadd.f32 %v1827, %v2115
  %v2117 = vpop.f32.mrb[0].mxu0
  %2118 = vmatprep.mubr.bf16.mxu0 0
  %2119 = vmatmul.mubr.bf16.gmra.mrb[0].mxu0 %v895
  %v2120 = vpop.f32.mrb[0].mxu0
  %v2121 = vadd.f32 %v1832, %v2120
  %v2122 = vpop.f32.mrb[0].mxu0
  %v2123 = vpop.f32.mrb[0].mxu0
  %v2124 = vadd.f32 %v1835, %v2123
  %v2125 = vpop.f32.mrb[0].mxu0
  %2126 = vmatprep.mubr.bf16.mxu0 0
  %2127 = vmatmul.mubr.bf16.gmra.mrb[0].mxu0 %v900
  %v2128 = vpop.f32.mrb[0].mxu0
  %v2129 = vadd.f32 %v1840, %v2128
  %v2130 = vpop.f32.mrb[0].mxu0
  %v2131 = vpop.f32.mrb[0].mxu0
  %v2132 = vadd.f32 %v1843, %v2131
  %v2133 = vpop.f32.mrb[0].mxu0
  %2134 = vmatprep.mubr.bf16.mxu0 0
  %2135 = vmatmul.mubr.bf16.gmra.mrb[0].mxu0 %v905
  %v2136 = vpop.f32.mrb[0].mxu0
  %v2137 = vadd.f32 %v1848, %v2136
  %v2138 = vpop.f32.mrb[0].mxu0
  %v2139 = vpop.f32.mrb[0].mxu0
  %v2140 = vadd.f32 %v1851, %v2139
  %v2141 = vpop.f32.mrb[0].mxu0
  %2142 = vmatprep.mubr.bf16.mxu0 0
  %2143 = vmatmul.mubr.bf16.gmra.mrb[0].mxu0 %v910
  %v2144 = vpop.f32.mrb[0].mxu0
  %v2145 = vadd.f32 %v1856, %v2144
  %v2146 = vpop.f32.mrb[0].mxu0
  %v2147 = vpop.f32.mrb[0].mxu0
  %v2148 = vadd.f32 %v1859, %v2147
  %v2149 = vpop.f32.mrb[0].mxu0
  %2150 = vmatprep.mubr.bf16.mxu0 0
  %2151 = vmatmul.mubr.bf16.gmra.mrb[0].mxu0 %v915
  %v2152 = vpop.f32.mrb[0].mxu0
  %v2153 = vadd.f32 %v1864, %v2152
  %v2154 = vpop.f32.mrb[0].mxu0
  %v2155 = vpop.f32.mrb[0].mxu0
  %v2156 = vadd.f32 %v1867, %v2155
  %v2157 = vpop.f32.mrb[0].mxu0
  %2158 = vmatprep.mubr.bf16.mxu0 0
  %2159 = vmatmul.mubr.bf16.gmra.mrb[0].mxu0 %v920
  %v2160 = vpop.f32.mrb[0].mxu0
  %v2161 = vadd.f32 %v1872, %v2160
  %v2162 = vpop.f32.mrb[0].mxu0
  %v2163 = vpop.f32.mrb[0].mxu0
  %v2164 = vadd.f32 %v1875, %v2163
  %v2165 = vpop.f32.mrb[0].mxu0
  %2166 = vmatprep.mubr.bf16.mxu0 0
  %2167 = vmatmul.mubr.bf16.gmra.mrb[0].mxu0 %v925
  %v2168 = vpop.f32.mrb[0].mxu0
  %v2169 = vadd.f32 %v1880, %v2168
  %v2170 = vpop.f32.mrb[0].mxu0
  %v2171 = vpop.f32.mrb[0].mxu0
  %v2172 = vadd.f32 %v1883, %v2171
  %v2173 = vpop.f32.mrb[0].mxu0
  %2174 = vmatprep.mubr.bf16.mxu0 0
  %2175 = vmatmul.mubr.bf16.gmra.mrb[0].mxu0 %v930
  %v2176 = vpop.f32.mrb[0].mxu0
  %v2177 = vadd.f32 %v1888, %v2176
  %v2178 = vpop.f32.mrb[0].mxu0
  %v2179 = vpop.f32.mrb[0].mxu0
  %v2180 = vadd.f32 %v1891, %v2179
  %v2181 = vpop.f32.mrb[0].mxu0
  %2182 = vmatprep.mubr.bf16.mxu0 0
  %2183 = vmatmul.mubr.bf16.gmra.mrb[0].mxu0 %v935
  %v2184 = vpop.f32.mrb[0].mxu0
  %v2185 = vadd.f32 %v1896, %v2184
  %v2186 = vpop.f32.mrb[0].mxu0
  %v2187 = vpop.f32.mrb[0].mxu0
  %v2188 = vadd.f32 %v1899, %v2187
  %v2189 = vpop.f32.mrb[0].mxu0
  %2190 = vmatprep.mubr.bf16.mxu0 0
  %2191 = vmatmul.mubr.bf16.gmra.mrb[0].mxu0 %v940
  %v2192 = vpop.f32.mrb[0].mxu0
  %v2193 = vadd.f32 %v1904, %v2192
  %v2194 = vpop.f32.mrb[0].mxu0
  %v2195 = vpop.f32.mrb[0].mxu0
  %v2196 = vadd.f32 %v1907, %v2195
  %v2197 = vpop.f32.mrb[0].mxu0
  %2198 = vmatprep.mubr.bf16.mxu0 0
  %2199 = vmatmul.mubr.bf16.gmra.mrb[0].mxu0 %v945
  %v2200 = vpop.f32.mrb[0].mxu0
  %v2201 = vadd.f32 %v1912, %v2200
  %v2202 = vpop.f32.mrb[0].mxu0
  %v2203 = vpop.f32.mrb[0].mxu0
  %v2204 = vadd.f32 %v1915, %v2203
  %v2205 = vpop.f32.mrb[0].mxu0
  %2206 = vmatprep.mubr.bf16.mxu0 0
  %2207 = vmatmul.mubr.bf16.gmra.mrb[0].mxu0 %v950
  %v2208 = vpop.f32.mrb[0].mxu0
  %v2209 = vadd.f32 %v1920, %v2208
  %v2210 = vpop.f32.mrb[0].mxu0
  %v2211 = vpop.f32.mrb[0].mxu0
  %v2212 = vadd.f32 %v1923, %v2211
  %v2213 = vpop.f32.mrb[0].mxu0
  %2214 = vmatprep.mubr.bf16.mxu0 0
  %2215 = vmatmul.mubr.bf16.gmra.mrb[0].mxu0 %v955
  %v2216 = vpop.f32.mrb[0].mxu0
  %v2217 = vadd.f32 %v1928, %v2216
  %v2218 = vpop.f32.mrb[0].mxu0
  %v2219 = vpop.f32.mrb[0].mxu0
  %v2220 = vadd.f32 %v1931, %v2219
  %v2221 = vpop.f32.mrb[0].mxu0
  %2222 = vdwg.mxu0
  %2223 = vst [vmem:[%s2] sm:$0xff] %v1969
  %2224 = vst [vmem:[%s2 + $0x8] sm:$0xff] %v1972
  %2225 = vst [vmem:[%s2 + $0x10] sm:$0xff] %v1977
  %2226 = vst [vmem:[%s2 + $0x18] sm:$0xff] %v1980
  %2227 = vst [vmem:[%s2 + $0x20] sm:$0xff] %v1985
  %2228 = vst [vmem:[%s2 + $0x28] sm:$0xff] %v1988
  %2229 = vst [vmem:[%s2 + $0x30] sm:$0xff] %v1993
  %2230 = vst [vmem:[%s2 + $0x38] sm:$0xff] %v1996
  %2231 = vst [vmem:[%s2 + $0x40] sm:$0xff] %v2001
  %2232 = vst [vmem:[%s2 + $0x48] sm:$0xff] %v2004
  %2233 = vst [vmem:[%s2 + $0x50] sm:$0xff] %v2009
  %2234 = vst [vmem:[%s2 + $0x58] sm:$0xff] %v2012
  %2235 = vst [vmem:[%s2 + $0x60] sm:$0xff] %v2017
  %2236 = vst [vmem:[%s2 + $0x68] sm:$0xff] %v2020
  %2237 = vst [vmem:[%s2 + $0x70] sm:$0xff] %v2025
  %2238 = vst [vmem:[%s2 + $0x78] sm:$0xff] %v2028
  %2239 = vst [vmem:[%s2 + $0x80] sm:$0xff] %v2033
  %2240 = vst [vmem:[%s2 + $0x88] sm:$0xff] %v2036
  %2241 = vst [vmem:[%s2 + $0x90] sm:$0xff] %v2041
  %2242 = vst [vmem:[%s2 + $0x98] sm:$0xff] %v2044
  %2243 = vst [vmem:[%s2 + $0xa0] sm:$0xff] %v2049
  %2244 = vst [vmem:[%s2 + $0xa8] sm:$0xff] %v2052
  %2245 = vst [vmem:[%s2 + $0xb0] sm:$0xff] %v2057
  %2246 = vst [vmem:[%s2 + $0xb8] sm:$0xff] %v2060
  %2247 = vst [vmem:[%s2 + $0xc0] sm:$0xff] %v2065
  %2248 = vst [vmem:[%s2 + $0xc8] sm:$0xff] %v2068
  %2249 = vst [vmem:[%s2 + $0xd0] sm:$0xff] %v2073
  %2250 = vst [vmem:[%s2 + $0xd8] sm:$0xff] %v2076
  %2251 = vst [vmem:[%s2 + $0xe0] sm:$0xff] %v2081
  %2252 = vst [vmem:[%s2 + $0xe8] sm:$0xff] %v2084
  %2253 = vst [vmem:[%s2 + $0xf0] sm:$0xff] %v2089
  %2254 = vst [vmem:[%s2 + $0xf8] sm:$0xff] %v2092
  %2255 = vst [vmem:[%s2 + $0x100] sm:$0xff] %v2097
  %2256 = vst [vmem:[%s2 + $0x108] sm:$0xff] %v2100
  %2257 = vst [vmem:[%s2 + $0x110] sm:$0xff] %v2105
  %2258 = vst [vmem:[%s2 + $0x118] sm:$0xff] %v2108
  %2259 = vst [vmem:[%s2 + $0x120] sm:$0xff] %v2113
  %2260 = vst [vmem:[%s2 + $0x128] sm:$0xff] %v2116
  %2261 = vst [vmem:[%s2 + $0x130] sm:$0xff] %v2121
  %2262 = vst [vmem:[%s2 + $0x138] sm:$0xff] %v2124
  %2263 = vst [vmem:[%s2 + $0x140] sm:$0xff] %v2129
  %2264 = vst [vmem:[%s2 + $0x148] sm:$0xff] %v2132
  %2265 = vst [vmem:[%s2 + $0x150] sm:$0xff] %v2137
  %2266 = vst [vmem:[%s2 + $0x158] sm:$0xff] %v2140
  %2267 = vst [vmem:[%s2 + $0x160] sm:$0xff] %v2145
  %2268 = vst [vmem:[%s2 + $0x168] sm:$0xff] %v2148
  %2269 = vst [vmem:[%s2 + $0x170] sm:$0xff] %v2153
  %2270 = vst [vmem:[%s2 + $0x178] sm:$0xff] %v2156
  %2271 = vst [vmem:[%s2 + $0x180] sm:$0xff] %v2161
  %2272 = vst [vmem:[%s2 + $0x188] sm:$0xff] %v2164
  %2273 = vst [vmem:[%s2 + $0x190] sm:$0xff] %v2169
  %2274 = vst [vmem:[%s2 + $0x198] sm:$0xff] %v2172
  %2275 = vst [vmem:[%s2 + $0x1a0] sm:$0xff] %v2177
  %2276 = vst [vmem:[%s2 + $0x1a8] sm:$0xff] %v2180
  %2277 = vst [vmem:[%s2 + $0x1b0] sm:$0xff] %v2185
  %2278 = vst [vmem:[%s2 + $0x1b8] sm:$0xff] %v2188
  %2279 = vst [vmem:[%s2 + $0x1c0] sm:$0xff] %v2193
  %2280 = vst [vmem:[%s2 + $0x1c8] sm:$0xff] %v2196
  %2281 = vst [vmem:[%s2 + $0x1d0] sm:$0xff] %v2201
  %2282 = vst [vmem:[%s2 + $0x1d8] sm:$0xff] %v2204
  %2283 = vst [vmem:[%s2 + $0x1e0] sm:$0xff] %v2209
  %2284 = vst [vmem:[%s2 + $0x1e8] sm:$0xff] %v2212
  %2285 = vst [vmem:[%s2 + $0x1f0] sm:$0xff] %v2217
  %2286 = vst [vmem:[%s2 + $0x1f8] sm:$0xff] %v2220
  // Predicated region
  $region10: #{_lambda_.10} parent=0 // pred_check
    _
  $region11: #{_lambda_.10} parent=0 // pred_check_branch
    %2288 = sbr.rel (0) target = $region13
  $region12: #{_lambda_.10} parent=0 // pred_region
    _
  $region13: #{_lambda_.10} parent=0 // pred_fallthru
    _
  // Predicated region
  $region14: #{_lambda_.10} parent=0 // pred_check
    _
  $region15: #{_lambda_.10} parent=0 // pred_check_branch
    %2290 = sbr.rel (0) target = $region17
  $region16: #{_lambda_.10} parent=0 // pred_region
    _
  $region17: #{_lambda_.10} parent=0 // pred_fallthru
    _

// kernel: _lambda_.11
$region0: #{_lambda_.11}
  #allocation0 [shape = 'u32[]', space=smem, size = 0x4, offset = 0x4, fixed_abs, tag = 'smem constant byte address 0x4 - core index']
  #allocation1 [shape = 'u32[144,128]{1,0:T(1,128)}', space=vmem, size = 0x12000, scoped, tag = 'internal scratch']
  %s0 = inlined_call_operand.vmem [shape: bf16[512,640], index: 0, kind: input, shape index: {}]
  %s1 = inlined_call_operand.vmem [shape: bf16[640,128], index: 1, kind: input, shape index: {}]
  %s2 = inlined_call_operand.vmem [shape: f32[1,128], index: 2, kind: input, shape index: {}]
  %s3 = inlined_call_operand.vmem [shape: f32[512,128], index: 3, kind: output, shape index: {}]
  %s4 = sld [smem:[#allocation0]]
  $region22: #{_lambda_.11} parent=0
    _
  %s6 = ssub.s32 1, %s4
  %s7 = scalar_select 0, %s6, %s4
  // Predicated region
  $region2: #{_lambda_.11} parent=0 // pred_check
    _
  $region3: #{_lambda_.11} parent=0 // pred_check_branch
    %9 = sbr.rel (0) target = $region5
  $region4: #{_lambda_.11} parent=0 // pred_region
    _
  $region5: #{_lambda_.11} parent=0 // pred_fallthru
    _
  // Predicated region
  $region6: #{_lambda_.11} parent=0 // pred_check
    _
  $region7: #{_lambda_.11} parent=0 // pred_check_branch
    %11 = sbr.rel (0) target = $region9
  $region8: #{_lambda_.11} parent=0 // pred_region
    _
  $region9: #{_lambda_.11} parent=0 // pred_fallthru
    _
  // Predicated region
  $region10: #{_lambda_.11} parent=0 // pred_check
    _
  $region11: #{_lambda_.11} parent=0 // pred_check_branch
    %13 = sbr.rel (0) target = $region13
  $region12: #{_lambda_.11} parent=0 // pred_region
    _
  $region13: #{_lambda_.11} parent=0 // pred_fallthru
    _
  %v15 = vld [vmem:[%s0] sm:$0xff]
  %v16 = vld [vmem:[%s0 + $0x8] sm:$0xff]
  %v17 = vld [vmem:[%s0 + $0x10] sm:$0xf]
  %v18 = vld [vmem:[%s0 + $0x14] sm:$0xff]
  %v19 = vld [vmem:[%s0 + $0x1c] sm:$0xff]
  %v20 = vld [vmem:[%s0 + $0x24] sm:$0xf]
  %v21 = vld [vmem:[%s0 + $0x28] sm:$0xff]
  %v22 = vld [vmem:[%s0 + $0x30] sm:$0xff]
  %v23 = vld [vmem:[%s0 + $0x38] sm:$0xf]
  %v24 = vld [vmem:[%s0 + $0x3c] sm:$0xff]
  %v25 = vld [vmem:[%s0 + $0x44] sm:$0xff]
  %v26 = vld [vmem:[%s0 + $0x4c] sm:$0xf]
  %v27 = vld [vmem:[%s0 + $0x50] sm:$0xff]
  %v28 = vld [vmem:[%s0 + $0x58] sm:$0xff]
  %v29 = vld [vmem:[%s0 + $0x60] sm:$0xf]
  %v30 = vld [vmem:[%s0 + $0x64] sm:$0xff]
  %v31 = vld [vmem:[%s0 + $0x6c] sm:$0xff]
  %v32 = vld [vmem:[%s0 + $0x74] sm:$0xf]
  %v33 = vld [vmem:[%s0 + $0x78] sm:$0xff]
  %v34 = vld [vmem:[%s0 + $0x80] sm:$0xff]
  %v35 = vld [vmem:[%s0 + $0x88] sm:$0xf]
  %v36 = vld [vmem:[%s0 + $0x8c] sm:$0xff]
  %v37 = vld [vmem:[%s0 + $0x94] sm:$0xff]
  %v38 = vld [vmem:[%s0 + $0x9c] sm:$0xf]
  %v39 = vld [vmem:[%s0 + $0xa0] sm:$0xff]
  %v40 = vld [vmem:[%s0 + $0xa8] sm:$0xff]
  %v41 = vld [vmem:[%s0 + $0xb0] sm:$0xf]
  %v42 = vld [vmem:[%s0 + $0xb4] sm:$0xff]
  %v43 = vld [vmem:[%s0 + $0xbc] sm:$0xff]
  %v44 = vld [vmem:[%s0 + $0xc4] sm:$0xf]
  %v45 = vld [vmem:[%s0 + $0xc8] sm:$0xff]
  %v46 = vld [vmem:[%s0 + $0xd0] sm:$0xff]
  %v47 = vld [vmem:[%s0 + $0xd8] sm:$0xf]
  %v48 = vld [vmem:[%s0 + $0xdc] sm:$0xff]
  %v49 = vld [vmem:[%s0 + $0xe4] sm:$0xff]
  %v50 = vld [vmem:[%s0 + $0xec] sm:$0xf]
  %v51 = vld [vmem:[%s0 + $0xf0] sm:$0xff]
  %v52 = vld [vmem:[%s0 + $0xf8] sm:$0xff]
  %v53 = vld [vmem:[%s0 + $0x100] sm:$0xf]
  %v54 = vld [vmem:[%s0 + $0x104] sm:$0xff]
  %v55 = vld [vmem:[%s0 + $0x10c] sm:$0xff]
  %v56 = vld [vmem:[%s0 + $0x114] sm:$0xf]
  %v57 = vld [vmem:[%s0 + $0x118] sm:$0xff]
  %v58 = vld [vmem:[%s0 + $0x120] sm:$0xff]
  %v59 = vld [vmem:[%s0 + $0x128] sm:$0xf]
  %v60 = vld [vmem:[%s0 + $0x12c] sm:$0xff]
  %v61 = vld [vmem:[%s0 + $0x134] sm:$0xff]
  %v62 = vld [vmem:[%s0 + $0x13c] sm:$0xf]
  %v63 = vld [vmem:[%s0 + $0x140] sm:$0xff]
  %v64 = vld [vmem:[%s0 + $0x148] sm:$0xff]
  %v65 = vld [vmem:[%s0 + $0x150] sm:$0xf]
  %v66 = vld [vmem:[%s0 + $0x154] sm:$0xff]
  %v67 = vld [vmem:[%s0 + $0x15c] sm:$0xff]
  %v68 = vld [vmem:[%s0 + $0x164] sm:$0xf]
  %v69 = vld [vmem:[%s0 + $0x168] sm:$0xff]
  %v70 = vld [vmem:[%s0 + $0x170] sm:$0xff]
  %v71 = vld [vmem:[%s0 + $0x178] sm:$0xf]
  %v72 = vld [vmem:[%s0 + $0x17c] sm:$0xff]
  %v73 = vld [vmem:[%s0 + $0x184] sm:$0xff]
  %v74 = vld [vmem:[%s0 + $0x18c] sm:$0xf]
  %v75 = vld [vmem:[%s0 + $0x190] sm:$0xff]
  %v76 = vld [vmem:[%s0 + $0x198] sm:$0xff]
  %v77 = vld [vmem:[%s0 + $0x1a0] sm:$0xf]
  %v78 = vld [vmem:[%s0 + $0x1a4] sm:$0xff]
  %v79 = vld [vmem:[%s0 + $0x1ac] sm:$0xff]
  %v80 = vld [vmem:[%s0 + $0x1b4] sm:$0xf]
  %v81 = vld [vmem:[%s0 + $0x1b8] sm:$0xff]
  %v82 = vld [vmem:[%s0 + $0x1c0] sm:$0xff]
  %v83 = vld [vmem:[%s0 + $0x1c8] sm:$0xf]
  %v84 = vld [vmem:[%s0 + $0x1cc] sm:$0xff]
  %v85 = vld [vmem:[%s0 + $0x1d4] sm:$0xff]
  %v86 = vld [vmem:[%s0 + $0x1dc] sm:$0xf]
  %v87 = vld [vmem:[%s0 + $0x1e0] sm:$0xff]
  %v88 = vld [vmem:[%s0 + $0x1e8] sm:$0xff]
  %v89 = vld [vmem:[%s0 + $0x1f0] sm:$0xf]
  %v90 = vld [vmem:[%s0 + $0x1f4] sm:$0xff]
  %v91 = vld [vmem:[%s0 + $0x1fc] sm:$0xff]
  %v92 = vld [vmem:[%s0 + $0x204] sm:$0xf]
  %v93 = vld [vmem:[%s0 + $0x208] sm:$0xff]
  %v94 = vld [vmem:[%s0 + $0x210] sm:$0xff]
  %v95 = vld [vmem:[%s0 + $0x218] sm:$0xf]
  %v96 = vld [vmem:[%s0 + $0x21c] sm:$0xff]
  %v97 = vld [vmem:[%s0 + $0x224] sm:$0xff]
  %v98 = vld [vmem:[%s0 + $0x22c] sm:$0xf]
  %v99 = vld [vmem:[%s0 + $0x230] sm:$0xff]
  %v100 = vld [vmem:[%s0 + $0x238] sm:$0xff]
  %v101 = vld [vmem:[%s0 + $0x240] sm:$0xf]
  %v102 = vld [vmem:[%s0 + $0x244] sm:$0xff]
  %v103 = vld [vmem:[%s0 + $0x24c] sm:$0xff]
  %v104 = vld [vmem:[%s0 + $0x254] sm:$0xf]
  %v105 = vld [vmem:[%s0 + $0x258] sm:$0xff]
  %v106 = vld [vmem:[%s0 + $0x260] sm:$0xff]
  %v107 = vld [vmem:[%s0 + $0x268] sm:$0xf]
  %v108 = vld [vmem:[%s0 + $0x26c] sm:$0xff]
  %v109 = vld [vmem:[%s0 + $0x274] sm:$0xff]
  %v110 = vld [vmem:[%s0 + $0x27c] sm:$0xf]
  %v111 = vld [vmem:[%s0 + $0x280] sm:$0xff]
  %v112 = vld [vmem:[%s0 + $0x288] sm:$0xff]
  %v113 = vld [vmem:[%s0 + $0x290] sm:$0xf]
  %v114 = vld [vmem:[%s0 + $0x294] sm:$0xff]
  %v115 = vld [vmem:[%s0 + $0x29c] sm:$0xff]
  %v116 = vld [vmem:[%s0 + $0x2a4] sm:$0xf]
  %v117 = vld [vmem:[%s0 + $0x2a8] sm:$0xff]
  %v118 = vld [vmem:[%s0 + $0x2b0] sm:$0xff]
  %v119 = vld [vmem:[%s0 + $0x2b8] sm:$0xf]
  %v120 = vld [vmem:[%s0 + $0x2bc] sm:$0xff]
  %v121 = vld [vmem:[%s0 + $0x2c4] sm:$0xff]
  %v122 = vld [vmem:[%s0 + $0x2cc] sm:$0xf]
  %v123 = vld [vmem:[%s0 + $0x2d0] sm:$0xff]
  %v124 = vld [vmem:[%s0 + $0x2d8] sm:$0xff]
  %v125 = vld [vmem:[%s0 + $0x2e0] sm:$0xf]
  %v126 = vld [vmem:[%s0 + $0x2e4] sm:$0xff]
  %v127 = vld [vmem:[%s0 + $0x2ec] sm:$0xff]
  %v128 = vld [vmem:[%s0 + $0x2f4] sm:$0xf]
  %v129 = vld [vmem:[%s0 + $0x2f8] sm:$0xff]
  %v130 = vld [vmem:[%s0 + $0x300] sm:$0xff]
  %v131 = vld [vmem:[%s0 + $0x308] sm:$0xf]
  %v132 = vld [vmem:[%s0 + $0x30c] sm:$0xff]
  %v133 = vld [vmem:[%s0 + $0x314] sm:$0xff]
  %v134 = vld [vmem:[%s0 + $0x31c] sm:$0xf]
  %v135 = vld [vmem:[%s0 + $0x320] sm:$0xff]
  %v136 = vld [vmem:[%s0 + $0x328] sm:$0xff]
  %v137 = vld [vmem:[%s0 + $0x330] sm:$0xf]
  %v138 = vld [vmem:[%s0 + $0x334] sm:$0xff]
  %v139 = vld [vmem:[%s0 + $0x33c] sm:$0xff]
  %v140 = vld [vmem:[%s0 + $0x344] sm:$0xf]
  %v141 = vld [vmem:[%s0 + $0x348] sm:$0xff]
  %v142 = vld [vmem:[%s0 + $0x350] sm:$0xff]
  %v143 = vld [vmem:[%s0 + $0x358] sm:$0xf]
  %v144 = vld [vmem:[%s0 + $0x35c] sm:$0xff]
  %v145 = vld [vmem:[%s0 + $0x364] sm:$0xff]
  %v146 = vld [vmem:[%s0 + $0x36c] sm:$0xf]
  %v147 = vld [vmem:[%s0 + $0x370] sm:$0xff]
  %v148 = vld [vmem:[%s0 + $0x378] sm:$0xff]
  %v149 = vld [vmem:[%s0 + $0x380] sm:$0xf]
  %v150 = vld [vmem:[%s0 + $0x384] sm:$0xff]
  %v151 = vld [vmem:[%s0 + $0x38c] sm:$0xff]
  %v152 = vld [vmem:[%s0 + $0x394] sm:$0xf]
  %v153 = vld [vmem:[%s0 + $0x398] sm:$0xff]
  %v154 = vld [vmem:[%s0 + $0x3a0] sm:$0xff]
  %v155 = vld [vmem:[%s0 + $0x3a8] sm:$0xf]
  %v156 = vld [vmem:[%s0 + $0x3ac] sm:$0xff]
  %v157 = vld [vmem:[%s0 + $0x3b4] sm:$0xff]
  %v158 = vld [vmem:[%s0 + $0x3bc] sm:$0xf]
  %v159 = vld [vmem:[%s0 + $0x3c0] sm:$0xff]
  %v160 = vld [vmem:[%s0 + $0x3c8] sm:$0xff]
  %v161 = vld [vmem:[%s0 + $0x3d0] sm:$0xf]
  %v162 = vld [vmem:[%s0 + $0x3d4] sm:$0xff]
  %v163 = vld [vmem:[%s0 + $0x3dc] sm:$0xff]
  %v164 = vld [vmem:[%s0 + $0x3e4] sm:$0xf]
  %v165 = vld [vmem:[%s0 + $0x3e8] sm:$0xff]
  %v166 = vld [vmem:[%s0 + $0x3f0] sm:$0xff]
  %v167 = vld [vmem:[%s0 + $0x3f8] sm:$0xf]
  %v168 = vld [vmem:[%s0 + $0x3fc] sm:$0xff]
  %v169 = vld [vmem:[%s0 + $0x404] sm:$0xff]
  %v170 = vld [vmem:[%s0 + $0x40c] sm:$0xf]
  %v171 = vld [vmem:[%s0 + $0x410] sm:$0xff]
  %v172 = vld [vmem:[%s0 + $0x418] sm:$0xff]
  %v173 = vld [vmem:[%s0 + $0x420] sm:$0xf]
  %v174 = vld [vmem:[%s0 + $0x424] sm:$0xff]
  %v175 = vld [vmem:[%s0 + $0x42c] sm:$0xff]
  %v176 = vld [vmem:[%s0 + $0x434] sm:$0xf]
  %v177 = vld [vmem:[%s0 + $0x438] sm:$0xff]
  %v178 = vld [vmem:[%s0 + $0x440] sm:$0xff]
  %v179 = vld [vmem:[%s0 + $0x448] sm:$0xf]
  %v180 = vld [vmem:[%s0 + $0x44c] sm:$0xff]
  %v181 = vld [vmem:[%s0 + $0x454] sm:$0xff]
  %v182 = vld [vmem:[%s0 + $0x45c] sm:$0xf]
  %v183 = vld [vmem:[%s0 + $0x460] sm:$0xff]
  %v184 = vld [vmem:[%s0 + $0x468] sm:$0xff]
  %v185 = vld [vmem:[%s0 + $0x470] sm:$0xf]
  %v186 = vld [vmem:[%s0 + $0x474] sm:$0xff]
  %v187 = vld [vmem:[%s0 + $0x47c] sm:$0xff]
  %v188 = vld [vmem:[%s0 + $0x484] sm:$0xf]
  %v189 = vld [vmem:[%s0 + $0x488] sm:$0xff]
  %v190 = vld [vmem:[%s0 + $0x490] sm:$0xff]
  %v191 = vld [vmem:[%s0 + $0x498] sm:$0xf]
  %v192 = vld [vmem:[%s0 + $0x49c] sm:$0xff]
  %v193 = vld [vmem:[%s0 + $0x4a4] sm:$0xff]
  %v194 = vld [vmem:[%s0 + $0x4ac] sm:$0xf]
  %v195 = vld [vmem:[%s0 + $0x4b0] sm:$0xff]
  %v196 = vld [vmem:[%s0 + $0x4b8] sm:$0xff]
  %v197 = vld [vmem:[%s0 + $0x4c0] sm:$0xf]
  %v198 = vld [vmem:[%s0 + $0x4c4] sm:$0xff]
  %v199 = vld [vmem:[%s0 + $0x4cc] sm:$0xff]
  %v200 = vld [vmem:[%s0 + $0x4d4] sm:$0xf]
  %v201 = vld [vmem:[%s0 + $0x4d8] sm:$0xff]
  %v202 = vld [vmem:[%s0 + $0x4e0] sm:$0xff]
  %v203 = vld [vmem:[%s0 + $0x4e8] sm:$0xf]
  %v204 = vld [vmem:[%s0 + $0x4ec] sm:$0xff]
  %v205 = vld [vmem:[%s0 + $0x4f4] sm:$0xff]
  %v206 = vld [vmem:[%s0 + $0x4fc] sm:$0xf]
  %v207 = vld [vmem:[%s1] sm:$0xf]
  %v208 = vld [vmem:[%s1 + $0x4] sm:$0xf]
  %v209 = vld [vmem:[%s1 + $0x8] sm:$0xf]
  %v210 = vld [vmem:[%s1 + $0xc] sm:$0xf]
  %v211 = vld [vmem:[%s1 + $0x10] sm:$0xf]
  %v212 = vld [vmem:[%s1 + $0x14] sm:$0xf]
  %v213 = vld [vmem:[%s1 + $0x18] sm:$0xf]
  %v214 = vld [vmem:[%s1 + $0x1c] sm:$0xf]
  %v215 = vld [vmem:[%s1 + $0x20] sm:$0xf]
  %v216 = vld [vmem:[%s1 + $0x24] sm:$0xf]
  %v217 = vld [vmem:[%s1 + $0x28] sm:$0xf]
  %v218 = vld [vmem:[%s1 + $0x2c] sm:$0xf]
  %v219 = vld [vmem:[%s1 + $0x30] sm:$0xf]
  %v220 = vld [vmem:[%s1 + $0x34] sm:$0xf]
  %v221 = vld [vmem:[%s1 + $0x38] sm:$0xf]
  %v222 = vld [vmem:[%s1 + $0x3c] sm:$0xf]
  %v223 = vld [vmem:[%s1 + $0x40] sm:$0xf]
  %v224 = vld [vmem:[%s1 + $0x44] sm:$0xf]
  %v225 = vld [vmem:[%s1 + $0x48] sm:$0xf]
  %v226 = vld [vmem:[%s1 + $0x4c] sm:$0xf]
  %v227 = vld [vmem:[%s1 + $0x50] sm:$0xf]
  %v228 = vld [vmem:[%s1 + $0x54] sm:$0xf]
  %v229 = vld [vmem:[%s1 + $0x58] sm:$0xf]
  %v230 = vld [vmem:[%s1 + $0x5c] sm:$0xf]
  %v231 = vld [vmem:[%s1 + $0x60] sm:$0xf]
  %v232 = vld [vmem:[%s1 + $0x64] sm:$0xf]
  %v233 = vld [vmem:[%s1 + $0x68] sm:$0xf]
  %v234 = vld [vmem:[%s1 + $0x6c] sm:$0xf]
  %v235 = vld [vmem:[%s1 + $0x70] sm:$0xf]
  %v236 = vld [vmem:[%s1 + $0x74] sm:$0xf]
  %v237 = vld [vmem:[%s1 + $0x78] sm:$0xf]
  %v238 = vld [vmem:[%s1 + $0x7c] sm:$0xf]
  %v239 = vld [vmem:[%s1 + $0x80] sm:$0xf]
  %v240 = vld [vmem:[%s1 + $0x84] sm:$0xf]
  %v241 = vld [vmem:[%s1 + $0x88] sm:$0xf]
  %v242 = vld [vmem:[%s1 + $0x8c] sm:$0xf]
  %v243 = vld [vmem:[%s1 + $0x90] sm:$0xf]
  %v244 = vld [vmem:[%s1 + $0x94] sm:$0xf]
  %v245 = vld [vmem:[%s1 + $0x98] sm:$0xf]
  %v246 = vld [vmem:[%s1 + $0x9c] sm:$0xf]
  %v247 = vld [vmem:[%s1 + $0xa0] sm:$0xf]
  %v248 = vld [vmem:[%s1 + $0xa4] sm:$0xf]
  %v249 = vld [vmem:[%s1 + $0xa8] sm:$0xf]
  %v250 = vld [vmem:[%s1 + $0xac] sm:$0xf]
  %v251 = vld [vmem:[%s1 + $0xb0] sm:$0xf]
  %v252 = vld [vmem:[%s1 + $0xb4] sm:$0xf]
  %v253 = vld [vmem:[%s1 + $0xb8] sm:$0xf]
  %v254 = vld [vmem:[%s1 + $0xbc] sm:$0xf]
  %v255 = vld [vmem:[%s1 + $0xc0] sm:$0xf]
  %v256 = vld [vmem:[%s1 + $0xc4] sm:$0xf]
  %v257 = vld [vmem:[%s1 + $0xc8] sm:$0xf]
  %v258 = vld [vmem:[%s1 + $0xcc] sm:$0xf]
  %v259 = vld [vmem:[%s1 + $0xd0] sm:$0xf]
  %v260 = vld [vmem:[%s1 + $0xd4] sm:$0xf]
  %v261 = vld [vmem:[%s1 + $0xd8] sm:$0xf]
  %v262 = vld [vmem:[%s1 + $0xdc] sm:$0xf]
  %v263 = vld [vmem:[%s1 + $0xe0] sm:$0xf]
  %v264 = vld [vmem:[%s1 + $0xe4] sm:$0xf]
  %v265 = vld [vmem:[%s1 + $0xe8] sm:$0xf]
  %v266 = vld [vmem:[%s1 + $0xec] sm:$0xf]
  %v267 = vld [vmem:[%s1 + $0xf0] sm:$0xf]
  %v268 = vld [vmem:[%s1 + $0xf4] sm:$0xf]
  %v269 = vld [vmem:[%s1 + $0xf8] sm:$0xf]
  %v270 = vld [vmem:[%s1 + $0xfc] sm:$0xf]
  %v271 = vld [vmem:[%s1 + $0x100] sm:$0xf]
  %v272 = vld [vmem:[%s1 + $0x104] sm:$0xf]
  %v273 = vld [vmem:[%s1 + $0x108] sm:$0xf]
  %v274 = vld [vmem:[%s1 + $0x10c] sm:$0xf]
  %v275 = vld [vmem:[%s1 + $0x110] sm:$0xf]
  %v276 = vld [vmem:[%s1 + $0x114] sm:$0xf]
  %v277 = vld [vmem:[%s1 + $0x118] sm:$0xf]
  %v278 = vld [vmem:[%s1 + $0x11c] sm:$0xf]
  %v279 = vld [vmem:[%s1 + $0x120] sm:$0xf]
  %v280 = vld [vmem:[%s1 + $0x124] sm:$0xf]
  %v281 = vld [vmem:[%s1 + $0x128] sm:$0xf]
  %v282 = vld [vmem:[%s1 + $0x12c] sm:$0xf]
  %v283 = vld [vmem:[%s1 + $0x130] sm:$0xf]
  %v284 = vld [vmem:[%s1 + $0x134] sm:$0xf]
  %v285 = vld [vmem:[%s1 + $0x138] sm:$0xf]
  %v286 = vld [vmem:[%s1 + $0x13c] sm:$0xf]
  %v287 = vld [vmem:[%s2] sm:$0x1]
  %v289 = vlaneseq
  %v290 = vshrl.u32 %v289, 7
  %v291 = vsub.s32 0, %v290
  %v292 = vrot.slane %v287, %v291
  %v486 = vunpack.c.l.b16 %v15
  %v487 = vunpack.c.h.b16 %v15
  %v488 = vunpack.c.l.b16 %v16
  %v489 = vunpack.c.h.b16 %v16
  %v490 = vunpack.c.l.b16 %v17
  %v491 = vunpack.c.l.b16 %v18
  %v492 = vunpack.c.h.b16 %v18
  %v493 = vunpack.c.l.b16 %v19
  %v494 = vunpack.c.h.b16 %v19
  %v495 = vunpack.c.l.b16 %v20
  %v496 = vunpack.c.l.b16 %v21
  %v497 = vunpack.c.h.b16 %v21
  %v498 = vunpack.c.l.b16 %v22
  %v499 = vunpack.c.h.b16 %v22
  %v500 = vunpack.c.l.b16 %v23
  %v501 = vunpack.c.l.b16 %v24
  %v502 = vunpack.c.h.b16 %v24
  %v503 = vunpack.c.l.b16 %v25
  %v504 = vunpack.c.h.b16 %v25
  %v505 = vunpack.c.l.b16 %v26
  %v506 = vunpack.c.l.b16 %v27
  %v507 = vunpack.c.h.b16 %v27
  %v508 = vunpack.c.l.b16 %v28
  %v509 = vunpack.c.h.b16 %v28
  %v510 = vunpack.c.l.b16 %v29
  %v511 = vunpack.c.l.b16 %v30
  %v512 = vunpack.c.h.b16 %v30
  %v513 = vunpack.c.l.b16 %v31
  %v514 = vunpack.c.h.b16 %v31
  %v515 = vunpack.c.l.b16 %v32
  %v516 = vunpack.c.l.b16 %v33
  %v517 = vunpack.c.h.b16 %v33
  %v518 = vunpack.c.l.b16 %v34
  %v519 = vunpack.c.h.b16 %v34
  %v520 = vunpack.c.l.b16 %v35
  %v521 = vunpack.c.l.b16 %v36
  %v522 = vunpack.c.h.b16 %v36
  %v523 = vunpack.c.l.b16 %v37
  %v524 = vunpack.c.h.b16 %v37
  %v525 = vunpack.c.l.b16 %v38
  %v526 = vunpack.c.l.b16 %v39
  %v527 = vunpack.c.h.b16 %v39
  %v528 = vunpack.c.l.b16 %v40
  %v529 = vunpack.c.h.b16 %v40
  %v530 = vunpack.c.l.b16 %v41
  %v531 = vunpack.c.l.b16 %v42
  %v532 = vunpack.c.h.b16 %v42
  %v533 = vunpack.c.l.b16 %v43
  %v534 = vunpack.c.h.b16 %v43
  %v535 = vunpack.c.l.b16 %v44
  %v536 = vunpack.c.l.b16 %v45
  %v537 = vunpack.c.h.b16 %v45
  %v538 = vunpack.c.l.b16 %v46
  %v539 = vunpack.c.h.b16 %v46
  %v540 = vunpack.c.l.b16 %v47
  %v541 = vunpack.c.l.b16 %v48
  %v542 = vunpack.c.h.b16 %v48
  %v543 = vunpack.c.l.b16 %v49
  %v544 = vunpack.c.h.b16 %v49
  %v545 = vunpack.c.l.b16 %v50
  %v546 = vunpack.c.l.b16 %v51
  %v547 = vunpack.c.h.b16 %v51
  %v548 = vunpack.c.l.b16 %v52
  %v549 = vunpack.c.h.b16 %v52
  %v550 = vunpack.c.l.b16 %v53
  %v551 = vunpack.c.l.b16 %v54
  %v552 = vunpack.c.h.b16 %v54
  %v553 = vunpack.c.l.b16 %v55
  %v554 = vunpack.c.h.b16 %v55
  %v555 = vunpack.c.l.b16 %v56
  %v556 = vunpack.c.l.b16 %v57
  %v557 = vunpack.c.h.b16 %v57
  %v558 = vunpack.c.l.b16 %v58
  %v559 = vunpack.c.h.b16 %v58
  %v560 = vunpack.c.l.b16 %v59
  %v561 = vunpack.c.l.b16 %v60
  %v562 = vunpack.c.h.b16 %v60
  %v563 = vunpack.c.l.b16 %v61
  %v564 = vunpack.c.h.b16 %v61
  %v565 = vunpack.c.l.b16 %v62
  %v566 = vunpack.c.l.b16 %v63
  %v567 = vunpack.c.h.b16 %v63
  %v568 = vunpack.c.l.b16 %v64
  %v569 = vunpack.c.h.b16 %v64
  %v570 = vunpack.c.l.b16 %v65
  %v571 = vunpack.c.l.b16 %v66
  %v572 = vunpack.c.h.b16 %v66
  %v573 = vunpack.c.l.b16 %v67
  %v574 = vunpack.c.h.b16 %v67
  %v575 = vunpack.c.l.b16 %v68
  %v576 = vunpack.c.l.b16 %v69
  %v577 = vunpack.c.h.b16 %v69
  %v578 = vunpack.c.l.b16 %v70
  %v579 = vunpack.c.h.b16 %v70
  %v580 = vunpack.c.l.b16 %v71
  %v581 = vunpack.c.l.b16 %v72
  %v582 = vunpack.c.h.b16 %v72
  %v583 = vunpack.c.l.b16 %v73
  %v584 = vunpack.c.h.b16 %v73
  %v585 = vunpack.c.l.b16 %v74
  %v586 = vunpack.c.l.b16 %v75
  %v587 = vunpack.c.h.b16 %v75
  %v588 = vunpack.c.l.b16 %v76
  %v589 = vunpack.c.h.b16 %v76
  %v590 = vunpack.c.l.b16 %v77
  %v591 = vunpack.c.l.b16 %v78
  %v592 = vunpack.c.h.b16 %v78
  %v593 = vunpack.c.l.b16 %v79
  %v594 = vunpack.c.h.b16 %v79
  %v595 = vunpack.c.l.b16 %v80
  %v596 = vunpack.c.l.b16 %v81
  %v597 = vunpack.c.h.b16 %v81
  %v598 = vunpack.c.l.b16 %v82
  %v599 = vunpack.c.h.b16 %v82
  %v600 = vunpack.c.l.b16 %v83
  %v601 = vunpack.c.l.b16 %v84
  %v602 = vunpack.c.h.b16 %v84
  %v603 = vunpack.c.l.b16 %v85
  %v604 = vunpack.c.h.b16 %v85
  %v605 = vunpack.c.l.b16 %v86
  %v606 = vunpack.c.l.b16 %v87
  %v607 = vunpack.c.h.b16 %v87
  %v608 = vunpack.c.l.b16 %v88
  %v609 = vunpack.c.h.b16 %v88
  %v610 = vunpack.c.l.b16 %v89
  %v611 = vunpack.c.l.b16 %v90
  %v612 = vunpack.c.h.b16 %v90
  %v613 = vunpack.c.l.b16 %v91
  %v614 = vunpack.c.h.b16 %v91
  %v615 = vunpack.c.l.b16 %v92
  %v616 = vunpack.c.l.b16 %v93
  %v617 = vunpack.c.h.b16 %v93
  %v618 = vunpack.c.l.b16 %v94
  %v619 = vunpack.c.h.b16 %v94
  %v620 = vunpack.c.l.b16 %v95
  %v621 = vunpack.c.l.b16 %v96
  %v622 = vunpack.c.h.b16 %v96
  %v623 = vunpack.c.l.b16 %v97
  %v624 = vunpack.c.h.b16 %v97
  %v625 = vunpack.c.l.b16 %v98
  %v626 = vunpack.c.l.b16 %v99
  %v627 = vunpack.c.h.b16 %v99
  %v628 = vunpack.c.l.b16 %v100
  %v629 = vunpack.c.h.b16 %v100
  %v630 = vunpack.c.l.b16 %v101
  %v631 = vunpack.c.l.b16 %v102
  %v632 = vunpack.c.h.b16 %v102
  %v633 = vunpack.c.l.b16 %v103
  %v634 = vunpack.c.h.b16 %v103
  %v635 = vunpack.c.l.b16 %v104
  %v636 = vunpack.c.l.b16 %v105
  %v637 = vunpack.c.h.b16 %v105
  %v638 = vunpack.c.l.b16 %v106
  %v639 = vunpack.c.h.b16 %v106
  %v640 = vunpack.c.l.b16 %v107
  %v641 = vunpack.c.l.b16 %v108
  %v642 = vunpack.c.h.b16 %v108
  %v643 = vunpack.c.l.b16 %v109
  %v644 = vunpack.c.h.b16 %v109
  %v645 = vunpack.c.l.b16 %v110
  %v646 = vunpack.c.l.b16 %v111
  %v647 = vunpack.c.h.b16 %v111
  %v648 = vunpack.c.l.b16 %v112
  %v649 = vunpack.c.h.b16 %v112
  %v650 = vunpack.c.l.b16 %v113
  %v651 = vunpack.c.l.b16 %v114
  %v652 = vunpack.c.h.b16 %v114
  %v653 = vunpack.c.l.b16 %v115
  %v654 = vunpack.c.h.b16 %v115
  %v655 = vunpack.c.l.b16 %v116
  %v656 = vunpack.c.l.b16 %v117
  %v657 = vunpack.c.h.b16 %v117
  %v658 = vunpack.c.l.b16 %v118
  %v659 = vunpack.c.h.b16 %v118
  %v660 = vunpack.c.l.b16 %v119
  %v661 = vunpack.c.l.b16 %v120
  %v662 = vunpack.c.h.b16 %v120
  %v663 = vunpack.c.l.b16 %v121
  %v664 = vunpack.c.h.b16 %v121
  %v665 = vunpack.c.l.b16 %v122
  %v666 = vunpack.c.l.b16 %v123
  %v667 = vunpack.c.h.b16 %v123
  %v668 = vunpack.c.l.b16 %v124
  %v669 = vunpack.c.h.b16 %v124
  %v670 = vunpack.c.l.b16 %v125
  %v671 = vunpack.c.l.b16 %v126
  %v672 = vunpack.c.h.b16 %v126
  %v673 = vunpack.c.l.b16 %v127
  %v674 = vunpack.c.h.b16 %v127
  %v675 = vunpack.c.l.b16 %v128
  %v676 = vunpack.c.l.b16 %v129
  %v677 = vunpack.c.h.b16 %v129
  %v678 = vunpack.c.l.b16 %v130
  %v679 = vunpack.c.h.b16 %v130
  %v680 = vunpack.c.l.b16 %v131
  %v681 = vunpack.c.l.b16 %v132
  %v682 = vunpack.c.h.b16 %v132
  %v683 = vunpack.c.l.b16 %v133
  %v684 = vunpack.c.h.b16 %v133
  %v685 = vunpack.c.l.b16 %v134
  %v686 = vunpack.c.l.b16 %v135
  %v687 = vunpack.c.h.b16 %v135
  %v688 = vunpack.c.l.b16 %v136
  %v689 = vunpack.c.h.b16 %v136
  %v690 = vunpack.c.l.b16 %v137
  %v691 = vunpack.c.l.b16 %v138
  %v692 = vunpack.c.h.b16 %v138
  %v693 = vunpack.c.l.b16 %v139
  %v694 = vunpack.c.h.b16 %v139
  %v695 = vunpack.c.l.b16 %v140
  %v696 = vunpack.c.l.b16 %v141
  %v697 = vunpack.c.h.b16 %v141
  %v698 = vunpack.c.l.b16 %v142
  %v699 = vunpack.c.h.b16 %v142
  %v700 = vunpack.c.l.b16 %v143
  %v701 = vunpack.c.l.b16 %v144
  %v702 = vunpack.c.h.b16 %v144
  %v703 = vunpack.c.l.b16 %v145
  %v704 = vunpack.c.h.b16 %v145
  %v705 = vunpack.c.l.b16 %v146
  %v706 = vunpack.c.l.b16 %v147
  %v707 = vunpack.c.h.b16 %v147
  %v708 = vunpack.c.l.b16 %v148
  %v709 = vunpack.c.h.b16 %v148
  %v710 = vunpack.c.l.b16 %v149
  %v711 = vunpack.c.l.b16 %v150
  %v712 = vunpack.c.h.b16 %v150
  %v713 = vunpack.c.l.b16 %v151
  %v714 = vunpack.c.h.b16 %v151
  %v715 = vunpack.c.l.b16 %v152
  %v716 = vunpack.c.l.b16 %v153
  %v717 = vunpack.c.h.b16 %v153
  %v718 = vunpack.c.l.b16 %v154
  %v719 = vunpack.c.h.b16 %v154
  %v720 = vunpack.c.l.b16 %v155
  %v721 = vunpack.c.l.b16 %v156
  %v722 = vunpack.c.h.b16 %v156
  %v723 = vunpack.c.l.b16 %v157
  %v724 = vunpack.c.h.b16 %v157
  %v725 = vunpack.c.l.b16 %v158
  %v726 = vunpack.c.l.b16 %v159
  %v727 = vunpack.c.h.b16 %v159
  %v728 = vunpack.c.l.b16 %v160
  %v729 = vunpack.c.h.b16 %v160
  %v730 = vunpack.c.l.b16 %v161
  %v731 = vunpack.c.l.b16 %v162
  %v732 = vunpack.c.h.b16 %v162
  %v733 = vunpack.c.l.b16 %v163
  %v734 = vunpack.c.h.b16 %v163
  %v735 = vunpack.c.l.b16 %v164
  %v736 = vunpack.c.l.b16 %v165
  %v737 = vunpack.c.h.b16 %v165
  %v738 = vunpack.c.l.b16 %v166
  %v739 = vunpack.c.h.b16 %v166
  %v740 = vunpack.c.l.b16 %v167
  %v741 = vunpack.c.l.b16 %v168
  %v742 = vunpack.c.h.b16 %v168
  %v743 = vunpack.c.l.b16 %v169
  %v744 = vunpack.c.h.b16 %v169
  %v745 = vunpack.c.l.b16 %v170
  %v746 = vunpack.c.l.b16 %v171
  %v747 = vunpack.c.h.b16 %v171
  %v748 = vunpack.c.l.b16 %v172
  %v749 = vunpack.c.h.b16 %v172
  %v750 = vunpack.c.l.b16 %v173
  %v751 = vunpack.c.l.b16 %v174
  %v752 = vunpack.c.h.b16 %v174
  %v753 = vunpack.c.l.b16 %v175
  %v754 = vunpack.c.h.b16 %v175
  %v755 = vunpack.c.l.b16 %v176
  %v756 = vunpack.c.l.b16 %v177
  %v757 = vunpack.c.h.b16 %v177
  %v758 = vunpack.c.l.b16 %v178
  %v759 = vunpack.c.h.b16 %v178
  %v760 = vunpack.c.l.b16 %v179
  %v761 = vunpack.c.l.b16 %v180
  %v762 = vunpack.c.h.b16 %v180
  %v763 = vunpack.c.l.b16 %v181
  %v764 = vunpack.c.h.b16 %v181
  %v765 = vunpack.c.l.b16 %v182
  %v766 = vunpack.c.l.b16 %v183
  %v767 = vunpack.c.h.b16 %v183
  %v768 = vunpack.c.l.b16 %v184
  %v769 = vunpack.c.h.b16 %v184
  %v770 = vunpack.c.l.b16 %v185
  %v771 = vunpack.c.l.b16 %v186
  %v772 = vunpack.c.h.b16 %v186
  %v773 = vunpack.c.l.b16 %v187
  %v774 = vunpack.c.h.b16 %v187
  %v775 = vunpack.c.l.b16 %v188
  %v776 = vunpack.c.l.b16 %v189
  %v777 = vunpack.c.h.b16 %v189
  %v778 = vunpack.c.l.b16 %v190
  %v779 = vunpack.c.h.b16 %v190
  %v780 = vunpack.c.l.b16 %v191
  %v781 = vunpack.c.l.b16 %v192
  %v782 = vunpack.c.h.b16 %v192
  %v783 = vunpack.c.l.b16 %v193
  %v784 = vunpack.c.h.b16 %v193
  %v785 = vunpack.c.l.b16 %v194
  %v786 = vunpack.c.l.b16 %v195
  %v787 = vunpack.c.h.b16 %v195
  %v788 = vunpack.c.l.b16 %v196
  %v789 = vunpack.c.h.b16 %v196
  %v790 = vunpack.c.l.b16 %v197
  %v791 = vunpack.c.l.b16 %v198
  %v792 = vunpack.c.h.b16 %v198
  %v793 = vunpack.c.l.b16 %v199
  %v794 = vunpack.c.h.b16 %v199
  %v795 = vunpack.c.l.b16 %v200
  %v796 = vunpack.c.l.b16 %v201
  %v797 = vunpack.c.h.b16 %v201
  %v798 = vunpack.c.l.b16 %v202
  %v799 = vunpack.c.h.b16 %v202
  %v800 = vunpack.c.l.b16 %v203
  %v801 = vunpack.c.l.b16 %v204
  %v802 = vunpack.c.h.b16 %v204
  %v803 = vunpack.c.l.b16 %v205
  %v804 = vunpack.c.h.b16 %v205
  %v805 = vunpack.c.l.b16 %v206
  %v806 = vpack.c.b16 %v491, %v486
  %v807 = vpack.c.b16 %v492, %v487
  %v808 = vpack.c.b16 %v493, %v488
  %v809 = vpack.c.b16 %v494, %v489
  %v810 = vpack.c.b16 %v495, %v490
  %v811 = vpack.c.b16 %v501, %v496
  %v812 = vpack.c.b16 %v502, %v497
  %v813 = vpack.c.b16 %v503, %v498
  %v814 = vpack.c.b16 %v504, %v499
  %v815 = vpack.c.b16 %v505, %v500
  %v816 = vpack.c.b16 %v511, %v506
  %v817 = vpack.c.b16 %v512, %v507
  %v818 = vpack.c.b16 %v513, %v508
  %v819 = vpack.c.b16 %v514, %v509
  %v820 = vpack.c.b16 %v515, %v510
  %v821 = vpack.c.b16 %v521, %v516
  %v822 = vpack.c.b16 %v522, %v517
  %v823 = vpack.c.b16 %v523, %v518
  %v824 = vpack.c.b16 %v524, %v519
  %v825 = vpack.c.b16 %v525, %v520
  %v826 = vpack.c.b16 %v531, %v526
  %v827 = vpack.c.b16 %v532, %v527
  %v828 = vpack.c.b16 %v533, %v528
  %v829 = vpack.c.b16 %v534, %v529
  %v830 = vpack.c.b16 %v535, %v530
  %v831 = vpack.c.b16 %v541, %v536
  %v832 = vpack.c.b16 %v542, %v537
  %v833 = vpack.c.b16 %v543, %v538
  %v834 = vpack.c.b16 %v544, %v539
  %v835 = vpack.c.b16 %v545, %v540
  %v836 = vpack.c.b16 %v551, %v546
  %v837 = vpack.c.b16 %v552, %v547
  %v838 = vpack.c.b16 %v553, %v548
  %v839 = vpack.c.b16 %v554, %v549
  %v840 = vpack.c.b16 %v555, %v550
  %v841 = vpack.c.b16 %v561, %v556
  %v842 = vpack.c.b16 %v562, %v557
  %v843 = vpack.c.b16 %v563, %v558
  %v844 = vpack.c.b16 %v564, %v559
  %v845 = vpack.c.b16 %v565, %v560
  %v846 = vpack.c.b16 %v571, %v566
  %v847 = vpack.c.b16 %v572, %v567
  %v848 = vpack.c.b16 %v573, %v568
  %v849 = vpack.c.b16 %v574, %v569
  %v850 = vpack.c.b16 %v575, %v570
  %v851 = vpack.c.b16 %v581, %v576
  %v852 = vpack.c.b16 %v582, %v577
  %v853 = vpack.c.b16 %v583, %v578
  %v854 = vpack.c.b16 %v584, %v579
  %v855 = vpack.c.b16 %v585, %v580
  %v856 = vpack.c.b16 %v591, %v586
  %v857 = vpack.c.b16 %v592, %v587
  %v858 = vpack.c.b16 %v593, %v588
  %v859 = vpack.c.b16 %v594, %v589
  %v860 = vpack.c.b16 %v595, %v590
  %v861 = vpack.c.b16 %v601, %v596
  %v862 = vpack.c.b16 %v602, %v597
  %v863 = vpack.c.b16 %v603, %v598
  %v864 = vpack.c.b16 %v604, %v599
  %v865 = vpack.c.b16 %v605, %v600
  %v866 = vpack.c.b16 %v611, %v606
  %v867 = vpack.c.b16 %v612, %v607
  %v868 = vpack.c.b16 %v613, %v608
  %v869 = vpack.c.b16 %v614, %v609
  %v870 = vpack.c.b16 %v615, %v610
  %v871 = vpack.c.b16 %v621, %v616
  %v872 = vpack.c.b16 %v622, %v617
  %v873 = vpack.c.b16 %v623, %v618
  %v874 = vpack.c.b16 %v624, %v619
  %v875 = vpack.c.b16 %v625, %v620
  %v876 = vpack.c.b16 %v631, %v626
  %v877 = vpack.c.b16 %v632, %v627
  %v878 = vpack.c.b16 %v633, %v628
  %v879 = vpack.c.b16 %v634, %v629
  %v880 = vpack.c.b16 %v635, %v630
  %v881 = vpack.c.b16 %v641, %v636
  %v882 = vpack.c.b16 %v642, %v637
  %v883 = vpack.c.b16 %v643, %v638
  %v884 = vpack.c.b16 %v644, %v639
  %v885 = vpack.c.b16 %v645, %v640
  %v886 = vpack.c.b16 %v651, %v646
  %v887 = vpack.c.b16 %v652, %v647
  %v888 = vpack.c.b16 %v653, %v648
  %v889 = vpack.c.b16 %v654, %v649
  %v890 = vpack.c.b16 %v655, %v650
  %v891 = vpack.c.b16 %v661, %v656
  %v892 = vpack.c.b16 %v662, %v657
  %v893 = vpack.c.b16 %v663, %v658
  %v894 = vpack.c.b16 %v664, %v659
  %v895 = vpack.c.b16 %v665, %v660
  %v896 = vpack.c.b16 %v671, %v666
  %v897 = vpack.c.b16 %v672, %v667
  %v898 = vpack.c.b16 %v673, %v668
  %v899 = vpack.c.b16 %v674, %v669
  %v900 = vpack.c.b16 %v675, %v670
  %v901 = vpack.c.b16 %v681, %v676
  %v902 = vpack.c.b16 %v682, %v677
  %v903 = vpack.c.b16 %v683, %v678
  %v904 = vpack.c.b16 %v684, %v679
  %v905 = vpack.c.b16 %v685, %v680
  %v906 = vpack.c.b16 %v691, %v686
  %v907 = vpack.c.b16 %v692, %v687
  %v908 = vpack.c.b16 %v693, %v688
  %v909 = vpack.c.b16 %v694, %v689
  %v910 = vpack.c.b16 %v695, %v690
  %v911 = vpack.c.b16 %v701, %v696
  %v912 = vpack.c.b16 %v702, %v697
  %v913 = vpack.c.b16 %v703, %v698
  %v914 = vpack.c.b16 %v704, %v699
  %v915 = vpack.c.b16 %v705, %v700
  %v916 = vpack.c.b16 %v711, %v706
  %v917 = vpack.c.b16 %v712, %v707
  %v918 = vpack.c.b16 %v713, %v708
  %v919 = vpack.c.b16 %v714, %v709
  %v920 = vpack.c.b16 %v715, %v710
  %v921 = vpack.c.b16 %v721, %v716
  %v922 = vpack.c.b16 %v722, %v717
  %v923 = vpack.c.b16 %v723, %v718
  %v924 = vpack.c.b16 %v724, %v719
  %v925 = vpack.c.b16 %v725, %v720
  %v926 = vpack.c.b16 %v731, %v726
  %v927 = vpack.c.b16 %v732, %v727
  %v928 = vpack.c.b16 %v733, %v728
  %v929 = vpack.c.b16 %v734, %v729
  %v930 = vpack.c.b16 %v735, %v730
  %v931 = vpack.c.b16 %v741, %v736
  %v932 = vpack.c.b16 %v742, %v737
  %v933 = vpack.c.b16 %v743, %v738
  %v934 = vpack.c.b16 %v744, %v739
  %v935 = vpack.c.b16 %v745, %v740
  %v936 = vpack.c.b16 %v751, %v746
  %v937 = vpack.c.b16 %v752, %v747
  %v938 = vpack.c.b16 %v753, %v748
  %v939 = vpack.c.b16 %v754, %v749
  %v940 = vpack.c.b16 %v755, %v750
  %v941 = vpack.c.b16 %v761, %v756
  %v942 = vpack.c.b16 %v762, %v757
  %v943 = vpack.c.b16 %v763, %v758
  %v944 = vpack.c.b16 %v764, %v759
  %v945 = vpack.c.b16 %v765, %v760
  %v946 = vpack.c.b16 %v771, %v766
  %v947 = vpack.c.b16 %v772, %v767
  %v948 = vpack.c.b16 %v773, %v768
  %v949 = vpack.c.b16 %v774, %v769
  %v950 = vpack.c.b16 %v775, %v770
  %v951 = vpack.c.b16 %v781, %v776
  %v952 = vpack.c.b16 %v782, %v777
  %v953 = vpack.c.b16 %v783, %v778
  %v954 = vpack.c.b16 %v784, %v779
  %v955 = vpack.c.b16 %v785, %v780
  %v956 = vpack.c.b16 %v791, %v786
  %v957 = vpack.c.b16 %v792, %v787
  %v958 = vpack.c.b16 %v793, %v788
  %v959 = vpack.c.b16 %v794, %v789
  %v960 = vpack.c.b16 %v795, %v790
  %v961 = vpack.c.b16 %v801, %v796
  %v962 = vpack.c.b16 %v802, %v797
  %v963 = vpack.c.b16 %v803, %v798
  %v964 = vpack.c.b16 %v804, %v799
  %v965 = vpack.c.b16 %v805, %v800
  %v1206 = vunpack.c.l.b16 %v207
  %v1207 = vunpack.c.l.b16 %v208
  %v1208 = vunpack.c.l.b16 %v209
  %v1209 = vunpack.c.l.b16 %v210
  %v1210 = vunpack.c.l.b16 %v211
  %v1211 = vunpack.c.l.b16 %v212
  %v1212 = vunpack.c.l.b16 %v213
  %v1213 = vunpack.c.l.b16 %v214
  %v1214 = vunpack.c.l.b16 %v215
  %v1215 = vunpack.c.l.b16 %v216
  %v1216 = vunpack.c.l.b16 %v217
  %v1217 = vunpack.c.l.b16 %v218
  %v1218 = vunpack.c.l.b16 %v219
  %v1219 = vunpack.c.l.b16 %v220
  %v1220 = vunpack.c.l.b16 %v221
  %v1221 = vunpack.c.l.b16 %v222
  %v1222 = vunpack.c.l.b16 %v223
  %v1223 = vunpack.c.l.b16 %v224
  %v1224 = vunpack.c.l.b16 %v225
  %v1225 = vunpack.c.l.b16 %v226
  %v1226 = vunpack.c.l.b16 %v227
  %v1227 = vunpack.c.l.b16 %v228
  %v1228 = vunpack.c.l.b16 %v229
  %v1229 = vunpack.c.l.b16 %v230
  %v1230 = vunpack.c.l.b16 %v231
  %v1231 = vunpack.c.l.b16 %v232
  %v1232 = vunpack.c.l.b16 %v233
  %v1233 = vunpack.c.l.b16 %v234
  %v1234 = vunpack.c.l.b16 %v235
  %v1235 = vunpack.c.l.b16 %v236
  %v1236 = vunpack.c.l.b16 %v237
  %v1237 = vunpack.c.l.b16 %v238
  %v1238 = vunpack.c.l.b16 %v239
  %v1239 = vunpack.c.l.b16 %v240
  %v1240 = vunpack.c.l.b16 %v241
  %v1241 = vunpack.c.l.b16 %v242
  %v1242 = vunpack.c.l.b16 %v243
  %v1243 = vunpack.c.l.b16 %v244
  %v1244 = vunpack.c.l.b16 %v245
  %v1245 = vunpack.c.l.b16 %v246
  %v1246 = vunpack.c.l.b16 %v247
  %v1247 = vunpack.c.l.b16 %v248
  %v1248 = vunpack.c.l.b16 %v249
  %v1249 = vunpack.c.l.b16 %v250
  %v1250 = vunpack.c.l.b16 %v251
  %v1251 = vunpack.c.l.b16 %v252
  %v1252 = vunpack.c.l.b16 %v253
  %v1253 = vunpack.c.l.b16 %v254
  %v1254 = vunpack.c.l.b16 %v255
  %v1255 = vunpack.c.l.b16 %v256
  %v1256 = vunpack.c.l.b16 %v257
  %v1257 = vunpack.c.l.b16 %v258
  %v1258 = vunpack.c.l.b16 %v259
  %v1259 = vunpack.c.l.b16 %v260
  %v1260 = vunpack.c.l.b16 %v261
  %v1261 = vunpack.c.l.b16 %v262
  %v1262 = vunpack.c.l.b16 %v263
  %v1263 = vunpack.c.l.b16 %v264
  %v1264 = vunpack.c.l.b16 %v265
  %v1265 = vunpack.c.l.b16 %v266
  %v1266 = vunpack.c.l.b16 %v267
  %v1267 = vunpack.c.l.b16 %v268
  %v1268 = vunpack.c.l.b16 %v269
  %v1269 = vunpack.c.l.b16 %v270
  %v1270 = vunpack.c.l.b16 %v271
  %v1271 = vunpack.c.l.b16 %v272
  %v1272 = vunpack.c.l.b16 %v273
  %v1273 = vunpack.c.l.b16 %v274
  %v1274 = vunpack.c.l.b16 %v275
  %v1275 = vunpack.c.l.b16 %v276
  %v1276 = vunpack.c.l.b16 %v277
  %v1277 = vunpack.c.l.b16 %v278
  %v1278 = vunpack.c.l.b16 %v279
  %v1279 = vunpack.c.l.b16 %v280
  %v1280 = vunpack.c.l.b16 %v281
  %v1281 = vunpack.c.l.b16 %v282
  %v1282 = vunpack.c.l.b16 %v283
  %v1283 = vunpack.c.l.b16 %v284
  %v1284 = vunpack.c.l.b16 %v285
  %v1285 = vunpack.c.l.b16 %v286
  %v1286 = vpack.c.b16 %v1207, %v1206
  %v1287 = vpack.c.b16 %v1209, %v1208
  %v1288 = vpack.c.b16 %v1211, %v1210
  %v1289 = vpack.c.b16 %v1213, %v1212
  %v1290 = vpack.c.b16 %v1215, %v1214
  %v1291 = vpack.c.b16 %v1217, %v1216
  %v1292 = vpack.c.b16 %v1219, %v1218
  %v1293 = vpack.c.b16 %v1221, %v1220
  %v1294 = vpack.c.b16 %v1223, %v1222
  %v1295 = vpack.c.b16 %v1225, %v1224
  %v1296 = vpack.c.b16 %v1227, %v1226
  %v1297 = vpack.c.b16 %v1229, %v1228
  %v1298 = vpack.c.b16 %v1231, %v1230
  %v1299 = vpack.c.b16 %v1233, %v1232
  %v1300 = vpack.c.b16 %v1235, %v1234
  %v1301 = vpack.c.b16 %v1237, %v1236
  %v1302 = vpack.c.b16 %v1239, %v1238
  %v1303 = vpack.c.b16 %v1241, %v1240
  %v1304 = vpack.c.b16 %v1243, %v1242
  %v1305 = vpack.c.b16 %v1245, %v1244
  %v1306 = vpack.c.b16 %v1247, %v1246
  %v1307 = vpack.c.b16 %v1249, %v1248
  %v1308 = vpack.c.b16 %v1251, %v1250
  %v1309 = vpack.c.b16 %v1253, %v1252
  %v1310 = vpack.c.b16 %v1255, %v1254
  %v1311 = vpack.c.b16 %v1257, %v1256
  %v1312 = vpack.c.b16 %v1259, %v1258
  %v1313 = vpack.c.b16 %v1261, %v1260
  %v1314 = vpack.c.b16 %v1263, %v1262
  %v1315 = vpack.c.b16 %v1265, %v1264
  %v1316 = vpack.c.b16 %v1267, %v1266
  %v1317 = vpack.c.b16 %v1269, %v1268
  %v1318 = vpack.c.b16 %v1271, %v1270
  %v1319 = vpack.c.b16 %v1273, %v1272
  %v1320 = vpack.c.b16 %v1275, %v1274
  %v1321 = vpack.c.b16 %v1277, %v1276
  %v1322 = vpack.c.b16 %v1279, %v1278
  %v1323 = vpack.c.b16 %v1281, %v1280
  %v1324 = vpack.c.b16 %v1283, %v1282
  %v1325 = vpack.c.b16 %v1285, %v1284
  %1366 = vmatprep.subr.bf16.mxu0 0
  %1367 = vmatpush1.bf16.msra.mxu0 %v1286
  %1368 = vmatprep.subr.bf16.mxu0 0
  %1369 = vmatpush1.bf16.msra.mxu0 %v1287
  %1370 = vmatprep.subr.bf16.mxu0 0
  %1371 = vmatpush1.bf16.msra.mxu0 %v1288
  %1372 = vmatprep.subr.bf16.mxu0 0
  %1373 = vmatpush1.bf16.msra.mxu0 %v1289
  %1374 = vmatprep.subr.bf16.mxu0 0
  %1375 = vmatpush1.bf16.msra.mxu0 %v1290
  %1376 = vmatprep.subr.bf16.mxu0 0
  %1377 = vmatpush1.bf16.msra.mxu0 %v1291
  %1378 = vmatprep.subr.bf16.mxu0 0
  %1379 = vmatpush1.bf16.msra.mxu0 %v1292
  %1380 = vmatprep.subr.bf16.mxu0 0
  %1381 = vmatpush1.bf16.msra.mxu0 %v1293
  %1382 = vmatprep.subr.bf16.mxu0 0
  %1383 = vmatpush1.bf16.msra.mxu0 %v1294
  %1384 = vmatprep.subr.bf16.mxu0 0
  %1385 = vmatpush1.bf16.msra.mxu0 %v1295
  %1386 = vmatprep.subr.bf16.mxu0 0
  %1387 = vmatpush1.bf16.msra.mxu0 %v1296
  %1388 = vmatprep.subr.bf16.mxu0 0
  %1389 = vmatpush1.bf16.msra.mxu0 %v1297
  %1390 = vmatprep.subr.bf16.mxu0 0
  %1391 = vmatpush1.bf16.msra.mxu0 %v1298
  %1392 = vmatprep.subr.bf16.mxu0 0
  %1393 = vmatpush1.bf16.msra.mxu0 %v1299
  %1394 = vmatprep.subr.bf16.mxu0 0
  %1395 = vmatpush1.bf16.msra.mxu0 %v1300
  %1396 = vmatprep.subr.bf16.mxu0 0
  %1397 = vmatpush1.bf16.msra.mxu0 %v1301
  %1398 = vmatprep.mubr.bf16.mxu0 %v807
  %1399 = vmatmul.mubr.bf16.gmra.mrb[0].mxu0 %v806
  %v1400 = vpop.f32.mrb[0].mxu0
  %v1401 = vadd.f32 %v292, %v1400
  %v1402 = vpop.f32.mrb[0].mxu0
  %v1403 = vpop.f32.mrb[0].mxu0
  %v1404 = vadd.f32 %v292, %v1403
  %v1405 = vpop.f32.mrb[0].mxu0
  %1406 = vmatprep.mubr.bf16.mxu0 %v812
  %1407 = vmatmul.mubr.bf16.gmra.mrb[0].mxu0 %v811
  %v1408 = vpop.f32.mrb[0].mxu0
  %v1409 = vadd.f32 %v292, %v1408
  %v1410 = vpop.f32.mrb[0].mxu0
  %v1411 = vpop.f32.mrb[0].mxu0
  %v1412 = vadd.f32 %v292, %v1411
  %v1413 = vpop.f32.mrb[0].mxu0
  %1414 = vmatprep.mubr.bf16.mxu0 %v817
  %1415 = vmatmul.mubr.bf16.gmra.mrb[0].mxu0 %v816
  %v1416 = vpop.f32.mrb[0].mxu0
  %v1417 = vadd.f32 %v292, %v1416
  %v1418 = vpop.f32.mrb[0].mxu0
  %v1419 = vpop.f32.mrb[0].mxu0
  %v1420 = vadd.f32 %v292, %v1419
  %v1421 = vpop.f32.mrb[0].mxu0
  %1422 = vmatprep.mubr.bf16.mxu0 %v822
  %1423 = vmatmul.mubr.bf16.gmra.mrb[0].mxu0 %v821
  %v1424 = vpop.f32.mrb[0].mxu0
  %v1425 = vadd.f32 %v292, %v1424
  %v1426 = vpop.f32.mrb[0].mxu0
  %v1427 = vpop.f32.mrb[0].mxu0
  %v1428 = vadd.f32 %v292, %v1427
  %v1429 = vpop.f32.mrb[0].mxu0
  %1430 = vmatprep.mubr.bf16.mxu0 %v827
  %1431 = vmatmul.mubr.bf16.gmra.mrb[0].mxu0 %v826
  %v1432 = vpop.f32.mrb[0].mxu0
  %v1433 = vadd.f32 %v292, %v1432
  %v1434 = vpop.f32.mrb[0].mxu0
  %v1435 = vpop.f32.mrb[0].mxu0
  %v1436 = vadd.f32 %v292, %v1435
  %v1437 = vpop.f32.mrb[0].mxu0
  %1438 = vmatprep.mubr.bf16.mxu0 %v832
  %1439 = vmatmul.mubr.bf16.gmra.mrb[0].mxu0 %v831
  %v1440 = vpop.f32.mrb[0].mxu0
  %v1441 = vadd.f32 %v292, %v1440
  %v1442 = vpop.f32.mrb[0].mxu0
  %v1443 = vpop.f32.mrb[0].mxu0
  %v1444 = vadd.f32 %v292, %v1443
  %v1445 = vpop.f32.mrb[0].mxu0
  %1446 = vmatprep.mubr.bf16.mxu0 %v837
  %1447 = vmatmul.mubr.bf16.gmra.mrb[0].mxu0 %v836
  %v1448 = vpop.f32.mrb[0].mxu0
  %v1449 = vadd.f32 %v292, %v1448
  %v1450 = vpop.f32.mrb[0].mxu0
  %v1451 = vpop.f32.mrb[0].mxu0
  %v1452 = vadd.f32 %v292, %v1451
  %v1453 = vpop.f32.mrb[0].mxu0
  %1454 = vmatprep.mubr.bf16.mxu0 %v842
  %1455 = vmatmul.mubr.bf16.gmra.mrb[0].mxu0 %v841
  %v1456 = vpop.f32.mrb[0].mxu0
  %v1457 = vadd.f32 %v292, %v1456
  %v1458 = vpop.f32.mrb[0].mxu0
  %v1459 = vpop.f32.mrb[0].mxu0
  %v1460 = vadd.f32 %v292, %v1459
  %v1461 = vpop.f32.mrb[0].mxu0
  %1462 = vmatprep.mubr.bf16.mxu0 %v847
  %1463 = vmatmul.mubr.bf16.gmra.mrb[0].mxu0 %v846
  %v1464 = vpop.f32.mrb[0].mxu0
  %v1465 = vadd.f32 %v292, %v1464
  %v1466 = vpop.f32.mrb[0].mxu0
  %v1467 = vpop.f32.mrb[0].mxu0
  %v1468 = vadd.f32 %v292, %v1467
  %v1469 = vpop.f32.mrb[0].mxu0
  %1470 = vmatprep.mubr.bf16.mxu0 %v852
  %1471 = vmatmul.mubr.bf16.gmra.mrb[0].mxu0 %v851
  %v1472 = vpop.f32.mrb[0].mxu0
  %v1473 = vadd.f32 %v292, %v1472
  %v1474 = vpop.f32.mrb[0].mxu0
  %v1475 = vpop.f32.mrb[0].mxu0
  %v1476 = vadd.f32 %v292, %v1475
  %v1477 = vpop.f32.mrb[0].mxu0
  %1478 = vmatprep.mubr.bf16.mxu0 %v857
  %1479 = vmatmul.mubr.bf16.gmra.mrb[0].mxu0 %v856
  %v1480 = vpop.f32.mrb[0].mxu0
  %v1481 = vadd.f32 %v292, %v1480
  %v1482 = vpop.f32.mrb[0].mxu0
  %v1483 = vpop.f32.mrb[0].mxu0
  %v1484 = vadd.f32 %v292, %v1483
  %v1485 = vpop.f32.mrb[0].mxu0
  %1486 = vmatprep.mubr.bf16.mxu0 %v862
  %1487 = vmatmul.mubr.bf16.gmra.mrb[0].mxu0 %v861
  %v1488 = vpop.f32.mrb[0].mxu0
  %v1489 = vadd.f32 %v292, %v1488
  %v1490 = vpop.f32.mrb[0].mxu0
  %v1491 = vpop.f32.mrb[0].mxu0
  %v1492 = vadd.f32 %v292, %v1491
  %v1493 = vpop.f32.mrb[0].mxu0
  %1494 = vmatprep.mubr.bf16.mxu0 %v867
  %1495 = vmatmul.mubr.bf16.gmra.mrb[0].mxu0 %v866
  %v1496 = vpop.f32.mrb[0].mxu0
  %v1497 = vadd.f32 %v292, %v1496
  %v1498 = vpop.f32.mrb[0].mxu0
  %v1499 = vpop.f32.mrb[0].mxu0
  %v1500 = vadd.f32 %v292, %v1499
  %v1501 = vpop.f32.mrb[0].mxu0
  %1502 = vmatprep.mubr.bf16.mxu0 %v872
  %1503 = vmatmul.mubr.bf16.gmra.mrb[0].mxu0 %v871
  %v1504 = vpop.f32.mrb[0].mxu0
  %v1505 = vadd.f32 %v292, %v1504
  %v1506 = vpop.f32.mrb[0].mxu0
  %v1507 = vpop.f32.mrb[0].mxu0
  %v1508 = vadd.f32 %v292, %v1507
  %v1509 = vpop.f32.mrb[0].mxu0
  %1510 = vmatprep.mubr.bf16.mxu0 %v877
  %1511 = vmatmul.mubr.bf16.gmra.mrb[0].mxu0 %v876
  %v1512 = vpop.f32.mrb[0].mxu0
  %v1513 = vadd.f32 %v292, %v1512
  %v1514 = vpop.f32.mrb[0].mxu0
  %v1515 = vpop.f32.mrb[0].mxu0
  %v1516 = vadd.f32 %v292, %v1515
  %v1517 = vpop.f32.mrb[0].mxu0
  %1518 = vmatprep.mubr.bf16.mxu0 %v882
  %1519 = vmatmul.mubr.bf16.gmra.mrb[0].mxu0 %v881
  %v1520 = vpop.f32.mrb[0].mxu0
  %v1521 = vadd.f32 %v292, %v1520
  %v1522 = vpop.f32.mrb[0].mxu0
  %v1523 = vpop.f32.mrb[0].mxu0
  %v1524 = vadd.f32 %v292, %v1523
  %v1525 = vpop.f32.mrb[0].mxu0
  %1526 = vmatprep.mubr.bf16.mxu0 %v887
  %1527 = vmatmul.mubr.bf16.gmra.mrb[0].mxu0 %v886
  %v1528 = vpop.f32.mrb[0].mxu0
  %v1529 = vadd.f32 %v292, %v1528
  %v1530 = vpop.f32.mrb[0].mxu0
  %v1531 = vpop.f32.mrb[0].mxu0
  %v1532 = vadd.f32 %v292, %v1531
  %v1533 = vpop.f32.mrb[0].mxu0
  %1534 = vmatprep.mubr.bf16.mxu0 %v892
  %1535 = vmatmul.mubr.bf16.gmra.mrb[0].mxu0 %v891
  %v1536 = vpop.f32.mrb[0].mxu0
  %v1537 = vadd.f32 %v292, %v1536
  %v1538 = vpop.f32.mrb[0].mxu0
  %v1539 = vpop.f32.mrb[0].mxu0
  %v1540 = vadd.f32 %v292, %v1539
  %v1541 = vpop.f32.mrb[0].mxu0
  %1542 = vmatprep.mubr.bf16.mxu0 %v897
  %1543 = vmatmul.mubr.bf16.gmra.mrb[0].mxu0 %v896
  %v1544 = vpop.f32.mrb[0].mxu0
  %v1545 = vadd.f32 %v292, %v1544
  %v1546 = vpop.f32.mrb[0].mxu0
  %v1547 = vpop.f32.mrb[0].mxu0
  %v1548 = vadd.f32 %v292, %v1547
  %v1549 = vpop.f32.mrb[0].mxu0
  %1550 = vmatprep.mubr.bf16.mxu0 %v902
  %1551 = vmatmul.mubr.bf16.gmra.mrb[0].mxu0 %v901
  %v1552 = vpop.f32.mrb[0].mxu0
  %v1553 = vadd.f32 %v292, %v1552
  %v1554 = vpop.f32.mrb[0].mxu0
  %v1555 = vpop.f32.mrb[0].mxu0
  %v1556 = vadd.f32 %v292, %v1555
  %v1557 = vpop.f32.mrb[0].mxu0
  %1558 = vmatprep.mubr.bf16.mxu0 %v907
  %1559 = vmatmul.mubr.bf16.gmra.mrb[0].mxu0 %v906
  %v1560 = vpop.f32.mrb[0].mxu0
  %v1561 = vadd.f32 %v292, %v1560
  %v1562 = vpop.f32.mrb[0].mxu0
  %v1563 = vpop.f32.mrb[0].mxu0
  %v1564 = vadd.f32 %v292, %v1563
  %v1565 = vpop.f32.mrb[0].mxu0
  %1566 = vmatprep.mubr.bf16.mxu0 %v912
  %1567 = vmatmul.mubr.bf16.gmra.mrb[0].mxu0 %v911
  %v1568 = vpop.f32.mrb[0].mxu0
  %v1569 = vadd.f32 %v292, %v1568
  %v1570 = vpop.f32.mrb[0].mxu0
  %v1571 = vpop.f32.mrb[0].mxu0
  %v1572 = vadd.f32 %v292, %v1571
  %v1573 = vpop.f32.mrb[0].mxu0
  %1574 = vmatprep.mubr.bf16.mxu0 %v917
  %1575 = vmatmul.mubr.bf16.gmra.mrb[0].mxu0 %v916
  %v1576 = vpop.f32.mrb[0].mxu0
  %v1577 = vadd.f32 %v292, %v1576
  %v1578 = vpop.f32.mrb[0].mxu0
  %v1579 = vpop.f32.mrb[0].mxu0
  %v1580 = vadd.f32 %v292, %v1579
  %v1581 = vpop.f32.mrb[0].mxu0
  %1582 = vmatprep.mubr.bf16.mxu0 %v922
  %1583 = vmatmul.mubr.bf16.gmra.mrb[0].mxu0 %v921
  %v1584 = vpop.f32.mrb[0].mxu0
  %v1585 = vadd.f32 %v292, %v1584
  %v1586 = vpop.f32.mrb[0].mxu0
  %v1587 = vpop.f32.mrb[0].mxu0
  %v1588 = vadd.f32 %v292, %v1587
  %v1589 = vpop.f32.mrb[0].mxu0
  %1590 = vmatprep.mubr.bf16.mxu0 %v927
  %1591 = vmatmul.mubr.bf16.gmra.mrb[0].mxu0 %v926
  %v1592 = vpop.f32.mrb[0].mxu0
  %v1593 = vadd.f32 %v292, %v1592
  %v1594 = vpop.f32.mrb[0].mxu0
  %v1595 = vpop.f32.mrb[0].mxu0
  %v1596 = vadd.f32 %v292, %v1595
  %v1597 = vpop.f32.mrb[0].mxu0
  %1598 = vmatprep.mubr.bf16.mxu0 %v932
  %1599 = vmatmul.mubr.bf16.gmra.mrb[0].mxu0 %v931
  %v1600 = vpop.f32.mrb[0].mxu0
  %v1601 = vadd.f32 %v292, %v1600
  %v1602 = vpop.f32.mrb[0].mxu0
  %v1603 = vpop.f32.mrb[0].mxu0
  %v1604 = vadd.f32 %v292, %v1603
  %v1605 = vpop.f32.mrb[0].mxu0
  %1606 = vmatprep.mubr.bf16.mxu0 %v937
  %1607 = vmatmul.mubr.bf16.gmra.mrb[0].mxu0 %v936
  %v1608 = vpop.f32.mrb[0].mxu0
  %v1609 = vadd.f32 %v292, %v1608
  %v1610 = vpop.f32.mrb[0].mxu0
  %v1611 = vpop.f32.mrb[0].mxu0
  %v1612 = vadd.f32 %v292, %v1611
  %v1613 = vpop.f32.mrb[0].mxu0
  %1614 = vmatprep.mubr.bf16.mxu0 %v942
  %1615 = vmatmul.mubr.bf16.gmra.mrb[0].mxu0 %v941
  %v1616 = vpop.f32.mrb[0].mxu0
  %v1617 = vadd.f32 %v292, %v1616
  %v1618 = vpop.f32.mrb[0].mxu0
  %v1619 = vpop.f32.mrb[0].mxu0
  %v1620 = vadd.f32 %v292, %v1619
  %v1621 = vpop.f32.mrb[0].mxu0
  %1622 = vmatprep.mubr.bf16.mxu0 %v947
  %1623 = vmatmul.mubr.bf16.gmra.mrb[0].mxu0 %v946
  %v1624 = vpop.f32.mrb[0].mxu0
  %v1625 = vadd.f32 %v292, %v1624
  %v1626 = vpop.f32.mrb[0].mxu0
  %v1627 = vpop.f32.mrb[0].mxu0
  %v1628 = vadd.f32 %v292, %v1627
  %v1629 = vpop.f32.mrb[0].mxu0
  %1630 = vmatprep.mubr.bf16.mxu0 %v952
  %1631 = vmatmul.mubr.bf16.gmra.mrb[0].mxu0 %v951
  %v1632 = vpop.f32.mrb[0].mxu0
  %v1633 = vadd.f32 %v292, %v1632
  %v1634 = vpop.f32.mrb[0].mxu0
  %v1635 = vpop.f32.mrb[0].mxu0
  %v1636 = vadd.f32 %v292, %v1635
  %v1637 = vpop.f32.mrb[0].mxu0
  %1638 = vmatprep.mubr.bf16.mxu0 %v957
  %1639 = vmatmul.mubr.bf16.gmra.mrb[0].mxu0 %v956
  %v1640 = vpop.f32.mrb[0].mxu0
  %v1641 = vadd.f32 %v292, %v1640
  %v1642 = vpop.f32.mrb[0].mxu0
  %v1643 = vpop.f32.mrb[0].mxu0
  %v1644 = vadd.f32 %v292, %v1643
  %v1645 = vpop.f32.mrb[0].mxu0
  %1646 = vmatprep.mubr.bf16.mxu0 %v962
  %1647 = vmatmul.mubr.bf16.gmra.mrb[0].mxu0 %v961
  %v1648 = vpop.f32.mrb[0].mxu0
  %v1649 = vadd.f32 %v292, %v1648
  %v1650 = vpop.f32.mrb[0].mxu0
  %v1651 = vpop.f32.mrb[0].mxu0
  %v1652 = vadd.f32 %v292, %v1651
  %v1653 = vpop.f32.mrb[0].mxu0
  %1654 = vdwg.mxu0
  %1655 = vmatprep.subr.bf16.mxu0 0
  %1656 = vmatpush1.bf16.msra.mxu0 %v1302
  %1657 = vmatprep.subr.bf16.mxu0 0
  %1658 = vmatpush1.bf16.msra.mxu0 %v1303
  %1659 = vmatprep.subr.bf16.mxu0 0
  %1660 = vmatpush1.bf16.msra.mxu0 %v1304
  %1661 = vmatprep.subr.bf16.mxu0 0
  %1662 = vmatpush1.bf16.msra.mxu0 %v1305
  %1663 = vmatprep.subr.bf16.mxu0 0
  %1664 = vmatpush1.bf16.msra.mxu0 %v1306
  %1665 = vmatprep.subr.bf16.mxu0 0
  %1666 = vmatpush1.bf16.msra.mxu0 %v1307
  %1667 = vmatprep.subr.bf16.mxu0 0
  %1668 = vmatpush1.bf16.msra.mxu0 %v1308
  %1669 = vmatprep.subr.bf16.mxu0 0
  %1670 = vmatpush1.bf16.msra.mxu0 %v1309
  %1671 = vmatprep.subr.bf16.mxu0 0
  %1672 = vmatpush1.bf16.msra.mxu0 %v1310
  %1673 = vmatprep.subr.bf16.mxu0 0
  %1674 = vmatpush1.bf16.msra.mxu0 %v1311
  %1675 = vmatprep.subr.bf16.mxu0 0
  %1676 = vmatpush1.bf16.msra.mxu0 %v1312
  %1677 = vmatprep.subr.bf16.mxu0 0
  %1678 = vmatpush1.bf16.msra.mxu0 %v1313
  %1679 = vmatprep.subr.bf16.mxu0 0
  %1680 = vmatpush1.bf16.msra.mxu0 %v1314
  %1681 = vmatprep.subr.bf16.mxu0 0
  %1682 = vmatpush1.bf16.msra.mxu0 %v1315
  %1683 = vmatprep.subr.bf16.mxu0 0
  %1684 = vmatpush1.bf16.msra.mxu0 %v1316
  %1685 = vmatprep.subr.bf16.mxu0 0
  %1686 = vmatpush1.bf16.msra.mxu0 %v1317
  %1687 = vmatprep.mubr.bf16.mxu0 %v809
  %1688 = vmatmul.mubr.bf16.gmra.mrb[0].mxu0 %v808
  %v1689 = vpop.f32.mrb[0].mxu0
  %v1690 = vadd.f32 %v1401, %v1689
  %v1691 = vpop.f32.mrb[0].mxu0
  %v1692 = vpop.f32.mrb[0].mxu0
  %v1693 = vadd.f32 %v1404, %v1692
  %v1694 = vpop.f32.mrb[0].mxu0
  %1695 = vmatprep.mubr.bf16.mxu0 %v814
  %1696 = vmatmul.mubr.bf16.gmra.mrb[0].mxu0 %v813
  %v1697 = vpop.f32.mrb[0].mxu0
  %v1698 = vadd.f32 %v1409, %v1697
  %v1699 = vpop.f32.mrb[0].mxu0
  %v1700 = vpop.f32.mrb[0].mxu0
  %v1701 = vadd.f32 %v1412, %v1700
  %v1702 = vpop.f32.mrb[0].mxu0
  %1703 = vmatprep.mubr.bf16.mxu0 %v819
  %1704 = vmatmul.mubr.bf16.gmra.mrb[0].mxu0 %v818
  %v1705 = vpop.f32.mrb[0].mxu0
  %v1706 = vadd.f32 %v1417, %v1705
  %v1707 = vpop.f32.mrb[0].mxu0
  %v1708 = vpop.f32.mrb[0].mxu0
  %v1709 = vadd.f32 %v1420, %v1708
  %v1710 = vpop.f32.mrb[0].mxu0
  %1711 = vmatprep.mubr.bf16.mxu0 %v824
  %1712 = vmatmul.mubr.bf16.gmra.mrb[0].mxu0 %v823
  %v1713 = vpop.f32.mrb[0].mxu0
  %v1714 = vadd.f32 %v1425, %v1713
  %v1715 = vpop.f32.mrb[0].mxu0
  %v1716 = vpop.f32.mrb[0].mxu0
  %v1717 = vadd.f32 %v1428, %v1716
  %v1718 = vpop.f32.mrb[0].mxu0
  %1719 = vmatprep.mubr.bf16.mxu0 %v829
  %1720 = vmatmul.mubr.bf16.gmra.mrb[0].mxu0 %v828
  %v1721 = vpop.f32.mrb[0].mxu0
  %v1722 = vadd.f32 %v1433, %v1721
  %v1723 = vpop.f32.mrb[0].mxu0
  %v1724 = vpop.f32.mrb[0].mxu0
  %v1725 = vadd.f32 %v1436, %v1724
  %v1726 = vpop.f32.mrb[0].mxu0
  %1727 = vmatprep.mubr.bf16.mxu0 %v834
  %1728 = vmatmul.mubr.bf16.gmra.mrb[0].mxu0 %v833
  %v1729 = vpop.f32.mrb[0].mxu0
  %v1730 = vadd.f32 %v1441, %v1729
  %v1731 = vpop.f32.mrb[0].mxu0
  %v1732 = vpop.f32.mrb[0].mxu0
  %v1733 = vadd.f32 %v1444, %v1732
  %v1734 = vpop.f32.mrb[0].mxu0
  %1735 = vmatprep.mubr.bf16.mxu0 %v839
  %1736 = vmatmul.mubr.bf16.gmra.mrb[0].mxu0 %v838
  %v1737 = vpop.f32.mrb[0].mxu0
  %v1738 = vadd.f32 %v1449, %v1737
  %v1739 = vpop.f32.mrb[0].mxu0
  %v1740 = vpop.f32.mrb[0].mxu0
  %v1741 = vadd.f32 %v1452, %v1740
  %v1742 = vpop.f32.mrb[0].mxu0
  %1743 = vmatprep.mubr.bf16.mxu0 %v844
  %1744 = vmatmul.mubr.bf16.gmra.mrb[0].mxu0 %v843
  %v1745 = vpop.f32.mrb[0].mxu0
  %v1746 = vadd.f32 %v1457, %v1745
  %v1747 = vpop.f32.mrb[0].mxu0
  %v1748 = vpop.f32.mrb[0].mxu0
  %v1749 = vadd.f32 %v1460, %v1748
  %v1750 = vpop.f32.mrb[0].mxu0
  %1751 = vmatprep.mubr.bf16.mxu0 %v849
  %1752 = vmatmul.mubr.bf16.gmra.mrb[0].mxu0 %v848
  %v1753 = vpop.f32.mrb[0].mxu0
  %v1754 = vadd.f32 %v1465, %v1753
  %v1755 = vpop.f32.mrb[0].mxu0
  %v1756 = vpop.f32.mrb[0].mxu0
  %v1757 = vadd.f32 %v1468, %v1756
  %v1758 = vpop.f32.mrb[0].mxu0
  %1759 = vmatprep.mubr.bf16.mxu0 %v854
  %1760 = vmatmul.mubr.bf16.gmra.mrb[0].mxu0 %v853
  %v1761 = vpop.f32.mrb[0].mxu0
  %v1762 = vadd.f32 %v1473, %v1761
  %v1763 = vpop.f32.mrb[0].mxu0
  %v1764 = vpop.f32.mrb[0].mxu0
  %v1765 = vadd.f32 %v1476, %v1764
  %v1766 = vpop.f32.mrb[0].mxu0
  %1767 = vmatprep.mubr.bf16.mxu0 %v859
  %1768 = vmatmul.mubr.bf16.gmra.mrb[0].mxu0 %v858
  %v1769 = vpop.f32.mrb[0].mxu0
  %v1770 = vadd.f32 %v1481, %v1769
  %v1771 = vpop.f32.mrb[0].mxu0
  %v1772 = vpop.f32.mrb[0].mxu0
  %v1773 = vadd.f32 %v1484, %v1772
  %v1774 = vpop.f32.mrb[0].mxu0
  %1775 = vmatprep.mubr.bf16.mxu0 %v864
  %1776 = vmatmul.mubr.bf16.gmra.mrb[0].mxu0 %v863
  %v1777 = vpop.f32.mrb[0].mxu0
  %v1778 = vadd.f32 %v1489, %v1777
  %v1779 = vpop.f32.mrb[0].mxu0
  %v1780 = vpop.f32.mrb[0].mxu0
  %v1781 = vadd.f32 %v1492, %v1780
  %v1782 = vpop.f32.mrb[0].mxu0
  %1783 = vmatprep.mubr.bf16.mxu0 %v869
  %1784 = vmatmul.mubr.bf16.gmra.mrb[0].mxu0 %v868
  %v1785 = vpop.f32.mrb[0].mxu0
  %v1786 = vadd.f32 %v1497, %v1785
  %v1787 = vpop.f32.mrb[0].mxu0
  %v1788 = vpop.f32.mrb[0].mxu0
  %v1789 = vadd.f32 %v1500, %v1788
  %v1790 = vpop.f32.mrb[0].mxu0
  %1791 = vmatprep.mubr.bf16.mxu0 %v874
  %1792 = vmatmul.mubr.bf16.gmra.mrb[0].mxu0 %v873
  %v1793 = vpop.f32.mrb[0].mxu0
  %v1794 = vadd.f32 %v1505, %v1793
  %v1795 = vpop.f32.mrb[0].mxu0
  %v1796 = vpop.f32.mrb[0].mxu0
  %v1797 = vadd.f32 %v1508, %v1796
  %v1798 = vpop.f32.mrb[0].mxu0
  %1799 = vmatprep.mubr.bf16.mxu0 %v879
  %1800 = vmatmul.mubr.bf16.gmra.mrb[0].mxu0 %v878
  %v1801 = vpop.f32.mrb[0].mxu0
  %v1802 = vadd.f32 %v1513, %v1801
  %v1803 = vpop.f32.mrb[0].mxu0
  %v1804 = vpop.f32.mrb[0].mxu0
  %v1805 = vadd.f32 %v1516, %v1804
  %v1806 = vpop.f32.mrb[0].mxu0
  %1807 = vmatprep.mubr.bf16.mxu0 %v884
  %1808 = vmatmul.mubr.bf16.gmra.mrb[0].mxu0 %v883
  %v1809 = vpop.f32.mrb[0].mxu0
  %v1810 = vadd.f32 %v1521, %v1809
  %v1811 = vpop.f32.mrb[0].mxu0
  %v1812 = vpop.f32.mrb[0].mxu0
  %v1813 = vadd.f32 %v1524, %v1812
  %v1814 = vpop.f32.mrb[0].mxu0
  %1815 = vmatprep.mubr.bf16.mxu0 %v889
  %1816 = vmatmul.mubr.bf16.gmra.mrb[0].mxu0 %v888
  %v1817 = vpop.f32.mrb[0].mxu0
  %v1818 = vadd.f32 %v1529, %v1817
  %v1819 = vpop.f32.mrb[0].mxu0
  %v1820 = vpop.f32.mrb[0].mxu0
  %v1821 = vadd.f32 %v1532, %v1820
  %v1822 = vpop.f32.mrb[0].mxu0
  %1823 = vmatprep.mubr.bf16.mxu0 %v894
  %1824 = vmatmul.mubr.bf16.gmra.mrb[0].mxu0 %v893
  %v1825 = vpop.f32.mrb[0].mxu0
  %v1826 = vadd.f32 %v1537, %v1825
  %v1827 = vpop.f32.mrb[0].mxu0
  %v1828 = vpop.f32.mrb[0].mxu0
  %v1829 = vadd.f32 %v1540, %v1828
  %v1830 = vpop.f32.mrb[0].mxu0
  %1831 = vmatprep.mubr.bf16.mxu0 %v899
  %1832 = vmatmul.mubr.bf16.gmra.mrb[0].mxu0 %v898
  %v1833 = vpop.f32.mrb[0].mxu0
  %v1834 = vadd.f32 %v1545, %v1833
  %v1835 = vpop.f32.mrb[0].mxu0
  %v1836 = vpop.f32.mrb[0].mxu0
  %v1837 = vadd.f32 %v1548, %v1836
  %v1838 = vpop.f32.mrb[0].mxu0
  %1839 = vmatprep.mubr.bf16.mxu0 %v904
  %1840 = vmatmul.mubr.bf16.gmra.mrb[0].mxu0 %v903
  %v1841 = vpop.f32.mrb[0].mxu0
  %v1842 = vadd.f32 %v1553, %v1841
  %v1843 = vpop.f32.mrb[0].mxu0
  %v1844 = vpop.f32.mrb[0].mxu0
  %v1845 = vadd.f32 %v1556, %v1844
  %v1846 = vpop.f32.mrb[0].mxu0
  %1847 = vmatprep.mubr.bf16.mxu0 %v909
  %1848 = vmatmul.mubr.bf16.gmra.mrb[0].mxu0 %v908
  %v1849 = vpop.f32.mrb[0].mxu0
  %v1850 = vadd.f32 %v1561, %v1849
  %v1851 = vpop.f32.mrb[0].mxu0
  %v1852 = vpop.f32.mrb[0].mxu0
  %v1853 = vadd.f32 %v1564, %v1852
  %v1854 = vpop.f32.mrb[0].mxu0
  %1855 = vmatprep.mubr.bf16.mxu0 %v914
  %1856 = vmatmul.mubr.bf16.gmra.mrb[0].mxu0 %v913
  %v1857 = vpop.f32.mrb[0].mxu0
  %v1858 = vadd.f32 %v1569, %v1857
  %v1859 = vpop.f32.mrb[0].mxu0
  %v1860 = vpop.f32.mrb[0].mxu0
  %v1861 = vadd.f32 %v1572, %v1860
  %v1862 = vpop.f32.mrb[0].mxu0
  %1863 = vmatprep.mubr.bf16.mxu0 %v919
  %1864 = vmatmul.mubr.bf16.gmra.mrb[0].mxu0 %v918
  %v1865 = vpop.f32.mrb[0].mxu0
  %v1866 = vadd.f32 %v1577, %v1865
  %v1867 = vpop.f32.mrb[0].mxu0
  %v1868 = vpop.f32.mrb[0].mxu0
  %v1869 = vadd.f32 %v1580, %v1868
  %v1870 = vpop.f32.mrb[0].mxu0
  %1871 = vmatprep.mubr.bf16.mxu0 %v924
  %1872 = vmatmul.mubr.bf16.gmra.mrb[0].mxu0 %v923
  %v1873 = vpop.f32.mrb[0].mxu0
  %v1874 = vadd.f32 %v1585, %v1873
  %v1875 = vpop.f32.mrb[0].mxu0
  %v1876 = vpop.f32.mrb[0].mxu0
  %v1877 = vadd.f32 %v1588, %v1876
  %v1878 = vpop.f32.mrb[0].mxu0
  %1879 = vmatprep.mubr.bf16.mxu0 %v929
  %1880 = vmatmul.mubr.bf16.gmra.mrb[0].mxu0 %v928
  %v1881 = vpop.f32.mrb[0].mxu0
  %v1882 = vadd.f32 %v1593, %v1881
  %v1883 = vpop.f32.mrb[0].mxu0
  %v1884 = vpop.f32.mrb[0].mxu0
  %v1885 = vadd.f32 %v1596, %v1884
  %v1886 = vpop.f32.mrb[0].mxu0
  %1887 = vmatprep.mubr.bf16.mxu0 %v934
  %1888 = vmatmul.mubr.bf16.gmra.mrb[0].mxu0 %v933
  %v1889 = vpop.f32.mrb[0].mxu0
  %v1890 = vadd.f32 %v1601, %v1889
  %v1891 = vpop.f32.mrb[0].mxu0
  %v1892 = vpop.f32.mrb[0].mxu0
  %v1893 = vadd.f32 %v1604, %v1892
  %v1894 = vpop.f32.mrb[0].mxu0
  %1895 = vmatprep.mubr.bf16.mxu0 %v939
  %1896 = vmatmul.mubr.bf16.gmra.mrb[0].mxu0 %v938
  %v1897 = vpop.f32.mrb[0].mxu0
  %v1898 = vadd.f32 %v1609, %v1897
  %v1899 = vpop.f32.mrb[0].mxu0
  %v1900 = vpop.f32.mrb[0].mxu0
  %v1901 = vadd.f32 %v1612, %v1900
  %v1902 = vpop.f32.mrb[0].mxu0
  %1903 = vmatprep.mubr.bf16.mxu0 %v944
  %1904 = vmatmul.mubr.bf16.gmra.mrb[0].mxu0 %v943
  %v1905 = vpop.f32.mrb[0].mxu0
  %v1906 = vadd.f32 %v1617, %v1905
  %v1907 = vpop.f32.mrb[0].mxu0
  %v1908 = vpop.f32.mrb[0].mxu0
  %v1909 = vadd.f32 %v1620, %v1908
  %v1910 = vpop.f32.mrb[0].mxu0
  %1911 = vmatprep.mubr.bf16.mxu0 %v949
  %1912 = vmatmul.mubr.bf16.gmra.mrb[0].mxu0 %v948
  %v1913 = vpop.f32.mrb[0].mxu0
  %v1914 = vadd.f32 %v1625, %v1913
  %v1915 = vpop.f32.mrb[0].mxu0
  %v1916 = vpop.f32.mrb[0].mxu0
  %v1917 = vadd.f32 %v1628, %v1916
  %v1918 = vpop.f32.mrb[0].mxu0
  %1919 = vmatprep.mubr.bf16.mxu0 %v954
  %1920 = vmatmul.mubr.bf16.gmra.mrb[0].mxu0 %v953
  %v1921 = vpop.f32.mrb[0].mxu0
  %v1922 = vadd.f32 %v1633, %v1921
  %v1923 = vpop.f32.mrb[0].mxu0
  %v1924 = vpop.f32.mrb[0].mxu0
  %v1925 = vadd.f32 %v1636, %v1924
  %v1926 = vpop.f32.mrb[0].mxu0
  %1927 = vmatprep.mubr.bf16.mxu0 %v959
  %1928 = vmatmul.mubr.bf16.gmra.mrb[0].mxu0 %v958
  %v1929 = vpop.f32.mrb[0].mxu0
  %v1930 = vadd.f32 %v1641, %v1929
  %v1931 = vpop.f32.mrb[0].mxu0
  %v1932 = vpop.f32.mrb[0].mxu0
  %v1933 = vadd.f32 %v1644, %v1932
  %v1934 = vpop.f32.mrb[0].mxu0
  %1935 = vmatprep.mubr.bf16.mxu0 %v964
  %1936 = vmatmul.mubr.bf16.gmra.mrb[0].mxu0 %v963
  %v1937 = vpop.f32.mrb[0].mxu0
  %v1938 = vadd.f32 %v1649, %v1937
  %v1939 = vpop.f32.mrb[0].mxu0
  %v1940 = vpop.f32.mrb[0].mxu0
  %v1941 = vadd.f32 %v1652, %v1940
  %v1942 = vpop.f32.mrb[0].mxu0
  %1943 = vdwg.mxu0
  %1944 = vmatprep.subr.bf16.mxu0 0
  %1945 = vmatpush1.bf16.msra.mxu0 %v1318
  %1946 = vmatprep.subr.bf16.mxu0 0
  %1947 = vmatpush1.bf16.msra.mxu0 %v1319
  %1948 = vmatprep.subr.bf16.mxu0 0
  %1949 = vmatpush1.bf16.msra.mxu0 %v1320
  %1950 = vmatprep.subr.bf16.mxu0 0
  %1951 = vmatpush1.bf16.msra.mxu0 %v1321
  %1952 = vmatprep.subr.bf16.mxu0 0
  %1953 = vmatpush1.bf16.msra.mxu0 %v1322
  %1954 = vmatprep.subr.bf16.mxu0 0
  %1955 = vmatpush1.bf16.msra.mxu0 %v1323
  %1956 = vmatprep.subr.bf16.mxu0 0
  %1957 = vmatpush1.bf16.msra.mxu0 %v1324
  %1958 = vmatprep.subr.bf16.mxu0 0
  %1959 = vmatpush1.bf16.msra.mxu0 %v1325
  %1960 = vmatprep.subr.bf16.mxu0 0
  %1961 = vmatpush1.bf16.msra.mxu0 0
  %1962 = vmatprep.subr.bf16.mxu0 0
  %1963 = vmatpush1.bf16.msra.mxu0 0
  %1964 = vmatprep.subr.bf16.mxu0 0
  %1965 = vmatpush1.bf16.msra.mxu0 0
  %1966 = vmatprep.subr.bf16.mxu0 0
  %1967 = vmatpush1.bf16.msra.mxu0 0
  %1968 = vmatprep.subr.bf16.mxu0 0
  %1969 = vmatpush1.bf16.msra.mxu0 0
  %1970 = vmatprep.subr.bf16.mxu0 0
  %1971 = vmatpush1.bf16.msra.mxu0 0
  %1972 = vmatprep.subr.bf16.mxu0 0
  %1973 = vmatpush1.bf16.msra.mxu0 0
  %1974 = vmatprep.subr.bf16.mxu0 0
  %1975 = vmatpush1.bf16.msra.mxu0 0
  %1976 = vmatprep.mubr.bf16.mxu0 0
  %1977 = vmatmul.mubr.bf16.gmra.mrb[0].mxu0 %v810
  %v1978 = vpop.f32.mrb[0].mxu0
  %v1979 = vadd.f32 %v1690, %v1978
  %v1980 = vpop.f32.mrb[0].mxu0
  %v1981 = vpop.f32.mrb[0].mxu0
  %v1982 = vadd.f32 %v1693, %v1981
  %v1983 = vpop.f32.mrb[0].mxu0
  %1984 = vmatprep.mubr.bf16.mxu0 0
  %1985 = vmatmul.mubr.bf16.gmra.mrb[0].mxu0 %v815
  %v1986 = vpop.f32.mrb[0].mxu0
  %v1987 = vadd.f32 %v1698, %v1986
  %v1988 = vpop.f32.mrb[0].mxu0
  %v1989 = vpop.f32.mrb[0].mxu0
  %v1990 = vadd.f32 %v1701, %v1989
  %v1991 = vpop.f32.mrb[0].mxu0
  %1992 = vmatprep.mubr.bf16.mxu0 0
  %1993 = vmatmul.mubr.bf16.gmra.mrb[0].mxu0 %v820
  %v1994 = vpop.f32.mrb[0].mxu0
  %v1995 = vadd.f32 %v1706, %v1994
  %v1996 = vpop.f32.mrb[0].mxu0
  %v1997 = vpop.f32.mrb[0].mxu0
  %v1998 = vadd.f32 %v1709, %v1997
  %v1999 = vpop.f32.mrb[0].mxu0
  %2000 = vmatprep.mubr.bf16.mxu0 0
  %2001 = vmatmul.mubr.bf16.gmra.mrb[0].mxu0 %v825
  %v2002 = vpop.f32.mrb[0].mxu0
  %v2003 = vadd.f32 %v1714, %v2002
  %v2004 = vpop.f32.mrb[0].mxu0
  %v2005 = vpop.f32.mrb[0].mxu0
  %v2006 = vadd.f32 %v1717, %v2005
  %v2007 = vpop.f32.mrb[0].mxu0
  %2008 = vmatprep.mubr.bf16.mxu0 0
  %2009 = vmatmul.mubr.bf16.gmra.mrb[0].mxu0 %v830
  %v2010 = vpop.f32.mrb[0].mxu0
  %v2011 = vadd.f32 %v1722, %v2010
  %v2012 = vpop.f32.mrb[0].mxu0
  %v2013 = vpop.f32.mrb[0].mxu0
  %v2014 = vadd.f32 %v1725, %v2013
  %v2015 = vpop.f32.mrb[0].mxu0
  %2016 = vmatprep.mubr.bf16.mxu0 0
  %2017 = vmatmul.mubr.bf16.gmra.mrb[0].mxu0 %v835
  %v2018 = vpop.f32.mrb[0].mxu0
  %v2019 = vadd.f32 %v1730, %v2018
  %v2020 = vpop.f32.mrb[0].mxu0
  %v2021 = vpop.f32.mrb[0].mxu0
  %v2022 = vadd.f32 %v1733, %v2021
  %v2023 = vpop.f32.mrb[0].mxu0
  %2024 = vmatprep.mubr.bf16.mxu0 0
  %2025 = vmatmul.mubr.bf16.gmra.mrb[0].mxu0 %v840
  %v2026 = vpop.f32.mrb[0].mxu0
  %v2027 = vadd.f32 %v1738, %v2026
  %v2028 = vpop.f32.mrb[0].mxu0
  %v2029 = vpop.f32.mrb[0].mxu0
  %v2030 = vadd.f32 %v1741, %v2029
  %v2031 = vpop.f32.mrb[0].mxu0
  %2032 = vmatprep.mubr.bf16.mxu0 0
  %2033 = vmatmul.mubr.bf16.gmra.mrb[0].mxu0 %v845
  %v2034 = vpop.f32.mrb[0].mxu0
  %v2035 = vadd.f32 %v1746, %v2034
  %v2036 = vpop.f32.mrb[0].mxu0
  %v2037 = vpop.f32.mrb[0].mxu0
  %v2038 = vadd.f32 %v1749, %v2037
  %v2039 = vpop.f32.mrb[0].mxu0
  %2040 = vmatprep.mubr.bf16.mxu0 0
  %2041 = vmatmul.mubr.bf16.gmra.mrb[0].mxu0 %v850
  %v2042 = vpop.f32.mrb[0].mxu0
  %v2043 = vadd.f32 %v1754, %v2042
  %v2044 = vpop.f32.mrb[0].mxu0
  %v2045 = vpop.f32.mrb[0].mxu0
  %v2046 = vadd.f32 %v1757, %v2045
  %v2047 = vpop.f32.mrb[0].mxu0
  %2048 = vmatprep.mubr.bf16.mxu0 0
  %2049 = vmatmul.mubr.bf16.gmra.mrb[0].mxu0 %v855
  %v2050 = vpop.f32.mrb[0].mxu0
  %v2051 = vadd.f32 %v1762, %v2050
  %v2052 = vpop.f32.mrb[0].mxu0
  %v2053 = vpop.f32.mrb[0].mxu0
  %v2054 = vadd.f32 %v1765, %v2053
  %v2055 = vpop.f32.mrb[0].mxu0
  %2056 = vmatprep.mubr.bf16.mxu0 0
  %2057 = vmatmul.mubr.bf16.gmra.mrb[0].mxu0 %v860
  %v2058 = vpop.f32.mrb[0].mxu0
  %v2059 = vadd.f32 %v1770, %v2058
  %v2060 = vpop.f32.mrb[0].mxu0
  %v2061 = vpop.f32.mrb[0].mxu0
  %v2062 = vadd.f32 %v1773, %v2061
  %v2063 = vpop.f32.mrb[0].mxu0
  %2064 = vmatprep.mubr.bf16.mxu0 0
  %2065 = vmatmul.mubr.bf16.gmra.mrb[0].mxu0 %v865
  %v2066 = vpop.f32.mrb[0].mxu0
  %v2067 = vadd.f32 %v1778, %v2066
  %v2068 = vpop.f32.mrb[0].mxu0
  %v2069 = vpop.f32.mrb[0].mxu0
  %v2070 = vadd.f32 %v1781, %v2069
  %v2071 = vpop.f32.mrb[0].mxu0
  %2072 = vmatprep.mubr.bf16.mxu0 0
  %2073 = vmatmul.mubr.bf16.gmra.mrb[0].mxu0 %v870
  %v2074 = vpop.f32.mrb[0].mxu0
  %v2075 = vadd.f32 %v1786, %v2074
  %v2076 = vpop.f32.mrb[0].mxu0
  %v2077 = vpop.f32.mrb[0].mxu0
  %v2078 = vadd.f32 %v1789, %v2077
  %v2079 = vpop.f32.mrb[0].mxu0
  %2080 = vmatprep.mubr.bf16.mxu0 0
  %2081 = vmatmul.mubr.bf16.gmra.mrb[0].mxu0 %v875
  %v2082 = vpop.f32.mrb[0].mxu0
  %v2083 = vadd.f32 %v1794, %v2082
  %v2084 = vpop.f32.mrb[0].mxu0
  %v2085 = vpop.f32.mrb[0].mxu0
  %v2086 = vadd.f32 %v1797, %v2085
  %v2087 = vpop.f32.mrb[0].mxu0
  %2088 = vmatprep.mubr.bf16.mxu0 0
  %2089 = vmatmul.mubr.bf16.gmra.mrb[0].mxu0 %v880
  %v2090 = vpop.f32.mrb[0].mxu0
  %v2091 = vadd.f32 %v1802, %v2090
  %v2092 = vpop.f32.mrb[0].mxu0
  %v2093 = vpop.f32.mrb[0].mxu0
  %v2094 = vadd.f32 %v1805, %v2093
  %v2095 = vpop.f32.mrb[0].mxu0
  %2096 = vmatprep.mubr.bf16.mxu0 0
  %2097 = vmatmul.mubr.bf16.gmra.mrb[0].mxu0 %v885
  %v2098 = vpop.f32.mrb[0].mxu0
  %v2099 = vadd.f32 %v1810, %v2098
  %v2100 = vpop.f32.mrb[0].mxu0
  %v2101 = vpop.f32.mrb[0].mxu0
  %v2102 = vadd.f32 %v1813, %v2101
  %v2103 = vpop.f32.mrb[0].mxu0
  %2104 = vmatprep.mubr.bf16.mxu0 0
  %2105 = vmatmul.mubr.bf16.gmra.mrb[0].mxu0 %v890
  %v2106 = vpop.f32.mrb[0].mxu0
  %v2107 = vadd.f32 %v1818, %v2106
  %v2108 = vpop.f32.mrb[0].mxu0
  %v2109 = vpop.f32.mrb[0].mxu0
  %v2110 = vadd.f32 %v1821, %v2109
  %v2111 = vpop.f32.mrb[0].mxu0
  %2112 = vmatprep.mubr.bf16.mxu0 0
  %2113 = vmatmul.mubr.bf16.gmra.mrb[0].mxu0 %v895
  %v2114 = vpop.f32.mrb[0].mxu0
  %v2115 = vadd.f32 %v1826, %v2114
  %v2116 = vpop.f32.mrb[0].mxu0
  %v2117 = vpop.f32.mrb[0].mxu0
  %v2118 = vadd.f32 %v1829, %v2117
  %v2119 = vpop.f32.mrb[0].mxu0
  %2120 = vmatprep.mubr.bf16.mxu0 0
  %2121 = vmatmul.mubr.bf16.gmra.mrb[0].mxu0 %v900
  %v2122 = vpop.f32.mrb[0].mxu0
  %v2123 = vadd.f32 %v1834, %v2122
  %v2124 = vpop.f32.mrb[0].mxu0
  %v2125 = vpop.f32.mrb[0].mxu0
  %v2126 = vadd.f32 %v1837, %v2125
  %v2127 = vpop.f32.mrb[0].mxu0
  %2128 = vmatprep.mubr.bf16.mxu0 0
  %2129 = vmatmul.mubr.bf16.gmra.mrb[0].mxu0 %v905
  %v2130 = vpop.f32.mrb[0].mxu0
  %v2131 = vadd.f32 %v1842, %v2130
  %v2132 = vpop.f32.mrb[0].mxu0
  %v2133 = vpop.f32.mrb[0].mxu0
  %v2134 = vadd.f32 %v1845, %v2133
  %v2135 = vpop.f32.mrb[0].mxu0
  %2136 = vmatprep.mubr.bf16.mxu0 0
  %2137 = vmatmul.mubr.bf16.gmra.mrb[0].mxu0 %v910
  %v2138 = vpop.f32.mrb[0].mxu0
  %v2139 = vadd.f32 %v1850, %v2138
  %v2140 = vpop.f32.mrb[0].mxu0
  %v2141 = vpop.f32.mrb[0].mxu0
  %v2142 = vadd.f32 %v1853, %v2141
  %v2143 = vpop.f32.mrb[0].mxu0
  %2144 = vmatprep.mubr.bf16.mxu0 0
  %2145 = vmatmul.mubr.bf16.gmra.mrb[0].mxu0 %v915
  %v2146 = vpop.f32.mrb[0].mxu0
  %v2147 = vadd.f32 %v1858, %v2146
  %v2148 = vpop.f32.mrb[0].mxu0
  %v2149 = vpop.f32.mrb[0].mxu0
  %v2150 = vadd.f32 %v1861, %v2149
  %v2151 = vpop.f32.mrb[0].mxu0
  %2152 = vmatprep.mubr.bf16.mxu0 0
  %2153 = vmatmul.mubr.bf16.gmra.mrb[0].mxu0 %v920
  %v2154 = vpop.f32.mrb[0].mxu0
  %v2155 = vadd.f32 %v1866, %v2154
  %v2156 = vpop.f32.mrb[0].mxu0
  %v2157 = vpop.f32.mrb[0].mxu0
  %v2158 = vadd.f32 %v1869, %v2157
  %v2159 = vpop.f32.mrb[0].mxu0
  %2160 = vmatprep.mubr.bf16.mxu0 0
  %2161 = vmatmul.mubr.bf16.gmra.mrb[0].mxu0 %v925
  %v2162 = vpop.f32.mrb[0].mxu0
  %v2163 = vadd.f32 %v1874, %v2162
  %v2164 = vpop.f32.mrb[0].mxu0
  %v2165 = vpop.f32.mrb[0].mxu0
  %v2166 = vadd.f32 %v1877, %v2165
  %v2167 = vpop.f32.mrb[0].mxu0
  %2168 = vmatprep.mubr.bf16.mxu0 0
  %2169 = vmatmul.mubr.bf16.gmra.mrb[0].mxu0 %v930
  %v2170 = vpop.f32.mrb[0].mxu0
  %v2171 = vadd.f32 %v1882, %v2170
  %v2172 = vpop.f32.mrb[0].mxu0
  %v2173 = vpop.f32.mrb[0].mxu0
  %v2174 = vadd.f32 %v1885, %v2173
  %v2175 = vpop.f32.mrb[0].mxu0
  %2176 = vmatprep.mubr.bf16.mxu0 0
  %2177 = vmatmul.mubr.bf16.gmra.mrb[0].mxu0 %v935
  %v2178 = vpop.f32.mrb[0].mxu0
  %v2179 = vadd.f32 %v1890, %v2178
  %v2180 = vpop.f32.mrb[0].mxu0
  %v2181 = vpop.f32.mrb[0].mxu0
  %v2182 = vadd.f32 %v1893, %v2181
  %v2183 = vpop.f32.mrb[0].mxu0
  %2184 = vmatprep.mubr.bf16.mxu0 0
  %2185 = vmatmul.mubr.bf16.gmra.mrb[0].mxu0 %v940
  %v2186 = vpop.f32.mrb[0].mxu0
  %v2187 = vadd.f32 %v1898, %v2186
  %v2188 = vpop.f32.mrb[0].mxu0
  %v2189 = vpop.f32.mrb[0].mxu0
  %v2190 = vadd.f32 %v1901, %v2189
  %v2191 = vpop.f32.mrb[0].mxu0
  %2192 = vmatprep.mubr.bf16.mxu0 0
  %2193 = vmatmul.mubr.bf16.gmra.mrb[0].mxu0 %v945
  %v2194 = vpop.f32.mrb[0].mxu0
  %v2195 = vadd.f32 %v1906, %v2194
  %v2196 = vpop.f32.mrb[0].mxu0
  %v2197 = vpop.f32.mrb[0].mxu0
  %v2198 = vadd.f32 %v1909, %v2197
  %v2199 = vpop.f32.mrb[0].mxu0
  %2200 = vmatprep.mubr.bf16.mxu0 0
  %2201 = vmatmul.mubr.bf16.gmra.mrb[0].mxu0 %v950
  %v2202 = vpop.f32.mrb[0].mxu0
  %v2203 = vadd.f32 %v1914, %v2202
  %v2204 = vpop.f32.mrb[0].mxu0
  %v2205 = vpop.f32.mrb[0].mxu0
  %v2206 = vadd.f32 %v1917, %v2205
  %v2207 = vpop.f32.mrb[0].mxu0
  %2208 = vmatprep.mubr.bf16.mxu0 0
  %2209 = vmatmul.mubr.bf16.gmra.mrb[0].mxu0 %v955
  %v2210 = vpop.f32.mrb[0].mxu0
  %v2211 = vadd.f32 %v1922, %v2210
  %v2212 = vpop.f32.mrb[0].mxu0
  %v2213 = vpop.f32.mrb[0].mxu0
  %v2214 = vadd.f32 %v1925, %v2213
  %v2215 = vpop.f32.mrb[0].mxu0
  %2216 = vmatprep.mubr.bf16.mxu0 0
  %2217 = vmatmul.mubr.bf16.gmra.mrb[0].mxu0 %v960
  %v2218 = vpop.f32.mrb[0].mxu0
  %v2219 = vadd.f32 %v1930, %v2218
  %v2220 = vpop.f32.mrb[0].mxu0
  %v2221 = vpop.f32.mrb[0].mxu0
  %v2222 = vadd.f32 %v1933, %v2221
  %v2223 = vpop.f32.mrb[0].mxu0
  %2224 = vmatprep.mubr.bf16.mxu0 0
  %2225 = vmatmul.mubr.bf16.gmra.mrb[0].mxu0 %v965
  %v2226 = vpop.f32.mrb[0].mxu0
  %v2227 = vadd.f32 %v1938, %v2226
  %v2228 = vpop.f32.mrb[0].mxu0
  %v2229 = vpop.f32.mrb[0].mxu0
  %v2230 = vadd.f32 %v1941, %v2229
  %v2231 = vpop.f32.mrb[0].mxu0
  %2232 = vdwg.mxu0
  %2233 = vst [vmem:[%s3] sm:$0xff] %v1979
  %2234 = vst [vmem:[%s3 + $0x8] sm:$0xff] %v1982
  %2235 = vst [vmem:[%s3 + $0x10] sm:$0xff] %v1987
  %2236 = vst [vmem:[%s3 + $0x18] sm:$0xff] %v1990
  %2237 = vst [vmem:[%s3 + $0x20] sm:$0xff] %v1995
  %2238 = vst [vmem:[%s3 + $0x28] sm:$0xff] %v1998
  %2239 = vst [vmem:[%s3 + $0x30] sm:$0xff] %v2003
  %2240 = vst [vmem:[%s3 + $0x38] sm:$0xff] %v2006
  %2241 = vst [vmem:[%s3 + $0x40] sm:$0xff] %v2011
  %2242 = vst [vmem:[%s3 + $0x48] sm:$0xff] %v2014
  %2243 = vst [vmem:[%s3 + $0x50] sm:$0xff] %v2019
  %2244 = vst [vmem:[%s3 + $0x58] sm:$0xff] %v2022
  %2245 = vst [vmem:[%s3 + $0x60] sm:$0xff] %v2027
  %2246 = vst [vmem:[%s3 + $0x68] sm:$0xff] %v2030
  %2247 = vst [vmem:[%s3 + $0x70] sm:$0xff] %v2035
  %2248 = vst [vmem:[%s3 + $0x78] sm:$0xff] %v2038
  %2249 = vst [vmem:[%s3 + $0x80] sm:$0xff] %v2043
  %2250 = vst [vmem:[%s3 + $0x88] sm:$0xff] %v2046
  %2251 = vst [vmem:[%s3 + $0x90] sm:$0xff] %v2051
  %2252 = vst [vmem:[%s3 + $0x98] sm:$0xff] %v2054
  %2253 = vst [vmem:[%s3 + $0xa0] sm:$0xff] %v2059
  %2254 = vst [vmem:[%s3 + $0xa8] sm:$0xff] %v2062
  %2255 = vst [vmem:[%s3 + $0xb0] sm:$0xff] %v2067
  %2256 = vst [vmem:[%s3 + $0xb8] sm:$0xff] %v2070
  %2257 = vst [vmem:[%s3 + $0xc0] sm:$0xff] %v2075
  %2258 = vst [vmem:[%s3 + $0xc8] sm:$0xff] %v2078
  %2259 = vst [vmem:[%s3 + $0xd0] sm:$0xff] %v2083
  %2260 = vst [vmem:[%s3 + $0xd8] sm:$0xff] %v2086
  %2261 = vst [vmem:[%s3 + $0xe0] sm:$0xff] %v2091
  %2262 = vst [vmem:[%s3 + $0xe8] sm:$0xff] %v2094
  %2263 = vst [vmem:[%s3 + $0xf0] sm:$0xff] %v2099
  %2264 = vst [vmem:[%s3 + $0xf8] sm:$0xff] %v2102
  %2265 = vst [vmem:[%s3 + $0x100] sm:$0xff] %v2107
  %2266 = vst [vmem:[%s3 + $0x108] sm:$0xff] %v2110
  %2267 = vst [vmem:[%s3 + $0x110] sm:$0xff] %v2115
  %2268 = vst [vmem:[%s3 + $0x118] sm:$0xff] %v2118
  %2269 = vst [vmem:[%s3 + $0x120] sm:$0xff] %v2123
  %2270 = vst [vmem:[%s3 + $0x128] sm:$0xff] %v2126
  %2271 = vst [vmem:[%s3 + $0x130] sm:$0xff] %v2131
  %2272 = vst [vmem:[%s3 + $0x138] sm:$0xff] %v2134
  %2273 = vst [vmem:[%s3 + $0x140] sm:$0xff] %v2139
  %2274 = vst [vmem:[%s3 + $0x148] sm:$0xff] %v2142
  %2275 = vst [vmem:[%s3 + $0x150] sm:$0xff] %v2147
  %2276 = vst [vmem:[%s3 + $0x158] sm:$0xff] %v2150
  %2277 = vst [vmem:[%s3 + $0x160] sm:$0xff] %v2155
  %2278 = vst [vmem:[%s3 + $0x168] sm:$0xff] %v2158
  %2279 = vst [vmem:[%s3 + $0x170] sm:$0xff] %v2163
  %2280 = vst [vmem:[%s3 + $0x178] sm:$0xff] %v2166
  %2281 = vst [vmem:[%s3 + $0x180] sm:$0xff] %v2171
  %2282 = vst [vmem:[%s3 + $0x188] sm:$0xff] %v2174
  %2283 = vst [vmem:[%s3 + $0x190] sm:$0xff] %v2179
  %2284 = vst [vmem:[%s3 + $0x198] sm:$0xff] %v2182
  %2285 = vst [vmem:[%s3 + $0x1a0] sm:$0xff] %v2187
  %2286 = vst [vmem:[%s3 + $0x1a8] sm:$0xff] %v2190
  %2287 = vst [vmem:[%s3 + $0x1b0] sm:$0xff] %v2195
  %2288 = vst [vmem:[%s3 + $0x1b8] sm:$0xff] %v2198
  %2289 = vst [vmem:[%s3 + $0x1c0] sm:$0xff] %v2203
  %2290 = vst [vmem:[%s3 + $0x1c8] sm:$0xff] %v2206
  %2291 = vst [vmem:[%s3 + $0x1d0] sm:$0xff] %v2211
  %2292 = vst [vmem:[%s3 + $0x1d8] sm:$0xff] %v2214
  %2293 = vst [vmem:[%s3 + $0x1e0] sm:$0xff] %v2219
  %2294 = vst [vmem:[%s3 + $0x1e8] sm:$0xff] %v2222
  %2295 = vst [vmem:[%s3 + $0x1f0] sm:$0xff] %v2227
  %2296 = vst [vmem:[%s3 + $0x1f8] sm:$0xff] %v2230
  // Predicated region
  $region14: #{_lambda_.11} parent=0 // pred_check
    _
  $region15: #{_lambda_.11} parent=0 // pred_check_branch
    %2298 = sbr.rel (0) target = $region17
  $region16: #{_lambda_.11} parent=0 // pred_region
    _
  $region17: #{_lambda_.11} parent=0 // pred_fallthru
    _
  // Predicated region
  $region18: #{_lambda_.11} parent=0 // pred_check
    _
  $region19: #{_lambda_.11} parent=0 // pred_check_branch
    %2300 = sbr.rel (0) target = $region21
  $region20: #{_lambda_.11} parent=0 // pred_region
    _
  $region21: #{_lambda_.11} parent=0 // pred_fallthru
    _

// kernel: _lambda_.12
$region0: #{_lambda_.12}
  #allocation0 [shape = 'u32[]', space=smem, size = 0x4, offset = 0x4, fixed_abs, tag = 'smem constant byte address 0x4 - core index']
  #allocation1 [shape = 'u32[144,128]{1,0:T(1,128)}', space=vmem, size = 0x12000, scoped, tag = 'internal scratch']
  %s0 = inlined_call_operand.vmem [shape: bf16[512,128], index: 0, kind: input, shape index: {}]
  %s1 = inlined_call_operand.vmem [shape: bf16[128,128], index: 1, kind: input, shape index: {}]
  %s2 = inlined_call_operand.vmem [shape: f32[1,128], index: 2, kind: input, shape index: {}]
  %s3 = inlined_call_operand.vmem [shape: f32[512,128], index: 3, kind: output, shape index: {}]
  %s4 = sld [smem:[#allocation0]]
  $region22: #{_lambda_.12} parent=0
    _
  %s6 = ssub.s32 1, %s4
  %s7 = scalar_select 0, %s6, %s4
  // Predicated region
  $region2: #{_lambda_.12} parent=0 // pred_check
    _
  $region3: #{_lambda_.12} parent=0 // pred_check_branch
    %9 = sbr.rel (0) target = $region5
  $region4: #{_lambda_.12} parent=0 // pred_region
    _
  $region5: #{_lambda_.12} parent=0 // pred_fallthru
    _
  // Predicated region
  $region6: #{_lambda_.12} parent=0 // pred_check
    _
  $region7: #{_lambda_.12} parent=0 // pred_check_branch
    %11 = sbr.rel (0) target = $region9
  $region8: #{_lambda_.12} parent=0 // pred_region
    _
  $region9: #{_lambda_.12} parent=0 // pred_fallthru
    _
  // Predicated region
  $region10: #{_lambda_.12} parent=0 // pred_check
    _
  $region11: #{_lambda_.12} parent=0 // pred_check_branch
    %13 = sbr.rel (0) target = $region13
  $region12: #{_lambda_.12} parent=0 // pred_region
    _
  $region13: #{_lambda_.12} parent=0 // pred_fallthru
    _
  %v15 = vld [vmem:[%s0] sm:$0xf]
  %v16 = vld [vmem:[%s0 + $0x4] sm:$0xf]
  %v17 = vld [vmem:[%s0 + $0x8] sm:$0xf]
  %v18 = vld [vmem:[%s0 + $0xc] sm:$0xf]
  %v19 = vld [vmem:[%s0 + $0x10] sm:$0xf]
  %v20 = vld [vmem:[%s0 + $0x14] sm:$0xf]
  %v21 = vld [vmem:[%s0 + $0x18] sm:$0xf]
  %v22 = vld [vmem:[%s0 + $0x1c] sm:$0xf]
  %v23 = vld [vmem:[%s0 + $0x20] sm:$0xf]
  %v24 = vld [vmem:[%s0 + $0x24] sm:$0xf]
  %v25 = vld [vmem:[%s0 + $0x28] sm:$0xf]
  %v26 = vld [vmem:[%s0 + $0x2c] sm:$0xf]
  %v27 = vld [vmem:[%s0 + $0x30] sm:$0xf]
  %v28 = vld [vmem:[%s0 + $0x34] sm:$0xf]
  %v29 = vld [vmem:[%s0 + $0x38] sm:$0xf]
  %v30 = vld [vmem:[%s0 + $0x3c] sm:$0xf]
  %v31 = vld [vmem:[%s0 + $0x40] sm:$0xf]
  %v32 = vld [vmem:[%s0 + $0x44] sm:$0xf]
  %v33 = vld [vmem:[%s0 + $0x48] sm:$0xf]
  %v34 = vld [vmem:[%s0 + $0x4c] sm:$0xf]
  %v35 = vld [vmem:[%s0 + $0x50] sm:$0xf]
  %v36 = vld [vmem:[%s0 + $0x54] sm:$0xf]
  %v37 = vld [vmem:[%s0 + $0x58] sm:$0xf]
  %v38 = vld [vmem:[%s0 + $0x5c] sm:$0xf]
  %v39 = vld [vmem:[%s0 + $0x60] sm:$0xf]
  %v40 = vld [vmem:[%s0 + $0x64] sm:$0xf]
  %v41 = vld [vmem:[%s0 + $0x68] sm:$0xf]
  %v42 = vld [vmem:[%s0 + $0x6c] sm:$0xf]
  %v43 = vld [vmem:[%s0 + $0x70] sm:$0xf]
  %v44 = vld [vmem:[%s0 + $0x74] sm:$0xf]
  %v45 = vld [vmem:[%s0 + $0x78] sm:$0xf]
  %v46 = vld [vmem:[%s0 + $0x7c] sm:$0xf]
  %v47 = vld [vmem:[%s0 + $0x80] sm:$0xf]
  %v48 = vld [vmem:[%s0 + $0x84] sm:$0xf]
  %v49 = vld [vmem:[%s0 + $0x88] sm:$0xf]
  %v50 = vld [vmem:[%s0 + $0x8c] sm:$0xf]
  %v51 = vld [vmem:[%s0 + $0x90] sm:$0xf]
  %v52 = vld [vmem:[%s0 + $0x94] sm:$0xf]
  %v53 = vld [vmem:[%s0 + $0x98] sm:$0xf]
  %v54 = vld [vmem:[%s0 + $0x9c] sm:$0xf]
  %v55 = vld [vmem:[%s0 + $0xa0] sm:$0xf]
  %v56 = vld [vmem:[%s0 + $0xa4] sm:$0xf]
  %v57 = vld [vmem:[%s0 + $0xa8] sm:$0xf]
  %v58 = vld [vmem:[%s0 + $0xac] sm:$0xf]
  %v59 = vld [vmem:[%s0 + $0xb0] sm:$0xf]
  %v60 = vld [vmem:[%s0 + $0xb4] sm:$0xf]
  %v61 = vld [vmem:[%s0 + $0xb8] sm:$0xf]
  %v62 = vld [vmem:[%s0 + $0xbc] sm:$0xf]
  %v63 = vld [vmem:[%s0 + $0xc0] sm:$0xf]
  %v64 = vld [vmem:[%s0 + $0xc4] sm:$0xf]
  %v65 = vld [vmem:[%s0 + $0xc8] sm:$0xf]
  %v66 = vld [vmem:[%s0 + $0xcc] sm:$0xf]
  %v67 = vld [vmem:[%s0 + $0xd0] sm:$0xf]
  %v68 = vld [vmem:[%s0 + $0xd4] sm:$0xf]
  %v69 = vld [vmem:[%s0 + $0xd8] sm:$0xf]
  %v70 = vld [vmem:[%s0 + $0xdc] sm:$0xf]
  %v71 = vld [vmem:[%s0 + $0xe0] sm:$0xf]
  %v72 = vld [vmem:[%s0 + $0xe4] sm:$0xf]
  %v73 = vld [vmem:[%s0 + $0xe8] sm:$0xf]
  %v74 = vld [vmem:[%s0 + $0xec] sm:$0xf]
  %v75 = vld [vmem:[%s0 + $0xf0] sm:$0xf]
  %v76 = vld [vmem:[%s0 + $0xf4] sm:$0xf]
  %v77 = vld [vmem:[%s0 + $0xf8] sm:$0xf]
  %v78 = vld [vmem:[%s0 + $0xfc] sm:$0xf]
  %v79 = vld [vmem:[%s1] sm:$0xf]
  %v80 = vld [vmem:[%s1 + $0x4] sm:$0xf]
  %v81 = vld [vmem:[%s1 + $0x8] sm:$0xf]
  %v82 = vld [vmem:[%s1 + $0xc] sm:$0xf]
  %v83 = vld [vmem:[%s1 + $0x10] sm:$0xf]
  %v84 = vld [vmem:[%s1 + $0x14] sm:$0xf]
  %v85 = vld [vmem:[%s1 + $0x18] sm:$0xf]
  %v86 = vld [vmem:[%s1 + $0x1c] sm:$0xf]
  %v87 = vld [vmem:[%s1 + $0x20] sm:$0xf]
  %v88 = vld [vmem:[%s1 + $0x24] sm:$0xf]
  %v89 = vld [vmem:[%s1 + $0x28] sm:$0xf]
  %v90 = vld [vmem:[%s1 + $0x2c] sm:$0xf]
  %v91 = vld [vmem:[%s1 + $0x30] sm:$0xf]
  %v92 = vld [vmem:[%s1 + $0x34] sm:$0xf]
  %v93 = vld [vmem:[%s1 + $0x38] sm:$0xf]
  %v94 = vld [vmem:[%s1 + $0x3c] sm:$0xf]
  %v95 = vld [vmem:[%s2] sm:$0x1]
  %v97 = vlaneseq
  %v98 = vshrl.u32 %v97, 7
  %v99 = vsub.s32 0, %v98
  %v100 = vrot.slane %v95, %v99
  %v166 = vunpack.c.l.b16 %v15
  %v167 = vunpack.c.l.b16 %v16
  %v168 = vunpack.c.l.b16 %v17
  %v169 = vunpack.c.l.b16 %v18
  %v170 = vunpack.c.l.b16 %v19
  %v171 = vunpack.c.l.b16 %v20
  %v172 = vunpack.c.l.b16 %v21
  %v173 = vunpack.c.l.b16 %v22
  %v174 = vunpack.c.l.b16 %v23
  %v175 = vunpack.c.l.b16 %v24
  %v176 = vunpack.c.l.b16 %v25
  %v177 = vunpack.c.l.b16 %v26
  %v178 = vunpack.c.l.b16 %v27
  %v179 = vunpack.c.l.b16 %v28
  %v180 = vunpack.c.l.b16 %v29
  %v181 = vunpack.c.l.b16 %v30
  %v182 = vunpack.c.l.b16 %v31
  %v183 = vunpack.c.l.b16 %v32
  %v184 = vunpack.c.l.b16 %v33
  %v185 = vunpack.c.l.b16 %v34
  %v186 = vunpack.c.l.b16 %v35
  %v187 = vunpack.c.l.b16 %v36
  %v188 = vunpack.c.l.b16 %v37
  %v189 = vunpack.c.l.b16 %v38
  %v190 = vunpack.c.l.b16 %v39
  %v191 = vunpack.c.l.b16 %v40
  %v192 = vunpack.c.l.b16 %v41
  %v193 = vunpack.c.l.b16 %v42
  %v194 = vunpack.c.l.b16 %v43
  %v195 = vunpack.c.l.b16 %v44
  %v196 = vunpack.c.l.b16 %v45
  %v197 = vunpack.c.l.b16 %v46
  %v198 = vunpack.c.l.b16 %v47
  %v199 = vunpack.c.l.b16 %v48
  %v200 = vunpack.c.l.b16 %v49
  %v201 = vunpack.c.l.b16 %v50
  %v202 = vunpack.c.l.b16 %v51
  %v203 = vunpack.c.l.b16 %v52
  %v204 = vunpack.c.l.b16 %v53
  %v205 = vunpack.c.l.b16 %v54
  %v206 = vunpack.c.l.b16 %v55
  %v207 = vunpack.c.l.b16 %v56
  %v208 = vunpack.c.l.b16 %v57
  %v209 = vunpack.c.l.b16 %v58
  %v210 = vunpack.c.l.b16 %v59
  %v211 = vunpack.c.l.b16 %v60
  %v212 = vunpack.c.l.b16 %v61
  %v213 = vunpack.c.l.b16 %v62
  %v214 = vunpack.c.l.b16 %v63
  %v215 = vunpack.c.l.b16 %v64
  %v216 = vunpack.c.l.b16 %v65
  %v217 = vunpack.c.l.b16 %v66
  %v218 = vunpack.c.l.b16 %v67
  %v219 = vunpack.c.l.b16 %v68
  %v220 = vunpack.c.l.b16 %v69
  %v221 = vunpack.c.l.b16 %v70
  %v222 = vunpack.c.l.b16 %v71
  %v223 = vunpack.c.l.b16 %v72
  %v224 = vunpack.c.l.b16 %v73
  %v225 = vunpack.c.l.b16 %v74
  %v226 = vunpack.c.l.b16 %v75
  %v227 = vunpack.c.l.b16 %v76
  %v228 = vunpack.c.l.b16 %v77
  %v229 = vunpack.c.l.b16 %v78
  %v230 = vpack.c.b16 %v167, %v166
  %v231 = vpack.c.b16 %v169, %v168
  %v232 = vpack.c.b16 %v171, %v170
  %v233 = vpack.c.b16 %v173, %v172
  %v234 = vpack.c.b16 %v175, %v174
  %v235 = vpack.c.b16 %v177, %v176
  %v236 = vpack.c.b16 %v179, %v178
  %v237 = vpack.c.b16 %v181, %v180
  %v238 = vpack.c.b16 %v183, %v182
  %v239 = vpack.c.b16 %v185, %v184
  %v240 = vpack.c.b16 %v187, %v186
  %v241 = vpack.c.b16 %v189, %v188
  %v242 = vpack.c.b16 %v191, %v190
  %v243 = vpack.c.b16 %v193, %v192
  %v244 = vpack.c.b16 %v195, %v194
  %v245 = vpack.c.b16 %v197, %v196
  %v246 = vpack.c.b16 %v199, %v198
  %v247 = vpack.c.b16 %v201, %v200
  %v248 = vpack.c.b16 %v203, %v202
  %v249 = vpack.c.b16 %v205, %v204
  %v250 = vpack.c.b16 %v207, %v206
  %v251 = vpack.c.b16 %v209, %v208
  %v252 = vpack.c.b16 %v211, %v210
  %v253 = vpack.c.b16 %v213, %v212
  %v254 = vpack.c.b16 %v215, %v214
  %v255 = vpack.c.b16 %v217, %v216
  %v256 = vpack.c.b16 %v219, %v218
  %v257 = vpack.c.b16 %v221, %v220
  %v258 = vpack.c.b16 %v223, %v222
  %v259 = vpack.c.b16 %v225, %v224
  %v260 = vpack.c.b16 %v227, %v226
  %v261 = vpack.c.b16 %v229, %v228
  %v310 = vunpack.c.l.b16 %v79
  %v311 = vunpack.c.l.b16 %v80
  %v312 = vunpack.c.l.b16 %v81
  %v313 = vunpack.c.l.b16 %v82
  %v314 = vunpack.c.l.b16 %v83
  %v315 = vunpack.c.l.b16 %v84
  %v316 = vunpack.c.l.b16 %v85
  %v317 = vunpack.c.l.b16 %v86
  %v318 = vunpack.c.l.b16 %v87
  %v319 = vunpack.c.l.b16 %v88
  %v320 = vunpack.c.l.b16 %v89
  %v321 = vunpack.c.l.b16 %v90
  %v322 = vunpack.c.l.b16 %v91
  %v323 = vunpack.c.l.b16 %v92
  %v324 = vunpack.c.l.b16 %v93
  %v325 = vunpack.c.l.b16 %v94
  %v326 = vpack.c.b16 %v311, %v310
  %v327 = vpack.c.b16 %v313, %v312
  %v328 = vpack.c.b16 %v315, %v314
  %v329 = vpack.c.b16 %v317, %v316
  %v330 = vpack.c.b16 %v319, %v318
  %v331 = vpack.c.b16 %v321, %v320
  %v332 = vpack.c.b16 %v323, %v322
  %v333 = vpack.c.b16 %v325, %v324
  %342 = vmatprep.subr.bf16.mxu0 0
  %343 = vmatpush1.bf16.msra.mxu0 %v326
  %344 = vmatprep.subr.bf16.mxu0 0
  %345 = vmatpush1.bf16.msra.mxu0 %v327
  %346 = vmatprep.subr.bf16.mxu0 0
  %347 = vmatpush1.bf16.msra.mxu0 %v328
  %348 = vmatprep.subr.bf16.mxu0 0
  %349 = vmatpush1.bf16.msra.mxu0 %v329
  %350 = vmatprep.subr.bf16.mxu0 0
  %351 = vmatpush1.bf16.msra.mxu0 %v330
  %352 = vmatprep.subr.bf16.mxu0 0
  %353 = vmatpush1.bf16.msra.mxu0 %v331
  %354 = vmatprep.subr.bf16.mxu0 0
  %355 = vmatpush1.bf16.msra.mxu0 %v332
  %356 = vmatprep.subr.bf16.mxu0 0
  %357 = vmatpush1.bf16.msra.mxu0 %v333
  %358 = vmatprep.subr.bf16.mxu0 0
  %359 = vmatpush1.bf16.msra.mxu0 0
  %360 = vmatprep.subr.bf16.mxu0 0
  %361 = vmatpush1.bf16.msra.mxu0 0
  %362 = vmatprep.subr.bf16.mxu0 0
  %363 = vmatpush1.bf16.msra.mxu0 0
  %364 = vmatprep.subr.bf16.mxu0 0
  %365 = vmatpush1.bf16.msra.mxu0 0
  %366 = vmatprep.subr.bf16.mxu0 0
  %367 = vmatpush1.bf16.msra.mxu0 0
  %368 = vmatprep.subr.bf16.mxu0 0
  %369 = vmatpush1.bf16.msra.mxu0 0
  %370 = vmatprep.subr.bf16.mxu0 0
  %371 = vmatpush1.bf16.msra.mxu0 0
  %372 = vmatprep.subr.bf16.mxu0 0
  %373 = vmatpush1.bf16.msra.mxu0 0
  %374 = vmatprep.mubr.bf16.mxu0 0
  %375 = vmatmul.mubr.bf16.gmra.mrb[0].mxu0 %v230
  %v376 = vpop.f32.mrb[0].mxu0
  %v377 = vadd.f32 %v100, %v376
  %v378 = vpop.f32.mrb[0].mxu0
  %v379 = vpop.f32.mrb[0].mxu0
  %v380 = vadd.f32 %v100, %v379
  %v381 = vpop.f32.mrb[0].mxu0
  %382 = vmatprep.mubr.bf16.mxu0 0
  %383 = vmatmul.mubr.bf16.gmra.mrb[0].mxu0 %v231
  %v384 = vpop.f32.mrb[0].mxu0
  %v385 = vadd.f32 %v100, %v384
  %v386 = vpop.f32.mrb[0].mxu0
  %v387 = vpop.f32.mrb[0].mxu0
  %v388 = vadd.f32 %v100, %v387
  %v389 = vpop.f32.mrb[0].mxu0
  %390 = vmatprep.mubr.bf16.mxu0 0
  %391 = vmatmul.mubr.bf16.gmra.mrb[0].mxu0 %v232
  %v392 = vpop.f32.mrb[0].mxu0
  %v393 = vadd.f32 %v100, %v392
  %v394 = vpop.f32.mrb[0].mxu0
  %v395 = vpop.f32.mrb[0].mxu0
  %v396 = vadd.f32 %v100, %v395
  %v397 = vpop.f32.mrb[0].mxu0
  %398 = vmatprep.mubr.bf16.mxu0 0
  %399 = vmatmul.mubr.bf16.gmra.mrb[0].mxu0 %v233
  %v400 = vpop.f32.mrb[0].mxu0
  %v401 = vadd.f32 %v100, %v400
  %v402 = vpop.f32.mrb[0].mxu0
  %v403 = vpop.f32.mrb[0].mxu0
  %v404 = vadd.f32 %v100, %v403
  %v405 = vpop.f32.mrb[0].mxu0
  %406 = vmatprep.mubr.bf16.mxu0 0
  %407 = vmatmul.mubr.bf16.gmra.mrb[0].mxu0 %v234
  %v408 = vpop.f32.mrb[0].mxu0
  %v409 = vadd.f32 %v100, %v408
  %v410 = vpop.f32.mrb[0].mxu0
  %v411 = vpop.f32.mrb[0].mxu0
  %v412 = vadd.f32 %v100, %v411
  %v413 = vpop.f32.mrb[0].mxu0
  %414 = vmatprep.mubr.bf16.mxu0 0
  %415 = vmatmul.mubr.bf16.gmra.mrb[0].mxu0 %v235
  %v416 = vpop.f32.mrb[0].mxu0
  %v417 = vadd.f32 %v100, %v416
  %v418 = vpop.f32.mrb[0].mxu0
  %v419 = vpop.f32.mrb[0].mxu0
  %v420 = vadd.f32 %v100, %v419
  %v421 = vpop.f32.mrb[0].mxu0
  %422 = vmatprep.mubr.bf16.mxu0 0
  %423 = vmatmul.mubr.bf16.gmra.mrb[0].mxu0 %v236
  %v424 = vpop.f32.mrb[0].mxu0
  %v425 = vadd.f32 %v100, %v424
  %v426 = vpop.f32.mrb[0].mxu0
  %v427 = vpop.f32.mrb[0].mxu0
  %v428 = vadd.f32 %v100, %v427
  %v429 = vpop.f32.mrb[0].mxu0
  %430 = vmatprep.mubr.bf16.mxu0 0
  %431 = vmatmul.mubr.bf16.gmra.mrb[0].mxu0 %v237
  %v432 = vpop.f32.mrb[0].mxu0
  %v433 = vadd.f32 %v100, %v432
  %v434 = vpop.f32.mrb[0].mxu0
  %v435 = vpop.f32.mrb[0].mxu0
  %v436 = vadd.f32 %v100, %v435
  %v437 = vpop.f32.mrb[0].mxu0
  %438 = vmatprep.mubr.bf16.mxu0 0
  %439 = vmatmul.mubr.bf16.gmra.mrb[0].mxu0 %v238
  %v440 = vpop.f32.mrb[0].mxu0
  %v441 = vadd.f32 %v100, %v440
  %v442 = vpop.f32.mrb[0].mxu0
  %v443 = vpop.f32.mrb[0].mxu0
  %v444 = vadd.f32 %v100, %v443
  %v445 = vpop.f32.mrb[0].mxu0
  %446 = vmatprep.mubr.bf16.mxu0 0
  %447 = vmatmul.mubr.bf16.gmra.mrb[0].mxu0 %v239
  %v448 = vpop.f32.mrb[0].mxu0
  %v449 = vadd.f32 %v100, %v448
  %v450 = vpop.f32.mrb[0].mxu0
  %v451 = vpop.f32.mrb[0].mxu0
  %v452 = vadd.f32 %v100, %v451
  %v453 = vpop.f32.mrb[0].mxu0
  %454 = vmatprep.mubr.bf16.mxu0 0
  %455 = vmatmul.mubr.bf16.gmra.mrb[0].mxu0 %v240
  %v456 = vpop.f32.mrb[0].mxu0
  %v457 = vadd.f32 %v100, %v456
  %v458 = vpop.f32.mrb[0].mxu0
  %v459 = vpop.f32.mrb[0].mxu0
  %v460 = vadd.f32 %v100, %v459
  %v461 = vpop.f32.mrb[0].mxu0
  %462 = vmatprep.mubr.bf16.mxu0 0
  %463 = vmatmul.mubr.bf16.gmra.mrb[0].mxu0 %v241
  %v464 = vpop.f32.mrb[0].mxu0
  %v465 = vadd.f32 %v100, %v464
  %v466 = vpop.f32.mrb[0].mxu0
  %v467 = vpop.f32.mrb[0].mxu0
  %v468 = vadd.f32 %v100, %v467
  %v469 = vpop.f32.mrb[0].mxu0
  %470 = vmatprep.mubr.bf16.mxu0 0
  %471 = vmatmul.mubr.bf16.gmra.mrb[0].mxu0 %v242
  %v472 = vpop.f32.mrb[0].mxu0
  %v473 = vadd.f32 %v100, %v472
  %v474 = vpop.f32.mrb[0].mxu0
  %v475 = vpop.f32.mrb[0].mxu0
  %v476 = vadd.f32 %v100, %v475
  %v477 = vpop.f32.mrb[0].mxu0
  %478 = vmatprep.mubr.bf16.mxu0 0
  %479 = vmatmul.mubr.bf16.gmra.mrb[0].mxu0 %v243
  %v480 = vpop.f32.mrb[0].mxu0
  %v481 = vadd.f32 %v100, %v480
  %v482 = vpop.f32.mrb[0].mxu0
  %v483 = vpop.f32.mrb[0].mxu0
  %v484 = vadd.f32 %v100, %v483
  %v485 = vpop.f32.mrb[0].mxu0
  %486 = vmatprep.mubr.bf16.mxu0 0
  %487 = vmatmul.mubr.bf16.gmra.mrb[0].mxu0 %v244
  %v488 = vpop.f32.mrb[0].mxu0
  %v489 = vadd.f32 %v100, %v488
  %v490 = vpop.f32.mrb[0].mxu0
  %v491 = vpop.f32.mrb[0].mxu0
  %v492 = vadd.f32 %v100, %v491
  %v493 = vpop.f32.mrb[0].mxu0
  %494 = vmatprep.mubr.bf16.mxu0 0
  %495 = vmatmul.mubr.bf16.gmra.mrb[0].mxu0 %v245
  %v496 = vpop.f32.mrb[0].mxu0
  %v497 = vadd.f32 %v100, %v496
  %v498 = vpop.f32.mrb[0].mxu0
  %v499 = vpop.f32.mrb[0].mxu0
  %v500 = vadd.f32 %v100, %v499
  %v501 = vpop.f32.mrb[0].mxu0
  %502 = vmatprep.mubr.bf16.mxu0 0
  %503 = vmatmul.mubr.bf16.gmra.mrb[0].mxu0 %v246
  %v504 = vpop.f32.mrb[0].mxu0
  %v505 = vadd.f32 %v100, %v504
  %v506 = vpop.f32.mrb[0].mxu0
  %v507 = vpop.f32.mrb[0].mxu0
  %v508 = vadd.f32 %v100, %v507
  %v509 = vpop.f32.mrb[0].mxu0
  %510 = vmatprep.mubr.bf16.mxu0 0
  %511 = vmatmul.mubr.bf16.gmra.mrb[0].mxu0 %v247
  %v512 = vpop.f32.mrb[0].mxu0
  %v513 = vadd.f32 %v100, %v512
  %v514 = vpop.f32.mrb[0].mxu0
  %v515 = vpop.f32.mrb[0].mxu0
  %v516 = vadd.f32 %v100, %v515
  %v517 = vpop.f32.mrb[0].mxu0
  %518 = vmatprep.mubr.bf16.mxu0 0
  %519 = vmatmul.mubr.bf16.gmra.mrb[0].mxu0 %v248
  %v520 = vpop.f32.mrb[0].mxu0
  %v521 = vadd.f32 %v100, %v520
  %v522 = vpop.f32.mrb[0].mxu0
  %v523 = vpop.f32.mrb[0].mxu0
  %v524 = vadd.f32 %v100, %v523
  %v525 = vpop.f32.mrb[0].mxu0
  %526 = vmatprep.mubr.bf16.mxu0 0
  %527 = vmatmul.mubr.bf16.gmra.mrb[0].mxu0 %v249
  %v528 = vpop.f32.mrb[0].mxu0
  %v529 = vadd.f32 %v100, %v528
  %v530 = vpop.f32.mrb[0].mxu0
  %v531 = vpop.f32.mrb[0].mxu0
  %v532 = vadd.f32 %v100, %v531
  %v533 = vpop.f32.mrb[0].mxu0
  %534 = vmatprep.mubr.bf16.mxu0 0
  %535 = vmatmul.mubr.bf16.gmra.mrb[0].mxu0 %v250
  %v536 = vpop.f32.mrb[0].mxu0
  %v537 = vadd.f32 %v100, %v536
  %v538 = vpop.f32.mrb[0].mxu0
  %v539 = vpop.f32.mrb[0].mxu0
  %v540 = vadd.f32 %v100, %v539
  %v541 = vpop.f32.mrb[0].mxu0
  %542 = vmatprep.mubr.bf16.mxu0 0
  %543 = vmatmul.mubr.bf16.gmra.mrb[0].mxu0 %v251
  %v544 = vpop.f32.mrb[0].mxu0
  %v545 = vadd.f32 %v100, %v544
  %v546 = vpop.f32.mrb[0].mxu0
  %v547 = vpop.f32.mrb[0].mxu0
  %v548 = vadd.f32 %v100, %v547
  %v549 = vpop.f32.mrb[0].mxu0
  %550 = vmatprep.mubr.bf16.mxu0 0
  %551 = vmatmul.mubr.bf16.gmra.mrb[0].mxu0 %v252
  %v552 = vpop.f32.mrb[0].mxu0
  %v553 = vadd.f32 %v100, %v552
  %v554 = vpop.f32.mrb[0].mxu0
  %v555 = vpop.f32.mrb[0].mxu0
  %v556 = vadd.f32 %v100, %v555
  %v557 = vpop.f32.mrb[0].mxu0
  %558 = vmatprep.mubr.bf16.mxu0 0
  %559 = vmatmul.mubr.bf16.gmra.mrb[0].mxu0 %v253
  %v560 = vpop.f32.mrb[0].mxu0
  %v561 = vadd.f32 %v100, %v560
  %v562 = vpop.f32.mrb[0].mxu0
  %v563 = vpop.f32.mrb[0].mxu0
  %v564 = vadd.f32 %v100, %v563
  %v565 = vpop.f32.mrb[0].mxu0
  %566 = vmatprep.mubr.bf16.mxu0 0
  %567 = vmatmul.mubr.bf16.gmra.mrb[0].mxu0 %v254
  %v568 = vpop.f32.mrb[0].mxu0
  %v569 = vadd.f32 %v100, %v568
  %v570 = vpop.f32.mrb[0].mxu0
  %v571 = vpop.f32.mrb[0].mxu0
  %v572 = vadd.f32 %v100, %v571
  %v573 = vpop.f32.mrb[0].mxu0
  %574 = vmatprep.mubr.bf16.mxu0 0
  %575 = vmatmul.mubr.bf16.gmra.mrb[0].mxu0 %v255
  %v576 = vpop.f32.mrb[0].mxu0
  %v577 = vadd.f32 %v100, %v576
  %v578 = vpop.f32.mrb[0].mxu0
  %v579 = vpop.f32.mrb[0].mxu0
  %v580 = vadd.f32 %v100, %v579
  %v581 = vpop.f32.mrb[0].mxu0
  %582 = vmatprep.mubr.bf16.mxu0 0
  %583 = vmatmul.mubr.bf16.gmra.mrb[0].mxu0 %v256
  %v584 = vpop.f32.mrb[0].mxu0
  %v585 = vadd.f32 %v100, %v584
  %v586 = vpop.f32.mrb[0].mxu0
  %v587 = vpop.f32.mrb[0].mxu0
  %v588 = vadd.f32 %v100, %v587
  %v589 = vpop.f32.mrb[0].mxu0
  %590 = vmatprep.mubr.bf16.mxu0 0
  %591 = vmatmul.mubr.bf16.gmra.mrb[0].mxu0 %v257
  %v592 = vpop.f32.mrb[0].mxu0
  %v593 = vadd.f32 %v100, %v592
  %v594 = vpop.f32.mrb[0].mxu0
  %v595 = vpop.f32.mrb[0].mxu0
  %v596 = vadd.f32 %v100, %v595
  %v597 = vpop.f32.mrb[0].mxu0
  %598 = vmatprep.mubr.bf16.mxu0 0
  %599 = vmatmul.mubr.bf16.gmra.mrb[0].mxu0 %v258
  %v600 = vpop.f32.mrb[0].mxu0
  %v601 = vadd.f32 %v100, %v600
  %v602 = vpop.f32.mrb[0].mxu0
  %v603 = vpop.f32.mrb[0].mxu0
  %v604 = vadd.f32 %v100, %v603
  %v605 = vpop.f32.mrb[0].mxu0
  %606 = vmatprep.mubr.bf16.mxu0 0
  %607 = vmatmul.mubr.bf16.gmra.mrb[0].mxu0 %v259
  %v608 = vpop.f32.mrb[0].mxu0
  %v609 = vadd.f32 %v100, %v608
  %v610 = vpop.f32.mrb[0].mxu0
  %v611 = vpop.f32.mrb[0].mxu0
  %v612 = vadd.f32 %v100, %v611
  %v613 = vpop.f32.mrb[0].mxu0
  %614 = vmatprep.mubr.bf16.mxu0 0
  %615 = vmatmul.mubr.bf16.gmra.mrb[0].mxu0 %v260
  %v616 = vpop.f32.mrb[0].mxu0
  %v617 = vadd.f32 %v100, %v616
  %v618 = vpop.f32.mrb[0].mxu0
  %v619 = vpop.f32.mrb[0].mxu0
  %v620 = vadd.f32 %v100, %v619
  %v621 = vpop.f32.mrb[0].mxu0
  %622 = vmatprep.mubr.bf16.mxu0 0
  %623 = vmatmul.mubr.bf16.gmra.mrb[0].mxu0 %v261
  %v624 = vpop.f32.mrb[0].mxu0
  %v625 = vadd.f32 %v100, %v624
  %v626 = vpop.f32.mrb[0].mxu0
  %v627 = vpop.f32.mrb[0].mxu0
  %v628 = vadd.f32 %v100, %v627
  %v629 = vpop.f32.mrb[0].mxu0
  %630 = vdwg.mxu0
  %631 = vst [vmem:[%s3] sm:$0xff] %v377
  %632 = vst [vmem:[%s3 + $0x8] sm:$0xff] %v380
  %633 = vst [vmem:[%s3 + $0x10] sm:$0xff] %v385
  %634 = vst [vmem:[%s3 + $0x18] sm:$0xff] %v388
  %635 = vst [vmem:[%s3 + $0x20] sm:$0xff] %v393
  %636 = vst [vmem:[%s3 + $0x28] sm:$0xff] %v396
  %637 = vst [vmem:[%s3 + $0x30] sm:$0xff] %v401
  %638 = vst [vmem:[%s3 + $0x38] sm:$0xff] %v404
  %639 = vst [vmem:[%s3 + $0x40] sm:$0xff] %v409
  %640 = vst [vmem:[%s3 + $0x48] sm:$0xff] %v412
  %641 = vst [vmem:[%s3 + $0x50] sm:$0xff] %v417
  %642 = vst [vmem:[%s3 + $0x58] sm:$0xff] %v420
  %643 = vst [vmem:[%s3 + $0x60] sm:$0xff] %v425
  %644 = vst [vmem:[%s3 + $0x68] sm:$0xff] %v428
  %645 = vst [vmem:[%s3 + $0x70] sm:$0xff] %v433
  %646 = vst [vmem:[%s3 + $0x78] sm:$0xff] %v436
  %647 = vst [vmem:[%s3 + $0x80] sm:$0xff] %v441
  %648 = vst [vmem:[%s3 + $0x88] sm:$0xff] %v444
  %649 = vst [vmem:[%s3 + $0x90] sm:$0xff] %v449
  %650 = vst [vmem:[%s3 + $0x98] sm:$0xff] %v452
  %651 = vst [vmem:[%s3 + $0xa0] sm:$0xff] %v457
  %652 = vst [vmem:[%s3 + $0xa8] sm:$0xff] %v460
  %653 = vst [vmem:[%s3 + $0xb0] sm:$0xff] %v465
  %654 = vst [vmem:[%s3 + $0xb8] sm:$0xff] %v468
  %655 = vst [vmem:[%s3 + $0xc0] sm:$0xff] %v473
  %656 = vst [vmem:[%s3 + $0xc8] sm:$0xff] %v476
  %657 = vst [vmem:[%s3 + $0xd0] sm:$0xff] %v481
  %658 = vst [vmem:[%s3 + $0xd8] sm:$0xff] %v484
  %659 = vst [vmem:[%s3 + $0xe0] sm:$0xff] %v489
  %660 = vst [vmem:[%s3 + $0xe8] sm:$0xff] %v492
  %661 = vst [vmem:[%s3 + $0xf0] sm:$0xff] %v497
  %662 = vst [vmem:[%s3 + $0xf8] sm:$0xff] %v500
  %663 = vst [vmem:[%s3 + $0x100] sm:$0xff] %v505
  %664 = vst [vmem:[%s3 + $0x108] sm:$0xff] %v508
  %665 = vst [vmem:[%s3 + $0x110] sm:$0xff] %v513
  %666 = vst [vmem:[%s3 + $0x118] sm:$0xff] %v516
  %667 = vst [vmem:[%s3 + $0x120] sm:$0xff] %v521
  %668 = vst [vmem:[%s3 + $0x128] sm:$0xff] %v524
  %669 = vst [vmem:[%s3 + $0x130] sm:$0xff] %v529
  %670 = vst [vmem:[%s3 + $0x138] sm:$0xff] %v532
  %671 = vst [vmem:[%s3 + $0x140] sm:$0xff] %v537
  %672 = vst [vmem:[%s3 + $0x148] sm:$0xff] %v540
  %673 = vst [vmem:[%s3 + $0x150] sm:$0xff] %v545
  %674 = vst [vmem:[%s3 + $0x158] sm:$0xff] %v548
  %675 = vst [vmem:[%s3 + $0x160] sm:$0xff] %v553
  %676 = vst [vmem:[%s3 + $0x168] sm:$0xff] %v556
  %677 = vst [vmem:[%s3 + $0x170] sm:$0xff] %v561
  %678 = vst [vmem:[%s3 + $0x178] sm:$0xff] %v564
  %679 = vst [vmem:[%s3 + $0x180] sm:$0xff] %v569
  %680 = vst [vmem:[%s3 + $0x188] sm:$0xff] %v572
  %681 = vst [vmem:[%s3 + $0x190] sm:$0xff] %v577
  %682 = vst [vmem:[%s3 + $0x198] sm:$0xff] %v580
  %683 = vst [vmem:[%s3 + $0x1a0] sm:$0xff] %v585
  %684 = vst [vmem:[%s3 + $0x1a8] sm:$0xff] %v588
  %685 = vst [vmem:[%s3 + $0x1b0] sm:$0xff] %v593
  %686 = vst [vmem:[%s3 + $0x1b8] sm:$0xff] %v596
  %687 = vst [vmem:[%s3 + $0x1c0] sm:$0xff] %v601
  %688 = vst [vmem:[%s3 + $0x1c8] sm:$0xff] %v604
  %689 = vst [vmem:[%s3 + $0x1d0] sm:$0xff] %v609
  %690 = vst [vmem:[%s3 + $0x1d8] sm:$0xff] %v612
  %691 = vst [vmem:[%s3 + $0x1e0] sm:$0xff] %v617
  %692 = vst [vmem:[%s3 + $0x1e8] sm:$0xff] %v620
  %693 = vst [vmem:[%s3 + $0x1f0] sm:$0xff] %v625
  %694 = vst [vmem:[%s3 + $0x1f8] sm:$0xff] %v628
  // Predicated region
  $region14: #{_lambda_.12} parent=0 // pred_check
    _
  $region15: #{_lambda_.12} parent=0 // pred_check_branch
    %696 = sbr.rel (0) target = $region17
  $region16: #{_lambda_.12} parent=0 // pred_region
    _
  $region17: #{_lambda_.12} parent=0 // pred_fallthru
    _
  // Predicated region
  $region18: #{_lambda_.12} parent=0 // pred_check
    _
  $region19: #{_lambda_.12} parent=0 // pred_check_branch
    %698 = sbr.rel (0) target = $region21
  $region20: #{_lambda_.12} parent=0 // pred_region
    _
  $region21: #{_lambda_.12} parent=0 // pred_fallthru
    _

// kernel: _lambda_.13
$region0: #{_lambda_.13}
  #allocation0 [shape = 'u32[]', space=smem, size = 0x4, offset = 0x4, fixed_abs, tag = 'smem constant byte address 0x4 - core index']
  #allocation1 [shape = 'u32[144,128]{1,0:T(1,128)}', space=vmem, size = 0x12000, scoped, tag = 'internal scratch']
  %s0 = inlined_call_operand.vmem [shape: bf16[128,1152], index: 0, kind: input, shape index: {}]
  %s1 = inlined_call_operand.vmem [shape: bf16[1152,256], index: 1, kind: input, shape index: {}]
  %s2 = inlined_call_operand.vmem [shape: f32[1,256], index: 2, kind: input, shape index: {}]
  %s3 = inlined_call_operand.vmem [shape: f32[128,256], index: 3, kind: output, shape index: {}]
  %s4 = sld [smem:[#allocation0]]
  $region22: #{_lambda_.13} parent=0
    _
  %s6 = ssub.s32 1, %s4
  %s7 = scalar_select 0, %s6, %s4
  // Predicated region
  $region2: #{_lambda_.13} parent=0 // pred_check
    _
  $region3: #{_lambda_.13} parent=0 // pred_check_branch
    %9 = sbr.rel (0) target = $region5
  $region4: #{_lambda_.13} parent=0 // pred_region
    _
  $region5: #{_lambda_.13} parent=0 // pred_fallthru
    _
  // Predicated region
  $region6: #{_lambda_.13} parent=0 // pred_check
    _
  $region7: #{_lambda_.13} parent=0 // pred_check_branch
    %11 = sbr.rel (0) target = $region9
  $region8: #{_lambda_.13} parent=0 // pred_region
    _
  $region9: #{_lambda_.13} parent=0 // pred_fallthru
    _
  // Predicated region
  $region10: #{_lambda_.13} parent=0 // pred_check
    _
  $region11: #{_lambda_.13} parent=0 // pred_check_branch
    %13 = sbr.rel (0) target = $region13
  $region12: #{_lambda_.13} parent=0 // pred_region
    _
  $region13: #{_lambda_.13} parent=0 // pred_fallthru
    _
  %v15 = vld [vmem:[%s0] sm:$0xff]
  %v16 = vld [vmem:[%s0 + $0x8] sm:$0xff]
  %v17 = vld [vmem:[%s0 + $0x10] sm:$0xff]
  %v18 = vld [vmem:[%s0 + $0x18] sm:$0xff]
  %v19 = vld [vmem:[%s0 + $0x20] sm:$0xf]
  %v20 = vld [vmem:[%s0 + $0x24] sm:$0xff]
  %v21 = vld [vmem:[%s0 + $0x2c] sm:$0xff]
  %v22 = vld [vmem:[%s0 + $0x34] sm:$0xff]
  %v23 = vld [vmem:[%s0 + $0x3c] sm:$0xff]
  %v24 = vld [vmem:[%s0 + $0x44] sm:$0xf]
  %v25 = vld [vmem:[%s0 + $0x48] sm:$0xff]
  %v26 = vld [vmem:[%s0 + $0x50] sm:$0xff]
  %v27 = vld [vmem:[%s0 + $0x58] sm:$0xff]
  %v28 = vld [vmem:[%s0 + $0x60] sm:$0xff]
  %v29 = vld [vmem:[%s0 + $0x68] sm:$0xf]
  %v30 = vld [vmem:[%s0 + $0x6c] sm:$0xff]
  %v31 = vld [vmem:[%s0 + $0x74] sm:$0xff]
  %v32 = vld [vmem:[%s0 + $0x7c] sm:$0xff]
  %v33 = vld [vmem:[%s0 + $0x84] sm:$0xff]
  %v34 = vld [vmem:[%s0 + $0x8c] sm:$0xf]
  %v35 = vld [vmem:[%s0 + $0x90] sm:$0xff]
  %v36 = vld [vmem:[%s0 + $0x98] sm:$0xff]
  %v37 = vld [vmem:[%s0 + $0xa0] sm:$0xff]
  %v38 = vld [vmem:[%s0 + $0xa8] sm:$0xff]
  %v39 = vld [vmem:[%s0 + $0xb0] sm:$0xf]
  %v40 = vld [vmem:[%s0 + $0xb4] sm:$0xff]
  %v41 = vld [vmem:[%s0 + $0xbc] sm:$0xff]
  %v42 = vld [vmem:[%s0 + $0xc4] sm:$0xff]
  %v43 = vld [vmem:[%s0 + $0xcc] sm:$0xff]
  %v44 = vld [vmem:[%s0 + $0xd4] sm:$0xf]
  %v45 = vld [vmem:[%s0 + $0xd8] sm:$0xff]
  %v46 = vld [vmem:[%s0 + $0xe0] sm:$0xff]
  %v47 = vld [vmem:[%s0 + $0xe8] sm:$0xff]
  %v48 = vld [vmem:[%s0 + $0xf0] sm:$0xff]
  %v49 = vld [vmem:[%s0 + $0xf8] sm:$0xf]
  %v50 = vld [vmem:[%s0 + $0xfc] sm:$0xff]
  %v51 = vld [vmem:[%s0 + $0x104] sm:$0xff]
  %v52 = vld [vmem:[%s0 + $0x10c] sm:$0xff]
  %v53 = vld [vmem:[%s0 + $0x114] sm:$0xff]
  %v54 = vld [vmem:[%s0 + $0x11c] sm:$0xf]
  %v55 = vld [vmem:[%s0 + $0x120] sm:$0xff]
  %v56 = vld [vmem:[%s0 + $0x128] sm:$0xff]
  %v57 = vld [vmem:[%s0 + $0x130] sm:$0xff]
  %v58 = vld [vmem:[%s0 + $0x138] sm:$0xff]
  %v59 = vld [vmem:[%s0 + $0x140] sm:$0xf]
  %v60 = vld [vmem:[%s0 + $0x144] sm:$0xff]
  %v61 = vld [vmem:[%s0 + $0x14c] sm:$0xff]
  %v62 = vld [vmem:[%s0 + $0x154] sm:$0xff]
  %v63 = vld [vmem:[%s0 + $0x15c] sm:$0xff]
  %v64 = vld [vmem:[%s0 + $0x164] sm:$0xf]
  %v65 = vld [vmem:[%s0 + $0x168] sm:$0xff]
  %v66 = vld [vmem:[%s0 + $0x170] sm:$0xff]
  %v67 = vld [vmem:[%s0 + $0x178] sm:$0xff]
  %v68 = vld [vmem:[%s0 + $0x180] sm:$0xff]
  %v69 = vld [vmem:[%s0 + $0x188] sm:$0xf]
  %v70 = vld [vmem:[%s0 + $0x18c] sm:$0xff]
  %v71 = vld [vmem:[%s0 + $0x194] sm:$0xff]
  %v72 = vld [vmem:[%s0 + $0x19c] sm:$0xff]
  %v73 = vld [vmem:[%s0 + $0x1a4] sm:$0xff]
  %v74 = vld [vmem:[%s0 + $0x1ac] sm:$0xf]
  %v75 = vld [vmem:[%s0 + $0x1b0] sm:$0xff]
  %v76 = vld [vmem:[%s0 + $0x1b8] sm:$0xff]
  %v77 = vld [vmem:[%s0 + $0x1c0] sm:$0xff]
  %v78 = vld [vmem:[%s0 + $0x1c8] sm:$0xff]
  %v79 = vld [vmem:[%s0 + $0x1d0] sm:$0xf]
  %v80 = vld [vmem:[%s0 + $0x1d4] sm:$0xff]
  %v81 = vld [vmem:[%s0 + $0x1dc] sm:$0xff]
  %v82 = vld [vmem:[%s0 + $0x1e4] sm:$0xff]
  %v83 = vld [vmem:[%s0 + $0x1ec] sm:$0xff]
  %v84 = vld [vmem:[%s0 + $0x1f4] sm:$0xf]
  %v85 = vld [vmem:[%s0 + $0x1f8] sm:$0xff]
  %v86 = vld [vmem:[%s0 + $0x200] sm:$0xff]
  %v87 = vld [vmem:[%s0 + $0x208] sm:$0xff]
  %v88 = vld [vmem:[%s0 + $0x210] sm:$0xff]
  %v89 = vld [vmem:[%s0 + $0x218] sm:$0xf]
  %v90 = vld [vmem:[%s0 + $0x21c] sm:$0xff]
  %v91 = vld [vmem:[%s0 + $0x224] sm:$0xff]
  %v92 = vld [vmem:[%s0 + $0x22c] sm:$0xff]
  %v93 = vld [vmem:[%s0 + $0x234] sm:$0xff]
  %v94 = vld [vmem:[%s0 + $0x23c] sm:$0xf]
  %v95 = vld [vmem:[%s1] sm:$0xff]
  %v96 = vld [vmem:[%s1 + $0x8] sm:$0xff]
  %v97 = vld [vmem:[%s1 + $0x10] sm:$0xff]
  %v98 = vld [vmem:[%s1 + $0x18] sm:$0xff]
  %v99 = vld [vmem:[%s1 + $0x20] sm:$0xff]
  %v100 = vld [vmem:[%s1 + $0x28] sm:$0xff]
  %v101 = vld [vmem:[%s1 + $0x30] sm:$0xff]
  %v102 = vld [vmem:[%s1 + $0x38] sm:$0xff]
  %v103 = vld [vmem:[%s1 + $0x40] sm:$0xff]
  %v104 = vld [vmem:[%s1 + $0x48] sm:$0xff]
  %v105 = vld [vmem:[%s1 + $0x50] sm:$0xff]
  %v106 = vld [vmem:[%s1 + $0x58] sm:$0xff]
  %v107 = vld [vmem:[%s1 + $0x60] sm:$0xff]
  %v108 = vld [vmem:[%s1 + $0x68] sm:$0xff]
  %v109 = vld [vmem:[%s1 + $0x70] sm:$0xff]
  %v110 = vld [vmem:[%s1 + $0x78] sm:$0xff]
  %v111 = vld [vmem:[%s1 + $0x80] sm:$0xff]
  %v112 = vld [vmem:[%s1 + $0x88] sm:$0xff]
  %v113 = vld [vmem:[%s1 + $0x90] sm:$0xff]
  %v114 = vld [vmem:[%s1 + $0x98] sm:$0xff]
  %v115 = vld [vmem:[%s1 + $0xa0] sm:$0xff]
  %v116 = vld [vmem:[%s1 + $0xa8] sm:$0xff]
  %v117 = vld [vmem:[%s1 + $0xb0] sm:$0xff]
  %v118 = vld [vmem:[%s1 + $0xb8] sm:$0xff]
  %v119 = vld [vmem:[%s1 + $0xc0] sm:$0xff]
  %v120 = vld [vmem:[%s1 + $0xc8] sm:$0xff]
  %v121 = vld [vmem:[%s1 + $0xd0] sm:$0xff]
  %v122 = vld [vmem:[%s1 + $0xd8] sm:$0xff]
  %v123 = vld [vmem:[%s1 + $0xe0] sm:$0xff]
  %v124 = vld [vmem:[%s1 + $0xe8] sm:$0xff]
  %v125 = vld [vmem:[%s1 + $0xf0] sm:$0xff]
  %v126 = vld [vmem:[%s1 + $0xf8] sm:$0xff]
  %v127 = vld [vmem:[%s1 + $0x100] sm:$0xff]
  %v128 = vld [vmem:[%s1 + $0x108] sm:$0xff]
  %v129 = vld [vmem:[%s1 + $0x110] sm:$0xff]
  %v130 = vld [vmem:[%s1 + $0x118] sm:$0xff]
  %v131 = vld [vmem:[%s1 + $0x120] sm:$0xff]
  %v132 = vld [vmem:[%s1 + $0x128] sm:$0xff]
  %v133 = vld [vmem:[%s1 + $0x130] sm:$0xff]
  %v134 = vld [vmem:[%s1 + $0x138] sm:$0xff]
  %v135 = vld [vmem:[%s1 + $0x140] sm:$0xff]
  %v136 = vld [vmem:[%s1 + $0x148] sm:$0xff]
  %v137 = vld [vmem:[%s1 + $0x150] sm:$0xff]
  %v138 = vld [vmem:[%s1 + $0x158] sm:$0xff]
  %v139 = vld [vmem:[%s1 + $0x160] sm:$0xff]
  %v140 = vld [vmem:[%s1 + $0x168] sm:$0xff]
  %v141 = vld [vmem:[%s1 + $0x170] sm:$0xff]
  %v142 = vld [vmem:[%s1 + $0x178] sm:$0xff]
  %v143 = vld [vmem:[%s1 + $0x180] sm:$0xff]
  %v144 = vld [vmem:[%s1 + $0x188] sm:$0xff]
  %v145 = vld [vmem:[%s1 + $0x190] sm:$0xff]
  %v146 = vld [vmem:[%s1 + $0x198] sm:$0xff]
  %v147 = vld [vmem:[%s1 + $0x1a0] sm:$0xff]
  %v148 = vld [vmem:[%s1 + $0x1a8] sm:$0xff]
  %v149 = vld [vmem:[%s1 + $0x1b0] sm:$0xff]
  %v150 = vld [vmem:[%s1 + $0x1b8] sm:$0xff]
  %v151 = vld [vmem:[%s1 + $0x1c0] sm:$0xff]
  %v152 = vld [vmem:[%s1 + $0x1c8] sm:$0xff]
  %v153 = vld [vmem:[%s1 + $0x1d0] sm:$0xff]
  %v154 = vld [vmem:[%s1 + $0x1d8] sm:$0xff]
  %v155 = vld [vmem:[%s1 + $0x1e0] sm:$0xff]
  %v156 = vld [vmem:[%s1 + $0x1e8] sm:$0xff]
  %v157 = vld [vmem:[%s1 + $0x1f0] sm:$0xff]
  %v158 = vld [vmem:[%s1 + $0x1f8] sm:$0xff]
  %v159 = vld [vmem:[%s1 + $0x200] sm:$0xff]
  %v160 = vld [vmem:[%s1 + $0x208] sm:$0xff]
  %v161 = vld [vmem:[%s1 + $0x210] sm:$0xff]
  %v162 = vld [vmem:[%s1 + $0x218] sm:$0xff]
  %v163 = vld [vmem:[%s1 + $0x220] sm:$0xff]
  %v164 = vld [vmem:[%s1 + $0x228] sm:$0xff]
  %v165 = vld [vmem:[%s1 + $0x230] sm:$0xff]
  %v166 = vld [vmem:[%s1 + $0x238] sm:$0xff]
  %v167 = vld [vmem:[%s1 + $0x240] sm:$0xff]
  %v168 = vld [vmem:[%s1 + $0x248] sm:$0xff]
  %v169 = vld [vmem:[%s1 + $0x250] sm:$0xff]
  %v170 = vld [vmem:[%s1 + $0x258] sm:$0xff]
  %v171 = vld [vmem:[%s1 + $0x260] sm:$0xff]
  %v172 = vld [vmem:[%s1 + $0x268] sm:$0xff]
  %v173 = vld [vmem:[%s1 + $0x270] sm:$0xff]
  %v174 = vld [vmem:[%s1 + $0x278] sm:$0xff]
  %v175 = vld [vmem:[%s1 + $0x280] sm:$0xff]
  %v176 = vld [vmem:[%s1 + $0x288] sm:$0xff]
  %v177 = vld [vmem:[%s1 + $0x290] sm:$0xff]
  %v178 = vld [vmem:[%s1 + $0x298] sm:$0xff]
  %v179 = vld [vmem:[%s1 + $0x2a0] sm:$0xff]
  %v180 = vld [vmem:[%s1 + $0x2a8] sm:$0xff]
  %v181 = vld [vmem:[%s1 + $0x2b0] sm:$0xff]
  %v182 = vld [vmem:[%s1 + $0x2b8] sm:$0xff]
  %v183 = vld [vmem:[%s1 + $0x2c0] sm:$0xff]
  %v184 = vld [vmem:[%s1 + $0x2c8] sm:$0xff]
  %v185 = vld [vmem:[%s1 + $0x2d0] sm:$0xff]
  %v186 = vld [vmem:[%s1 + $0x2d8] sm:$0xff]
  %v187 = vld [vmem:[%s1 + $0x2e0] sm:$0xff]
  %v188 = vld [vmem:[%s1 + $0x2e8] sm:$0xff]
  %v189 = vld [vmem:[%s1 + $0x2f0] sm:$0xff]
  %v190 = vld [vmem:[%s1 + $0x2f8] sm:$0xff]
  %v191 = vld [vmem:[%s1 + $0x300] sm:$0xff]
  %v192 = vld [vmem:[%s1 + $0x308] sm:$0xff]
  %v193 = vld [vmem:[%s1 + $0x310] sm:$0xff]
  %v194 = vld [vmem:[%s1 + $0x318] sm:$0xff]
  %v195 = vld [vmem:[%s1 + $0x320] sm:$0xff]
  %v196 = vld [vmem:[%s1 + $0x328] sm:$0xff]
  %v197 = vld [vmem:[%s1 + $0x330] sm:$0xff]
  %v198 = vld [vmem:[%s1 + $0x338] sm:$0xff]
  %v199 = vld [vmem:[%s1 + $0x340] sm:$0xff]
  %v200 = vld [vmem:[%s1 + $0x348] sm:$0xff]
  %v201 = vld [vmem:[%s1 + $0x350] sm:$0xff]
  %v202 = vld [vmem:[%s1 + $0x358] sm:$0xff]
  %v203 = vld [vmem:[%s1 + $0x360] sm:$0xff]
  %v204 = vld [vmem:[%s1 + $0x368] sm:$0xff]
  %v205 = vld [vmem:[%s1 + $0x370] sm:$0xff]
  %v206 = vld [vmem:[%s1 + $0x378] sm:$0xff]
  %v207 = vld [vmem:[%s1 + $0x380] sm:$0xff]
  %v208 = vld [vmem:[%s1 + $0x388] sm:$0xff]
  %v209 = vld [vmem:[%s1 + $0x390] sm:$0xff]
  %v210 = vld [vmem:[%s1 + $0x398] sm:$0xff]
  %v211 = vld [vmem:[%s1 + $0x3a0] sm:$0xff]
  %v212 = vld [vmem:[%s1 + $0x3a8] sm:$0xff]
  %v213 = vld [vmem:[%s1 + $0x3b0] sm:$0xff]
  %v214 = vld [vmem:[%s1 + $0x3b8] sm:$0xff]
  %v215 = vld [vmem:[%s1 + $0x3c0] sm:$0xff]
  %v216 = vld [vmem:[%s1 + $0x3c8] sm:$0xff]
  %v217 = vld [vmem:[%s1 + $0x3d0] sm:$0xff]
  %v218 = vld [vmem:[%s1 + $0x3d8] sm:$0xff]
  %v219 = vld [vmem:[%s1 + $0x3e0] sm:$0xff]
  %v220 = vld [vmem:[%s1 + $0x3e8] sm:$0xff]
  %v221 = vld [vmem:[%s1 + $0x3f0] sm:$0xff]
  %v222 = vld [vmem:[%s1 + $0x3f8] sm:$0xff]
  %v223 = vld [vmem:[%s1 + $0x400] sm:$0xff]
  %v224 = vld [vmem:[%s1 + $0x408] sm:$0xff]
  %v225 = vld [vmem:[%s1 + $0x410] sm:$0xff]
  %v226 = vld [vmem:[%s1 + $0x418] sm:$0xff]
  %v227 = vld [vmem:[%s1 + $0x420] sm:$0xff]
  %v228 = vld [vmem:[%s1 + $0x428] sm:$0xff]
  %v229 = vld [vmem:[%s1 + $0x430] sm:$0xff]
  %v230 = vld [vmem:[%s1 + $0x438] sm:$0xff]
  %v231 = vld [vmem:[%s1 + $0x440] sm:$0xff]
  %v232 = vld [vmem:[%s1 + $0x448] sm:$0xff]
  %v233 = vld [vmem:[%s1 + $0x450] sm:$0xff]
  %v234 = vld [vmem:[%s1 + $0x458] sm:$0xff]
  %v235 = vld [vmem:[%s1 + $0x460] sm:$0xff]
  %v236 = vld [vmem:[%s1 + $0x468] sm:$0xff]
  %v237 = vld [vmem:[%s1 + $0x470] sm:$0xff]
  %v238 = vld [vmem:[%s1 + $0x478] sm:$0xff]
  %v239 = vld [vmem:[%s2] sm:$0x3]
  %v241 = vlaneseq
  %v242 = vshrl.u32 %v241, 7
  %v243 = vsub.s32 0, %v242
  %v244 = vrot.slane %v239, %v243
  %v245 = vlaneseq
  %v246 = vshrl.u32 %v245, 7
  %v247 = vsub.s32 1, %v246
  %v248 = vrot.slane %v239, %v247
  %v331 = vunpack.c.l.b16 %v15
  %v332 = vunpack.c.h.b16 %v15
  %v333 = vunpack.c.l.b16 %v16
  %v334 = vunpack.c.h.b16 %v16
  %v335 = vunpack.c.l.b16 %v17
  %v336 = vunpack.c.h.b16 %v17
  %v337 = vunpack.c.l.b16 %v18
  %v338 = vunpack.c.h.b16 %v18
  %v339 = vunpack.c.l.b16 %v19
  %v340 = vunpack.c.l.b16 %v20
  %v341 = vunpack.c.h.b16 %v20
  %v342 = vunpack.c.l.b16 %v21
  %v343 = vunpack.c.h.b16 %v21
  %v344 = vunpack.c.l.b16 %v22
  %v345 = vunpack.c.h.b16 %v22
  %v346 = vunpack.c.l.b16 %v23
  %v347 = vunpack.c.h.b16 %v23
  %v348 = vunpack.c.l.b16 %v24
  %v349 = vunpack.c.l.b16 %v25
  %v350 = vunpack.c.h.b16 %v25
  %v351 = vunpack.c.l.b16 %v26
  %v352 = vunpack.c.h.b16 %v26
  %v353 = vunpack.c.l.b16 %v27
  %v354 = vunpack.c.h.b16 %v27
  %v355 = vunpack.c.l.b16 %v28
  %v356 = vunpack.c.h.b16 %v28
  %v357 = vunpack.c.l.b16 %v29
  %v358 = vunpack.c.l.b16 %v30
  %v359 = vunpack.c.h.b16 %v30
  %v360 = vunpack.c.l.b16 %v31
  %v361 = vunpack.c.h.b16 %v31
  %v362 = vunpack.c.l.b16 %v32
  %v363 = vunpack.c.h.b16 %v32
  %v364 = vunpack.c.l.b16 %v33
  %v365 = vunpack.c.h.b16 %v33
  %v366 = vunpack.c.l.b16 %v34
  %v367 = vunpack.c.l.b16 %v35
  %v368 = vunpack.c.h.b16 %v35
  %v369 = vunpack.c.l.b16 %v36
  %v370 = vunpack.c.h.b16 %v36
  %v371 = vunpack.c.l.b16 %v37
  %v372 = vunpack.c.h.b16 %v37
  %v373 = vunpack.c.l.b16 %v38
  %v374 = vunpack.c.h.b16 %v38
  %v375 = vunpack.c.l.b16 %v39
  %v376 = vunpack.c.l.b16 %v40
  %v377 = vunpack.c.h.b16 %v40
  %v378 = vunpack.c.l.b16 %v41
  %v379 = vunpack.c.h.b16 %v41
  %v380 = vunpack.c.l.b16 %v42
  %v381 = vunpack.c.h.b16 %v42
  %v382 = vunpack.c.l.b16 %v43
  %v383 = vunpack.c.h.b16 %v43
  %v384 = vunpack.c.l.b16 %v44
  %v385 = vunpack.c.l.b16 %v45
  %v386 = vunpack.c.h.b16 %v45
  %v387 = vunpack.c.l.b16 %v46
  %v388 = vunpack.c.h.b16 %v46
  %v389 = vunpack.c.l.b16 %v47
  %v390 = vunpack.c.h.b16 %v47
  %v391 = vunpack.c.l.b16 %v48
  %v392 = vunpack.c.h.b16 %v48
  %v393 = vunpack.c.l.b16 %v49
  %v394 = vunpack.c.l.b16 %v50
  %v395 = vunpack.c.h.b16 %v50
  %v396 = vunpack.c.l.b16 %v51
  %v397 = vunpack.c.h.b16 %v51
  %v398 = vunpack.c.l.b16 %v52
  %v399 = vunpack.c.h.b16 %v52
  %v400 = vunpack.c.l.b16 %v53
  %v401 = vunpack.c.h.b16 %v53
  %v402 = vunpack.c.l.b16 %v54
  %v403 = vunpack.c.l.b16 %v55
  %v404 = vunpack.c.h.b16 %v55
  %v405 = vunpack.c.l.b16 %v56
  %v406 = vunpack.c.h.b16 %v56
  %v407 = vunpack.c.l.b16 %v57
  %v408 = vunpack.c.h.b16 %v57
  %v409 = vunpack.c.l.b16 %v58
  %v410 = vunpack.c.h.b16 %v58
  %v411 = vunpack.c.l.b16 %v59
  %v412 = vunpack.c.l.b16 %v60
  %v413 = vunpack.c.h.b16 %v60
  %v414 = vunpack.c.l.b16 %v61
  %v415 = vunpack.c.h.b16 %v61
  %v416 = vunpack.c.l.b16 %v62
  %v417 = vunpack.c.h.b16 %v62
  %v418 = vunpack.c.l.b16 %v63
  %v419 = vunpack.c.h.b16 %v63
  %v420 = vunpack.c.l.b16 %v64
  %v421 = vunpack.c.l.b16 %v65
  %v422 = vunpack.c.h.b16 %v65
  %v423 = vunpack.c.l.b16 %v66
  %v424 = vunpack.c.h.b16 %v66
  %v425 = vunpack.c.l.b16 %v67
  %v426 = vunpack.c.h.b16 %v67
  %v427 = vunpack.c.l.b16 %v68
  %v428 = vunpack.c.h.b16 %v68
  %v429 = vunpack.c.l.b16 %v69
  %v430 = vunpack.c.l.b16 %v70
  %v431 = vunpack.c.h.b16 %v70
  %v432 = vunpack.c.l.b16 %v71
  %v433 = vunpack.c.h.b16 %v71
  %v434 = vunpack.c.l.b16 %v72
  %v435 = vunpack.c.h.b16 %v72
  %v436 = vunpack.c.l.b16 %v73
  %v437 = vunpack.c.h.b16 %v73
  %v438 = vunpack.c.l.b16 %v74
  %v439 = vunpack.c.l.b16 %v75
  %v440 = vunpack.c.h.b16 %v75
  %v441 = vunpack.c.l.b16 %v76
  %v442 = vunpack.c.h.b16 %v76
  %v443 = vunpack.c.l.b16 %v77
  %v444 = vunpack.c.h.b16 %v77
  %v445 = vunpack.c.l.b16 %v78
  %v446 = vunpack.c.h.b16 %v78
  %v447 = vunpack.c.l.b16 %v79
  %v448 = vunpack.c.l.b16 %v80
  %v449 = vunpack.c.h.b16 %v80
  %v450 = vunpack.c.l.b16 %v81
  %v451 = vunpack.c.h.b16 %v81
  %v452 = vunpack.c.l.b16 %v82
  %v453 = vunpack.c.h.b16 %v82
  %v454 = vunpack.c.l.b16 %v83
  %v455 = vunpack.c.h.b16 %v83
  %v456 = vunpack.c.l.b16 %v84
  %v457 = vunpack.c.l.b16 %v85
  %v458 = vunpack.c.h.b16 %v85
  %v459 = vunpack.c.l.b16 %v86
  %v460 = vunpack.c.h.b16 %v86
  %v461 = vunpack.c.l.b16 %v87
  %v462 = vunpack.c.h.b16 %v87
  %v463 = vunpack.c.l.b16 %v88
  %v464 = vunpack.c.h.b16 %v88
  %v465 = vunpack.c.l.b16 %v89
  %v466 = vunpack.c.l.b16 %v90
  %v467 = vunpack.c.h.b16 %v90
  %v468 = vunpack.c.l.b16 %v91
  %v469 = vunpack.c.h.b16 %v91
  %v470 = vunpack.c.l.b16 %v92
  %v471 = vunpack.c.h.b16 %v92
  %v472 = vunpack.c.l.b16 %v93
  %v473 = vunpack.c.h.b16 %v93
  %v474 = vunpack.c.l.b16 %v94
  %v475 = vpack.c.b16 %v340, %v331
  %v476 = vpack.c.b16 %v341, %v332
  %v477 = vpack.c.b16 %v342, %v333
  %v478 = vpack.c.b16 %v343, %v334
  %v479 = vpack.c.b16 %v344, %v335
  %v480 = vpack.c.b16 %v345, %v336
  %v481 = vpack.c.b16 %v346, %v337
  %v482 = vpack.c.b16 %v347, %v338
  %v483 = vpack.c.b16 %v348, %v339
  %v484 = vpack.c.b16 %v358, %v349
  %v485 = vpack.c.b16 %v359, %v350
  %v486 = vpack.c.b16 %v360, %v351
  %v487 = vpack.c.b16 %v361, %v352
  %v488 = vpack.c.b16 %v362, %v353
  %v489 = vpack.c.b16 %v363, %v354
  %v490 = vpack.c.b16 %v364, %v355
  %v491 = vpack.c.b16 %v365, %v356
  %v492 = vpack.c.b16 %v366, %v357
  %v493 = vpack.c.b16 %v376, %v367
  %v494 = vpack.c.b16 %v377, %v368
  %v495 = vpack.c.b16 %v378, %v369
  %v496 = vpack.c.b16 %v379, %v370
  %v497 = vpack.c.b16 %v380, %v371
  %v498 = vpack.c.b16 %v381, %v372
  %v499 = vpack.c.b16 %v382, %v373
  %v500 = vpack.c.b16 %v383, %v374
  %v501 = vpack.c.b16 %v384, %v375
  %v502 = vpack.c.b16 %v394, %v385
  %v503 = vpack.c.b16 %v395, %v386
  %v504 = vpack.c.b16 %v396, %v387
  %v505 = vpack.c.b16 %v397, %v388
  %v506 = vpack.c.b16 %v398, %v389
  %v507 = vpack.c.b16 %v399, %v390
  %v508 = vpack.c.b16 %v400, %v391
  %v509 = vpack.c.b16 %v401, %v392
  %v510 = vpack.c.b16 %v402, %v393
  %v511 = vpack.c.b16 %v412, %v403
  %v512 = vpack.c.b16 %v413, %v404
  %v513 = vpack.c.b16 %v414, %v405
  %v514 = vpack.c.b16 %v415, %v406
  %v515 = vpack.c.b16 %v416, %v407
  %v516 = vpack.c.b16 %v417, %v408
  %v517 = vpack.c.b16 %v418, %v409
  %v518 = vpack.c.b16 %v419, %v410
  %v519 = vpack.c.b16 %v420, %v411
  %v520 = vpack.c.b16 %v430, %v421
  %v521 = vpack.c.b16 %v431, %v422
  %v522 = vpack.c.b16 %v432, %v423
  %v523 = vpack.c.b16 %v433, %v424
  %v524 = vpack.c.b16 %v434, %v425
  %v525 = vpack.c.b16 %v435, %v426
  %v526 = vpack.c.b16 %v436, %v427
  %v527 = vpack.c.b16 %v437, %v428
  %v528 = vpack.c.b16 %v438, %v429
  %v529 = vpack.c.b16 %v448, %v439
  %v530 = vpack.c.b16 %v449, %v440
  %v531 = vpack.c.b16 %v450, %v441
  %v532 = vpack.c.b16 %v451, %v442
  %v533 = vpack.c.b16 %v452, %v443
  %v534 = vpack.c.b16 %v453, %v444
  %v535 = vpack.c.b16 %v454, %v445
  %v536 = vpack.c.b16 %v455, %v446
  %v537 = vpack.c.b16 %v456, %v447
  %v538 = vpack.c.b16 %v466, %v457
  %v539 = vpack.c.b16 %v467, %v458
  %v540 = vpack.c.b16 %v468, %v459
  %v541 = vpack.c.b16 %v469, %v460
  %v542 = vpack.c.b16 %v470, %v461
  %v543 = vpack.c.b16 %v471, %v462
  %v544 = vpack.c.b16 %v472, %v463
  %v545 = vpack.c.b16 %v473, %v464
  %v546 = vpack.c.b16 %v474, %v465
  %v763 = vunpack.c.l.b16 %v95
  %v764 = vunpack.c.h.b16 %v95
  %v765 = vunpack.c.l.b16 %v96
  %v766 = vunpack.c.h.b16 %v96
  %v767 = vunpack.c.l.b16 %v97
  %v768 = vunpack.c.h.b16 %v97
  %v769 = vunpack.c.l.b16 %v98
  %v770 = vunpack.c.h.b16 %v98
  %v771 = vunpack.c.l.b16 %v99
  %v772 = vunpack.c.h.b16 %v99
  %v773 = vunpack.c.l.b16 %v100
  %v774 = vunpack.c.h.b16 %v100
  %v775 = vunpack.c.l.b16 %v101
  %v776 = vunpack.c.h.b16 %v101
  %v777 = vunpack.c.l.b16 %v102
  %v778 = vunpack.c.h.b16 %v102
  %v779 = vunpack.c.l.b16 %v103
  %v780 = vunpack.c.h.b16 %v103
  %v781 = vunpack.c.l.b16 %v104
  %v782 = vunpack.c.h.b16 %v104
  %v783 = vunpack.c.l.b16 %v105
  %v784 = vunpack.c.h.b16 %v105
  %v785 = vunpack.c.l.b16 %v106
  %v786 = vunpack.c.h.b16 %v106
  %v787 = vunpack.c.l.b16 %v107
  %v788 = vunpack.c.h.b16 %v107
  %v789 = vunpack.c.l.b16 %v108
  %v790 = vunpack.c.h.b16 %v108
  %v791 = vunpack.c.l.b16 %v109
  %v792 = vunpack.c.h.b16 %v109
  %v793 = vunpack.c.l.b16 %v110
  %v794 = vunpack.c.h.b16 %v110
  %v795 = vunpack.c.l.b16 %v111
  %v796 = vunpack.c.h.b16 %v111
  %v797 = vunpack.c.l.b16 %v112
  %v798 = vunpack.c.h.b16 %v112
  %v799 = vunpack.c.l.b16 %v113
  %v800 = vunpack.c.h.b16 %v113
  %v801 = vunpack.c.l.b16 %v114
  %v802 = vunpack.c.h.b16 %v114
  %v803 = vunpack.c.l.b16 %v115
  %v804 = vunpack.c.h.b16 %v115
  %v805 = vunpack.c.l.b16 %v116
  %v806 = vunpack.c.h.b16 %v116
  %v807 = vunpack.c.l.b16 %v117
  %v808 = vunpack.c.h.b16 %v117
  %v809 = vunpack.c.l.b16 %v118
  %v810 = vunpack.c.h.b16 %v118
  %v811 = vunpack.c.l.b16 %v119
  %v812 = vunpack.c.h.b16 %v119
  %v813 = vunpack.c.l.b16 %v120
  %v814 = vunpack.c.h.b16 %v120
  %v815 = vunpack.c.l.b16 %v121
  %v816 = vunpack.c.h.b16 %v121
  %v817 = vunpack.c.l.b16 %v122
  %v818 = vunpack.c.h.b16 %v122
  %v819 = vunpack.c.l.b16 %v123
  %v820 = vunpack.c.h.b16 %v123
  %v821 = vunpack.c.l.b16 %v124
  %v822 = vunpack.c.h.b16 %v124
  %v823 = vunpack.c.l.b16 %v125
  %v824 = vunpack.c.h.b16 %v125
  %v825 = vunpack.c.l.b16 %v126
  %v826 = vunpack.c.h.b16 %v126
  %v827 = vunpack.c.l.b16 %v127
  %v828 = vunpack.c.h.b16 %v127
  %v829 = vunpack.c.l.b16 %v128
  %v830 = vunpack.c.h.b16 %v128
  %v831 = vunpack.c.l.b16 %v129
  %v832 = vunpack.c.h.b16 %v129
  %v833 = vunpack.c.l.b16 %v130
  %v834 = vunpack.c.h.b16 %v130
  %v835 = vunpack.c.l.b16 %v131
  %v836 = vunpack.c.h.b16 %v131
  %v837 = vunpack.c.l.b16 %v132
  %v838 = vunpack.c.h.b16 %v132
  %v839 = vunpack.c.l.b16 %v133
  %v840 = vunpack.c.h.b16 %v133
  %v841 = vunpack.c.l.b16 %v134
  %v842 = vunpack.c.h.b16 %v134
  %v843 = vunpack.c.l.b16 %v135
  %v844 = vunpack.c.h.b16 %v135
  %v845 = vunpack.c.l.b16 %v136
  %v846 = vunpack.c.h.b16 %v136
  %v847 = vunpack.c.l.b16 %v137
  %v848 = vunpack.c.h.b16 %v137
  %v849 = vunpack.c.l.b16 %v138
  %v850 = vunpack.c.h.b16 %v138
  %v851 = vunpack.c.l.b16 %v139
  %v852 = vunpack.c.h.b16 %v139
  %v853 = vunpack.c.l.b16 %v140
  %v854 = vunpack.c.h.b16 %v140
  %v855 = vunpack.c.l.b16 %v141
  %v856 = vunpack.c.h.b16 %v141
  %v857 = vunpack.c.l.b16 %v142
  %v858 = vunpack.c.h.b16 %v142
  %v859 = vunpack.c.l.b16 %v143
  %v860 = vunpack.c.h.b16 %v143
  %v861 = vunpack.c.l.b16 %v144
  %v862 = vunpack.c.h.b16 %v144
  %v863 = vunpack.c.l.b16 %v145
  %v864 = vunpack.c.h.b16 %v145
  %v865 = vunpack.c.l.b16 %v146
  %v866 = vunpack.c.h.b16 %v146
  %v867 = vunpack.c.l.b16 %v147
  %v868 = vunpack.c.h.b16 %v147
  %v869 = vunpack.c.l.b16 %v148
  %v870 = vunpack.c.h.b16 %v148
  %v871 = vunpack.c.l.b16 %v149
  %v872 = vunpack.c.h.b16 %v149
  %v873 = vunpack.c.l.b16 %v150
  %v874 = vunpack.c.h.b16 %v150
  %v875 = vunpack.c.l.b16 %v151
  %v876 = vunpack.c.h.b16 %v151
  %v877 = vunpack.c.l.b16 %v152
  %v878 = vunpack.c.h.b16 %v152
  %v879 = vunpack.c.l.b16 %v153
  %v880 = vunpack.c.h.b16 %v153
  %v881 = vunpack.c.l.b16 %v154
  %v882 = vunpack.c.h.b16 %v154
  %v883 = vunpack.c.l.b16 %v155
  %v884 = vunpack.c.h.b16 %v155
  %v885 = vunpack.c.l.b16 %v156
  %v886 = vunpack.c.h.b16 %v156
  %v887 = vunpack.c.l.b16 %v157
  %v888 = vunpack.c.h.b16 %v157
  %v889 = vunpack.c.l.b16 %v158
  %v890 = vunpack.c.h.b16 %v158
  %v891 = vunpack.c.l.b16 %v159
  %v892 = vunpack.c.h.b16 %v159
  %v893 = vunpack.c.l.b16 %v160
  %v894 = vunpack.c.h.b16 %v160
  %v895 = vunpack.c.l.b16 %v161
  %v896 = vunpack.c.h.b16 %v161
  %v897 = vunpack.c.l.b16 %v162
  %v898 = vunpack.c.h.b16 %v162
  %v899 = vunpack.c.l.b16 %v163
  %v900 = vunpack.c.h.b16 %v163
  %v901 = vunpack.c.l.b16 %v164
  %v902 = vunpack.c.h.b16 %v164
  %v903 = vunpack.c.l.b16 %v165
  %v904 = vunpack.c.h.b16 %v165
  %v905 = vunpack.c.l.b16 %v166
  %v906 = vunpack.c.h.b16 %v166
  %v907 = vunpack.c.l.b16 %v167
  %v908 = vunpack.c.h.b16 %v167
  %v909 = vunpack.c.l.b16 %v168
  %v910 = vunpack.c.h.b16 %v168
  %v911 = vunpack.c.l.b16 %v169
  %v912 = vunpack.c.h.b16 %v169
  %v913 = vunpack.c.l.b16 %v170
  %v914 = vunpack.c.h.b16 %v170
  %v915 = vunpack.c.l.b16 %v171
  %v916 = vunpack.c.h.b16 %v171
  %v917 = vunpack.c.l.b16 %v172
  %v918 = vunpack.c.h.b16 %v172
  %v919 = vunpack.c.l.b16 %v173
  %v920 = vunpack.c.h.b16 %v173
  %v921 = vunpack.c.l.b16 %v174
  %v922 = vunpack.c.h.b16 %v174
  %v923 = vunpack.c.l.b16 %v175
  %v924 = vunpack.c.h.b16 %v175
  %v925 = vunpack.c.l.b16 %v176
  %v926 = vunpack.c.h.b16 %v176
  %v927 = vunpack.c.l.b16 %v177
  %v928 = vunpack.c.h.b16 %v177
  %v929 = vunpack.c.l.b16 %v178
  %v930 = vunpack.c.h.b16 %v178
  %v931 = vunpack.c.l.b16 %v179
  %v932 = vunpack.c.h.b16 %v179
  %v933 = vunpack.c.l.b16 %v180
  %v934 = vunpack.c.h.b16 %v180
  %v935 = vunpack.c.l.b16 %v181
  %v936 = vunpack.c.h.b16 %v181
  %v937 = vunpack.c.l.b16 %v182
  %v938 = vunpack.c.h.b16 %v182
  %v939 = vunpack.c.l.b16 %v183
  %v940 = vunpack.c.h.b16 %v183
  %v941 = vunpack.c.l.b16 %v184
  %v942 = vunpack.c.h.b16 %v184
  %v943 = vunpack.c.l.b16 %v185
  %v944 = vunpack.c.h.b16 %v185
  %v945 = vunpack.c.l.b16 %v186
  %v946 = vunpack.c.h.b16 %v186
  %v947 = vunpack.c.l.b16 %v187
  %v948 = vunpack.c.h.b16 %v187
  %v949 = vunpack.c.l.b16 %v188
  %v950 = vunpack.c.h.b16 %v188
  %v951 = vunpack.c.l.b16 %v189
  %v952 = vunpack.c.h.b16 %v189
  %v953 = vunpack.c.l.b16 %v190
  %v954 = vunpack.c.h.b16 %v190
  %v955 = vunpack.c.l.b16 %v191
  %v956 = vunpack.c.h.b16 %v191
  %v957 = vunpack.c.l.b16 %v192
  %v958 = vunpack.c.h.b16 %v192
  %v959 = vunpack.c.l.b16 %v193
  %v960 = vunpack.c.h.b16 %v193
  %v961 = vunpack.c.l.b16 %v194
  %v962 = vunpack.c.h.b16 %v194
  %v963 = vunpack.c.l.b16 %v195
  %v964 = vunpack.c.h.b16 %v195
  %v965 = vunpack.c.l.b16 %v196
  %v966 = vunpack.c.h.b16 %v196
  %v967 = vunpack.c.l.b16 %v197
  %v968 = vunpack.c.h.b16 %v197
  %v969 = vunpack.c.l.b16 %v198
  %v970 = vunpack.c.h.b16 %v198
  %v971 = vunpack.c.l.b16 %v199
  %v972 = vunpack.c.h.b16 %v199
  %v973 = vunpack.c.l.b16 %v200
  %v974 = vunpack.c.h.b16 %v200
  %v975 = vunpack.c.l.b16 %v201
  %v976 = vunpack.c.h.b16 %v201
  %v977 = vunpack.c.l.b16 %v202
  %v978 = vunpack.c.h.b16 %v202
  %v979 = vunpack.c.l.b16 %v203
  %v980 = vunpack.c.h.b16 %v203
  %v981 = vunpack.c.l.b16 %v204
  %v982 = vunpack.c.h.b16 %v204
  %v983 = vunpack.c.l.b16 %v205
  %v984 = vunpack.c.h.b16 %v205
  %v985 = vunpack.c.l.b16 %v206
  %v986 = vunpack.c.h.b16 %v206
  %v987 = vunpack.c.l.b16 %v207
  %v988 = vunpack.c.h.b16 %v207
  %v989 = vunpack.c.l.b16 %v208
  %v990 = vunpack.c.h.b16 %v208
  %v991 = vunpack.c.l.b16 %v209
  %v992 = vunpack.c.h.b16 %v209
  %v993 = vunpack.c.l.b16 %v210
  %v994 = vunpack.c.h.b16 %v210
  %v995 = vunpack.c.l.b16 %v211
  %v996 = vunpack.c.h.b16 %v211
  %v997 = vunpack.c.l.b16 %v212
  %v998 = vunpack.c.h.b16 %v212
  %v999 = vunpack.c.l.b16 %v213
  %v1000 = vunpack.c.h.b16 %v213
  %v1001 = vunpack.c.l.b16 %v214
  %v1002 = vunpack.c.h.b16 %v214
  %v1003 = vunpack.c.l.b16 %v215
  %v1004 = vunpack.c.h.b16 %v215
  %v1005 = vunpack.c.l.b16 %v216
  %v1006 = vunpack.c.h.b16 %v216
  %v1007 = vunpack.c.l.b16 %v217
  %v1008 = vunpack.c.h.b16 %v217
  %v1009 = vunpack.c.l.b16 %v218
  %v1010 = vunpack.c.h.b16 %v218
  %v1011 = vunpack.c.l.b16 %v219
  %v1012 = vunpack.c.h.b16 %v219
  %v1013 = vunpack.c.l.b16 %v220
  %v1014 = vunpack.c.h.b16 %v220
  %v1015 = vunpack.c.l.b16 %v221
  %v1016 = vunpack.c.h.b16 %v221
  %v1017 = vunpack.c.l.b16 %v222
  %v1018 = vunpack.c.h.b16 %v222
  %v1019 = vunpack.c.l.b16 %v223
  %v1020 = vunpack.c.h.b16 %v223
  %v1021 = vunpack.c.l.b16 %v224
  %v1022 = vunpack.c.h.b16 %v224
  %v1023 = vunpack.c.l.b16 %v225
  %v1024 = vunpack.c.h.b16 %v225
  %v1025 = vunpack.c.l.b16 %v226
  %v1026 = vunpack.c.h.b16 %v226
  %v1027 = vunpack.c.l.b16 %v227
  %v1028 = vunpack.c.h.b16 %v227
  %v1029 = vunpack.c.l.b16 %v228
  %v1030 = vunpack.c.h.b16 %v228
  %v1031 = vunpack.c.l.b16 %v229
  %v1032 = vunpack.c.h.b16 %v229
  %v1033 = vunpack.c.l.b16 %v230
  %v1034 = vunpack.c.h.b16 %v230
  %v1035 = vunpack.c.l.b16 %v231
  %v1036 = vunpack.c.h.b16 %v231
  %v1037 = vunpack.c.l.b16 %v232
  %v1038 = vunpack.c.h.b16 %v232
  %v1039 = vunpack.c.l.b16 %v233
  %v1040 = vunpack.c.h.b16 %v233
  %v1041 = vunpack.c.l.b16 %v234
  %v1042 = vunpack.c.h.b16 %v234
  %v1043 = vunpack.c.l.b16 %v235
  %v1044 = vunpack.c.h.b16 %v235
  %v1045 = vunpack.c.l.b16 %v236
  %v1046 = vunpack.c.h.b16 %v236
  %v1047 = vunpack.c.l.b16 %v237
  %v1048 = vunpack.c.h.b16 %v237
  %v1049 = vunpack.c.l.b16 %v238
  %v1050 = vunpack.c.h.b16 %v238
  %v1051 = vpack.c.b16 %v765, %v763
  %v1052 = vpack.c.b16 %v766, %v764
  %v1053 = vpack.c.b16 %v769, %v767
  %v1054 = vpack.c.b16 %v770, %v768
  %v1055 = vpack.c.b16 %v773, %v771
  %v1056 = vpack.c.b16 %v774, %v772
  %v1057 = vpack.c.b16 %v777, %v775
  %v1058 = vpack.c.b16 %v778, %v776
  %v1059 = vpack.c.b16 %v781, %v779
  %v1060 = vpack.c.b16 %v782, %v780
  %v1061 = vpack.c.b16 %v785, %v783
  %v1062 = vpack.c.b16 %v786, %v784
  %v1063 = vpack.c.b16 %v789, %v787
  %v1064 = vpack.c.b16 %v790, %v788
  %v1065 = vpack.c.b16 %v793, %v791
  %v1066 = vpack.c.b16 %v794, %v792
  %v1067 = vpack.c.b16 %v797, %v795
  %v1068 = vpack.c.b16 %v798, %v796
  %v1069 = vpack.c.b16 %v801, %v799
  %v1070 = vpack.c.b16 %v802, %v800
  %v1071 = vpack.c.b16 %v805, %v803
  %v1072 = vpack.c.b16 %v806, %v804
  %v1073 = vpack.c.b16 %v809, %v807
  %v1074 = vpack.c.b16 %v810, %v808
  %v1075 = vpack.c.b16 %v813, %v811
  %v1076 = vpack.c.b16 %v814, %v812
  %v1077 = vpack.c.b16 %v817, %v815
  %v1078 = vpack.c.b16 %v818, %v816
  %v1079 = vpack.c.b16 %v821, %v819
  %v1080 = vpack.c.b16 %v822, %v820
  %v1081 = vpack.c.b16 %v825, %v823
  %v1082 = vpack.c.b16 %v826, %v824
  %v1083 = vpack.c.b16 %v829, %v827
  %v1084 = vpack.c.b16 %v830, %v828
  %v1085 = vpack.c.b16 %v833, %v831
  %v1086 = vpack.c.b16 %v834, %v832
  %v1087 = vpack.c.b16 %v837, %v835
  %v1088 = vpack.c.b16 %v838, %v836
  %v1089 = vpack.c.b16 %v841, %v839
  %v1090 = vpack.c.b16 %v842, %v840
  %v1091 = vpack.c.b16 %v845, %v843
  %v1092 = vpack.c.b16 %v846, %v844
  %v1093 = vpack.c.b16 %v849, %v847
  %v1094 = vpack.c.b16 %v850, %v848
  %v1095 = vpack.c.b16 %v853, %v851
  %v1096 = vpack.c.b16 %v854, %v852
  %v1097 = vpack.c.b16 %v857, %v855
  %v1098 = vpack.c.b16 %v858, %v856
  %v1099 = vpack.c.b16 %v861, %v859
  %v1100 = vpack.c.b16 %v862, %v860
  %v1101 = vpack.c.b16 %v865, %v863
  %v1102 = vpack.c.b16 %v866, %v864
  %v1103 = vpack.c.b16 %v869, %v867
  %v1104 = vpack.c.b16 %v870, %v868
  %v1105 = vpack.c.b16 %v873, %v871
  %v1106 = vpack.c.b16 %v874, %v872
  %v1107 = vpack.c.b16 %v877, %v875
  %v1108 = vpack.c.b16 %v878, %v876
  %v1109 = vpack.c.b16 %v881, %v879
  %v1110 = vpack.c.b16 %v882, %v880
  %v1111 = vpack.c.b16 %v885, %v883
  %v1112 = vpack.c.b16 %v886, %v884
  %v1113 = vpack.c.b16 %v889, %v887
  %v1114 = vpack.c.b16 %v890, %v888
  %v1115 = vpack.c.b16 %v893, %v891
  %v1116 = vpack.c.b16 %v894, %v892
  %v1117 = vpack.c.b16 %v897, %v895
  %v1118 = vpack.c.b16 %v898, %v896
  %v1119 = vpack.c.b16 %v901, %v899
  %v1120 = vpack.c.b16 %v902, %v900
  %v1121 = vpack.c.b16 %v905, %v903
  %v1122 = vpack.c.b16 %v906, %v904
  %v1123 = vpack.c.b16 %v909, %v907
  %v1124 = vpack.c.b16 %v910, %v908
  %v1125 = vpack.c.b16 %v913, %v911
  %v1126 = vpack.c.b16 %v914, %v912
  %v1127 = vpack.c.b16 %v917, %v915
  %v1128 = vpack.c.b16 %v918, %v916
  %v1129 = vpack.c.b16 %v921, %v919
  %v1130 = vpack.c.b16 %v922, %v920
  %v1131 = vpack.c.b16 %v925, %v923
  %v1132 = vpack.c.b16 %v926, %v924
  %v1133 = vpack.c.b16 %v929, %v927
  %v1134 = vpack.c.b16 %v930, %v928
  %v1135 = vpack.c.b16 %v933, %v931
  %v1136 = vpack.c.b16 %v934, %v932
  %v1137 = vpack.c.b16 %v937, %v935
  %v1138 = vpack.c.b16 %v938, %v936
  %v1139 = vpack.c.b16 %v941, %v939
  %v1140 = vpack.c.b16 %v942, %v940
  %v1141 = vpack.c.b16 %v945, %v943
  %v1142 = vpack.c.b16 %v946, %v944
  %v1143 = vpack.c.b16 %v949, %v947
  %v1144 = vpack.c.b16 %v950, %v948
  %v1145 = vpack.c.b16 %v953, %v951
  %v1146 = vpack.c.b16 %v954, %v952
  %v1147 = vpack.c.b16 %v957, %v955
  %v1148 = vpack.c.b16 %v958, %v956
  %v1149 = vpack.c.b16 %v961, %v959
  %v1150 = vpack.c.b16 %v962, %v960
  %v1151 = vpack.c.b16 %v965, %v963
  %v1152 = vpack.c.b16 %v966, %v964
  %v1153 = vpack.c.b16 %v969, %v967
  %v1154 = vpack.c.b16 %v970, %v968
  %v1155 = vpack.c.b16 %v973, %v971
  %v1156 = vpack.c.b16 %v974, %v972
  %v1157 = vpack.c.b16 %v977, %v975
  %v1158 = vpack.c.b16 %v978, %v976
  %v1159 = vpack.c.b16 %v981, %v979
  %v1160 = vpack.c.b16 %v982, %v980
  %v1161 = vpack.c.b16 %v985, %v983
  %v1162 = vpack.c.b16 %v986, %v984
  %v1163 = vpack.c.b16 %v989, %v987
  %v1164 = vpack.c.b16 %v990, %v988
  %v1165 = vpack.c.b16 %v993, %v991
  %v1166 = vpack.c.b16 %v994, %v992
  %v1167 = vpack.c.b16 %v997, %v995
  %v1168 = vpack.c.b16 %v998, %v996
  %v1169 = vpack.c.b16 %v1001, %v999
  %v1170 = vpack.c.b16 %v1002, %v1000
  %v1171 = vpack.c.b16 %v1005, %v1003
  %v1172 = vpack.c.b16 %v1006, %v1004
  %v1173 = vpack.c.b16 %v1009, %v1007
  %v1174 = vpack.c.b16 %v1010, %v1008
  %v1175 = vpack.c.b16 %v1013, %v1011
  %v1176 = vpack.c.b16 %v1014, %v1012
  %v1177 = vpack.c.b16 %v1017, %v1015
  %v1178 = vpack.c.b16 %v1018, %v1016
  %v1179 = vpack.c.b16 %v1021, %v1019
  %v1180 = vpack.c.b16 %v1022, %v1020
  %v1181 = vpack.c.b16 %v1025, %v1023
  %v1182 = vpack.c.b16 %v1026, %v1024
  %v1183 = vpack.c.b16 %v1029, %v1027
  %v1184 = vpack.c.b16 %v1030, %v1028
  %v1185 = vpack.c.b16 %v1033, %v1031
  %v1186 = vpack.c.b16 %v1034, %v1032
  %v1187 = vpack.c.b16 %v1037, %v1035
  %v1188 = vpack.c.b16 %v1038, %v1036
  %v1189 = vpack.c.b16 %v1041, %v1039
  %v1190 = vpack.c.b16 %v1042, %v1040
  %v1191 = vpack.c.b16 %v1045, %v1043
  %v1192 = vpack.c.b16 %v1046, %v1044
  %v1193 = vpack.c.b16 %v1049, %v1047
  %v1194 = vpack.c.b16 %v1050, %v1048
  %1339 = vmatprep.subr.bf16.mxu0 %v1052
  %1340 = vmatpush1.bf16.msra.mxu0 %v1051
  %1341 = vmatprep.subr.bf16.mxu0 %v1054
  %1342 = vmatpush1.bf16.msra.mxu0 %v1053
  %1343 = vmatprep.subr.bf16.mxu0 %v1056
  %1344 = vmatpush1.bf16.msra.mxu0 %v1055
  %1345 = vmatprep.subr.bf16.mxu0 %v1058
  %1346 = vmatpush1.bf16.msra.mxu0 %v1057
  %1347 = vmatprep.subr.bf16.mxu0 %v1060
  %1348 = vmatpush1.bf16.msra.mxu0 %v1059
  %1349 = vmatprep.subr.bf16.mxu0 %v1062
  %1350 = vmatpush1.bf16.msra.mxu0 %v1061
  %1351 = vmatprep.subr.bf16.mxu0 %v1064
  %1352 = vmatpush1.bf16.msra.mxu0 %v1063
  %1353 = vmatprep.subr.bf16.mxu0 %v1066
  %1354 = vmatpush1.bf16.msra.mxu0 %v1065
  %1355 = vmatprep.subr.bf16.mxu0 %v1068
  %1356 = vmatpush1.bf16.msra.mxu0 %v1067
  %1357 = vmatprep.subr.bf16.mxu0 %v1070
  %1358 = vmatpush1.bf16.msra.mxu0 %v1069
  %1359 = vmatprep.subr.bf16.mxu0 %v1072
  %1360 = vmatpush1.bf16.msra.mxu0 %v1071
  %1361 = vmatprep.subr.bf16.mxu0 %v1074
  %1362 = vmatpush1.bf16.msra.mxu0 %v1073
  %1363 = vmatprep.subr.bf16.mxu0 %v1076
  %1364 = vmatpush1.bf16.msra.mxu0 %v1075
  %1365 = vmatprep.subr.bf16.mxu0 %v1078
  %1366 = vmatpush1.bf16.msra.mxu0 %v1077
  %1367 = vmatprep.subr.bf16.mxu0 %v1080
  %1368 = vmatpush1.bf16.msra.mxu0 %v1079
  %1369 = vmatprep.subr.bf16.mxu0 %v1082
  %1370 = vmatpush1.bf16.msra.mxu0 %v1081
  %1371 = vmatprep.mubr.bf16.mxu0 %v476
  %1372 = vmatmul.mubr.bf16.gmra.mrb[0].mxu0 %v475
  %v1373 = vpop.f32.mrb[0].mxu0
  %v1374 = vadd.f32 %v244, %v1373
  %v1375 = vpop.f32.mrb[0].mxu0
  %v1376 = vadd.f32 %v248, %v1375
  %v1377 = vpop.f32.mrb[0].mxu0
  %v1378 = vadd.f32 %v244, %v1377
  %v1379 = vpop.f32.mrb[0].mxu0
  %v1380 = vadd.f32 %v248, %v1379
  %1381 = vmatprep.mubr.bf16.mxu0 %v485
  %1382 = vmatmul.mubr.bf16.gmra.mrb[0].mxu0 %v484
  %v1383 = vpop.f32.mrb[0].mxu0
  %v1384 = vadd.f32 %v244, %v1383
  %v1385 = vpop.f32.mrb[0].mxu0
  %v1386 = vadd.f32 %v248, %v1385
  %v1387 = vpop.f32.mrb[0].mxu0
  %v1388 = vadd.f32 %v244, %v1387
  %v1389 = vpop.f32.mrb[0].mxu0
  %v1390 = vadd.f32 %v248, %v1389
  %1391 = vmatprep.mubr.bf16.mxu0 %v494
  %1392 = vmatmul.mubr.bf16.gmra.mrb[0].mxu0 %v493
  %v1393 = vpop.f32.mrb[0].mxu0
  %v1394 = vadd.f32 %v244, %v1393
  %v1395 = vpop.f32.mrb[0].mxu0
  %v1396 = vadd.f32 %v248, %v1395
  %v1397 = vpop.f32.mrb[0].mxu0
  %v1398 = vadd.f32 %v244, %v1397
  %v1399 = vpop.f32.mrb[0].mxu0
  %v1400 = vadd.f32 %v248, %v1399
  %1401 = vmatprep.mubr.bf16.mxu0 %v503
  %1402 = vmatmul.mubr.bf16.gmra.mrb[0].mxu0 %v502
  %v1403 = vpop.f32.mrb[0].mxu0
  %v1404 = vadd.f32 %v244, %v1403
  %v1405 = vpop.f32.mrb[0].mxu0
  %v1406 = vadd.f32 %v248, %v1405
  %v1407 = vpop.f32.mrb[0].mxu0
  %v1408 = vadd.f32 %v244, %v1407
  %v1409 = vpop.f32.mrb[0].mxu0
  %v1410 = vadd.f32 %v248, %v1409
  %1411 = vmatprep.mubr.bf16.mxu0 %v512
  %1412 = vmatmul.mubr.bf16.gmra.mrb[0].mxu0 %v511
  %v1413 = vpop.f32.mrb[0].mxu0
  %v1414 = vadd.f32 %v244, %v1413
  %v1415 = vpop.f32.mrb[0].mxu0
  %v1416 = vadd.f32 %v248, %v1415
  %v1417 = vpop.f32.mrb[0].mxu0
  %v1418 = vadd.f32 %v244, %v1417
  %v1419 = vpop.f32.mrb[0].mxu0
  %v1420 = vadd.f32 %v248, %v1419
  %1421 = vmatprep.mubr.bf16.mxu0 %v521
  %1422 = vmatmul.mubr.bf16.gmra.mrb[0].mxu0 %v520
  %v1423 = vpop.f32.mrb[0].mxu0
  %v1424 = vadd.f32 %v244, %v1423
  %v1425 = vpop.f32.mrb[0].mxu0
  %v1426 = vadd.f32 %v248, %v1425
  %v1427 = vpop.f32.mrb[0].mxu0
  %v1428 = vadd.f32 %v244, %v1427
  %v1429 = vpop.f32.mrb[0].mxu0
  %v1430 = vadd.f32 %v248, %v1429
  %1431 = vmatprep.mubr.bf16.mxu0 %v530
  %1432 = vmatmul.mubr.bf16.gmra.mrb[0].mxu0 %v529
  %v1433 = vpop.f32.mrb[0].mxu0
  %v1434 = vadd.f32 %v244, %v1433
  %v1435 = vpop.f32.mrb[0].mxu0
  %v1436 = vadd.f32 %v248, %v1435
  %v1437 = vpop.f32.mrb[0].mxu0
  %v1438 = vadd.f32 %v244, %v1437
  %v1439 = vpop.f32.mrb[0].mxu0
  %v1440 = vadd.f32 %v248, %v1439
  %1441 = vmatprep.mubr.bf16.mxu0 %v539
  %1442 = vmatmul.mubr.bf16.gmra.mrb[0].mxu0 %v538
  %v1443 = vpop.f32.mrb[0].mxu0
  %v1444 = vadd.f32 %v244, %v1443
  %v1445 = vpop.f32.mrb[0].mxu0
  %v1446 = vadd.f32 %v248, %v1445
  %v1447 = vpop.f32.mrb[0].mxu0
  %v1448 = vadd.f32 %v244, %v1447
  %v1449 = vpop.f32.mrb[0].mxu0
  %v1450 = vadd.f32 %v248, %v1449
  %1451 = vdwg.mxu0
  %1452 = vmatprep.subr.bf16.mxu0 %v1084
  %1453 = vmatpush1.bf16.msra.mxu0 %v1083
  %1454 = vmatprep.subr.bf16.mxu0 %v1086
  %1455 = vmatpush1.bf16.msra.mxu0 %v1085
  %1456 = vmatprep.subr.bf16.mxu0 %v1088
  %1457 = vmatpush1.bf16.msra.mxu0 %v1087
  %1458 = vmatprep.subr.bf16.mxu0 %v1090
  %1459 = vmatpush1.bf16.msra.mxu0 %v1089
  %1460 = vmatprep.subr.bf16.mxu0 %v1092
  %1461 = vmatpush1.bf16.msra.mxu0 %v1091
  %1462 = vmatprep.subr.bf16.mxu0 %v1094
  %1463 = vmatpush1.bf16.msra.mxu0 %v1093
  %1464 = vmatprep.subr.bf16.mxu0 %v1096
  %1465 = vmatpush1.bf16.msra.mxu0 %v1095
  %1466 = vmatprep.subr.bf16.mxu0 %v1098
  %1467 = vmatpush1.bf16.msra.mxu0 %v1097
  %1468 = vmatprep.subr.bf16.mxu0 %v1100
  %1469 = vmatpush1.bf16.msra.mxu0 %v1099
  %1470 = vmatprep.subr.bf16.mxu0 %v1102
  %1471 = vmatpush1.bf16.msra.mxu0 %v1101
  %1472 = vmatprep.subr.bf16.mxu0 %v1104
  %1473 = vmatpush1.bf16.msra.mxu0 %v1103
  %1474 = vmatprep.subr.bf16.mxu0 %v1106
  %1475 = vmatpush1.bf16.msra.mxu0 %v1105
  %1476 = vmatprep.subr.bf16.mxu0 %v1108
  %1477 = vmatpush1.bf16.msra.mxu0 %v1107
  %1478 = vmatprep.subr.bf16.mxu0 %v1110
  %1479 = vmatpush1.bf16.msra.mxu0 %v1109
  %1480 = vmatprep.subr.bf16.mxu0 %v1112
  %1481 = vmatpush1.bf16.msra.mxu0 %v1111
  %1482 = vmatprep.subr.bf16.mxu0 %v1114
  %1483 = vmatpush1.bf16.msra.mxu0 %v1113
  %1484 = vmatprep.mubr.bf16.mxu0 %v478
  %1485 = vmatmul.mubr.bf16.gmra.mrb[0].mxu0 %v477
  %v1486 = vpop.f32.mrb[0].mxu0
  %v1487 = vadd.f32 %v1374, %v1486
  %v1488 = vpop.f32.mrb[0].mxu0
  %v1489 = vadd.f32 %v1376, %v1488
  %v1490 = vpop.f32.mrb[0].mxu0
  %v1491 = vadd.f32 %v1378, %v1490
  %v1492 = vpop.f32.mrb[0].mxu0
  %v1493 = vadd.f32 %v1380, %v1492
  %1494 = vmatprep.mubr.bf16.mxu0 %v487
  %1495 = vmatmul.mubr.bf16.gmra.mrb[0].mxu0 %v486
  %v1496 = vpop.f32.mrb[0].mxu0
  %v1497 = vadd.f32 %v1384, %v1496
  %v1498 = vpop.f32.mrb[0].mxu0
  %v1499 = vadd.f32 %v1386, %v1498
  %v1500 = vpop.f32.mrb[0].mxu0
  %v1501 = vadd.f32 %v1388, %v1500
  %v1502 = vpop.f32.mrb[0].mxu0
  %v1503 = vadd.f32 %v1390, %v1502
  %1504 = vmatprep.mubr.bf16.mxu0 %v496
  %1505 = vmatmul.mubr.bf16.gmra.mrb[0].mxu0 %v495
  %v1506 = vpop.f32.mrb[0].mxu0
  %v1507 = vadd.f32 %v1394, %v1506
  %v1508 = vpop.f32.mrb[0].mxu0
  %v1509 = vadd.f32 %v1396, %v1508
  %v1510 = vpop.f32.mrb[0].mxu0
  %v1511 = vadd.f32 %v1398, %v1510
  %v1512 = vpop.f32.mrb[0].mxu0
  %v1513 = vadd.f32 %v1400, %v1512
  %1514 = vmatprep.mubr.bf16.mxu0 %v505
  %1515 = vmatmul.mubr.bf16.gmra.mrb[0].mxu0 %v504
  %v1516 = vpop.f32.mrb[0].mxu0
  %v1517 = vadd.f32 %v1404, %v1516
  %v1518 = vpop.f32.mrb[0].mxu0
  %v1519 = vadd.f32 %v1406, %v1518
  %v1520 = vpop.f32.mrb[0].mxu0
  %v1521 = vadd.f32 %v1408, %v1520
  %v1522 = vpop.f32.mrb[0].mxu0
  %v1523 = vadd.f32 %v1410, %v1522
  %1524 = vmatprep.mubr.bf16.mxu0 %v514
  %1525 = vmatmul.mubr.bf16.gmra.mrb[0].mxu0 %v513
  %v1526 = vpop.f32.mrb[0].mxu0
  %v1527 = vadd.f32 %v1414, %v1526
  %v1528 = vpop.f32.mrb[0].mxu0
  %v1529 = vadd.f32 %v1416, %v1528
  %v1530 = vpop.f32.mrb[0].mxu0
  %v1531 = vadd.f32 %v1418, %v1530
  %v1532 = vpop.f32.mrb[0].mxu0
  %v1533 = vadd.f32 %v1420, %v1532
  %1534 = vmatprep.mubr.bf16.mxu0 %v523
  %1535 = vmatmul.mubr.bf16.gmra.mrb[0].mxu0 %v522
  %v1536 = vpop.f32.mrb[0].mxu0
  %v1537 = vadd.f32 %v1424, %v1536
  %v1538 = vpop.f32.mrb[0].mxu0
  %v1539 = vadd.f32 %v1426, %v1538
  %v1540 = vpop.f32.mrb[0].mxu0
  %v1541 = vadd.f32 %v1428, %v1540
  %v1542 = vpop.f32.mrb[0].mxu0
  %v1543 = vadd.f32 %v1430, %v1542
  %1544 = vmatprep.mubr.bf16.mxu0 %v532
  %1545 = vmatmul.mubr.bf16.gmra.mrb[0].mxu0 %v531
  %v1546 = vpop.f32.mrb[0].mxu0
  %v1547 = vadd.f32 %v1434, %v1546
  %v1548 = vpop.f32.mrb[0].mxu0
  %v1549 = vadd.f32 %v1436, %v1548
  %v1550 = vpop.f32.mrb[0].mxu0
  %v1551 = vadd.f32 %v1438, %v1550
  %v1552 = vpop.f32.mrb[0].mxu0
  %v1553 = vadd.f32 %v1440, %v1552
  %1554 = vmatprep.mubr.bf16.mxu0 %v541
  %1555 = vmatmul.mubr.bf16.gmra.mrb[0].mxu0 %v540
  %v1556 = vpop.f32.mrb[0].mxu0
  %v1557 = vadd.f32 %v1444, %v1556
  %v1558 = vpop.f32.mrb[0].mxu0
  %v1559 = vadd.f32 %v1446, %v1558
  %v1560 = vpop.f32.mrb[0].mxu0
  %v1561 = vadd.f32 %v1448, %v1560
  %v1562 = vpop.f32.mrb[0].mxu0
  %v1563 = vadd.f32 %v1450, %v1562
  %1564 = vdwg.mxu0
  %1565 = vmatprep.subr.bf16.mxu0 %v1116
  %1566 = vmatpush1.bf16.msra.mxu0 %v1115
  %1567 = vmatprep.subr.bf16.mxu0 %v1118
  %1568 = vmatpush1.bf16.msra.mxu0 %v1117
  %1569 = vmatprep.subr.bf16.mxu0 %v1120
  %1570 = vmatpush1.bf16.msra.mxu0 %v1119
  %1571 = vmatprep.subr.bf16.mxu0 %v1122
  %1572 = vmatpush1.bf16.msra.mxu0 %v1121
  %1573 = vmatprep.subr.bf16.mxu0 %v1124
  %1574 = vmatpush1.bf16.msra.mxu0 %v1123
  %1575 = vmatprep.subr.bf16.mxu0 %v1126
  %1576 = vmatpush1.bf16.msra.mxu0 %v1125
  %1577 = vmatprep.subr.bf16.mxu0 %v1128
  %1578 = vmatpush1.bf16.msra.mxu0 %v1127
  %1579 = vmatprep.subr.bf16.mxu0 %v1130
  %1580 = vmatpush1.bf16.msra.mxu0 %v1129
  %1581 = vmatprep.subr.bf16.mxu0 %v1132
  %1582 = vmatpush1.bf16.msra.mxu0 %v1131
  %1583 = vmatprep.subr.bf16.mxu0 %v1134
  %1584 = vmatpush1.bf16.msra.mxu0 %v1133
  %1585 = vmatprep.subr.bf16.mxu0 %v1136
  %1586 = vmatpush1.bf16.msra.mxu0 %v1135
  %1587 = vmatprep.subr.bf16.mxu0 %v1138
  %1588 = vmatpush1.bf16.msra.mxu0 %v1137
  %1589 = vmatprep.subr.bf16.mxu0 %v1140
  %1590 = vmatpush1.bf16.msra.mxu0 %v1139
  %1591 = vmatprep.subr.bf16.mxu0 %v1142
  %1592 = vmatpush1.bf16.msra.mxu0 %v1141
  %1593 = vmatprep.subr.bf16.mxu0 %v1144
  %1594 = vmatpush1.bf16.msra.mxu0 %v1143
  %1595 = vmatprep.subr.bf16.mxu0 %v1146
  %1596 = vmatpush1.bf16.msra.mxu0 %v1145
  %1597 = vmatprep.mubr.bf16.mxu0 %v480
  %1598 = vmatmul.mubr.bf16.gmra.mrb[0].mxu0 %v479
  %v1599 = vpop.f32.mrb[0].mxu0
  %v1600 = vadd.f32 %v1487, %v1599
  %v1601 = vpop.f32.mrb[0].mxu0
  %v1602 = vadd.f32 %v1489, %v1601
  %v1603 = vpop.f32.mrb[0].mxu0
  %v1604 = vadd.f32 %v1491, %v1603
  %v1605 = vpop.f32.mrb[0].mxu0
  %v1606 = vadd.f32 %v1493, %v1605
  %1607 = vmatprep.mubr.bf16.mxu0 %v489
  %1608 = vmatmul.mubr.bf16.gmra.mrb[0].mxu0 %v488
  %v1609 = vpop.f32.mrb[0].mxu0
  %v1610 = vadd.f32 %v1497, %v1609
  %v1611 = vpop.f32.mrb[0].mxu0
  %v1612 = vadd.f32 %v1499, %v1611
  %v1613 = vpop.f32.mrb[0].mxu0
  %v1614 = vadd.f32 %v1501, %v1613
  %v1615 = vpop.f32.mrb[0].mxu0
  %v1616 = vadd.f32 %v1503, %v1615
  %1617 = vmatprep.mubr.bf16.mxu0 %v498
  %1618 = vmatmul.mubr.bf16.gmra.mrb[0].mxu0 %v497
  %v1619 = vpop.f32.mrb[0].mxu0
  %v1620 = vadd.f32 %v1507, %v1619
  %v1621 = vpop.f32.mrb[0].mxu0
  %v1622 = vadd.f32 %v1509, %v1621
  %v1623 = vpop.f32.mrb[0].mxu0
  %v1624 = vadd.f32 %v1511, %v1623
  %v1625 = vpop.f32.mrb[0].mxu0
  %v1626 = vadd.f32 %v1513, %v1625
  %1627 = vmatprep.mubr.bf16.mxu0 %v507
  %1628 = vmatmul.mubr.bf16.gmra.mrb[0].mxu0 %v506
  %v1629 = vpop.f32.mrb[0].mxu0
  %v1630 = vadd.f32 %v1517, %v1629
  %v1631 = vpop.f32.mrb[0].mxu0
  %v1632 = vadd.f32 %v1519, %v1631
  %v1633 = vpop.f32.mrb[0].mxu0
  %v1634 = vadd.f32 %v1521, %v1633
  %v1635 = vpop.f32.mrb[0].mxu0
  %v1636 = vadd.f32 %v1523, %v1635
  %1637 = vmatprep.mubr.bf16.mxu0 %v516
  %1638 = vmatmul.mubr.bf16.gmra.mrb[0].mxu0 %v515
  %v1639 = vpop.f32.mrb[0].mxu0
  %v1640 = vadd.f32 %v1527, %v1639
  %v1641 = vpop.f32.mrb[0].mxu0
  %v1642 = vadd.f32 %v1529, %v1641
  %v1643 = vpop.f32.mrb[0].mxu0
  %v1644 = vadd.f32 %v1531, %v1643
  %v1645 = vpop.f32.mrb[0].mxu0
  %v1646 = vadd.f32 %v1533, %v1645
  %1647 = vmatprep.mubr.bf16.mxu0 %v525
  %1648 = vmatmul.mubr.bf16.gmra.mrb[0].mxu0 %v524
  %v1649 = vpop.f32.mrb[0].mxu0
  %v1650 = vadd.f32 %v1537, %v1649
  %v1651 = vpop.f32.mrb[0].mxu0
  %v1652 = vadd.f32 %v1539, %v1651
  %v1653 = vpop.f32.mrb[0].mxu0
  %v1654 = vadd.f32 %v1541, %v1653
  %v1655 = vpop.f32.mrb[0].mxu0
  %v1656 = vadd.f32 %v1543, %v1655
  %1657 = vmatprep.mubr.bf16.mxu0 %v534
  %1658 = vmatmul.mubr.bf16.gmra.mrb[0].mxu0 %v533
  %v1659 = vpop.f32.mrb[0].mxu0
  %v1660 = vadd.f32 %v1547, %v1659
  %v1661 = vpop.f32.mrb[0].mxu0
  %v1662 = vadd.f32 %v1549, %v1661
  %v1663 = vpop.f32.mrb[0].mxu0
  %v1664 = vadd.f32 %v1551, %v1663
  %v1665 = vpop.f32.mrb[0].mxu0
  %v1666 = vadd.f32 %v1553, %v1665
  %1667 = vmatprep.mubr.bf16.mxu0 %v543
  %1668 = vmatmul.mubr.bf16.gmra.mrb[0].mxu0 %v542
  %v1669 = vpop.f32.mrb[0].mxu0
  %v1670 = vadd.f32 %v1557, %v1669
  %v1671 = vpop.f32.mrb[0].mxu0
  %v1672 = vadd.f32 %v1559, %v1671
  %v1673 = vpop.f32.mrb[0].mxu0
  %v1674 = vadd.f32 %v1561, %v1673
  %v1675 = vpop.f32.mrb[0].mxu0
  %v1676 = vadd.f32 %v1563, %v1675
  %1677 = vdwg.mxu0
  %1678 = vmatprep.subr.bf16.mxu0 %v1148
  %1679 = vmatpush1.bf16.msra.mxu0 %v1147
  %1680 = vmatprep.subr.bf16.mxu0 %v1150
  %1681 = vmatpush1.bf16.msra.mxu0 %v1149
  %1682 = vmatprep.subr.bf16.mxu0 %v1152
  %1683 = vmatpush1.bf16.msra.mxu0 %v1151
  %1684 = vmatprep.subr.bf16.mxu0 %v1154
  %1685 = vmatpush1.bf16.msra.mxu0 %v1153
  %1686 = vmatprep.subr.bf16.mxu0 %v1156
  %1687 = vmatpush1.bf16.msra.mxu0 %v1155
  %1688 = vmatprep.subr.bf16.mxu0 %v1158
  %1689 = vmatpush1.bf16.msra.mxu0 %v1157
  %1690 = vmatprep.subr.bf16.mxu0 %v1160
  %1691 = vmatpush1.bf16.msra.mxu0 %v1159
  %1692 = vmatprep.subr.bf16.mxu0 %v1162
  %1693 = vmatpush1.bf16.msra.mxu0 %v1161
  %1694 = vmatprep.subr.bf16.mxu0 %v1164
  %1695 = vmatpush1.bf16.msra.mxu0 %v1163
  %1696 = vmatprep.subr.bf16.mxu0 %v1166
  %1697 = vmatpush1.bf16.msra.mxu0 %v1165
  %1698 = vmatprep.subr.bf16.mxu0 %v1168
  %1699 = vmatpush1.bf16.msra.mxu0 %v1167
  %1700 = vmatprep.subr.bf16.mxu0 %v1170
  %1701 = vmatpush1.bf16.msra.mxu0 %v1169
  %1702 = vmatprep.subr.bf16.mxu0 %v1172
  %1703 = vmatpush1.bf16.msra.mxu0 %v1171
  %1704 = vmatprep.subr.bf16.mxu0 %v1174
  %1705 = vmatpush1.bf16.msra.mxu0 %v1173
  %1706 = vmatprep.subr.bf16.mxu0 %v1176
  %1707 = vmatpush1.bf16.msra.mxu0 %v1175
  %1708 = vmatprep.subr.bf16.mxu0 %v1178
  %1709 = vmatpush1.bf16.msra.mxu0 %v1177
  %1710 = vmatprep.mubr.bf16.mxu0 %v482
  %1711 = vmatmul.mubr.bf16.gmra.mrb[0].mxu0 %v481
  %v1712 = vpop.f32.mrb[0].mxu0
  %v1713 = vadd.f32 %v1600, %v1712
  %v1714 = vpop.f32.mrb[0].mxu0
  %v1715 = vadd.f32 %v1602, %v1714
  %v1716 = vpop.f32.mrb[0].mxu0
  %v1717 = vadd.f32 %v1604, %v1716
  %v1718 = vpop.f32.mrb[0].mxu0
  %v1719 = vadd.f32 %v1606, %v1718
  %1720 = vmatprep.mubr.bf16.mxu0 %v491
  %1721 = vmatmul.mubr.bf16.gmra.mrb[0].mxu0 %v490
  %v1722 = vpop.f32.mrb[0].mxu0
  %v1723 = vadd.f32 %v1610, %v1722
  %v1724 = vpop.f32.mrb[0].mxu0
  %v1725 = vadd.f32 %v1612, %v1724
  %v1726 = vpop.f32.mrb[0].mxu0
  %v1727 = vadd.f32 %v1614, %v1726
  %v1728 = vpop.f32.mrb[0].mxu0
  %v1729 = vadd.f32 %v1616, %v1728
  %1730 = vmatprep.mubr.bf16.mxu0 %v500
  %1731 = vmatmul.mubr.bf16.gmra.mrb[0].mxu0 %v499
  %v1732 = vpop.f32.mrb[0].mxu0
  %v1733 = vadd.f32 %v1620, %v1732
  %v1734 = vpop.f32.mrb[0].mxu0
  %v1735 = vadd.f32 %v1622, %v1734
  %v1736 = vpop.f32.mrb[0].mxu0
  %v1737 = vadd.f32 %v1624, %v1736
  %v1738 = vpop.f32.mrb[0].mxu0
  %v1739 = vadd.f32 %v1626, %v1738
  %1740 = vmatprep.mubr.bf16.mxu0 %v509
  %1741 = vmatmul.mubr.bf16.gmra.mrb[0].mxu0 %v508
  %v1742 = vpop.f32.mrb[0].mxu0
  %v1743 = vadd.f32 %v1630, %v1742
  %v1744 = vpop.f32.mrb[0].mxu0
  %v1745 = vadd.f32 %v1632, %v1744
  %v1746 = vpop.f32.mrb[0].mxu0
  %v1747 = vadd.f32 %v1634, %v1746
  %v1748 = vpop.f32.mrb[0].mxu0
  %v1749 = vadd.f32 %v1636, %v1748
  %1750 = vmatprep.mubr.bf16.mxu0 %v518
  %1751 = vmatmul.mubr.bf16.gmra.mrb[0].mxu0 %v517
  %v1752 = vpop.f32.mrb[0].mxu0
  %v1753 = vadd.f32 %v1640, %v1752
  %v1754 = vpop.f32.mrb[0].mxu0
  %v1755 = vadd.f32 %v1642, %v1754
  %v1756 = vpop.f32.mrb[0].mxu0
  %v1757 = vadd.f32 %v1644, %v1756
  %v1758 = vpop.f32.mrb[0].mxu0
  %v1759 = vadd.f32 %v1646, %v1758
  %1760 = vmatprep.mubr.bf16.mxu0 %v527
  %1761 = vmatmul.mubr.bf16.gmra.mrb[0].mxu0 %v526
  %v1762 = vpop.f32.mrb[0].mxu0
  %v1763 = vadd.f32 %v1650, %v1762
  %v1764 = vpop.f32.mrb[0].mxu0
  %v1765 = vadd.f32 %v1652, %v1764
  %v1766 = vpop.f32.mrb[0].mxu0
  %v1767 = vadd.f32 %v1654, %v1766
  %v1768 = vpop.f32.mrb[0].mxu0
  %v1769 = vadd.f32 %v1656, %v1768
  %1770 = vmatprep.mubr.bf16.mxu0 %v536
  %1771 = vmatmul.mubr.bf16.gmra.mrb[0].mxu0 %v535
  %v1772 = vpop.f32.mrb[0].mxu0
  %v1773 = vadd.f32 %v1660, %v1772
  %v1774 = vpop.f32.mrb[0].mxu0
  %v1775 = vadd.f32 %v1662, %v1774
  %v1776 = vpop.f32.mrb[0].mxu0
  %v1777 = vadd.f32 %v1664, %v1776
  %v1778 = vpop.f32.mrb[0].mxu0
  %v1779 = vadd.f32 %v1666, %v1778
  %1780 = vmatprep.mubr.bf16.mxu0 %v545
  %1781 = vmatmul.mubr.bf16.gmra.mrb[0].mxu0 %v544
  %v1782 = vpop.f32.mrb[0].mxu0
  %v1783 = vadd.f32 %v1670, %v1782
  %v1784 = vpop.f32.mrb[0].mxu0
  %v1785 = vadd.f32 %v1672, %v1784
  %v1786 = vpop.f32.mrb[0].mxu0
  %v1787 = vadd.f32 %v1674, %v1786
  %v1788 = vpop.f32.mrb[0].mxu0
  %v1789 = vadd.f32 %v1676, %v1788
  %1790 = vdwg.mxu0
  %1791 = vmatprep.subr.bf16.mxu0 %v1180
  %1792 = vmatpush1.bf16.msra.mxu0 %v1179
  %1793 = vmatprep.subr.bf16.mxu0 %v1182
  %1794 = vmatpush1.bf16.msra.mxu0 %v1181
  %1795 = vmatprep.subr.bf16.mxu0 %v1184
  %1796 = vmatpush1.bf16.msra.mxu0 %v1183
  %1797 = vmatprep.subr.bf16.mxu0 %v1186
  %1798 = vmatpush1.bf16.msra.mxu0 %v1185
  %1799 = vmatprep.subr.bf16.mxu0 %v1188
  %1800 = vmatpush1.bf16.msra.mxu0 %v1187
  %1801 = vmatprep.subr.bf16.mxu0 %v1190
  %1802 = vmatpush1.bf16.msra.mxu0 %v1189
  %1803 = vmatprep.subr.bf16.mxu0 %v1192
  %1804 = vmatpush1.bf16.msra.mxu0 %v1191
  %1805 = vmatprep.subr.bf16.mxu0 %v1194
  %1806 = vmatpush1.bf16.msra.mxu0 %v1193
  %1807 = vmatprep.subr.bf16.mxu0 0
  %1808 = vmatpush1.bf16.msra.mxu0 0
  %1809 = vmatprep.subr.bf16.mxu0 0
  %1810 = vmatpush1.bf16.msra.mxu0 0
  %1811 = vmatprep.subr.bf16.mxu0 0
  %1812 = vmatpush1.bf16.msra.mxu0 0
  %1813 = vmatprep.subr.bf16.mxu0 0
  %1814 = vmatpush1.bf16.msra.mxu0 0
  %1815 = vmatprep.subr.bf16.mxu0 0
  %1816 = vmatpush1.bf16.msra.mxu0 0
  %1817 = vmatprep.subr.bf16.mxu0 0
  %1818 = vmatpush1.bf16.msra.mxu0 0
  %1819 = vmatprep.subr.bf16.mxu0 0
  %1820 = vmatpush1.bf16.msra.mxu0 0
  %1821 = vmatprep.subr.bf16.mxu0 0
  %1822 = vmatpush1.bf16.msra.mxu0 0
  %1823 = vmatprep.mubr.bf16.mxu0 0
  %1824 = vmatmul.mubr.bf16.gmra.mrb[0].mxu0 %v483
  %v1825 = vpop.f32.mrb[0].mxu0
  %v1826 = vadd.f32 %v1713, %v1825
  %v1827 = vpop.f32.mrb[0].mxu0
  %v1828 = vadd.f32 %v1715, %v1827
  %v1829 = vpop.f32.mrb[0].mxu0
  %v1830 = vadd.f32 %v1717, %v1829
  %v1831 = vpop.f32.mrb[0].mxu0
  %v1832 = vadd.f32 %v1719, %v1831
  %1833 = vmatprep.mubr.bf16.mxu0 0
  %1834 = vmatmul.mubr.bf16.gmra.mrb[0].mxu0 %v492
  %v1835 = vpop.f32.mrb[0].mxu0
  %v1836 = vadd.f32 %v1723, %v1835
  %v1837 = vpop.f32.mrb[0].mxu0
  %v1838 = vadd.f32 %v1725, %v1837
  %v1839 = vpop.f32.mrb[0].mxu0
  %v1840 = vadd.f32 %v1727, %v1839
  %v1841 = vpop.f32.mrb[0].mxu0
  %v1842 = vadd.f32 %v1729, %v1841
  %1843 = vmatprep.mubr.bf16.mxu0 0
  %1844 = vmatmul.mubr.bf16.gmra.mrb[0].mxu0 %v501
  %v1845 = vpop.f32.mrb[0].mxu0
  %v1846 = vadd.f32 %v1733, %v1845
  %v1847 = vpop.f32.mrb[0].mxu0
  %v1848 = vadd.f32 %v1735, %v1847
  %v1849 = vpop.f32.mrb[0].mxu0
  %v1850 = vadd.f32 %v1737, %v1849
  %v1851 = vpop.f32.mrb[0].mxu0
  %v1852 = vadd.f32 %v1739, %v1851
  %1853 = vmatprep.mubr.bf16.mxu0 0
  %1854 = vmatmul.mubr.bf16.gmra.mrb[0].mxu0 %v510
  %v1855 = vpop.f32.mrb[0].mxu0
  %v1856 = vadd.f32 %v1743, %v1855
  %v1857 = vpop.f32.mrb[0].mxu0
  %v1858 = vadd.f32 %v1745, %v1857
  %v1859 = vpop.f32.mrb[0].mxu0
  %v1860 = vadd.f32 %v1747, %v1859
  %v1861 = vpop.f32.mrb[0].mxu0
  %v1862 = vadd.f32 %v1749, %v1861
  %1863 = vmatprep.mubr.bf16.mxu0 0
  %1864 = vmatmul.mubr.bf16.gmra.mrb[0].mxu0 %v519
  %v1865 = vpop.f32.mrb[0].mxu0
  %v1866 = vadd.f32 %v1753, %v1865
  %v1867 = vpop.f32.mrb[0].mxu0
  %v1868 = vadd.f32 %v1755, %v1867
  %v1869 = vpop.f32.mrb[0].mxu0
  %v1870 = vadd.f32 %v1757, %v1869
  %v1871 = vpop.f32.mrb[0].mxu0
  %v1872 = vadd.f32 %v1759, %v1871
  %1873 = vmatprep.mubr.bf16.mxu0 0
  %1874 = vmatmul.mubr.bf16.gmra.mrb[0].mxu0 %v528
  %v1875 = vpop.f32.mrb[0].mxu0
  %v1876 = vadd.f32 %v1763, %v1875
  %v1877 = vpop.f32.mrb[0].mxu0
  %v1878 = vadd.f32 %v1765, %v1877
  %v1879 = vpop.f32.mrb[0].mxu0
  %v1880 = vadd.f32 %v1767, %v1879
  %v1881 = vpop.f32.mrb[0].mxu0
  %v1882 = vadd.f32 %v1769, %v1881
  %1883 = vmatprep.mubr.bf16.mxu0 0
  %1884 = vmatmul.mubr.bf16.gmra.mrb[0].mxu0 %v537
  %v1885 = vpop.f32.mrb[0].mxu0
  %v1886 = vadd.f32 %v1773, %v1885
  %v1887 = vpop.f32.mrb[0].mxu0
  %v1888 = vadd.f32 %v1775, %v1887
  %v1889 = vpop.f32.mrb[0].mxu0
  %v1890 = vadd.f32 %v1777, %v1889
  %v1891 = vpop.f32.mrb[0].mxu0
  %v1892 = vadd.f32 %v1779, %v1891
  %1893 = vmatprep.mubr.bf16.mxu0 0
  %1894 = vmatmul.mubr.bf16.gmra.mrb[0].mxu0 %v546
  %v1895 = vpop.f32.mrb[0].mxu0
  %v1896 = vadd.f32 %v1783, %v1895
  %v1897 = vpop.f32.mrb[0].mxu0
  %v1898 = vadd.f32 %v1785, %v1897
  %v1899 = vpop.f32.mrb[0].mxu0
  %v1900 = vadd.f32 %v1787, %v1899
  %v1901 = vpop.f32.mrb[0].mxu0
  %v1902 = vadd.f32 %v1789, %v1901
  %1903 = vdwg.mxu0
  %1904 = vst [vmem:[%s3] sm:$0xff] %v1826
  %1905 = vst [vmem:[%s3 + $0x8] sm:$0xff] %v1828
  %1906 = vst [vmem:[%s3 + $0x10] sm:$0xff] %v1830
  %1907 = vst [vmem:[%s3 + $0x18] sm:$0xff] %v1832
  %1908 = vst [vmem:[%s3 + $0x20] sm:$0xff] %v1836
  %1909 = vst [vmem:[%s3 + $0x28] sm:$0xff] %v1838
  %1910 = vst [vmem:[%s3 + $0x30] sm:$0xff] %v1840
  %1911 = vst [vmem:[%s3 + $0x38] sm:$0xff] %v1842
  %1912 = vst [vmem:[%s3 + $0x40] sm:$0xff] %v1846
  %1913 = vst [vmem:[%s3 + $0x48] sm:$0xff] %v1848
  %1914 = vst [vmem:[%s3 + $0x50] sm:$0xff] %v1850
  %1915 = vst [vmem:[%s3 + $0x58] sm:$0xff] %v1852
  %1916 = vst [vmem:[%s3 + $0x60] sm:$0xff] %v1856
  %1917 = vst [vmem:[%s3 + $0x68] sm:$0xff] %v1858
  %1918 = vst [vmem:[%s3 + $0x70] sm:$0xff] %v1860
  %1919 = vst [vmem:[%s3 + $0x78] sm:$0xff] %v1862
  %1920 = vst [vmem:[%s3 + $0x80] sm:$0xff] %v1866
  %1921 = vst [vmem:[%s3 + $0x88] sm:$0xff] %v1868
  %1922 = vst [vmem:[%s3 + $0x90] sm:$0xff] %v1870
  %1923 = vst [vmem:[%s3 + $0x98] sm:$0xff] %v1872
  %1924 = vst [vmem:[%s3 + $0xa0] sm:$0xff] %v1876
  %1925 = vst [vmem:[%s3 + $0xa8] sm:$0xff] %v1878
  %1926 = vst [vmem:[%s3 + $0xb0] sm:$0xff] %v1880
  %1927 = vst [vmem:[%s3 + $0xb8] sm:$0xff] %v1882
  %1928 = vst [vmem:[%s3 + $0xc0] sm:$0xff] %v1886
  %1929 = vst [vmem:[%s3 + $0xc8] sm:$0xff] %v1888
  %1930 = vst [vmem:[%s3 + $0xd0] sm:$0xff] %v1890
  %1931 = vst [vmem:[%s3 + $0xd8] sm:$0xff] %v1892
  %1932 = vst [vmem:[%s3 + $0xe0] sm:$0xff] %v1896
  %1933 = vst [vmem:[%s3 + $0xe8] sm:$0xff] %v1898
  %1934 = vst [vmem:[%s3 + $0xf0] sm:$0xff] %v1900
  %1935 = vst [vmem:[%s3 + $0xf8] sm:$0xff] %v1902
  // Predicated region
  $region14: #{_lambda_.13} parent=0 // pred_check
    _
  $region15: #{_lambda_.13} parent=0 // pred_check_branch
    %1937 = sbr.rel (0) target = $region17
  $region16: #{_lambda_.13} parent=0 // pred_region
    _
  $region17: #{_lambda_.13} parent=0 // pred_fallthru
    _
  // Predicated region
  $region18: #{_lambda_.13} parent=0 // pred_check
    _
  $region19: #{_lambda_.13} parent=0 // pred_check_branch
    %1939 = sbr.rel (0) target = $region21
  $region20: #{_lambda_.13} parent=0 // pred_region
    _
  $region21: #{_lambda_.13} parent=0 // pred_fallthru
    _

// kernel: _lambda_.14
$region0: #{_lambda_.14}
  #allocation0 [shape = 'u32[]', space=smem, size = 0x4, offset = 0x4, fixed_abs, tag = 'smem constant byte address 0x4 - core index']
  #allocation1 [shape = 'u32[144,128]{1,0:T(1,128)}', space=vmem, size = 0x12000, scoped, tag = 'internal scratch']
  %s0 = inlined_call_operand.vmem [shape: bf16[32,1152], index: 0, kind: input, shape index: {}]
  %s1 = inlined_call_operand.vmem [shape: bf16[1152,128], index: 1, kind: input, shape index: {}]
  %s2 = inlined_call_operand.vmem [shape: f32[1,128], index: 2, kind: input, shape index: {}]
  %s3 = inlined_call_operand.vmem [shape: f32[32,128], index: 3, kind: output, shape index: {}]
  %s4 = sld [smem:[#allocation0]]
  $region22: #{_lambda_.14} parent=0
    _
  %s6 = ssub.s32 1, %s4
  %s7 = scalar_select 0, %s6, %s4
  // Predicated region
  $region2: #{_lambda_.14} parent=0 // pred_check
    _
  $region3: #{_lambda_.14} parent=0 // pred_check_branch
    %9 = sbr.rel (0) target = $region5
  $region4: #{_lambda_.14} parent=0 // pred_region
    _
  $region5: #{_lambda_.14} parent=0 // pred_fallthru
    _
  // Predicated region
  $region6: #{_lambda_.14} parent=0 // pred_check
    _
  $region7: #{_lambda_.14} parent=0 // pred_check_branch
    %11 = sbr.rel (0) target = $region9
  $region8: #{_lambda_.14} parent=0 // pred_region
    _
  $region9: #{_lambda_.14} parent=0 // pred_fallthru
    _
  // Predicated region
  $region10: #{_lambda_.14} parent=0 // pred_check
    _
  $region11: #{_lambda_.14} parent=0 // pred_check_branch
    %13 = sbr.rel (0) target = $region13
  $region12: #{_lambda_.14} parent=0 // pred_region
    _
  $region13: #{_lambda_.14} parent=0 // pred_fallthru
    _
  %v15 = vld [vmem:[%s0] sm:$0xff]
  %v16 = vld [vmem:[%s0 + $0x8] sm:$0xff]
  %v17 = vld [vmem:[%s0 + $0x10] sm:$0xff]
  %v18 = vld [vmem:[%s0 + $0x18] sm:$0xff]
  %v19 = vld [vmem:[%s0 + $0x20] sm:$0xf]
  %v20 = vld [vmem:[%s0 + $0x24] sm:$0xff]
  %v21 = vld [vmem:[%s0 + $0x2c] sm:$0xff]
  %v22 = vld [vmem:[%s0 + $0x34] sm:$0xff]
  %v23 = vld [vmem:[%s0 + $0x3c] sm:$0xff]
  %v24 = vld [vmem:[%s0 + $0x44] sm:$0xf]
  %v25 = vld [vmem:[%s0 + $0x48] sm:$0xff]
  %v26 = vld [vmem:[%s0 + $0x50] sm:$0xff]
  %v27 = vld [vmem:[%s0 + $0x58] sm:$0xff]
  %v28 = vld [vmem:[%s0 + $0x60] sm:$0xff]
  %v29 = vld [vmem:[%s0 + $0x68] sm:$0xf]
  %v30 = vld [vmem:[%s0 + $0x6c] sm:$0xff]
  %v31 = vld [vmem:[%s0 + $0x74] sm:$0xff]
  %v32 = vld [vmem:[%s0 + $0x7c] sm:$0xff]
  %v33 = vld [vmem:[%s0 + $0x84] sm:$0xff]
  %v34 = vld [vmem:[%s0 + $0x8c] sm:$0xf]
  %v35 = vld [vmem:[%s1] sm:$0xf]
  %v36 = vld [vmem:[%s1 + $0x4] sm:$0xf]
  %v37 = vld [vmem:[%s1 + $0x8] sm:$0xf]
  %v38 = vld [vmem:[%s1 + $0xc] sm:$0xf]
  %v39 = vld [vmem:[%s1 + $0x10] sm:$0xf]
  %v40 = vld [vmem:[%s1 + $0x14] sm:$0xf]
  %v41 = vld [vmem:[%s1 + $0x18] sm:$0xf]
  %v42 = vld [vmem:[%s1 + $0x1c] sm:$0xf]
  %v43 = vld [vmem:[%s1 + $0x20] sm:$0xf]
  %v44 = vld [vmem:[%s1 + $0x24] sm:$0xf]
  %v45 = vld [vmem:[%s1 + $0x28] sm:$0xf]
  %v46 = vld [vmem:[%s1 + $0x2c] sm:$0xf]
  %v47 = vld [vmem:[%s1 + $0x30] sm:$0xf]
  %v48 = vld [vmem:[%s1 + $0x34] sm:$0xf]
  %v49 = vld [vmem:[%s1 + $0x38] sm:$0xf]
  %v50 = vld [vmem:[%s1 + $0x3c] sm:$0xf]
  %v51 = vld [vmem:[%s1 + $0x40] sm:$0xf]
  %v52 = vld [vmem:[%s1 + $0x44] sm:$0xf]
  %v53 = vld [vmem:[%s1 + $0x48] sm:$0xf]
  %v54 = vld [vmem:[%s1 + $0x4c] sm:$0xf]
  %v55 = vld [vmem:[%s1 + $0x50] sm:$0xf]
  %v56 = vld [vmem:[%s1 + $0x54] sm:$0xf]
  %v57 = vld [vmem:[%s1 + $0x58] sm:$0xf]
  %v58 = vld [vmem:[%s1 + $0x5c] sm:$0xf]
  %v59 = vld [vmem:[%s1 + $0x60] sm:$0xf]
  %v60 = vld [vmem:[%s1 + $0x64] sm:$0xf]
  %v61 = vld [vmem:[%s1 + $0x68] sm:$0xf]
  %v62 = vld [vmem:[%s1 + $0x6c] sm:$0xf]
  %v63 = vld [vmem:[%s1 + $0x70] sm:$0xf]
  %v64 = vld [vmem:[%s1 + $0x74] sm:$0xf]
  %v65 = vld [vmem:[%s1 + $0x78] sm:$0xf]
  %v66 = vld [vmem:[%s1 + $0x7c] sm:$0xf]
  %v67 = vld [vmem:[%s1 + $0x80] sm:$0xf]
  %v68 = vld [vmem:[%s1 + $0x84] sm:$0xf]
  %v69 = vld [vmem:[%s1 + $0x88] sm:$0xf]
  %v70 = vld [vmem:[%s1 + $0x8c] sm:$0xf]
  %v71 = vld [vmem:[%s1 + $0x90] sm:$0xf]
  %v72 = vld [vmem:[%s1 + $0x94] sm:$0xf]
  %v73 = vld [vmem:[%s1 + $0x98] sm:$0xf]
  %v74 = vld [vmem:[%s1 + $0x9c] sm:$0xf]
  %v75 = vld [vmem:[%s1 + $0xa0] sm:$0xf]
  %v76 = vld [vmem:[%s1 + $0xa4] sm:$0xf]
  %v77 = vld [vmem:[%s1 + $0xa8] sm:$0xf]
  %v78 = vld [vmem:[%s1 + $0xac] sm:$0xf]
  %v79 = vld [vmem:[%s1 + $0xb0] sm:$0xf]
  %v80 = vld [vmem:[%s1 + $0xb4] sm:$0xf]
  %v81 = vld [vmem:[%s1 + $0xb8] sm:$0xf]
  %v82 = vld [vmem:[%s1 + $0xbc] sm:$0xf]
  %v83 = vld [vmem:[%s1 + $0xc0] sm:$0xf]
  %v84 = vld [vmem:[%s1 + $0xc4] sm:$0xf]
  %v85 = vld [vmem:[%s1 + $0xc8] sm:$0xf]
  %v86 = vld [vmem:[%s1 + $0xcc] sm:$0xf]
  %v87 = vld [vmem:[%s1 + $0xd0] sm:$0xf]
  %v88 = vld [vmem:[%s1 + $0xd4] sm:$0xf]
  %v89 = vld [vmem:[%s1 + $0xd8] sm:$0xf]
  %v90 = vld [vmem:[%s1 + $0xdc] sm:$0xf]
  %v91 = vld [vmem:[%s1 + $0xe0] sm:$0xf]
  %v92 = vld [vmem:[%s1 + $0xe4] sm:$0xf]
  %v93 = vld [vmem:[%s1 + $0xe8] sm:$0xf]
  %v94 = vld [vmem:[%s1 + $0xec] sm:$0xf]
  %v95 = vld [vmem:[%s1 + $0xf0] sm:$0xf]
  %v96 = vld [vmem:[%s1 + $0xf4] sm:$0xf]
  %v97 = vld [vmem:[%s1 + $0xf8] sm:$0xf]
  %v98 = vld [vmem:[%s1 + $0xfc] sm:$0xf]
  %v99 = vld [vmem:[%s1 + $0x100] sm:$0xf]
  %v100 = vld [vmem:[%s1 + $0x104] sm:$0xf]
  %v101 = vld [vmem:[%s1 + $0x108] sm:$0xf]
  %v102 = vld [vmem:[%s1 + $0x10c] sm:$0xf]
  %v103 = vld [vmem:[%s1 + $0x110] sm:$0xf]
  %v104 = vld [vmem:[%s1 + $0x114] sm:$0xf]
  %v105 = vld [vmem:[%s1 + $0x118] sm:$0xf]
  %v106 = vld [vmem:[%s1 + $0x11c] sm:$0xf]
  %v107 = vld [vmem:[%s1 + $0x120] sm:$0xf]
  %v108 = vld [vmem:[%s1 + $0x124] sm:$0xf]
  %v109 = vld [vmem:[%s1 + $0x128] sm:$0xf]
  %v110 = vld [vmem:[%s1 + $0x12c] sm:$0xf]
  %v111 = vld [vmem:[%s1 + $0x130] sm:$0xf]
  %v112 = vld [vmem:[%s1 + $0x134] sm:$0xf]
  %v113 = vld [vmem:[%s1 + $0x138] sm:$0xf]
  %v114 = vld [vmem:[%s1 + $0x13c] sm:$0xf]
  %v115 = vld [vmem:[%s1 + $0x140] sm:$0xf]
  %v116 = vld [vmem:[%s1 + $0x144] sm:$0xf]
  %v117 = vld [vmem:[%s1 + $0x148] sm:$0xf]
  %v118 = vld [vmem:[%s1 + $0x14c] sm:$0xf]
  %v119 = vld [vmem:[%s1 + $0x150] sm:$0xf]
  %v120 = vld [vmem:[%s1 + $0x154] sm:$0xf]
  %v121 = vld [vmem:[%s1 + $0x158] sm:$0xf]
  %v122 = vld [vmem:[%s1 + $0x15c] sm:$0xf]
  %v123 = vld [vmem:[%s1 + $0x160] sm:$0xf]
  %v124 = vld [vmem:[%s1 + $0x164] sm:$0xf]
  %v125 = vld [vmem:[%s1 + $0x168] sm:$0xf]
  %v126 = vld [vmem:[%s1 + $0x16c] sm:$0xf]
  %v127 = vld [vmem:[%s1 + $0x170] sm:$0xf]
  %v128 = vld [vmem:[%s1 + $0x174] sm:$0xf]
  %v129 = vld [vmem:[%s1 + $0x178] sm:$0xf]
  %v130 = vld [vmem:[%s1 + $0x17c] sm:$0xf]
  %v131 = vld [vmem:[%s1 + $0x180] sm:$0xf]
  %v132 = vld [vmem:[%s1 + $0x184] sm:$0xf]
  %v133 = vld [vmem:[%s1 + $0x188] sm:$0xf]
  %v134 = vld [vmem:[%s1 + $0x18c] sm:$0xf]
  %v135 = vld [vmem:[%s1 + $0x190] sm:$0xf]
  %v136 = vld [vmem:[%s1 + $0x194] sm:$0xf]
  %v137 = vld [vmem:[%s1 + $0x198] sm:$0xf]
  %v138 = vld [vmem:[%s1 + $0x19c] sm:$0xf]
  %v139 = vld [vmem:[%s1 + $0x1a0] sm:$0xf]
  %v140 = vld [vmem:[%s1 + $0x1a4] sm:$0xf]
  %v141 = vld [vmem:[%s1 + $0x1a8] sm:$0xf]
  %v142 = vld [vmem:[%s1 + $0x1ac] sm:$0xf]
  %v143 = vld [vmem:[%s1 + $0x1b0] sm:$0xf]
  %v144 = vld [vmem:[%s1 + $0x1b4] sm:$0xf]
  %v145 = vld [vmem:[%s1 + $0x1b8] sm:$0xf]
  %v146 = vld [vmem:[%s1 + $0x1bc] sm:$0xf]
  %v147 = vld [vmem:[%s1 + $0x1c0] sm:$0xf]
  %v148 = vld [vmem:[%s1 + $0x1c4] sm:$0xf]
  %v149 = vld [vmem:[%s1 + $0x1c8] sm:$0xf]
  %v150 = vld [vmem:[%s1 + $0x1cc] sm:$0xf]
  %v151 = vld [vmem:[%s1 + $0x1d0] sm:$0xf]
  %v152 = vld [vmem:[%s1 + $0x1d4] sm:$0xf]
  %v153 = vld [vmem:[%s1 + $0x1d8] sm:$0xf]
  %v154 = vld [vmem:[%s1 + $0x1dc] sm:$0xf]
  %v155 = vld [vmem:[%s1 + $0x1e0] sm:$0xf]
  %v156 = vld [vmem:[%s1 + $0x1e4] sm:$0xf]
  %v157 = vld [vmem:[%s1 + $0x1e8] sm:$0xf]
  %v158 = vld [vmem:[%s1 + $0x1ec] sm:$0xf]
  %v159 = vld [vmem:[%s1 + $0x1f0] sm:$0xf]
  %v160 = vld [vmem:[%s1 + $0x1f4] sm:$0xf]
  %v161 = vld [vmem:[%s1 + $0x1f8] sm:$0xf]
  %v162 = vld [vmem:[%s1 + $0x1fc] sm:$0xf]
  %v163 = vld [vmem:[%s1 + $0x200] sm:$0xf]
  %v164 = vld [vmem:[%s1 + $0x204] sm:$0xf]
  %v165 = vld [vmem:[%s1 + $0x208] sm:$0xf]
  %v166 = vld [vmem:[%s1 + $0x20c] sm:$0xf]
  %v167 = vld [vmem:[%s1 + $0x210] sm:$0xf]
  %v168 = vld [vmem:[%s1 + $0x214] sm:$0xf]
  %v169 = vld [vmem:[%s1 + $0x218] sm:$0xf]
  %v170 = vld [vmem:[%s1 + $0x21c] sm:$0xf]
  %v171 = vld [vmem:[%s1 + $0x220] sm:$0xf]
  %v172 = vld [vmem:[%s1 + $0x224] sm:$0xf]
  %v173 = vld [vmem:[%s1 + $0x228] sm:$0xf]
  %v174 = vld [vmem:[%s1 + $0x22c] sm:$0xf]
  %v175 = vld [vmem:[%s1 + $0x230] sm:$0xf]
  %v176 = vld [vmem:[%s1 + $0x234] sm:$0xf]
  %v177 = vld [vmem:[%s1 + $0x238] sm:$0xf]
  %v178 = vld [vmem:[%s1 + $0x23c] sm:$0xf]
  %v179 = vld [vmem:[%s2] sm:$0x1]
  %v181 = vlaneseq
  %v182 = vshrl.u32 %v181, 7
  %v183 = vsub.s32 0, %v182
  %v184 = vrot.slane %v179, %v183
  %v206 = vunpack.c.l.b16 %v15
  %v207 = vunpack.c.h.b16 %v15
  %v208 = vunpack.c.l.b16 %v16
  %v209 = vunpack.c.h.b16 %v16
  %v210 = vunpack.c.l.b16 %v17
  %v211 = vunpack.c.h.b16 %v17
  %v212 = vunpack.c.l.b16 %v18
  %v213 = vunpack.c.h.b16 %v18
  %v214 = vunpack.c.l.b16 %v19
  %v215 = vunpack.c.l.b16 %v20
  %v216 = vunpack.c.h.b16 %v20
  %v217 = vunpack.c.l.b16 %v21
  %v218 = vunpack.c.h.b16 %v21
  %v219 = vunpack.c.l.b16 %v22
  %v220 = vunpack.c.h.b16 %v22
  %v221 = vunpack.c.l.b16 %v23
  %v222 = vunpack.c.h.b16 %v23
  %v223 = vunpack.c.l.b16 %v24
  %v224 = vunpack.c.l.b16 %v25
  %v225 = vunpack.c.h.b16 %v25
  %v226 = vunpack.c.l.b16 %v26
  %v227 = vunpack.c.h.b16 %v26
  %v228 = vunpack.c.l.b16 %v27
  %v229 = vunpack.c.h.b16 %v27
  %v230 = vunpack.c.l.b16 %v28
  %v231 = vunpack.c.h.b16 %v28
  %v232 = vunpack.c.l.b16 %v29
  %v233 = vunpack.c.l.b16 %v30
  %v234 = vunpack.c.h.b16 %v30
  %v235 = vunpack.c.l.b16 %v31
  %v236 = vunpack.c.h.b16 %v31
  %v237 = vunpack.c.l.b16 %v32
  %v238 = vunpack.c.h.b16 %v32
  %v239 = vunpack.c.l.b16 %v33
  %v240 = vunpack.c.h.b16 %v33
  %v241 = vunpack.c.l.b16 %v34
  %v242 = vpack.c.b16 %v215, %v206
  %v243 = vpack.c.b16 %v216, %v207
  %v244 = vpack.c.b16 %v217, %v208
  %v245 = vpack.c.b16 %v218, %v209
  %v246 = vpack.c.b16 %v219, %v210
  %v247 = vpack.c.b16 %v220, %v211
  %v248 = vpack.c.b16 %v221, %v212
  %v249 = vpack.c.b16 %v222, %v213
  %v250 = vpack.c.b16 %v223, %v214
  %v251 = vpack.c.b16 %v233, %v224
  %v252 = vpack.c.b16 %v234, %v225
  %v253 = vpack.c.b16 %v235, %v226
  %v254 = vpack.c.b16 %v236, %v227
  %v255 = vpack.c.b16 %v237, %v228
  %v256 = vpack.c.b16 %v238, %v229
  %v257 = vpack.c.b16 %v239, %v230
  %v258 = vpack.c.b16 %v240, %v231
  %v259 = vpack.c.b16 %v241, %v232
  %v422 = vunpack.c.l.b16 %v35
  %v423 = vunpack.c.l.b16 %v36
  %v424 = vunpack.c.l.b16 %v37
  %v425 = vunpack.c.l.b16 %v38
  %v426 = vunpack.c.l.b16 %v39
  %v427 = vunpack.c.l.b16 %v40
  %v428 = vunpack.c.l.b16 %v41
  %v429 = vunpack.c.l.b16 %v42
  %v430 = vunpack.c.l.b16 %v43
  %v431 = vunpack.c.l.b16 %v44
  %v432 = vunpack.c.l.b16 %v45
  %v433 = vunpack.c.l.b16 %v46
  %v434 = vunpack.c.l.b16 %v47
  %v435 = vunpack.c.l.b16 %v48
  %v436 = vunpack.c.l.b16 %v49
  %v437 = vunpack.c.l.b16 %v50
  %v438 = vunpack.c.l.b16 %v51
  %v439 = vunpack.c.l.b16 %v52
  %v440 = vunpack.c.l.b16 %v53
  %v441 = vunpack.c.l.b16 %v54
  %v442 = vunpack.c.l.b16 %v55
  %v443 = vunpack.c.l.b16 %v56
  %v444 = vunpack.c.l.b16 %v57
  %v445 = vunpack.c.l.b16 %v58
  %v446 = vunpack.c.l.b16 %v59
  %v447 = vunpack.c.l.b16 %v60
  %v448 = vunpack.c.l.b16 %v61
  %v449 = vunpack.c.l.b16 %v62
  %v450 = vunpack.c.l.b16 %v63
  %v451 = vunpack.c.l.b16 %v64
  %v452 = vunpack.c.l.b16 %v65
  %v453 = vunpack.c.l.b16 %v66
  %v454 = vunpack.c.l.b16 %v67
  %v455 = vunpack.c.l.b16 %v68
  %v456 = vunpack.c.l.b16 %v69
  %v457 = vunpack.c.l.b16 %v70
  %v458 = vunpack.c.l.b16 %v71
  %v459 = vunpack.c.l.b16 %v72
  %v460 = vunpack.c.l.b16 %v73
  %v461 = vunpack.c.l.b16 %v74
  %v462 = vunpack.c.l.b16 %v75
  %v463 = vunpack.c.l.b16 %v76
  %v464 = vunpack.c.l.b16 %v77
  %v465 = vunpack.c.l.b16 %v78
  %v466 = vunpack.c.l.b16 %v79
  %v467 = vunpack.c.l.b16 %v80
  %v468 = vunpack.c.l.b16 %v81
  %v469 = vunpack.c.l.b16 %v82
  %v470 = vunpack.c.l.b16 %v83
  %v471 = vunpack.c.l.b16 %v84
  %v472 = vunpack.c.l.b16 %v85
  %v473 = vunpack.c.l.b16 %v86
  %v474 = vunpack.c.l.b16 %v87
  %v475 = vunpack.c.l.b16 %v88
  %v476 = vunpack.c.l.b16 %v89
  %v477 = vunpack.c.l.b16 %v90
  %v478 = vunpack.c.l.b16 %v91
  %v479 = vunpack.c.l.b16 %v92
  %v480 = vunpack.c.l.b16 %v93
  %v481 = vunpack.c.l.b16 %v94
  %v482 = vunpack.c.l.b16 %v95
  %v483 = vunpack.c.l.b16 %v96
  %v484 = vunpack.c.l.b16 %v97
  %v485 = vunpack.c.l.b16 %v98
  %v486 = vunpack.c.l.b16 %v99
  %v487 = vunpack.c.l.b16 %v100
  %v488 = vunpack.c.l.b16 %v101
  %v489 = vunpack.c.l.b16 %v102
  %v490 = vunpack.c.l.b16 %v103
  %v491 = vunpack.c.l.b16 %v104
  %v492 = vunpack.c.l.b16 %v105
  %v493 = vunpack.c.l.b16 %v106
  %v494 = vunpack.c.l.b16 %v107
  %v495 = vunpack.c.l.b16 %v108
  %v496 = vunpack.c.l.b16 %v109
  %v497 = vunpack.c.l.b16 %v110
  %v498 = vunpack.c.l.b16 %v111
  %v499 = vunpack.c.l.b16 %v112
  %v500 = vunpack.c.l.b16 %v113
  %v501 = vunpack.c.l.b16 %v114
  %v502 = vunpack.c.l.b16 %v115
  %v503 = vunpack.c.l.b16 %v116
  %v504 = vunpack.c.l.b16 %v117
  %v505 = vunpack.c.l.b16 %v118
  %v506 = vunpack.c.l.b16 %v119
  %v507 = vunpack.c.l.b16 %v120
  %v508 = vunpack.c.l.b16 %v121
  %v509 = vunpack.c.l.b16 %v122
  %v510 = vunpack.c.l.b16 %v123
  %v511 = vunpack.c.l.b16 %v124
  %v512 = vunpack.c.l.b16 %v125
  %v513 = vunpack.c.l.b16 %v126
  %v514 = vunpack.c.l.b16 %v127
  %v515 = vunpack.c.l.b16 %v128
  %v516 = vunpack.c.l.b16 %v129
  %v517 = vunpack.c.l.b16 %v130
  %v518 = vunpack.c.l.b16 %v131
  %v519 = vunpack.c.l.b16 %v132
  %v520 = vunpack.c.l.b16 %v133
  %v521 = vunpack.c.l.b16 %v134
  %v522 = vunpack.c.l.b16 %v135
  %v523 = vunpack.c.l.b16 %v136
  %v524 = vunpack.c.l.b16 %v137
  %v525 = vunpack.c.l.b16 %v138
  %v526 = vunpack.c.l.b16 %v139
  %v527 = vunpack.c.l.b16 %v140
  %v528 = vunpack.c.l.b16 %v141
  %v529 = vunpack.c.l.b16 %v142
  %v530 = vunpack.c.l.b16 %v143
  %v531 = vunpack.c.l.b16 %v144
  %v532 = vunpack.c.l.b16 %v145
  %v533 = vunpack.c.l.b16 %v146
  %v534 = vunpack.c.l.b16 %v147
  %v535 = vunpack.c.l.b16 %v148
  %v536 = vunpack.c.l.b16 %v149
  %v537 = vunpack.c.l.b16 %v150
  %v538 = vunpack.c.l.b16 %v151
  %v539 = vunpack.c.l.b16 %v152
  %v540 = vunpack.c.l.b16 %v153
  %v541 = vunpack.c.l.b16 %v154
  %v542 = vunpack.c.l.b16 %v155
  %v543 = vunpack.c.l.b16 %v156
  %v544 = vunpack.c.l.b16 %v157
  %v545 = vunpack.c.l.b16 %v158
  %v546 = vunpack.c.l.b16 %v159
  %v547 = vunpack.c.l.b16 %v160
  %v548 = vunpack.c.l.b16 %v161
  %v549 = vunpack.c.l.b16 %v162
  %v550 = vunpack.c.l.b16 %v163
  %v551 = vunpack.c.l.b16 %v164
  %v552 = vunpack.c.l.b16 %v165
  %v553 = vunpack.c.l.b16 %v166
  %v554 = vunpack.c.l.b16 %v167
  %v555 = vunpack.c.l.b16 %v168
  %v556 = vunpack.c.l.b16 %v169
  %v557 = vunpack.c.l.b16 %v170
  %v558 = vunpack.c.l.b16 %v171
  %v559 = vunpack.c.l.b16 %v172
  %v560 = vunpack.c.l.b16 %v173
  %v561 = vunpack.c.l.b16 %v174
  %v562 = vunpack.c.l.b16 %v175
  %v563 = vunpack.c.l.b16 %v176
  %v564 = vunpack.c.l.b16 %v177
  %v565 = vunpack.c.l.b16 %v178
  %v566 = vpack.c.b16 %v423, %v422
  %v567 = vpack.c.b16 %v425, %v424
  %v568 = vpack.c.b16 %v427, %v426
  %v569 = vpack.c.b16 %v429, %v428
  %v570 = vpack.c.b16 %v431, %v430
  %v571 = vpack.c.b16 %v433, %v432
  %v572 = vpack.c.b16 %v435, %v434
  %v573 = vpack.c.b16 %v437, %v436
  %v574 = vpack.c.b16 %v439, %v438
  %v575 = vpack.c.b16 %v441, %v440
  %v576 = vpack.c.b16 %v443, %v442
  %v577 = vpack.c.b16 %v445, %v444
  %v578 = vpack.c.b16 %v447, %v446
  %v579 = vpack.c.b16 %v449, %v448
  %v580 = vpack.c.b16 %v451, %v450
  %v581 = vpack.c.b16 %v453, %v452
  %v582 = vpack.c.b16 %v455, %v454
  %v583 = vpack.c.b16 %v457, %v456
  %v584 = vpack.c.b16 %v459, %v458
  %v585 = vpack.c.b16 %v461, %v460
  %v586 = vpack.c.b16 %v463, %v462
  %v587 = vpack.c.b16 %v465, %v464
  %v588 = vpack.c.b16 %v467, %v466
  %v589 = vpack.c.b16 %v469, %v468
  %v590 = vpack.c.b16 %v471, %v470
  %v591 = vpack.c.b16 %v473, %v472
  %v592 = vpack.c.b16 %v475, %v474
  %v593 = vpack.c.b16 %v477, %v476
  %v594 = vpack.c.b16 %v479, %v478
  %v595 = vpack.c.b16 %v481, %v480
  %v596 = vpack.c.b16 %v483, %v482
  %v597 = vpack.c.b16 %v485, %v484
  %v598 = vpack.c.b16 %v487, %v486
  %v599 = vpack.c.b16 %v489, %v488
  %v600 = vpack.c.b16 %v491, %v490
  %v601 = vpack.c.b16 %v493, %v492
  %v602 = vpack.c.b16 %v495, %v494
  %v603 = vpack.c.b16 %v497, %v496
  %v604 = vpack.c.b16 %v499, %v498
  %v605 = vpack.c.b16 %v501, %v500
  %v606 = vpack.c.b16 %v503, %v502
  %v607 = vpack.c.b16 %v505, %v504
  %v608 = vpack.c.b16 %v507, %v506
  %v609 = vpack.c.b16 %v509, %v508
  %v610 = vpack.c.b16 %v511, %v510
  %v611 = vpack.c.b16 %v513, %v512
  %v612 = vpack.c.b16 %v515, %v514
  %v613 = vpack.c.b16 %v517, %v516
  %v614 = vpack.c.b16 %v519, %v518
  %v615 = vpack.c.b16 %v521, %v520
  %v616 = vpack.c.b16 %v523, %v522
  %v617 = vpack.c.b16 %v525, %v524
  %v618 = vpack.c.b16 %v527, %v526
  %v619 = vpack.c.b16 %v529, %v528
  %v620 = vpack.c.b16 %v531, %v530
  %v621 = vpack.c.b16 %v533, %v532
  %v622 = vpack.c.b16 %v535, %v534
  %v623 = vpack.c.b16 %v537, %v536
  %v624 = vpack.c.b16 %v539, %v538
  %v625 = vpack.c.b16 %v541, %v540
  %v626 = vpack.c.b16 %v543, %v542
  %v627 = vpack.c.b16 %v545, %v544
  %v628 = vpack.c.b16 %v547, %v546
  %v629 = vpack.c.b16 %v549, %v548
  %v630 = vpack.c.b16 %v551, %v550
  %v631 = vpack.c.b16 %v553, %v552
  %v632 = vpack.c.b16 %v555, %v554
  %v633 = vpack.c.b16 %v557, %v556
  %v634 = vpack.c.b16 %v559, %v558
  %v635 = vpack.c.b16 %v561, %v560
  %v636 = vpack.c.b16 %v563, %v562
  %v637 = vpack.c.b16 %v565, %v564
  %710 = vmatprep.subr.bf16.mxu0 0
  %711 = vmatpush1.bf16.msra.mxu0 %v566
  %712 = vmatprep.subr.bf16.mxu0 0
  %713 = vmatpush1.bf16.msra.mxu0 %v567
  %714 = vmatprep.subr.bf16.mxu0 0
  %715 = vmatpush1.bf16.msra.mxu0 %v568
  %716 = vmatprep.subr.bf16.mxu0 0
  %717 = vmatpush1.bf16.msra.mxu0 %v569
  %718 = vmatprep.subr.bf16.mxu0 0
  %719 = vmatpush1.bf16.msra.mxu0 %v570
  %720 = vmatprep.subr.bf16.mxu0 0
  %721 = vmatpush1.bf16.msra.mxu0 %v571
  %722 = vmatprep.subr.bf16.mxu0 0
  %723 = vmatpush1.bf16.msra.mxu0 %v572
  %724 = vmatprep.subr.bf16.mxu0 0
  %725 = vmatpush1.bf16.msra.mxu0 %v573
  %726 = vmatprep.subr.bf16.mxu0 0
  %727 = vmatpush1.bf16.msra.mxu0 %v574
  %728 = vmatprep.subr.bf16.mxu0 0
  %729 = vmatpush1.bf16.msra.mxu0 %v575
  %730 = vmatprep.subr.bf16.mxu0 0
  %731 = vmatpush1.bf16.msra.mxu0 %v576
  %732 = vmatprep.subr.bf16.mxu0 0
  %733 = vmatpush1.bf16.msra.mxu0 %v577
  %734 = vmatprep.subr.bf16.mxu0 0
  %735 = vmatpush1.bf16.msra.mxu0 %v578
  %736 = vmatprep.subr.bf16.mxu0 0
  %737 = vmatpush1.bf16.msra.mxu0 %v579
  %738 = vmatprep.subr.bf16.mxu0 0
  %739 = vmatpush1.bf16.msra.mxu0 %v580
  %740 = vmatprep.subr.bf16.mxu0 0
  %741 = vmatpush1.bf16.msra.mxu0 %v581
  %742 = vmatprep.mubr.bf16.mxu0 %v243
  %743 = vmatmul.mubr.bf16.gmra.mrb[0].mxu0 %v242
  %v744 = vpop.f32.mrb[0].mxu0
  %v745 = vadd.f32 %v184, %v744
  %v746 = vpop.f32.mrb[0].mxu0
  %v747 = vpop.f32.mrb[0].mxu0
  %v748 = vadd.f32 %v184, %v747
  %v749 = vpop.f32.mrb[0].mxu0
  %750 = vmatprep.mubr.bf16.mxu0 %v252
  %751 = vmatmul.mubr.bf16.gmra.mrb[0].mxu0 %v251
  %v752 = vpop.f32.mrb[0].mxu0
  %v753 = vadd.f32 %v184, %v752
  %v754 = vpop.f32.mrb[0].mxu0
  %v755 = vpop.f32.mrb[0].mxu0
  %v756 = vadd.f32 %v184, %v755
  %v757 = vpop.f32.mrb[0].mxu0
  %758 = vdwg.mxu0
  %759 = vmatprep.subr.bf16.mxu0 0
  %760 = vmatpush1.bf16.msra.mxu0 %v582
  %761 = vmatprep.subr.bf16.mxu0 0
  %762 = vmatpush1.bf16.msra.mxu0 %v583
  %763 = vmatprep.subr.bf16.mxu0 0
  %764 = vmatpush1.bf16.msra.mxu0 %v584
  %765 = vmatprep.subr.bf16.mxu0 0
  %766 = vmatpush1.bf16.msra.mxu0 %v585
  %767 = vmatprep.subr.bf16.mxu0 0
  %768 = vmatpush1.bf16.msra.mxu0 %v586
  %769 = vmatprep.subr.bf16.mxu0 0
  %770 = vmatpush1.bf16.msra.mxu0 %v587
  %771 = vmatprep.subr.bf16.mxu0 0
  %772 = vmatpush1.bf16.msra.mxu0 %v588
  %773 = vmatprep.subr.bf16.mxu0 0
  %774 = vmatpush1.bf16.msra.mxu0 %v589
  %775 = vmatprep.subr.bf16.mxu0 0
  %776 = vmatpush1.bf16.msra.mxu0 %v590
  %777 = vmatprep.subr.bf16.mxu0 0
  %778 = vmatpush1.bf16.msra.mxu0 %v591
  %779 = vmatprep.subr.bf16.mxu0 0
  %780 = vmatpush1.bf16.msra.mxu0 %v592
  %781 = vmatprep.subr.bf16.mxu0 0
  %782 = vmatpush1.bf16.msra.mxu0 %v593
  %783 = vmatprep.subr.bf16.mxu0 0
  %784 = vmatpush1.bf16.msra.mxu0 %v594
  %785 = vmatprep.subr.bf16.mxu0 0
  %786 = vmatpush1.bf16.msra.mxu0 %v595
  %787 = vmatprep.subr.bf16.mxu0 0
  %788 = vmatpush1.bf16.msra.mxu0 %v596
  %789 = vmatprep.subr.bf16.mxu0 0
  %790 = vmatpush1.bf16.msra.mxu0 %v597
  %791 = vmatprep.mubr.bf16.mxu0 %v245
  %792 = vmatmul.mubr.bf16.gmra.mrb[0].mxu0 %v244
  %v793 = vpop.f32.mrb[0].mxu0
  %v794 = vadd.f32 %v745, %v793
  %v795 = vpop.f32.mrb[0].mxu0
  %v796 = vpop.f32.mrb[0].mxu0
  %v797 = vadd.f32 %v748, %v796
  %v798 = vpop.f32.mrb[0].mxu0
  %799 = vmatprep.mubr.bf16.mxu0 %v254
  %800 = vmatmul.mubr.bf16.gmra.mrb[0].mxu0 %v253
  %v801 = vpop.f32.mrb[0].mxu0
  %v802 = vadd.f32 %v753, %v801
  %v803 = vpop.f32.mrb[0].mxu0
  %v804 = vpop.f32.mrb[0].mxu0
  %v805 = vadd.f32 %v756, %v804
  %v806 = vpop.f32.mrb[0].mxu0
  %807 = vdwg.mxu0
  %808 = vmatprep.subr.bf16.mxu0 0
  %809 = vmatpush1.bf16.msra.mxu0 %v598
  %810 = vmatprep.subr.bf16.mxu0 0
  %811 = vmatpush1.bf16.msra.mxu0 %v599
  %812 = vmatprep.subr.bf16.mxu0 0
  %813 = vmatpush1.bf16.msra.mxu0 %v600
  %814 = vmatprep.subr.bf16.mxu0 0
  %815 = vmatpush1.bf16.msra.mxu0 %v601
  %816 = vmatprep.subr.bf16.mxu0 0
  %817 = vmatpush1.bf16.msra.mxu0 %v602
  %818 = vmatprep.subr.bf16.mxu0 0
  %819 = vmatpush1.bf16.msra.mxu0 %v603
  %820 = vmatprep.subr.bf16.mxu0 0
  %821 = vmatpush1.bf16.msra.mxu0 %v604
  %822 = vmatprep.subr.bf16.mxu0 0
  %823 = vmatpush1.bf16.msra.mxu0 %v605
  %824 = vmatprep.subr.bf16.mxu0 0
  %825 = vmatpush1.bf16.msra.mxu0 %v606
  %826 = vmatprep.subr.bf16.mxu0 0
  %827 = vmatpush1.bf16.msra.mxu0 %v607
  %828 = vmatprep.subr.bf16.mxu0 0
  %829 = vmatpush1.bf16.msra.mxu0 %v608
  %830 = vmatprep.subr.bf16.mxu0 0
  %831 = vmatpush1.bf16.msra.mxu0 %v609
  %832 = vmatprep.subr.bf16.mxu0 0
  %833 = vmatpush1.bf16.msra.mxu0 %v610
  %834 = vmatprep.subr.bf16.mxu0 0
  %835 = vmatpush1.bf16.msra.mxu0 %v611
  %836 = vmatprep.subr.bf16.mxu0 0
  %837 = vmatpush1.bf16.msra.mxu0 %v612
  %838 = vmatprep.subr.bf16.mxu0 0
  %839 = vmatpush1.bf16.msra.mxu0 %v613
  %840 = vmatprep.mubr.bf16.mxu0 %v247
  %841 = vmatmul.mubr.bf16.gmra.mrb[0].mxu0 %v246
  %v842 = vpop.f32.mrb[0].mxu0
  %v843 = vadd.f32 %v794, %v842
  %v844 = vpop.f32.mrb[0].mxu0
  %v845 = vpop.f32.mrb[0].mxu0
  %v846 = vadd.f32 %v797, %v845
  %v847 = vpop.f32.mrb[0].mxu0
  %848 = vmatprep.mubr.bf16.mxu0 %v256
  %849 = vmatmul.mubr.bf16.gmra.mrb[0].mxu0 %v255
  %v850 = vpop.f32.mrb[0].mxu0
  %v851 = vadd.f32 %v802, %v850
  %v852 = vpop.f32.mrb[0].mxu0
  %v853 = vpop.f32.mrb[0].mxu0
  %v854 = vadd.f32 %v805, %v853
  %v855 = vpop.f32.mrb[0].mxu0
  %856 = vdwg.mxu0
  %857 = vmatprep.subr.bf16.mxu0 0
  %858 = vmatpush1.bf16.msra.mxu0 %v614
  %859 = vmatprep.subr.bf16.mxu0 0
  %860 = vmatpush1.bf16.msra.mxu0 %v615
  %861 = vmatprep.subr.bf16.mxu0 0
  %862 = vmatpush1.bf16.msra.mxu0 %v616
  %863 = vmatprep.subr.bf16.mxu0 0
  %864 = vmatpush1.bf16.msra.mxu0 %v617
  %865 = vmatprep.subr.bf16.mxu0 0
  %866 = vmatpush1.bf16.msra.mxu0 %v618
  %867 = vmatprep.subr.bf16.mxu0 0
  %868 = vmatpush1.bf16.msra.mxu0 %v619
  %869 = vmatprep.subr.bf16.mxu0 0
  %870 = vmatpush1.bf16.msra.mxu0 %v620
  %871 = vmatprep.subr.bf16.mxu0 0
  %872 = vmatpush1.bf16.msra.mxu0 %v621
  %873 = vmatprep.subr.bf16.mxu0 0
  %874 = vmatpush1.bf16.msra.mxu0 %v622
  %875 = vmatprep.subr.bf16.mxu0 0
  %876 = vmatpush1.bf16.msra.mxu0 %v623
  %877 = vmatprep.subr.bf16.mxu0 0
  %878 = vmatpush1.bf16.msra.mxu0 %v624
  %879 = vmatprep.subr.bf16.mxu0 0
  %880 = vmatpush1.bf16.msra.mxu0 %v625
  %881 = vmatprep.subr.bf16.mxu0 0
  %882 = vmatpush1.bf16.msra.mxu0 %v626
  %883 = vmatprep.subr.bf16.mxu0 0
  %884 = vmatpush1.bf16.msra.mxu0 %v627
  %885 = vmatprep.subr.bf16.mxu0 0
  %886 = vmatpush1.bf16.msra.mxu0 %v628
  %887 = vmatprep.subr.bf16.mxu0 0
  %888 = vmatpush1.bf16.msra.mxu0 %v629
  %889 = vmatprep.mubr.bf16.mxu0 %v249
  %890 = vmatmul.mubr.bf16.gmra.mrb[0].mxu0 %v248
  %v891 = vpop.f32.mrb[0].mxu0
  %v892 = vadd.f32 %v843, %v891
  %v893 = vpop.f32.mrb[0].mxu0
  %v894 = vpop.f32.mrb[0].mxu0
  %v895 = vadd.f32 %v846, %v894
  %v896 = vpop.f32.mrb[0].mxu0
  %897 = vmatprep.mubr.bf16.mxu0 %v258
  %898 = vmatmul.mubr.bf16.gmra.mrb[0].mxu0 %v257
  %v899 = vpop.f32.mrb[0].mxu0
  %v900 = vadd.f32 %v851, %v899
  %v901 = vpop.f32.mrb[0].mxu0
  %v902 = vpop.f32.mrb[0].mxu0
  %v903 = vadd.f32 %v854, %v902
  %v904 = vpop.f32.mrb[0].mxu0
  %905 = vdwg.mxu0
  %906 = vmatprep.subr.bf16.mxu0 0
  %907 = vmatpush1.bf16.msra.mxu0 %v630
  %908 = vmatprep.subr.bf16.mxu0 0
  %909 = vmatpush1.bf16.msra.mxu0 %v631
  %910 = vmatprep.subr.bf16.mxu0 0
  %911 = vmatpush1.bf16.msra.mxu0 %v632
  %912 = vmatprep.subr.bf16.mxu0 0
  %913 = vmatpush1.bf16.msra.mxu0 %v633
  %914 = vmatprep.subr.bf16.mxu0 0
  %915 = vmatpush1.bf16.msra.mxu0 %v634
  %916 = vmatprep.subr.bf16.mxu0 0
  %917 = vmatpush1.bf16.msra.mxu0 %v635
  %918 = vmatprep.subr.bf16.mxu0 0
  %919 = vmatpush1.bf16.msra.mxu0 %v636
  %920 = vmatprep.subr.bf16.mxu0 0
  %921 = vmatpush1.bf16.msra.mxu0 %v637
  %922 = vmatprep.subr.bf16.mxu0 0
  %923 = vmatpush1.bf16.msra.mxu0 0
  %924 = vmatprep.subr.bf16.mxu0 0
  %925 = vmatpush1.bf16.msra.mxu0 0
  %926 = vmatprep.subr.bf16.mxu0 0
  %927 = vmatpush1.bf16.msra.mxu0 0
  %928 = vmatprep.subr.bf16.mxu0 0
  %929 = vmatpush1.bf16.msra.mxu0 0
  %930 = vmatprep.subr.bf16.mxu0 0
  %931 = vmatpush1.bf16.msra.mxu0 0
  %932 = vmatprep.subr.bf16.mxu0 0
  %933 = vmatpush1.bf16.msra.mxu0 0
  %934 = vmatprep.subr.bf16.mxu0 0
  %935 = vmatpush1.bf16.msra.mxu0 0
  %936 = vmatprep.subr.bf16.mxu0 0
  %937 = vmatpush1.bf16.msra.mxu0 0
  %938 = vmatprep.mubr.bf16.mxu0 0
  %939 = vmatmul.mubr.bf16.gmra.mrb[0].mxu0 %v250
  %v940 = vpop.f32.mrb[0].mxu0
  %v941 = vadd.f32 %v892, %v940
  %v942 = vpop.f32.mrb[0].mxu0
  %v943 = vpop.f32.mrb[0].mxu0
  %v944 = vadd.f32 %v895, %v943
  %v945 = vpop.f32.mrb[0].mxu0
  %946 = vmatprep.mubr.bf16.mxu0 0
  %947 = vmatmul.mubr.bf16.gmra.mrb[0].mxu0 %v259
  %v948 = vpop.f32.mrb[0].mxu0
  %v949 = vadd.f32 %v900, %v948
  %v950 = vpop.f32.mrb[0].mxu0
  %v951 = vpop.f32.mrb[0].mxu0
  %v952 = vadd.f32 %v903, %v951
  %v953 = vpop.f32.mrb[0].mxu0
  %954 = vdwg.mxu0
  %955 = vst [vmem:[%s3] sm:$0xff] %v941
  %956 = vst [vmem:[%s3 + $0x8] sm:$0xff] %v944
  %957 = vst [vmem:[%s3 + $0x10] sm:$0xff] %v949
  %958 = vst [vmem:[%s3 + $0x18] sm:$0xff] %v952
  // Predicated region
  $region14: #{_lambda_.14} parent=0 // pred_check
    _
  $region15: #{_lambda_.14} parent=0 // pred_check_branch
    %960 = sbr.rel (0) target = $region17
  $region16: #{_lambda_.14} parent=0 // pred_region
    _
  $region17: #{_lambda_.14} parent=0 // pred_fallthru
    _
  // Predicated region
  $region18: #{_lambda_.14} parent=0 // pred_check
    _
  $region19: #{_lambda_.14} parent=0 // pred_check_branch
    %962 = sbr.rel (0) target = $region21
  $region20: #{_lambda_.14} parent=0 // pred_region
    _
  $region21: #{_lambda_.14} parent=0 // pred_fallthru
    _

// kernel: _lambda_.15
$region0: #{_lambda_.15}
  #allocation0 [shape = 'u32[]', space=smem, size = 0x4, offset = 0x4, fixed_abs, tag = 'smem constant byte address 0x4 - core index']
  #allocation1 [shape = 'u32[144,128]{1,0:T(1,128)}', space=vmem, size = 0x12000, scoped, tag = 'internal scratch']
  %s0 = inlined_call_operand.vmem [shape: bf16[16,1152], index: 0, kind: input, shape index: {}]
  %s1 = inlined_call_operand.vmem [shape: bf16[1152,128], index: 1, kind: input, shape index: {}]
  %s2 = inlined_call_operand.vmem [shape: f32[1,128], index: 2, kind: input, shape index: {}]
  %s3 = inlined_call_operand.vmem [shape: f32[16,128], index: 3, kind: output, shape index: {}]
  %s4 = sld [smem:[#allocation0]]
  $region22: #{_lambda_.15} parent=0
    _
  %s6 = ssub.s32 1, %s4
  %s7 = scalar_select 0, %s6, %s4
  // Predicated region
  $region2: #{_lambda_.15} parent=0 // pred_check
    _
  $region3: #{_lambda_.15} parent=0 // pred_check_branch
    %9 = sbr.rel (0) target = $region5
  $region4: #{_lambda_.15} parent=0 // pred_region
    _
  $region5: #{_lambda_.15} parent=0 // pred_fallthru
    _
  // Predicated region
  $region6: #{_lambda_.15} parent=0 // pred_check
    _
  $region7: #{_lambda_.15} parent=0 // pred_check_branch
    %11 = sbr.rel (0) target = $region9
  $region8: #{_lambda_.15} parent=0 // pred_region
    _
  $region9: #{_lambda_.15} parent=0 // pred_fallthru
    _
  // Predicated region
  $region10: #{_lambda_.15} parent=0 // pred_check
    _
  $region11: #{_lambda_.15} parent=0 // pred_check_branch
    %13 = sbr.rel (0) target = $region13
  $region12: #{_lambda_.15} parent=0 // pred_region
    _
  $region13: #{_lambda_.15} parent=0 // pred_fallthru
    _
  %v15 = vld [vmem:[%s0] sm:$0xff]
  %v16 = vld [vmem:[%s0 + $0x8] sm:$0xff]
  %v17 = vld [vmem:[%s0 + $0x10] sm:$0xff]
  %v18 = vld [vmem:[%s0 + $0x18] sm:$0xff]
  %v19 = vld [vmem:[%s0 + $0x20] sm:$0xf]
  %v20 = vld [vmem:[%s0 + $0x24] sm:$0xff]
  %v21 = vld [vmem:[%s0 + $0x2c] sm:$0xff]
  %v22 = vld [vmem:[%s0 + $0x34] sm:$0xff]
  %v23 = vld [vmem:[%s0 + $0x3c] sm:$0xff]
  %v24 = vld [vmem:[%s0 + $0x44] sm:$0xf]
  %v25 = vld [vmem:[%s1] sm:$0xf]
  %v26 = vld [vmem:[%s1 + $0x4] sm:$0xf]
  %v27 = vld [vmem:[%s1 + $0x8] sm:$0xf]
  %v28 = vld [vmem:[%s1 + $0xc] sm:$0xf]
  %v29 = vld [vmem:[%s1 + $0x10] sm:$0xf]
  %v30 = vld [vmem:[%s1 + $0x14] sm:$0xf]
  %v31 = vld [vmem:[%s1 + $0x18] sm:$0xf]
  %v32 = vld [vmem:[%s1 + $0x1c] sm:$0xf]
  %v33 = vld [vmem:[%s1 + $0x20] sm:$0xf]
  %v34 = vld [vmem:[%s1 + $0x24] sm:$0xf]
  %v35 = vld [vmem:[%s1 + $0x28] sm:$0xf]
  %v36 = vld [vmem:[%s1 + $0x2c] sm:$0xf]
  %v37 = vld [vmem:[%s1 + $0x30] sm:$0xf]
  %v38 = vld [vmem:[%s1 + $0x34] sm:$0xf]
  %v39 = vld [vmem:[%s1 + $0x38] sm:$0xf]
  %v40 = vld [vmem:[%s1 + $0x3c] sm:$0xf]
  %v41 = vld [vmem:[%s1 + $0x40] sm:$0xf]
  %v42 = vld [vmem:[%s1 + $0x44] sm:$0xf]
  %v43 = vld [vmem:[%s1 + $0x48] sm:$0xf]
  %v44 = vld [vmem:[%s1 + $0x4c] sm:$0xf]
  %v45 = vld [vmem:[%s1 + $0x50] sm:$0xf]
  %v46 = vld [vmem:[%s1 + $0x54] sm:$0xf]
  %v47 = vld [vmem:[%s1 + $0x58] sm:$0xf]
  %v48 = vld [vmem:[%s1 + $0x5c] sm:$0xf]
  %v49 = vld [vmem:[%s1 + $0x60] sm:$0xf]
  %v50 = vld [vmem:[%s1 + $0x64] sm:$0xf]
  %v51 = vld [vmem:[%s1 + $0x68] sm:$0xf]
  %v52 = vld [vmem:[%s1 + $0x6c] sm:$0xf]
  %v53 = vld [vmem:[%s1 + $0x70] sm:$0xf]
  %v54 = vld [vmem:[%s1 + $0x74] sm:$0xf]
  %v55 = vld [vmem:[%s1 + $0x78] sm:$0xf]
  %v56 = vld [vmem:[%s1 + $0x7c] sm:$0xf]
  %v57 = vld [vmem:[%s1 + $0x80] sm:$0xf]
  %v58 = vld [vmem:[%s1 + $0x84] sm:$0xf]
  %v59 = vld [vmem:[%s1 + $0x88] sm:$0xf]
  %v60 = vld [vmem:[%s1 + $0x8c] sm:$0xf]
  %v61 = vld [vmem:[%s1 + $0x90] sm:$0xf]
  %v62 = vld [vmem:[%s1 + $0x94] sm:$0xf]
  %v63 = vld [vmem:[%s1 + $0x98] sm:$0xf]
  %v64 = vld [vmem:[%s1 + $0x9c] sm:$0xf]
  %v65 = vld [vmem:[%s1 + $0xa0] sm:$0xf]
  %v66 = vld [vmem:[%s1 + $0xa4] sm:$0xf]
  %v67 = vld [vmem:[%s1 + $0xa8] sm:$0xf]
  %v68 = vld [vmem:[%s1 + $0xac] sm:$0xf]
  %v69 = vld [vmem:[%s1 + $0xb0] sm:$0xf]
  %v70 = vld [vmem:[%s1 + $0xb4] sm:$0xf]
  %v71 = vld [vmem:[%s1 + $0xb8] sm:$0xf]
  %v72 = vld [vmem:[%s1 + $0xbc] sm:$0xf]
  %v73 = vld [vmem:[%s1 + $0xc0] sm:$0xf]
  %v74 = vld [vmem:[%s1 + $0xc4] sm:$0xf]
  %v75 = vld [vmem:[%s1 + $0xc8] sm:$0xf]
  %v76 = vld [vmem:[%s1 + $0xcc] sm:$0xf]
  %v77 = vld [vmem:[%s1 + $0xd0] sm:$0xf]
  %v78 = vld [vmem:[%s1 + $0xd4] sm:$0xf]
  %v79 = vld [vmem:[%s1 + $0xd8] sm:$0xf]
  %v80 = vld [vmem:[%s1 + $0xdc] sm:$0xf]
  %v81 = vld [vmem:[%s1 + $0xe0] sm:$0xf]
  %v82 = vld [vmem:[%s1 + $0xe4] sm:$0xf]
  %v83 = vld [vmem:[%s1 + $0xe8] sm:$0xf]
  %v84 = vld [vmem:[%s1 + $0xec] sm:$0xf]
  %v85 = vld [vmem:[%s1 + $0xf0] sm:$0xf]
  %v86 = vld [vmem:[%s1 + $0xf4] sm:$0xf]
  %v87 = vld [vmem:[%s1 + $0xf8] sm:$0xf]
  %v88 = vld [vmem:[%s1 + $0xfc] sm:$0xf]
  %v89 = vld [vmem:[%s1 + $0x100] sm:$0xf]
  %v90 = vld [vmem:[%s1 + $0x104] sm:$0xf]
  %v91 = vld [vmem:[%s1 + $0x108] sm:$0xf]
  %v92 = vld [vmem:[%s1 + $0x10c] sm:$0xf]
  %v93 = vld [vmem:[%s1 + $0x110] sm:$0xf]
  %v94 = vld [vmem:[%s1 + $0x114] sm:$0xf]
  %v95 = vld [vmem:[%s1 + $0x118] sm:$0xf]
  %v96 = vld [vmem:[%s1 + $0x11c] sm:$0xf]
  %v97 = vld [vmem:[%s1 + $0x120] sm:$0xf]
  %v98 = vld [vmem:[%s1 + $0x124] sm:$0xf]
  %v99 = vld [vmem:[%s1 + $0x128] sm:$0xf]
  %v100 = vld [vmem:[%s1 + $0x12c] sm:$0xf]
  %v101 = vld [vmem:[%s1 + $0x130] sm:$0xf]
  %v102 = vld [vmem:[%s1 + $0x134] sm:$0xf]
  %v103 = vld [vmem:[%s1 + $0x138] sm:$0xf]
  %v104 = vld [vmem:[%s1 + $0x13c] sm:$0xf]
  %v105 = vld [vmem:[%s1 + $0x140] sm:$0xf]
  %v106 = vld [vmem:[%s1 + $0x144] sm:$0xf]
  %v107 = vld [vmem:[%s1 + $0x148] sm:$0xf]
  %v108 = vld [vmem:[%s1 + $0x14c] sm:$0xf]
  %v109 = vld [vmem:[%s1 + $0x150] sm:$0xf]
  %v110 = vld [vmem:[%s1 + $0x154] sm:$0xf]
  %v111 = vld [vmem:[%s1 + $0x158] sm:$0xf]
  %v112 = vld [vmem:[%s1 + $0x15c] sm:$0xf]
  %v113 = vld [vmem:[%s1 + $0x160] sm:$0xf]
  %v114 = vld [vmem:[%s1 + $0x164] sm:$0xf]
  %v115 = vld [vmem:[%s1 + $0x168] sm:$0xf]
  %v116 = vld [vmem:[%s1 + $0x16c] sm:$0xf]
  %v117 = vld [vmem:[%s1 + $0x170] sm:$0xf]
  %v118 = vld [vmem:[%s1 + $0x174] sm:$0xf]
  %v119 = vld [vmem:[%s1 + $0x178] sm:$0xf]
  %v120 = vld [vmem:[%s1 + $0x17c] sm:$0xf]
  %v121 = vld [vmem:[%s1 + $0x180] sm:$0xf]
  %v122 = vld [vmem:[%s1 + $0x184] sm:$0xf]
  %v123 = vld [vmem:[%s1 + $0x188] sm:$0xf]
  %v124 = vld [vmem:[%s1 + $0x18c] sm:$0xf]
  %v125 = vld [vmem:[%s1 + $0x190] sm:$0xf]
  %v126 = vld [vmem:[%s1 + $0x194] sm:$0xf]
  %v127 = vld [vmem:[%s1 + $0x198] sm:$0xf]
  %v128 = vld [vmem:[%s1 + $0x19c] sm:$0xf]
  %v129 = vld [vmem:[%s1 + $0x1a0] sm:$0xf]
  %v130 = vld [vmem:[%s1 + $0x1a4] sm:$0xf]
  %v131 = vld [vmem:[%s1 + $0x1a8] sm:$0xf]
  %v132 = vld [vmem:[%s1 + $0x1ac] sm:$0xf]
  %v133 = vld [vmem:[%s1 + $0x1b0] sm:$0xf]
  %v134 = vld [vmem:[%s1 + $0x1b4] sm:$0xf]
  %v135 = vld [vmem:[%s1 + $0x1b8] sm:$0xf]
  %v136 = vld [vmem:[%s1 + $0x1bc] sm:$0xf]
  %v137 = vld [vmem:[%s1 + $0x1c0] sm:$0xf]
  %v138 = vld [vmem:[%s1 + $0x1c4] sm:$0xf]
  %v139 = vld [vmem:[%s1 + $0x1c8] sm:$0xf]
  %v140 = vld [vmem:[%s1 + $0x1cc] sm:$0xf]
  %v141 = vld [vmem:[%s1 + $0x1d0] sm:$0xf]
  %v142 = vld [vmem:[%s1 + $0x1d4] sm:$0xf]
  %v143 = vld [vmem:[%s1 + $0x1d8] sm:$0xf]
  %v144 = vld [vmem:[%s1 + $0x1dc] sm:$0xf]
  %v145 = vld [vmem:[%s1 + $0x1e0] sm:$0xf]
  %v146 = vld [vmem:[%s1 + $0x1e4] sm:$0xf]
  %v147 = vld [vmem:[%s1 + $0x1e8] sm:$0xf]
  %v148 = vld [vmem:[%s1 + $0x1ec] sm:$0xf]
  %v149 = vld [vmem:[%s1 + $0x1f0] sm:$0xf]
  %v150 = vld [vmem:[%s1 + $0x1f4] sm:$0xf]
  %v151 = vld [vmem:[%s1 + $0x1f8] sm:$0xf]
  %v152 = vld [vmem:[%s1 + $0x1fc] sm:$0xf]
  %v153 = vld [vmem:[%s1 + $0x200] sm:$0xf]
  %v154 = vld [vmem:[%s1 + $0x204] sm:$0xf]
  %v155 = vld [vmem:[%s1 + $0x208] sm:$0xf]
  %v156 = vld [vmem:[%s1 + $0x20c] sm:$0xf]
  %v157 = vld [vmem:[%s1 + $0x210] sm:$0xf]
  %v158 = vld [vmem:[%s1 + $0x214] sm:$0xf]
  %v159 = vld [vmem:[%s1 + $0x218] sm:$0xf]
  %v160 = vld [vmem:[%s1 + $0x21c] sm:$0xf]
  %v161 = vld [vmem:[%s1 + $0x220] sm:$0xf]
  %v162 = vld [vmem:[%s1 + $0x224] sm:$0xf]
  %v163 = vld [vmem:[%s1 + $0x228] sm:$0xf]
  %v164 = vld [vmem:[%s1 + $0x22c] sm:$0xf]
  %v165 = vld [vmem:[%s1 + $0x230] sm:$0xf]
  %v166 = vld [vmem:[%s1 + $0x234] sm:$0xf]
  %v167 = vld [vmem:[%s1 + $0x238] sm:$0xf]
  %v168 = vld [vmem:[%s1 + $0x23c] sm:$0xf]
  %v169 = vld [vmem:[%s2] sm:$0x1]
  %v171 = vlaneseq
  %v172 = vshrl.u32 %v171, 7
  %v173 = vsub.s32 0, %v172
  %v174 = vrot.slane %v169, %v173
  %v186 = vunpack.c.l.b16 %v15
  %v187 = vunpack.c.h.b16 %v15
  %v188 = vunpack.c.l.b16 %v16
  %v189 = vunpack.c.h.b16 %v16
  %v190 = vunpack.c.l.b16 %v17
  %v191 = vunpack.c.h.b16 %v17
  %v192 = vunpack.c.l.b16 %v18
  %v193 = vunpack.c.h.b16 %v18
  %v194 = vunpack.c.l.b16 %v19
  %v195 = vunpack.c.l.b16 %v20
  %v196 = vunpack.c.h.b16 %v20
  %v197 = vunpack.c.l.b16 %v21
  %v198 = vunpack.c.h.b16 %v21
  %v199 = vunpack.c.l.b16 %v22
  %v200 = vunpack.c.h.b16 %v22
  %v201 = vunpack.c.l.b16 %v23
  %v202 = vunpack.c.h.b16 %v23
  %v203 = vunpack.c.l.b16 %v24
  %v204 = vpack.c.b16 %v195, %v186
  %v205 = vpack.c.b16 %v196, %v187
  %v206 = vpack.c.b16 %v197, %v188
  %v207 = vpack.c.b16 %v198, %v189
  %v208 = vpack.c.b16 %v199, %v190
  %v209 = vpack.c.b16 %v200, %v191
  %v210 = vpack.c.b16 %v201, %v192
  %v211 = vpack.c.b16 %v202, %v193
  %v212 = vpack.c.b16 %v203, %v194
  %v366 = vunpack.c.l.b16 %v25
  %v367 = vunpack.c.l.b16 %v26
  %v368 = vunpack.c.l.b16 %v27
  %v369 = vunpack.c.l.b16 %v28
  %v370 = vunpack.c.l.b16 %v29
  %v371 = vunpack.c.l.b16 %v30
  %v372 = vunpack.c.l.b16 %v31
  %v373 = vunpack.c.l.b16 %v32
  %v374 = vunpack.c.l.b16 %v33
  %v375 = vunpack.c.l.b16 %v34
  %v376 = vunpack.c.l.b16 %v35
  %v377 = vunpack.c.l.b16 %v36
  %v378 = vunpack.c.l.b16 %v37
  %v379 = vunpack.c.l.b16 %v38
  %v380 = vunpack.c.l.b16 %v39
  %v381 = vunpack.c.l.b16 %v40
  %v382 = vunpack.c.l.b16 %v41
  %v383 = vunpack.c.l.b16 %v42
  %v384 = vunpack.c.l.b16 %v43
  %v385 = vunpack.c.l.b16 %v44
  %v386 = vunpack.c.l.b16 %v45
  %v387 = vunpack.c.l.b16 %v46
  %v388 = vunpack.c.l.b16 %v47
  %v389 = vunpack.c.l.b16 %v48
  %v390 = vunpack.c.l.b16 %v49
  %v391 = vunpack.c.l.b16 %v50
  %v392 = vunpack.c.l.b16 %v51
  %v393 = vunpack.c.l.b16 %v52
  %v394 = vunpack.c.l.b16 %v53
  %v395 = vunpack.c.l.b16 %v54
  %v396 = vunpack.c.l.b16 %v55
  %v397 = vunpack.c.l.b16 %v56
  %v398 = vunpack.c.l.b16 %v57
  %v399 = vunpack.c.l.b16 %v58
  %v400 = vunpack.c.l.b16 %v59
  %v401 = vunpack.c.l.b16 %v60
  %v402 = vunpack.c.l.b16 %v61
  %v403 = vunpack.c.l.b16 %v62
  %v404 = vunpack.c.l.b16 %v63
  %v405 = vunpack.c.l.b16 %v64
  %v406 = vunpack.c.l.b16 %v65
  %v407 = vunpack.c.l.b16 %v66
  %v408 = vunpack.c.l.b16 %v67
  %v409 = vunpack.c.l.b16 %v68
  %v410 = vunpack.c.l.b16 %v69
  %v411 = vunpack.c.l.b16 %v70
  %v412 = vunpack.c.l.b16 %v71
  %v413 = vunpack.c.l.b16 %v72
  %v414 = vunpack.c.l.b16 %v73
  %v415 = vunpack.c.l.b16 %v74
  %v416 = vunpack.c.l.b16 %v75
  %v417 = vunpack.c.l.b16 %v76
  %v418 = vunpack.c.l.b16 %v77
  %v419 = vunpack.c.l.b16 %v78
  %v420 = vunpack.c.l.b16 %v79
  %v421 = vunpack.c.l.b16 %v80
  %v422 = vunpack.c.l.b16 %v81
  %v423 = vunpack.c.l.b16 %v82
  %v424 = vunpack.c.l.b16 %v83
  %v425 = vunpack.c.l.b16 %v84
  %v426 = vunpack.c.l.b16 %v85
  %v427 = vunpack.c.l.b16 %v86
  %v428 = vunpack.c.l.b16 %v87
  %v429 = vunpack.c.l.b16 %v88
  %v430 = vunpack.c.l.b16 %v89
  %v431 = vunpack.c.l.b16 %v90
  %v432 = vunpack.c.l.b16 %v91
  %v433 = vunpack.c.l.b16 %v92
  %v434 = vunpack.c.l.b16 %v93
  %v435 = vunpack.c.l.b16 %v94
  %v436 = vunpack.c.l.b16 %v95
  %v437 = vunpack.c.l.b16 %v96
  %v438 = vunpack.c.l.b16 %v97
  %v439 = vunpack.c.l.b16 %v98
  %v440 = vunpack.c.l.b16 %v99
  %v441 = vunpack.c.l.b16 %v100
  %v442 = vunpack.c.l.b16 %v101
  %v443 = vunpack.c.l.b16 %v102
  %v444 = vunpack.c.l.b16 %v103
  %v445 = vunpack.c.l.b16 %v104
  %v446 = vunpack.c.l.b16 %v105
  %v447 = vunpack.c.l.b16 %v106
  %v448 = vunpack.c.l.b16 %v107
  %v449 = vunpack.c.l.b16 %v108
  %v450 = vunpack.c.l.b16 %v109
  %v451 = vunpack.c.l.b16 %v110
  %v452 = vunpack.c.l.b16 %v111
  %v453 = vunpack.c.l.b16 %v112
  %v454 = vunpack.c.l.b16 %v113
  %v455 = vunpack.c.l.b16 %v114
  %v456 = vunpack.c.l.b16 %v115
  %v457 = vunpack.c.l.b16 %v116
  %v458 = vunpack.c.l.b16 %v117
  %v459 = vunpack.c.l.b16 %v118
  %v460 = vunpack.c.l.b16 %v119
  %v461 = vunpack.c.l.b16 %v120
  %v462 = vunpack.c.l.b16 %v121
  %v463 = vunpack.c.l.b16 %v122
  %v464 = vunpack.c.l.b16 %v123
  %v465 = vunpack.c.l.b16 %v124
  %v466 = vunpack.c.l.b16 %v125
  %v467 = vunpack.c.l.b16 %v126
  %v468 = vunpack.c.l.b16 %v127
  %v469 = vunpack.c.l.b16 %v128
  %v470 = vunpack.c.l.b16 %v129
  %v471 = vunpack.c.l.b16 %v130
  %v472 = vunpack.c.l.b16 %v131
  %v473 = vunpack.c.l.b16 %v132
  %v474 = vunpack.c.l.b16 %v133
  %v475 = vunpack.c.l.b16 %v134
  %v476 = vunpack.c.l.b16 %v135
  %v477 = vunpack.c.l.b16 %v136
  %v478 = vunpack.c.l.b16 %v137
  %v479 = vunpack.c.l.b16 %v138
  %v480 = vunpack.c.l.b16 %v139
  %v481 = vunpack.c.l.b16 %v140
  %v482 = vunpack.c.l.b16 %v141
  %v483 = vunpack.c.l.b16 %v142
  %v484 = vunpack.c.l.b16 %v143
  %v485 = vunpack.c.l.b16 %v144
  %v486 = vunpack.c.l.b16 %v145
  %v487 = vunpack.c.l.b16 %v146
  %v488 = vunpack.c.l.b16 %v147
  %v489 = vunpack.c.l.b16 %v148
  %v490 = vunpack.c.l.b16 %v149
  %v491 = vunpack.c.l.b16 %v150
  %v492 = vunpack.c.l.b16 %v151
  %v493 = vunpack.c.l.b16 %v152
  %v494 = vunpack.c.l.b16 %v153
  %v495 = vunpack.c.l.b16 %v154
  %v496 = vunpack.c.l.b16 %v155
  %v497 = vunpack.c.l.b16 %v156
  %v498 = vunpack.c.l.b16 %v157
  %v499 = vunpack.c.l.b16 %v158
  %v500 = vunpack.c.l.b16 %v159
  %v501 = vunpack.c.l.b16 %v160
  %v502 = vunpack.c.l.b16 %v161
  %v503 = vunpack.c.l.b16 %v162
  %v504 = vunpack.c.l.b16 %v163
  %v505 = vunpack.c.l.b16 %v164
  %v506 = vunpack.c.l.b16 %v165
  %v507 = vunpack.c.l.b16 %v166
  %v508 = vunpack.c.l.b16 %v167
  %v509 = vunpack.c.l.b16 %v168
  %v510 = vpack.c.b16 %v367, %v366
  %v511 = vpack.c.b16 %v369, %v368
  %v512 = vpack.c.b16 %v371, %v370
  %v513 = vpack.c.b16 %v373, %v372
  %v514 = vpack.c.b16 %v375, %v374
  %v515 = vpack.c.b16 %v377, %v376
  %v516 = vpack.c.b16 %v379, %v378
  %v517 = vpack.c.b16 %v381, %v380
  %v518 = vpack.c.b16 %v383, %v382
  %v519 = vpack.c.b16 %v385, %v384
  %v520 = vpack.c.b16 %v387, %v386
  %v521 = vpack.c.b16 %v389, %v388
  %v522 = vpack.c.b16 %v391, %v390
  %v523 = vpack.c.b16 %v393, %v392
  %v524 = vpack.c.b16 %v395, %v394
  %v525 = vpack.c.b16 %v397, %v396
  %v526 = vpack.c.b16 %v399, %v398
  %v527 = vpack.c.b16 %v401, %v400
  %v528 = vpack.c.b16 %v403, %v402
  %v529 = vpack.c.b16 %v405, %v404
  %v530 = vpack.c.b16 %v407, %v406
  %v531 = vpack.c.b16 %v409, %v408
  %v532 = vpack.c.b16 %v411, %v410
  %v533 = vpack.c.b16 %v413, %v412
  %v534 = vpack.c.b16 %v415, %v414
  %v535 = vpack.c.b16 %v417, %v416
  %v536 = vpack.c.b16 %v419, %v418
  %v537 = vpack.c.b16 %v421, %v420
  %v538 = vpack.c.b16 %v423, %v422
  %v539 = vpack.c.b16 %v425, %v424
  %v540 = vpack.c.b16 %v427, %v426
  %v541 = vpack.c.b16 %v429, %v428
  %v542 = vpack.c.b16 %v431, %v430
  %v543 = vpack.c.b16 %v433, %v432
  %v544 = vpack.c.b16 %v435, %v434
  %v545 = vpack.c.b16 %v437, %v436
  %v546 = vpack.c.b16 %v439, %v438
  %v547 = vpack.c.b16 %v441, %v440
  %v548 = vpack.c.b16 %v443, %v442
  %v549 = vpack.c.b16 %v445, %v444
  %v550 = vpack.c.b16 %v447, %v446
  %v551 = vpack.c.b16 %v449, %v448
  %v552 = vpack.c.b16 %v451, %v450
  %v553 = vpack.c.b16 %v453, %v452
  %v554 = vpack.c.b16 %v455, %v454
  %v555 = vpack.c.b16 %v457, %v456
  %v556 = vpack.c.b16 %v459, %v458
  %v557 = vpack.c.b16 %v461, %v460
  %v558 = vpack.c.b16 %v463, %v462
  %v559 = vpack.c.b16 %v465, %v464
  %v560 = vpack.c.b16 %v467, %v466
  %v561 = vpack.c.b16 %v469, %v468
  %v562 = vpack.c.b16 %v471, %v470
  %v563 = vpack.c.b16 %v473, %v472
  %v564 = vpack.c.b16 %v475, %v474
  %v565 = vpack.c.b16 %v477, %v476
  %v566 = vpack.c.b16 %v479, %v478
  %v567 = vpack.c.b16 %v481, %v480
  %v568 = vpack.c.b16 %v483, %v482
  %v569 = vpack.c.b16 %v485, %v484
  %v570 = vpack.c.b16 %v487, %v486
  %v571 = vpack.c.b16 %v489, %v488
  %v572 = vpack.c.b16 %v491, %v490
  %v573 = vpack.c.b16 %v493, %v492
  %v574 = vpack.c.b16 %v495, %v494
  %v575 = vpack.c.b16 %v497, %v496
  %v576 = vpack.c.b16 %v499, %v498
  %v577 = vpack.c.b16 %v501, %v500
  %v578 = vpack.c.b16 %v503, %v502
  %v579 = vpack.c.b16 %v505, %v504
  %v580 = vpack.c.b16 %v507, %v506
  %v581 = vpack.c.b16 %v509, %v508
  %654 = vmatprep.subr.bf16.mxu0 0
  %655 = vmatpush1.bf16.msra.mxu0 %v510
  %656 = vmatprep.subr.bf16.mxu0 0
  %657 = vmatpush1.bf16.msra.mxu0 %v511
  %658 = vmatprep.subr.bf16.mxu0 0
  %659 = vmatpush1.bf16.msra.mxu0 %v512
  %660 = vmatprep.subr.bf16.mxu0 0
  %661 = vmatpush1.bf16.msra.mxu0 %v513
  %662 = vmatprep.subr.bf16.mxu0 0
  %663 = vmatpush1.bf16.msra.mxu0 %v514
  %664 = vmatprep.subr.bf16.mxu0 0
  %665 = vmatpush1.bf16.msra.mxu0 %v515
  %666 = vmatprep.subr.bf16.mxu0 0
  %667 = vmatpush1.bf16.msra.mxu0 %v516
  %668 = vmatprep.subr.bf16.mxu0 0
  %669 = vmatpush1.bf16.msra.mxu0 %v517
  %670 = vmatprep.subr.bf16.mxu0 0
  %671 = vmatpush1.bf16.msra.mxu0 %v518
  %672 = vmatprep.subr.bf16.mxu0 0
  %673 = vmatpush1.bf16.msra.mxu0 %v519
  %674 = vmatprep.subr.bf16.mxu0 0
  %675 = vmatpush1.bf16.msra.mxu0 %v520
  %676 = vmatprep.subr.bf16.mxu0 0
  %677 = vmatpush1.bf16.msra.mxu0 %v521
  %678 = vmatprep.subr.bf16.mxu0 0
  %679 = vmatpush1.bf16.msra.mxu0 %v522
  %680 = vmatprep.subr.bf16.mxu0 0
  %681 = vmatpush1.bf16.msra.mxu0 %v523
  %682 = vmatprep.subr.bf16.mxu0 0
  %683 = vmatpush1.bf16.msra.mxu0 %v524
  %684 = vmatprep.subr.bf16.mxu0 0
  %685 = vmatpush1.bf16.msra.mxu0 %v525
  %686 = vmatprep.mubr.bf16.mxu0 %v205
  %687 = vmatmul.mubr.bf16.gmra.mrb[0].mxu0 %v204
  %v688 = vpop.f32.mrb[0].mxu0
  %v689 = vadd.f32 %v174, %v688
  %v690 = vpop.f32.mrb[0].mxu0
  %v691 = vpop.f32.mrb[0].mxu0
  %v692 = vadd.f32 %v174, %v691
  %v693 = vpop.f32.mrb[0].mxu0
  %694 = vdwg.mxu0
  %695 = vmatprep.subr.bf16.mxu0 0
  %696 = vmatpush1.bf16.msra.mxu0 %v526
  %697 = vmatprep.subr.bf16.mxu0 0
  %698 = vmatpush1.bf16.msra.mxu0 %v527
  %699 = vmatprep.subr.bf16.mxu0 0
  %700 = vmatpush1.bf16.msra.mxu0 %v528
  %701 = vmatprep.subr.bf16.mxu0 0
  %702 = vmatpush1.bf16.msra.mxu0 %v529
  %703 = vmatprep.subr.bf16.mxu0 0
  %704 = vmatpush1.bf16.msra.mxu0 %v530
  %705 = vmatprep.subr.bf16.mxu0 0
  %706 = vmatpush1.bf16.msra.mxu0 %v531
  %707 = vmatprep.subr.bf16.mxu0 0
  %708 = vmatpush1.bf16.msra.mxu0 %v532
  %709 = vmatprep.subr.bf16.mxu0 0
  %710 = vmatpush1.bf16.msra.mxu0 %v533
  %711 = vmatprep.subr.bf16.mxu0 0
  %712 = vmatpush1.bf16.msra.mxu0 %v534
  %713 = vmatprep.subr.bf16.mxu0 0
  %714 = vmatpush1.bf16.msra.mxu0 %v535
  %715 = vmatprep.subr.bf16.mxu0 0
  %716 = vmatpush1.bf16.msra.mxu0 %v536
  %717 = vmatprep.subr.bf16.mxu0 0
  %718 = vmatpush1.bf16.msra.mxu0 %v537
  %719 = vmatprep.subr.bf16.mxu0 0
  %720 = vmatpush1.bf16.msra.mxu0 %v538
  %721 = vmatprep.subr.bf16.mxu0 0
  %722 = vmatpush1.bf16.msra.mxu0 %v539
  %723 = vmatprep.subr.bf16.mxu0 0
  %724 = vmatpush1.bf16.msra.mxu0 %v540
  %725 = vmatprep.subr.bf16.mxu0 0
  %726 = vmatpush1.bf16.msra.mxu0 %v541
  %727 = vmatprep.mubr.bf16.mxu0 %v207
  %728 = vmatmul.mubr.bf16.gmra.mrb[0].mxu0 %v206
  %v729 = vpop.f32.mrb[0].mxu0
  %v730 = vadd.f32 %v689, %v729
  %v731 = vpop.f32.mrb[0].mxu0
  %v732 = vpop.f32.mrb[0].mxu0
  %v733 = vadd.f32 %v692, %v732
  %v734 = vpop.f32.mrb[0].mxu0
  %735 = vdwg.mxu0
  %736 = vmatprep.subr.bf16.mxu0 0
  %737 = vmatpush1.bf16.msra.mxu0 %v542
  %738 = vmatprep.subr.bf16.mxu0 0
  %739 = vmatpush1.bf16.msra.mxu0 %v543
  %740 = vmatprep.subr.bf16.mxu0 0
  %741 = vmatpush1.bf16.msra.mxu0 %v544
  %742 = vmatprep.subr.bf16.mxu0 0
  %743 = vmatpush1.bf16.msra.mxu0 %v545
  %744 = vmatprep.subr.bf16.mxu0 0
  %745 = vmatpush1.bf16.msra.mxu0 %v546
  %746 = vmatprep.subr.bf16.mxu0 0
  %747 = vmatpush1.bf16.msra.mxu0 %v547
  %748 = vmatprep.subr.bf16.mxu0 0
  %749 = vmatpush1.bf16.msra.mxu0 %v548
  %750 = vmatprep.subr.bf16.mxu0 0
  %751 = vmatpush1.bf16.msra.mxu0 %v549
  %752 = vmatprep.subr.bf16.mxu0 0
  %753 = vmatpush1.bf16.msra.mxu0 %v550
  %754 = vmatprep.subr.bf16.mxu0 0
  %755 = vmatpush1.bf16.msra.mxu0 %v551
  %756 = vmatprep.subr.bf16.mxu0 0
  %757 = vmatpush1.bf16.msra.mxu0 %v552
  %758 = vmatprep.subr.bf16.mxu0 0
  %759 = vmatpush1.bf16.msra.mxu0 %v553
  %760 = vmatprep.subr.bf16.mxu0 0
  %761 = vmatpush1.bf16.msra.mxu0 %v554
  %762 = vmatprep.subr.bf16.mxu0 0
  %763 = vmatpush1.bf16.msra.mxu0 %v555
  %764 = vmatprep.subr.bf16.mxu0 0
  %765 = vmatpush1.bf16.msra.mxu0 %v556
  %766 = vmatprep.subr.bf16.mxu0 0
  %767 = vmatpush1.bf16.msra.mxu0 %v557
  %768 = vmatprep.mubr.bf16.mxu0 %v209
  %769 = vmatmul.mubr.bf16.gmra.mrb[0].mxu0 %v208
  %v770 = vpop.f32.mrb[0].mxu0
  %v771 = vadd.f32 %v730, %v770
  %v772 = vpop.f32.mrb[0].mxu0
  %v773 = vpop.f32.mrb[0].mxu0
  %v774 = vadd.f32 %v733, %v773
  %v775 = vpop.f32.mrb[0].mxu0
  %776 = vdwg.mxu0
  %777 = vmatprep.subr.bf16.mxu0 0
  %778 = vmatpush1.bf16.msra.mxu0 %v558
  %779 = vmatprep.subr.bf16.mxu0 0
  %780 = vmatpush1.bf16.msra.mxu0 %v559
  %781 = vmatprep.subr.bf16.mxu0 0
  %782 = vmatpush1.bf16.msra.mxu0 %v560
  %783 = vmatprep.subr.bf16.mxu0 0
  %784 = vmatpush1.bf16.msra.mxu0 %v561
  %785 = vmatprep.subr.bf16.mxu0 0
  %786 = vmatpush1.bf16.msra.mxu0 %v562
  %787 = vmatprep.subr.bf16.mxu0 0
  %788 = vmatpush1.bf16.msra.mxu0 %v563
  %789 = vmatprep.subr.bf16.mxu0 0
  %790 = vmatpush1.bf16.msra.mxu0 %v564
  %791 = vmatprep.subr.bf16.mxu0 0
  %792 = vmatpush1.bf16.msra.mxu0 %v565
  %793 = vmatprep.subr.bf16.mxu0 0
  %794 = vmatpush1.bf16.msra.mxu0 %v566
  %795 = vmatprep.subr.bf16.mxu0 0
  %796 = vmatpush1.bf16.msra.mxu0 %v567
  %797 = vmatprep.subr.bf16.mxu0 0
  %798 = vmatpush1.bf16.msra.mxu0 %v568
  %799 = vmatprep.subr.bf16.mxu0 0
  %800 = vmatpush1.bf16.msra.mxu0 %v569
  %801 = vmatprep.subr.bf16.mxu0 0
  %802 = vmatpush1.bf16.msra.mxu0 %v570
  %803 = vmatprep.subr.bf16.mxu0 0
  %804 = vmatpush1.bf16.msra.mxu0 %v571
  %805 = vmatprep.subr.bf16.mxu0 0
  %806 = vmatpush1.bf16.msra.mxu0 %v572
  %807 = vmatprep.subr.bf16.mxu0 0
  %808 = vmatpush1.bf16.msra.mxu0 %v573
  %809 = vmatprep.mubr.bf16.mxu0 %v211
  %810 = vmatmul.mubr.bf16.gmra.mrb[0].mxu0 %v210
  %v811 = vpop.f32.mrb[0].mxu0
  %v812 = vadd.f32 %v771, %v811
  %v813 = vpop.f32.mrb[0].mxu0
  %v814 = vpop.f32.mrb[0].mxu0
  %v815 = vadd.f32 %v774, %v814
  %v816 = vpop.f32.mrb[0].mxu0
  %817 = vdwg.mxu0
  %818 = vmatprep.subr.bf16.mxu0 0
  %819 = vmatpush1.bf16.msra.mxu0 %v574
  %820 = vmatprep.subr.bf16.mxu0 0
  %821 = vmatpush1.bf16.msra.mxu0 %v575
  %822 = vmatprep.subr.bf16.mxu0 0
  %823 = vmatpush1.bf16.msra.mxu0 %v576
  %824 = vmatprep.subr.bf16.mxu0 0
  %825 = vmatpush1.bf16.msra.mxu0 %v577
  %826 = vmatprep.subr.bf16.mxu0 0
  %827 = vmatpush1.bf16.msra.mxu0 %v578
  %828 = vmatprep.subr.bf16.mxu0 0
  %829 = vmatpush1.bf16.msra.mxu0 %v579
  %830 = vmatprep.subr.bf16.mxu0 0
  %831 = vmatpush1.bf16.msra.mxu0 %v580
  %832 = vmatprep.subr.bf16.mxu0 0
  %833 = vmatpush1.bf16.msra.mxu0 %v581
  %834 = vmatprep.subr.bf16.mxu0 0
  %835 = vmatpush1.bf16.msra.mxu0 0
  %836 = vmatprep.subr.bf16.mxu0 0
  %837 = vmatpush1.bf16.msra.mxu0 0
  %838 = vmatprep.subr.bf16.mxu0 0
  %839 = vmatpush1.bf16.msra.mxu0 0
  %840 = vmatprep.subr.bf16.mxu0 0
  %841 = vmatpush1.bf16.msra.mxu0 0
  %842 = vmatprep.subr.bf16.mxu0 0
  %843 = vmatpush1.bf16.msra.mxu0 0
  %844 = vmatprep.subr.bf16.mxu0 0
  %845 = vmatpush1.bf16.msra.mxu0 0
  %846 = vmatprep.subr.bf16.mxu0 0
  %847 = vmatpush1.bf16.msra.mxu0 0
  %848 = vmatprep.subr.bf16.mxu0 0
  %849 = vmatpush1.bf16.msra.mxu0 0
  %850 = vmatprep.mubr.bf16.mxu0 0
  %851 = vmatmul.mubr.bf16.gmra.mrb[0].mxu0 %v212
  %v852 = vpop.f32.mrb[0].mxu0
  %v853 = vadd.f32 %v812, %v852
  %v854 = vpop.f32.mrb[0].mxu0
  %v855 = vpop.f32.mrb[0].mxu0
  %v856 = vadd.f32 %v815, %v855
  %v857 = vpop.f32.mrb[0].mxu0
  %858 = vdwg.mxu0
  %859 = vst [vmem:[%s3] sm:$0xff] %v853
  %860 = vst [vmem:[%s3 + $0x8] sm:$0xff] %v856
  // Predicated region
  $region14: #{_lambda_.15} parent=0 // pred_check
    _
  $region15: #{_lambda_.15} parent=0 // pred_check_branch
    %862 = sbr.rel (0) target = $region17
  $region16: #{_lambda_.15} parent=0 // pred_region
    _
  $region17: #{_lambda_.15} parent=0 // pred_fallthru
    _
  // Predicated region
  $region18: #{_lambda_.15} parent=0 // pred_check
    _
  $region19: #{_lambda_.15} parent=0 // pred_check_branch
    %864 = sbr.rel (0) target = $region21
  $region20: #{_lambda_.15} parent=0 // pred_region
    _
  $region21: #{_lambda_.15} parent=0 // pred_fallthru
    _

// kernel: _lambda_.16
$region0: #{_lambda_.16}
  #allocation0 [shape = 'u32[]', space=smem, size = 0x4, offset = 0x4, fixed_abs, tag = 'smem constant byte address 0x4 - core index']
  #allocation1 [shape = 'u32[144,128]{1,0:T(1,128)}', space=vmem, size = 0x12000, scoped, tag = 'internal scratch']
  %s0 = inlined_call_operand.vmem [shape: bf16[16,1152], index: 0, kind: input, shape index: {}]
  %s1 = inlined_call_operand.vmem [shape: bf16[1152,128], index: 1, kind: input, shape index: {}]
  %s2 = inlined_call_operand.vmem [shape: f32[1,128], index: 2, kind: input, shape index: {}]
  %s3 = inlined_call_operand.vmem [shape: f32[16,128], index: 3, kind: output, shape index: {}]
  %s4 = sld [smem:[#allocation0]]
  $region22: #{_lambda_.16} parent=0
    _
  %s6 = ssub.s32 1, %s4
  %s7 = scalar_select 0, %s6, %s4
  // Predicated region
  $region2: #{_lambda_.16} parent=0 // pred_check
    _
  $region3: #{_lambda_.16} parent=0 // pred_check_branch
    %9 = sbr.rel (0) target = $region5
  $region4: #{_lambda_.16} parent=0 // pred_region
    _
  $region5: #{_lambda_.16} parent=0 // pred_fallthru
    _
  // Predicated region
  $region6: #{_lambda_.16} parent=0 // pred_check
    _
  $region7: #{_lambda_.16} parent=0 // pred_check_branch
    %11 = sbr.rel (0) target = $region9
  $region8: #{_lambda_.16} parent=0 // pred_region
    _
  $region9: #{_lambda_.16} parent=0 // pred_fallthru
    _
  // Predicated region
  $region10: #{_lambda_.16} parent=0 // pred_check
    _
  $region11: #{_lambda_.16} parent=0 // pred_check_branch
    %13 = sbr.rel (0) target = $region13
  $region12: #{_lambda_.16} parent=0 // pred_region
    _
  $region13: #{_lambda_.16} parent=0 // pred_fallthru
    _
  %v15 = vld [vmem:[%s0] sm:$0xff]
  %v16 = vld [vmem:[%s0 + $0x8] sm:$0xff]
  %v17 = vld [vmem:[%s0 + $0x10] sm:$0xff]
  %v18 = vld [vmem:[%s0 + $0x18] sm:$0xff]
  %v19 = vld [vmem:[%s0 + $0x20] sm:$0xf]
  %v20 = vld [vmem:[%s0 + $0x24] sm:$0xff]
  %v21 = vld [vmem:[%s0 + $0x2c] sm:$0xff]
  %v22 = vld [vmem:[%s0 + $0x34] sm:$0xff]
  %v23 = vld [vmem:[%s0 + $0x3c] sm:$0xff]
  %v24 = vld [vmem:[%s0 + $0x44] sm:$0xf]
  %v25 = vld [vmem:[%s1] sm:$0xf]
  %v26 = vld [vmem:[%s1 + $0x4] sm:$0xf]
  %v27 = vld [vmem:[%s1 + $0x8] sm:$0xf]
  %v28 = vld [vmem:[%s1 + $0xc] sm:$0xf]
  %v29 = vld [vmem:[%s1 + $0x10] sm:$0xf]
  %v30 = vld [vmem:[%s1 + $0x14] sm:$0xf]
  %v31 = vld [vmem:[%s1 + $0x18] sm:$0xf]
  %v32 = vld [vmem:[%s1 + $0x1c] sm:$0xf]
  %v33 = vld [vmem:[%s1 + $0x20] sm:$0xf]
  %v34 = vld [vmem:[%s1 + $0x24] sm:$0xf]
  %v35 = vld [vmem:[%s1 + $0x28] sm:$0xf]
  %v36 = vld [vmem:[%s1 + $0x2c] sm:$0xf]
  %v37 = vld [vmem:[%s1 + $0x30] sm:$0xf]
  %v38 = vld [vmem:[%s1 + $0x34] sm:$0xf]
  %v39 = vld [vmem:[%s1 + $0x38] sm:$0xf]
  %v40 = vld [vmem:[%s1 + $0x3c] sm:$0xf]
  %v41 = vld [vmem:[%s1 + $0x40] sm:$0xf]
  %v42 = vld [vmem:[%s1 + $0x44] sm:$0xf]
  %v43 = vld [vmem:[%s1 + $0x48] sm:$0xf]
  %v44 = vld [vmem:[%s1 + $0x4c] sm:$0xf]
  %v45 = vld [vmem:[%s1 + $0x50] sm:$0xf]
  %v46 = vld [vmem:[%s1 + $0x54] sm:$0xf]
  %v47 = vld [vmem:[%s1 + $0x58] sm:$0xf]
  %v48 = vld [vmem:[%s1 + $0x5c] sm:$0xf]
  %v49 = vld [vmem:[%s1 + $0x60] sm:$0xf]
  %v50 = vld [vmem:[%s1 + $0x64] sm:$0xf]
  %v51 = vld [vmem:[%s1 + $0x68] sm:$0xf]
  %v52 = vld [vmem:[%s1 + $0x6c] sm:$0xf]
  %v53 = vld [vmem:[%s1 + $0x70] sm:$0xf]
  %v54 = vld [vmem:[%s1 + $0x74] sm:$0xf]
  %v55 = vld [vmem:[%s1 + $0x78] sm:$0xf]
  %v56 = vld [vmem:[%s1 + $0x7c] sm:$0xf]
  %v57 = vld [vmem:[%s1 + $0x80] sm:$0xf]
  %v58 = vld [vmem:[%s1 + $0x84] sm:$0xf]
  %v59 = vld [vmem:[%s1 + $0x88] sm:$0xf]
  %v60 = vld [vmem:[%s1 + $0x8c] sm:$0xf]
  %v61 = vld [vmem:[%s1 + $0x90] sm:$0xf]
  %v62 = vld [vmem:[%s1 + $0x94] sm:$0xf]
  %v63 = vld [vmem:[%s1 + $0x98] sm:$0xf]
  %v64 = vld [vmem:[%s1 + $0x9c] sm:$0xf]
  %v65 = vld [vmem:[%s1 + $0xa0] sm:$0xf]
  %v66 = vld [vmem:[%s1 + $0xa4] sm:$0xf]
  %v67 = vld [vmem:[%s1 + $0xa8] sm:$0xf]
  %v68 = vld [vmem:[%s1 + $0xac] sm:$0xf]
  %v69 = vld [vmem:[%s1 + $0xb0] sm:$0xf]
  %v70 = vld [vmem:[%s1 + $0xb4] sm:$0xf]
  %v71 = vld [vmem:[%s1 + $0xb8] sm:$0xf]
  %v72 = vld [vmem:[%s1 + $0xbc] sm:$0xf]
  %v73 = vld [vmem:[%s1 + $0xc0] sm:$0xf]
  %v74 = vld [vmem:[%s1 + $0xc4] sm:$0xf]
  %v75 = vld [vmem:[%s1 + $0xc8] sm:$0xf]
  %v76 = vld [vmem:[%s1 + $0xcc] sm:$0xf]
  %v77 = vld [vmem:[%s1 + $0xd0] sm:$0xf]
  %v78 = vld [vmem:[%s1 + $0xd4] sm:$0xf]
  %v79 = vld [vmem:[%s1 + $0xd8] sm:$0xf]
  %v80 = vld [vmem:[%s1 + $0xdc] sm:$0xf]
  %v81 = vld [vmem:[%s1 + $0xe0] sm:$0xf]
  %v82 = vld [vmem:[%s1 + $0xe4] sm:$0xf]
  %v83 = vld [vmem:[%s1 + $0xe8] sm:$0xf]
  %v84 = vld [vmem:[%s1 + $0xec] sm:$0xf]
  %v85 = vld [vmem:[%s1 + $0xf0] sm:$0xf]
  %v86 = vld [vmem:[%s1 + $0xf4] sm:$0xf]
  %v87 = vld [vmem:[%s1 + $0xf8] sm:$0xf]
  %v88 = vld [vmem:[%s1 + $0xfc] sm:$0xf]
  %v89 = vld [vmem:[%s1 + $0x100] sm:$0xf]
  %v90 = vld [vmem:[%s1 + $0x104] sm:$0xf]
  %v91 = vld [vmem:[%s1 + $0x108] sm:$0xf]
  %v92 = vld [vmem:[%s1 + $0x10c] sm:$0xf]
  %v93 = vld [vmem:[%s1 + $0x110] sm:$0xf]
  %v94 = vld [vmem:[%s1 + $0x114] sm:$0xf]
  %v95 = vld [vmem:[%s1 + $0x118] sm:$0xf]
  %v96 = vld [vmem:[%s1 + $0x11c] sm:$0xf]
  %v97 = vld [vmem:[%s1 + $0x120] sm:$0xf]
  %v98 = vld [vmem:[%s1 + $0x124] sm:$0xf]
  %v99 = vld [vmem:[%s1 + $0x128] sm:$0xf]
  %v100 = vld [vmem:[%s1 + $0x12c] sm:$0xf]
  %v101 = vld [vmem:[%s1 + $0x130] sm:$0xf]
  %v102 = vld [vmem:[%s1 + $0x134] sm:$0xf]
  %v103 = vld [vmem:[%s1 + $0x138] sm:$0xf]
  %v104 = vld [vmem:[%s1 + $0x13c] sm:$0xf]
  %v105 = vld [vmem:[%s1 + $0x140] sm:$0xf]
  %v106 = vld [vmem:[%s1 + $0x144] sm:$0xf]
  %v107 = vld [vmem:[%s1 + $0x148] sm:$0xf]
  %v108 = vld [vmem:[%s1 + $0x14c] sm:$0xf]
  %v109 = vld [vmem:[%s1 + $0x150] sm:$0xf]
  %v110 = vld [vmem:[%s1 + $0x154] sm:$0xf]
  %v111 = vld [vmem:[%s1 + $0x158] sm:$0xf]
  %v112 = vld [vmem:[%s1 + $0x15c] sm:$0xf]
  %v113 = vld [vmem:[%s1 + $0x160] sm:$0xf]
  %v114 = vld [vmem:[%s1 + $0x164] sm:$0xf]
  %v115 = vld [vmem:[%s1 + $0x168] sm:$0xf]
  %v116 = vld [vmem:[%s1 + $0x16c] sm:$0xf]
  %v117 = vld [vmem:[%s1 + $0x170] sm:$0xf]
  %v118 = vld [vmem:[%s1 + $0x174] sm:$0xf]
  %v119 = vld [vmem:[%s1 + $0x178] sm:$0xf]
  %v120 = vld [vmem:[%s1 + $0x17c] sm:$0xf]
  %v121 = vld [vmem:[%s1 + $0x180] sm:$0xf]
  %v122 = vld [vmem:[%s1 + $0x184] sm:$0xf]
  %v123 = vld [vmem:[%s1 + $0x188] sm:$0xf]
  %v124 = vld [vmem:[%s1 + $0x18c] sm:$0xf]
  %v125 = vld [vmem:[%s1 + $0x190] sm:$0xf]
  %v126 = vld [vmem:[%s1 + $0x194] sm:$0xf]
  %v127 = vld [vmem:[%s1 + $0x198] sm:$0xf]
  %v128 = vld [vmem:[%s1 + $0x19c] sm:$0xf]
  %v129 = vld [vmem:[%s1 + $0x1a0] sm:$0xf]
  %v130 = vld [vmem:[%s1 + $0x1a4] sm:$0xf]
  %v131 = vld [vmem:[%s1 + $0x1a8] sm:$0xf]
  %v132 = vld [vmem:[%s1 + $0x1ac] sm:$0xf]
  %v133 = vld [vmem:[%s1 + $0x1b0] sm:$0xf]
  %v134 = vld [vmem:[%s1 + $0x1b4] sm:$0xf]
  %v135 = vld [vmem:[%s1 + $0x1b8] sm:$0xf]
  %v136 = vld [vmem:[%s1 + $0x1bc] sm:$0xf]
  %v137 = vld [vmem:[%s1 + $0x1c0] sm:$0xf]
  %v138 = vld [vmem:[%s1 + $0x1c4] sm:$0xf]
  %v139 = vld [vmem:[%s1 + $0x1c8] sm:$0xf]
  %v140 = vld [vmem:[%s1 + $0x1cc] sm:$0xf]
  %v141 = vld [vmem:[%s1 + $0x1d0] sm:$0xf]
  %v142 = vld [vmem:[%s1 + $0x1d4] sm:$0xf]
  %v143 = vld [vmem:[%s1 + $0x1d8] sm:$0xf]
  %v144 = vld [vmem:[%s1 + $0x1dc] sm:$0xf]
  %v145 = vld [vmem:[%s1 + $0x1e0] sm:$0xf]
  %v146 = vld [vmem:[%s1 + $0x1e4] sm:$0xf]
  %v147 = vld [vmem:[%s1 + $0x1e8] sm:$0xf]
  %v148 = vld [vmem:[%s1 + $0x1ec] sm:$0xf]
  %v149 = vld [vmem:[%s1 + $0x1f0] sm:$0xf]
  %v150 = vld [vmem:[%s1 + $0x1f4] sm:$0xf]
  %v151 = vld [vmem:[%s1 + $0x1f8] sm:$0xf]
  %v152 = vld [vmem:[%s1 + $0x1fc] sm:$0xf]
  %v153 = vld [vmem:[%s1 + $0x200] sm:$0xf]
  %v154 = vld [vmem:[%s1 + $0x204] sm:$0xf]
  %v155 = vld [vmem:[%s1 + $0x208] sm:$0xf]
  %v156 = vld [vmem:[%s1 + $0x20c] sm:$0xf]
  %v157 = vld [vmem:[%s1 + $0x210] sm:$0xf]
  %v158 = vld [vmem:[%s1 + $0x214] sm:$0xf]
  %v159 = vld [vmem:[%s1 + $0x218] sm:$0xf]
  %v160 = vld [vmem:[%s1 + $0x21c] sm:$0xf]
  %v161 = vld [vmem:[%s1 + $0x220] sm:$0xf]
  %v162 = vld [vmem:[%s1 + $0x224] sm:$0xf]
  %v163 = vld [vmem:[%s1 + $0x228] sm:$0xf]
  %v164 = vld [vmem:[%s1 + $0x22c] sm:$0xf]
  %v165 = vld [vmem:[%s1 + $0x230] sm:$0xf]
  %v166 = vld [vmem:[%s1 + $0x234] sm:$0xf]
  %v167 = vld [vmem:[%s1 + $0x238] sm:$0xf]
  %v168 = vld [vmem:[%s1 + $0x23c] sm:$0xf]
  %v169 = vld [vmem:[%s2] sm:$0x1]
  %v171 = vlaneseq
  %v172 = vshrl.u32 %v171, 7
  %v173 = vsub.s32 0, %v172
  %v174 = vrot.slane %v169, %v173
  %v186 = vunpack.c.l.b16 %v15
  %v187 = vunpack.c.h.b16 %v15
  %v188 = vunpack.c.l.b16 %v16
  %v189 = vunpack.c.h.b16 %v16
  %v190 = vunpack.c.l.b16 %v17
  %v191 = vunpack.c.h.b16 %v17
  %v192 = vunpack.c.l.b16 %v18
  %v193 = vunpack.c.h.b16 %v18
  %v194 = vunpack.c.l.b16 %v19
  %v195 = vunpack.c.l.b16 %v20
  %v196 = vunpack.c.h.b16 %v20
  %v197 = vunpack.c.l.b16 %v21
  %v198 = vunpack.c.h.b16 %v21
  %v199 = vunpack.c.l.b16 %v22
  %v200 = vunpack.c.h.b16 %v22
  %v201 = vunpack.c.l.b16 %v23
  %v202 = vunpack.c.h.b16 %v23
  %v203 = vunpack.c.l.b16 %v24
  %v204 = vpack.c.b16 %v195, %v186
  %v205 = vpack.c.b16 %v196, %v187
  %v206 = vpack.c.b16 %v197, %v188
  %v207 = vpack.c.b16 %v198, %v189
  %v208 = vpack.c.b16 %v199, %v190
  %v209 = vpack.c.b16 %v200, %v191
  %v210 = vpack.c.b16 %v201, %v192
  %v211 = vpack.c.b16 %v202, %v193
  %v212 = vpack.c.b16 %v203, %v194
  %v366 = vunpack.c.l.b16 %v25
  %v367 = vunpack.c.l.b16 %v26
  %v368 = vunpack.c.l.b16 %v27
  %v369 = vunpack.c.l.b16 %v28
  %v370 = vunpack.c.l.b16 %v29
  %v371 = vunpack.c.l.b16 %v30
  %v372 = vunpack.c.l.b16 %v31
  %v373 = vunpack.c.l.b16 %v32
  %v374 = vunpack.c.l.b16 %v33
  %v375 = vunpack.c.l.b16 %v34
  %v376 = vunpack.c.l.b16 %v35
  %v377 = vunpack.c.l.b16 %v36
  %v378 = vunpack.c.l.b16 %v37
  %v379 = vunpack.c.l.b16 %v38
  %v380 = vunpack.c.l.b16 %v39
  %v381 = vunpack.c.l.b16 %v40
  %v382 = vunpack.c.l.b16 %v41
  %v383 = vunpack.c.l.b16 %v42
  %v384 = vunpack.c.l.b16 %v43
  %v385 = vunpack.c.l.b16 %v44
  %v386 = vunpack.c.l.b16 %v45
  %v387 = vunpack.c.l.b16 %v46
  %v388 = vunpack.c.l.b16 %v47
  %v389 = vunpack.c.l.b16 %v48
  %v390 = vunpack.c.l.b16 %v49
  %v391 = vunpack.c.l.b16 %v50
  %v392 = vunpack.c.l.b16 %v51
  %v393 = vunpack.c.l.b16 %v52
  %v394 = vunpack.c.l.b16 %v53
  %v395 = vunpack.c.l.b16 %v54
  %v396 = vunpack.c.l.b16 %v55
  %v397 = vunpack.c.l.b16 %v56
  %v398 = vunpack.c.l.b16 %v57
  %v399 = vunpack.c.l.b16 %v58
  %v400 = vunpack.c.l.b16 %v59
  %v401 = vunpack.c.l.b16 %v60
  %v402 = vunpack.c.l.b16 %v61
  %v403 = vunpack.c.l.b16 %v62
  %v404 = vunpack.c.l.b16 %v63
  %v405 = vunpack.c.l.b16 %v64
  %v406 = vunpack.c.l.b16 %v65
  %v407 = vunpack.c.l.b16 %v66
  %v408 = vunpack.c.l.b16 %v67
  %v409 = vunpack.c.l.b16 %v68
  %v410 = vunpack.c.l.b16 %v69
  %v411 = vunpack.c.l.b16 %v70
  %v412 = vunpack.c.l.b16 %v71
  %v413 = vunpack.c.l.b16 %v72
  %v414 = vunpack.c.l.b16 %v73
  %v415 = vunpack.c.l.b16 %v74
  %v416 = vunpack.c.l.b16 %v75
  %v417 = vunpack.c.l.b16 %v76
  %v418 = vunpack.c.l.b16 %v77
  %v419 = vunpack.c.l.b16 %v78
  %v420 = vunpack.c.l.b16 %v79
  %v421 = vunpack.c.l.b16 %v80
  %v422 = vunpack.c.l.b16 %v81
  %v423 = vunpack.c.l.b16 %v82
  %v424 = vunpack.c.l.b16 %v83
  %v425 = vunpack.c.l.b16 %v84
  %v426 = vunpack.c.l.b16 %v85
  %v427 = vunpack.c.l.b16 %v86
  %v428 = vunpack.c.l.b16 %v87
  %v429 = vunpack.c.l.b16 %v88
  %v430 = vunpack.c.l.b16 %v89
  %v431 = vunpack.c.l.b16 %v90
  %v432 = vunpack.c.l.b16 %v91
  %v433 = vunpack.c.l.b16 %v92
  %v434 = vunpack.c.l.b16 %v93
  %v435 = vunpack.c.l.b16 %v94
  %v436 = vunpack.c.l.b16 %v95
  %v437 = vunpack.c.l.b16 %v96
  %v438 = vunpack.c.l.b16 %v97
  %v439 = vunpack.c.l.b16 %v98
  %v440 = vunpack.c.l.b16 %v99
  %v441 = vunpack.c.l.b16 %v100
  %v442 = vunpack.c.l.b16 %v101
  %v443 = vunpack.c.l.b16 %v102
  %v444 = vunpack.c.l.b16 %v103
  %v445 = vunpack.c.l.b16 %v104
  %v446 = vunpack.c.l.b16 %v105
  %v447 = vunpack.c.l.b16 %v106
  %v448 = vunpack.c.l.b16 %v107
  %v449 = vunpack.c.l.b16 %v108
  %v450 = vunpack.c.l.b16 %v109
  %v451 = vunpack.c.l.b16 %v110
  %v452 = vunpack.c.l.b16 %v111
  %v453 = vunpack.c.l.b16 %v112
  %v454 = vunpack.c.l.b16 %v113
  %v455 = vunpack.c.l.b16 %v114
  %v456 = vunpack.c.l.b16 %v115
  %v457 = vunpack.c.l.b16 %v116
  %v458 = vunpack.c.l.b16 %v117
  %v459 = vunpack.c.l.b16 %v118
  %v460 = vunpack.c.l.b16 %v119
  %v461 = vunpack.c.l.b16 %v120
  %v462 = vunpack.c.l.b16 %v121
  %v463 = vunpack.c.l.b16 %v122
  %v464 = vunpack.c.l.b16 %v123
  %v465 = vunpack.c.l.b16 %v124
  %v466 = vunpack.c.l.b16 %v125
  %v467 = vunpack.c.l.b16 %v126
  %v468 = vunpack.c.l.b16 %v127
  %v469 = vunpack.c.l.b16 %v128
  %v470 = vunpack.c.l.b16 %v129
  %v471 = vunpack.c.l.b16 %v130
  %v472 = vunpack.c.l.b16 %v131
  %v473 = vunpack.c.l.b16 %v132
  %v474 = vunpack.c.l.b16 %v133
  %v475 = vunpack.c.l.b16 %v134
  %v476 = vunpack.c.l.b16 %v135
  %v477 = vunpack.c.l.b16 %v136
  %v478 = vunpack.c.l.b16 %v137
  %v479 = vunpack.c.l.b16 %v138
  %v480 = vunpack.c.l.b16 %v139
  %v481 = vunpack.c.l.b16 %v140
  %v482 = vunpack.c.l.b16 %v141
  %v483 = vunpack.c.l.b16 %v142
  %v484 = vunpack.c.l.b16 %v143
  %v485 = vunpack.c.l.b16 %v144
  %v486 = vunpack.c.l.b16 %v145
  %v487 = vunpack.c.l.b16 %v146
  %v488 = vunpack.c.l.b16 %v147
  %v489 = vunpack.c.l.b16 %v148
  %v490 = vunpack.c.l.b16 %v149
  %v491 = vunpack.c.l.b16 %v150
  %v492 = vunpack.c.l.b16 %v151
  %v493 = vunpack.c.l.b16 %v152
  %v494 = vunpack.c.l.b16 %v153
  %v495 = vunpack.c.l.b16 %v154
  %v496 = vunpack.c.l.b16 %v155
  %v497 = vunpack.c.l.b16 %v156
  %v498 = vunpack.c.l.b16 %v157
  %v499 = vunpack.c.l.b16 %v158
  %v500 = vunpack.c.l.b16 %v159
  %v501 = vunpack.c.l.b16 %v160
  %v502 = vunpack.c.l.b16 %v161
  %v503 = vunpack.c.l.b16 %v162
  %v504 = vunpack.c.l.b16 %v163
  %v505 = vunpack.c.l.b16 %v164
  %v506 = vunpack.c.l.b16 %v165
  %v507 = vunpack.c.l.b16 %v166
  %v508 = vunpack.c.l.b16 %v167
  %v509 = vunpack.c.l.b16 %v168
  %v510 = vpack.c.b16 %v367, %v366
  %v511 = vpack.c.b16 %v369, %v368
  %v512 = vpack.c.b16 %v371, %v370
  %v513 = vpack.c.b16 %v373, %v372
  %v514 = vpack.c.b16 %v375, %v374
  %v515 = vpack.c.b16 %v377, %v376
  %v516 = vpack.c.b16 %v379, %v378
  %v517 = vpack.c.b16 %v381, %v380
  %v518 = vpack.c.b16 %v383, %v382
  %v519 = vpack.c.b16 %v385, %v384
  %v520 = vpack.c.b16 %v387, %v386
  %v521 = vpack.c.b16 %v389, %v388
  %v522 = vpack.c.b16 %v391, %v390
  %v523 = vpack.c.b16 %v393, %v392
  %v524 = vpack.c.b16 %v395, %v394
  %v525 = vpack.c.b16 %v397, %v396
  %v526 = vpack.c.b16 %v399, %v398
  %v527 = vpack.c.b16 %v401, %v400
  %v528 = vpack.c.b16 %v403, %v402
  %v529 = vpack.c.b16 %v405, %v404
  %v530 = vpack.c.b16 %v407, %v406
  %v531 = vpack.c.b16 %v409, %v408
  %v532 = vpack.c.b16 %v411, %v410
  %v533 = vpack.c.b16 %v413, %v412
  %v534 = vpack.c.b16 %v415, %v414
  %v535 = vpack.c.b16 %v417, %v416
  %v536 = vpack.c.b16 %v419, %v418
  %v537 = vpack.c.b16 %v421, %v420
  %v538 = vpack.c.b16 %v423, %v422
  %v539 = vpack.c.b16 %v425, %v424
  %v540 = vpack.c.b16 %v427, %v426
  %v541 = vpack.c.b16 %v429, %v428
  %v542 = vpack.c.b16 %v431, %v430
  %v543 = vpack.c.b16 %v433, %v432
  %v544 = vpack.c.b16 %v435, %v434
  %v545 = vpack.c.b16 %v437, %v436
  %v546 = vpack.c.b16 %v439, %v438
  %v547 = vpack.c.b16 %v441, %v440
  %v548 = vpack.c.b16 %v443, %v442
  %v549 = vpack.c.b16 %v445, %v444
  %v550 = vpack.c.b16 %v447, %v446
  %v551 = vpack.c.b16 %v449, %v448
  %v552 = vpack.c.b16 %v451, %v450
  %v553 = vpack.c.b16 %v453, %v452
  %v554 = vpack.c.b16 %v455, %v454
  %v555 = vpack.c.b16 %v457, %v456
  %v556 = vpack.c.b16 %v459, %v458
  %v557 = vpack.c.b16 %v461, %v460
  %v558 = vpack.c.b16 %v463, %v462
  %v559 = vpack.c.b16 %v465, %v464
  %v560 = vpack.c.b16 %v467, %v466
  %v561 = vpack.c.b16 %v469, %v468
  %v562 = vpack.c.b16 %v471, %v470
  %v563 = vpack.c.b16 %v473, %v472
  %v564 = vpack.c.b16 %v475, %v474
  %v565 = vpack.c.b16 %v477, %v476
  %v566 = vpack.c.b16 %v479, %v478
  %v567 = vpack.c.b16 %v481, %v480
  %v568 = vpack.c.b16 %v483, %v482
  %v569 = vpack.c.b16 %v485, %v484
  %v570 = vpack.c.b16 %v487, %v486
  %v571 = vpack.c.b16 %v489, %v488
  %v572 = vpack.c.b16 %v491, %v490
  %v573 = vpack.c.b16 %v493, %v492
  %v574 = vpack.c.b16 %v495, %v494
  %v575 = vpack.c.b16 %v497, %v496
  %v576 = vpack.c.b16 %v499, %v498
  %v577 = vpack.c.b16 %v501, %v500
  %v578 = vpack.c.b16 %v503, %v502
  %v579 = vpack.c.b16 %v505, %v504
  %v580 = vpack.c.b16 %v507, %v506
  %v581 = vpack.c.b16 %v509, %v508
  %654 = vmatprep.subr.bf16.mxu0 0
  %655 = vmatpush1.bf16.msra.mxu0 %v510
  %656 = vmatprep.subr.bf16.mxu0 0
  %657 = vmatpush1.bf16.msra.mxu0 %v511
  %658 = vmatprep.subr.bf16.mxu0 0
  %659 = vmatpush1.bf16.msra.mxu0 %v512
  %660 = vmatprep.subr.bf16.mxu0 0
  %661 = vmatpush1.bf16.msra.mxu0 %v513
  %662 = vmatprep.subr.bf16.mxu0 0
  %663 = vmatpush1.bf16.msra.mxu0 %v514
  %664 = vmatprep.subr.bf16.mxu0 0
  %665 = vmatpush1.bf16.msra.mxu0 %v515
  %666 = vmatprep.subr.bf16.mxu0 0
  %667 = vmatpush1.bf16.msra.mxu0 %v516
  %668 = vmatprep.subr.bf16.mxu0 0
  %669 = vmatpush1.bf16.msra.mxu0 %v517
  %670 = vmatprep.subr.bf16.mxu0 0
  %671 = vmatpush1.bf16.msra.mxu0 %v518
  %672 = vmatprep.subr.bf16.mxu0 0
  %673 = vmatpush1.bf16.msra.mxu0 %v519
  %674 = vmatprep.subr.bf16.mxu0 0
  %675 = vmatpush1.bf16.msra.mxu0 %v520
  %676 = vmatprep.subr.bf16.mxu0 0
  %677 = vmatpush1.bf16.msra.mxu0 %v521
  %678 = vmatprep.subr.bf16.mxu0 0
  %679 = vmatpush1.bf16.msra.mxu0 %v522
  %680 = vmatprep.subr.bf16.mxu0 0
  %681 = vmatpush1.bf16.msra.mxu0 %v523
  %682 = vmatprep.subr.bf16.mxu0 0
  %683 = vmatpush1.bf16.msra.mxu0 %v524
  %684 = vmatprep.subr.bf16.mxu0 0
  %685 = vmatpush1.bf16.msra.mxu0 %v525
  %686 = vmatprep.mubr.bf16.mxu0 %v205
  %687 = vmatmul.mubr.bf16.gmra.mrb[0].mxu0 %v204
  %v688 = vpop.f32.mrb[0].mxu0
  %v689 = vadd.f32 %v174, %v688
  %v690 = vpop.f32.mrb[0].mxu0
  %v691 = vpop.f32.mrb[0].mxu0
  %v692 = vadd.f32 %v174, %v691
  %v693 = vpop.f32.mrb[0].mxu0
  %694 = vdwg.mxu0
  %695 = vmatprep.subr.bf16.mxu0 0
  %696 = vmatpush1.bf16.msra.mxu0 %v526
  %697 = vmatprep.subr.bf16.mxu0 0
  %698 = vmatpush1.bf16.msra.mxu0 %v527
  %699 = vmatprep.subr.bf16.mxu0 0
  %700 = vmatpush1.bf16.msra.mxu0 %v528
  %701 = vmatprep.subr.bf16.mxu0 0
  %702 = vmatpush1.bf16.msra.mxu0 %v529
  %703 = vmatprep.subr.bf16.mxu0 0
  %704 = vmatpush1.bf16.msra.mxu0 %v530
  %705 = vmatprep.subr.bf16.mxu0 0
  %706 = vmatpush1.bf16.msra.mxu0 %v531
  %707 = vmatprep.subr.bf16.mxu0 0
  %708 = vmatpush1.bf16.msra.mxu0 %v532
  %709 = vmatprep.subr.bf16.mxu0 0
  %710 = vmatpush1.bf16.msra.mxu0 %v533
  %711 = vmatprep.subr.bf16.mxu0 0
  %712 = vmatpush1.bf16.msra.mxu0 %v534
  %713 = vmatprep.subr.bf16.mxu0 0
  %714 = vmatpush1.bf16.msra.mxu0 %v535
  %715 = vmatprep.subr.bf16.mxu0 0
  %716 = vmatpush1.bf16.msra.mxu0 %v536
  %717 = vmatprep.subr.bf16.mxu0 0
  %718 = vmatpush1.bf16.msra.mxu0 %v537
  %719 = vmatprep.subr.bf16.mxu0 0
  %720 = vmatpush1.bf16.msra.mxu0 %v538
  %721 = vmatprep.subr.bf16.mxu0 0
  %722 = vmatpush1.bf16.msra.mxu0 %v539
  %723 = vmatprep.subr.bf16.mxu0 0
  %724 = vmatpush1.bf16.msra.mxu0 %v540
  %725 = vmatprep.subr.bf16.mxu0 0
  %726 = vmatpush1.bf16.msra.mxu0 %v541
  %727 = vmatprep.mubr.bf16.mxu0 %v207
  %728 = vmatmul.mubr.bf16.gmra.mrb[0].mxu0 %v206
  %v729 = vpop.f32.mrb[0].mxu0
  %v730 = vadd.f32 %v689, %v729
  %v731 = vpop.f32.mrb[0].mxu0
  %v732 = vpop.f32.mrb[0].mxu0
  %v733 = vadd.f32 %v692, %v732
  %v734 = vpop.f32.mrb[0].mxu0
  %735 = vdwg.mxu0
  %736 = vmatprep.subr.bf16.mxu0 0
  %737 = vmatpush1.bf16.msra.mxu0 %v542
  %738 = vmatprep.subr.bf16.mxu0 0
  %739 = vmatpush1.bf16.msra.mxu0 %v543
  %740 = vmatprep.subr.bf16.mxu0 0
  %741 = vmatpush1.bf16.msra.mxu0 %v544
  %742 = vmatprep.subr.bf16.mxu0 0
  %743 = vmatpush1.bf16.msra.mxu0 %v545
  %744 = vmatprep.subr.bf16.mxu0 0
  %745 = vmatpush1.bf16.msra.mxu0 %v546
  %746 = vmatprep.subr.bf16.mxu0 0
  %747 = vmatpush1.bf16.msra.mxu0 %v547
  %748 = vmatprep.subr.bf16.mxu0 0
  %749 = vmatpush1.bf16.msra.mxu0 %v548
  %750 = vmatprep.subr.bf16.mxu0 0
  %751 = vmatpush1.bf16.msra.mxu0 %v549
  %752 = vmatprep.subr.bf16.mxu0 0
  %753 = vmatpush1.bf16.msra.mxu0 %v550
  %754 = vmatprep.subr.bf16.mxu0 0
  %755 = vmatpush1.bf16.msra.mxu0 %v551
  %756 = vmatprep.subr.bf16.mxu0 0
  %757 = vmatpush1.bf16.msra.mxu0 %v552
  %758 = vmatprep.subr.bf16.mxu0 0
  %759 = vmatpush1.bf16.msra.mxu0 %v553
  %760 = vmatprep.subr.bf16.mxu0 0
  %761 = vmatpush1.bf16.msra.mxu0 %v554
  %762 = vmatprep.subr.bf16.mxu0 0
  %763 = vmatpush1.bf16.msra.mxu0 %v555
  %764 = vmatprep.subr.bf16.mxu0 0
  %765 = vmatpush1.bf16.msra.mxu0 %v556
  %766 = vmatprep.subr.bf16.mxu0 0
  %767 = vmatpush1.bf16.msra.mxu0 %v557
  %768 = vmatprep.mubr.bf16.mxu0 %v209
  %769 = vmatmul.mubr.bf16.gmra.mrb[0].mxu0 %v208
  %v770 = vpop.f32.mrb[0].mxu0
  %v771 = vadd.f32 %v730, %v770
  %v772 = vpop.f32.mrb[0].mxu0
  %v773 = vpop.f32.mrb[0].mxu0
  %v774 = vadd.f32 %v733, %v773
  %v775 = vpop.f32.mrb[0].mxu0
  %776 = vdwg.mxu0
  %777 = vmatprep.subr.bf16.mxu0 0
  %778 = vmatpush1.bf16.msra.mxu0 %v558
  %779 = vmatprep.subr.bf16.mxu0 0
  %780 = vmatpush1.bf16.msra.mxu0 %v559
  %781 = vmatprep.subr.bf16.mxu0 0
  %782 = vmatpush1.bf16.msra.mxu0 %v560
  %783 = vmatprep.subr.bf16.mxu0 0
  %784 = vmatpush1.bf16.msra.mxu0 %v561
  %785 = vmatprep.subr.bf16.mxu0 0
  %786 = vmatpush1.bf16.msra.mxu0 %v562
  %787 = vmatprep.subr.bf16.mxu0 0
  %788 = vmatpush1.bf16.msra.mxu0 %v563
  %789 = vmatprep.subr.bf16.mxu0 0
  %790 = vmatpush1.bf16.msra.mxu0 %v564
  %791 = vmatprep.subr.bf16.mxu0 0
  %792 = vmatpush1.bf16.msra.mxu0 %v565
  %793 = vmatprep.subr.bf16.mxu0 0
  %794 = vmatpush1.bf16.msra.mxu0 %v566
  %795 = vmatprep.subr.bf16.mxu0 0
  %796 = vmatpush1.bf16.msra.mxu0 %v567
  %797 = vmatprep.subr.bf16.mxu0 0
  %798 = vmatpush1.bf16.msra.mxu0 %v568
  %799 = vmatprep.subr.bf16.mxu0 0
  %800 = vmatpush1.bf16.msra.mxu0 %v569
  %801 = vmatprep.subr.bf16.mxu0 0
  %802 = vmatpush1.bf16.msra.mxu0 %v570
  %803 = vmatprep.subr.bf16.mxu0 0
  %804 = vmatpush1.bf16.msra.mxu0 %v571
  %805 = vmatprep.subr.bf16.mxu0 0
  %806 = vmatpush1.bf16.msra.mxu0 %v572
  %807 = vmatprep.subr.bf16.mxu0 0
  %808 = vmatpush1.bf16.msra.mxu0 %v573
  %809 = vmatprep.mubr.bf16.mxu0 %v211
  %810 = vmatmul.mubr.bf16.gmra.mrb[0].mxu0 %v210
  %v811 = vpop.f32.mrb[0].mxu0
  %v812 = vadd.f32 %v771, %v811
  %v813 = vpop.f32.mrb[0].mxu0
  %v814 = vpop.f32.mrb[0].mxu0
  %v815 = vadd.f32 %v774, %v814
  %v816 = vpop.f32.mrb[0].mxu0
  %817 = vdwg.mxu0
  %818 = vmatprep.subr.bf16.mxu0 0
  %819 = vmatpush1.bf16.msra.mxu0 %v574
  %820 = vmatprep.subr.bf16.mxu0 0
  %821 = vmatpush1.bf16.msra.mxu0 %v575
  %822 = vmatprep.subr.bf16.mxu0 0
  %823 = vmatpush1.bf16.msra.mxu0 %v576
  %824 = vmatprep.subr.bf16.mxu0 0
  %825 = vmatpush1.bf16.msra.mxu0 %v577
  %826 = vmatprep.subr.bf16.mxu0 0
  %827 = vmatpush1.bf16.msra.mxu0 %v578
  %828 = vmatprep.subr.bf16.mxu0 0
  %829 = vmatpush1.bf16.msra.mxu0 %v579
  %830 = vmatprep.subr.bf16.mxu0 0
  %831 = vmatpush1.bf16.msra.mxu0 %v580
  %832 = vmatprep.subr.bf16.mxu0 0
  %833 = vmatpush1.bf16.msra.mxu0 %v581
  %834 = vmatprep.subr.bf16.mxu0 0
  %835 = vmatpush1.bf16.msra.mxu0 0
  %836 = vmatprep.subr.bf16.mxu0 0
  %837 = vmatpush1.bf16.msra.mxu0 0
  %838 = vmatprep.subr.bf16.mxu0 0
  %839 = vmatpush1.bf16.msra.mxu0 0
  %840 = vmatprep.subr.bf16.mxu0 0
  %841 = vmatpush1.bf16.msra.mxu0 0
  %842 = vmatprep.subr.bf16.mxu0 0
  %843 = vmatpush1.bf16.msra.mxu0 0
  %844 = vmatprep.subr.bf16.mxu0 0
  %845 = vmatpush1.bf16.msra.mxu0 0
  %846 = vmatprep.subr.bf16.mxu0 0
  %847 = vmatpush1.bf16.msra.mxu0 0
  %848 = vmatprep.subr.bf16.mxu0 0
  %849 = vmatpush1.bf16.msra.mxu0 0
  %850 = vmatprep.mubr.bf16.mxu0 0
  %851 = vmatmul.mubr.bf16.gmra.mrb[0].mxu0 %v212
  %v852 = vpop.f32.mrb[0].mxu0
  %v853 = vadd.f32 %v812, %v852
  %v854 = vpop.f32.mrb[0].mxu0
  %v855 = vpop.f32.mrb[0].mxu0
  %v856 = vadd.f32 %v815, %v855
  %v857 = vpop.f32.mrb[0].mxu0
  %858 = vdwg.mxu0
  %v859 = vtanh.pop %v853
  %v860 = vtanh.pop %v856
  %v861 = vmul.f32 %v859, 0.0625
  %v862 = vmul.f32 %v860, 0.0625
  %863 = vst [vmem:[%s3] sm:$0xff] %v861
  %864 = vst [vmem:[%s3 + $0x8] sm:$0xff] %v862
  // Predicated region
  $region14: #{_lambda_.16} parent=0 // pred_check
    _
  $region15: #{_lambda_.16} parent=0 // pred_check_branch
    %866 = sbr.rel (0) target = $region17
  $region16: #{_lambda_.16} parent=0 // pred_region
    _
  $region17: #{_lambda_.16} parent=0 // pred_fallthru
    _
  // Predicated region
  $region18: #{_lambda_.16} parent=0 // pred_check
    _
  $region19: #{_lambda_.16} parent=0 // pred_check_branch
    %868 = sbr.rel (0) target = $region21
  $region20: #{_lambda_.16} parent=0 // pred_region
    _
  $region21: #{_lambda_.16} parent=0 // pred_fallthru
    _

// kernel: _lambda_.17
$region0: #{_lambda_.17}
  #allocation0 [shape = 'u32[]', space=smem, size = 0x4, offset = 0x4, fixed_abs, tag = 'smem constant byte address 0x4 - core index']
  #allocation1 [shape = 'u32[144,128]{1,0:T(1,128)}', space=vmem, size = 0x12000, scoped, tag = 'internal scratch']
  %s0 = inlined_call_operand.vmem [shape: bf16[128,1152], index: 0, kind: input, shape index: {}]
  %s1 = inlined_call_operand.vmem [shape: bf16[1152,128], index: 1, kind: input, shape index: {}]
  %s2 = inlined_call_operand.vmem [shape: f32[1,128], index: 2, kind: input, shape index: {}]
  %s3 = inlined_call_operand.vmem [shape: f32[128,128], index: 3, kind: output, shape index: {}]
  %s4 = sld [smem:[#allocation0]]
  $region22: #{_lambda_.17} parent=0
    _
  %s6 = ssub.s32 1, %s4
  %s7 = scalar_select 0, %s6, %s4
  // Predicated region
  $region2: #{_lambda_.17} parent=0 // pred_check
    _
  $region3: #{_lambda_.17} parent=0 // pred_check_branch
    %9 = sbr.rel (0) target = $region5
  $region4: #{_lambda_.17} parent=0 // pred_region
    _
  $region5: #{_lambda_.17} parent=0 // pred_fallthru
    _
  // Predicated region
  $region6: #{_lambda_.17} parent=0 // pred_check
    _
  $region7: #{_lambda_.17} parent=0 // pred_check_branch
    %11 = sbr.rel (0) target = $region9
  $region8: #{_lambda_.17} parent=0 // pred_region
    _
  $region9: #{_lambda_.17} parent=0 // pred_fallthru
    _
  // Predicated region
  $region10: #{_lambda_.17} parent=0 // pred_check
    _
  $region11: #{_lambda_.17} parent=0 // pred_check_branch
    %13 = sbr.rel (0) target = $region13
  $region12: #{_lambda_.17} parent=0 // pred_region
    _
  $region13: #{_lambda_.17} parent=0 // pred_fallthru
    _
  %v15 = vld [vmem:[%s0] sm:$0xff]
  %v16 = vld [vmem:[%s0 + $0x8] sm:$0xff]
  %v17 = vld [vmem:[%s0 + $0x10] sm:$0xff]
  %v18 = vld [vmem:[%s0 + $0x18] sm:$0xff]
  %v19 = vld [vmem:[%s0 + $0x20] sm:$0xf]
  %v20 = vld [vmem:[%s0 + $0x24] sm:$0xff]
  %v21 = vld [vmem:[%s0 + $0x2c] sm:$0xff]
  %v22 = vld [vmem:[%s0 + $0x34] sm:$0xff]
  %v23 = vld [vmem:[%s0 + $0x3c] sm:$0xff]
  %v24 = vld [vmem:[%s0 + $0x44] sm:$0xf]
  %v25 = vld [vmem:[%s0 + $0x48] sm:$0xff]
  %v26 = vld [vmem:[%s0 + $0x50] sm:$0xff]
  %v27 = vld [vmem:[%s0 + $0x58] sm:$0xff]
  %v28 = vld [vmem:[%s0 + $0x60] sm:$0xff]
  %v29 = vld [vmem:[%s0 + $0x68] sm:$0xf]
  %v30 = vld [vmem:[%s0 + $0x6c] sm:$0xff]
  %v31 = vld [vmem:[%s0 + $0x74] sm:$0xff]
  %v32 = vld [vmem:[%s0 + $0x7c] sm:$0xff]
  %v33 = vld [vmem:[%s0 + $0x84] sm:$0xff]
  %v34 = vld [vmem:[%s0 + $0x8c] sm:$0xf]
  %v35 = vld [vmem:[%s0 + $0x90] sm:$0xff]
  %v36 = vld [vmem:[%s0 + $0x98] sm:$0xff]
  %v37 = vld [vmem:[%s0 + $0xa0] sm:$0xff]
  %v38 = vld [vmem:[%s0 + $0xa8] sm:$0xff]
  %v39 = vld [vmem:[%s0 + $0xb0] sm:$0xf]
  %v40 = vld [vmem:[%s0 + $0xb4] sm:$0xff]
  %v41 = vld [vmem:[%s0 + $0xbc] sm:$0xff]
  %v42 = vld [vmem:[%s0 + $0xc4] sm:$0xff]
  %v43 = vld [vmem:[%s0 + $0xcc] sm:$0xff]
  %v44 = vld [vmem:[%s0 + $0xd4] sm:$0xf]
  %v45 = vld [vmem:[%s0 + $0xd8] sm:$0xff]
  %v46 = vld [vmem:[%s0 + $0xe0] sm:$0xff]
  %v47 = vld [vmem:[%s0 + $0xe8] sm:$0xff]
  %v48 = vld [vmem:[%s0 + $0xf0] sm:$0xff]
  %v49 = vld [vmem:[%s0 + $0xf8] sm:$0xf]
  %v50 = vld [vmem:[%s0 + $0xfc] sm:$0xff]
  %v51 = vld [vmem:[%s0 + $0x104] sm:$0xff]
  %v52 = vld [vmem:[%s0 + $0x10c] sm:$0xff]
  %v53 = vld [vmem:[%s0 + $0x114] sm:$0xff]
  %v54 = vld [vmem:[%s0 + $0x11c] sm:$0xf]
  %v55 = vld [vmem:[%s0 + $0x120] sm:$0xff]
  %v56 = vld [vmem:[%s0 + $0x128] sm:$0xff]
  %v57 = vld [vmem:[%s0 + $0x130] sm:$0xff]
  %v58 = vld [vmem:[%s0 + $0x138] sm:$0xff]
  %v59 = vld [vmem:[%s0 + $0x140] sm:$0xf]
  %v60 = vld [vmem:[%s0 + $0x144] sm:$0xff]
  %v61 = vld [vmem:[%s0 + $0x14c] sm:$0xff]
  %v62 = vld [vmem:[%s0 + $0x154] sm:$0xff]
  %v63 = vld [vmem:[%s0 + $0x15c] sm:$0xff]
  %v64 = vld [vmem:[%s0 + $0x164] sm:$0xf]
  %v65 = vld [vmem:[%s0 + $0x168] sm:$0xff]
  %v66 = vld [vmem:[%s0 + $0x170] sm:$0xff]
  %v67 = vld [vmem:[%s0 + $0x178] sm:$0xff]
  %v68 = vld [vmem:[%s0 + $0x180] sm:$0xff]
  %v69 = vld [vmem:[%s0 + $0x188] sm:$0xf]
  %v70 = vld [vmem:[%s0 + $0x18c] sm:$0xff]
  %v71 = vld [vmem:[%s0 + $0x194] sm:$0xff]
  %v72 = vld [vmem:[%s0 + $0x19c] sm:$0xff]
  %v73 = vld [vmem:[%s0 + $0x1a4] sm:$0xff]
  %v74 = vld [vmem:[%s0 + $0x1ac] sm:$0xf]
  %v75 = vld [vmem:[%s0 + $0x1b0] sm:$0xff]
  %v76 = vld [vmem:[%s0 + $0x1b8] sm:$0xff]
  %v77 = vld [vmem:[%s0 + $0x1c0] sm:$0xff]
  %v78 = vld [vmem:[%s0 + $0x1c8] sm:$0xff]
  %v79 = vld [vmem:[%s0 + $0x1d0] sm:$0xf]
  %v80 = vld [vmem:[%s0 + $0x1d4] sm:$0xff]
  %v81 = vld [vmem:[%s0 + $0x1dc] sm:$0xff]
  %v82 = vld [vmem:[%s0 + $0x1e4] sm:$0xff]
  %v83 = vld [vmem:[%s0 + $0x1ec] sm:$0xff]
  %v84 = vld [vmem:[%s0 + $0x1f4] sm:$0xf]
  %v85 = vld [vmem:[%s0 + $0x1f8] sm:$0xff]
  %v86 = vld [vmem:[%s0 + $0x200] sm:$0xff]
  %v87 = vld [vmem:[%s0 + $0x208] sm:$0xff]
  %v88 = vld [vmem:[%s0 + $0x210] sm:$0xff]
  %v89 = vld [vmem:[%s0 + $0x218] sm:$0xf]
  %v90 = vld [vmem:[%s0 + $0x21c] sm:$0xff]
  %v91 = vld [vmem:[%s0 + $0x224] sm:$0xff]
  %v92 = vld [vmem:[%s0 + $0x22c] sm:$0xff]
  %v93 = vld [vmem:[%s0 + $0x234] sm:$0xff]
  %v94 = vld [vmem:[%s0 + $0x23c] sm:$0xf]
  %v95 = vld [vmem:[%s1] sm:$0xf]
  %v96 = vld [vmem:[%s1 + $0x4] sm:$0xf]
  %v97 = vld [vmem:[%s1 + $0x8] sm:$0xf]
  %v98 = vld [vmem:[%s1 + $0xc] sm:$0xf]
  %v99 = vld [vmem:[%s1 + $0x10] sm:$0xf]
  %v100 = vld [vmem:[%s1 + $0x14] sm:$0xf]
  %v101 = vld [vmem:[%s1 + $0x18] sm:$0xf]
  %v102 = vld [vmem:[%s1 + $0x1c] sm:$0xf]
  %v103 = vld [vmem:[%s1 + $0x20] sm:$0xf]
  %v104 = vld [vmem:[%s1 + $0x24] sm:$0xf]
  %v105 = vld [vmem:[%s1 + $0x28] sm:$0xf]
  %v106 = vld [vmem:[%s1 + $0x2c] sm:$0xf]
  %v107 = vld [vmem:[%s1 + $0x30] sm:$0xf]
  %v108 = vld [vmem:[%s1 + $0x34] sm:$0xf]
  %v109 = vld [vmem:[%s1 + $0x38] sm:$0xf]
  %v110 = vld [vmem:[%s1 + $0x3c] sm:$0xf]
  %v111 = vld [vmem:[%s1 + $0x40] sm:$0xf]
  %v112 = vld [vmem:[%s1 + $0x44] sm:$0xf]
  %v113 = vld [vmem:[%s1 + $0x48] sm:$0xf]
  %v114 = vld [vmem:[%s1 + $0x4c] sm:$0xf]
  %v115 = vld [vmem:[%s1 + $0x50] sm:$0xf]
  %v116 = vld [vmem:[%s1 + $0x54] sm:$0xf]
  %v117 = vld [vmem:[%s1 + $0x58] sm:$0xf]
  %v118 = vld [vmem:[%s1 + $0x5c] sm:$0xf]
  %v119 = vld [vmem:[%s1 + $0x60] sm:$0xf]
  %v120 = vld [vmem:[%s1 + $0x64] sm:$0xf]
  %v121 = vld [vmem:[%s1 + $0x68] sm:$0xf]
  %v122 = vld [vmem:[%s1 + $0x6c] sm:$0xf]
  %v123 = vld [vmem:[%s1 + $0x70] sm:$0xf]
  %v124 = vld [vmem:[%s1 + $0x74] sm:$0xf]
  %v125 = vld [vmem:[%s1 + $0x78] sm:$0xf]
  %v126 = vld [vmem:[%s1 + $0x7c] sm:$0xf]
  %v127 = vld [vmem:[%s1 + $0x80] sm:$0xf]
  %v128 = vld [vmem:[%s1 + $0x84] sm:$0xf]
  %v129 = vld [vmem:[%s1 + $0x88] sm:$0xf]
  %v130 = vld [vmem:[%s1 + $0x8c] sm:$0xf]
  %v131 = vld [vmem:[%s1 + $0x90] sm:$0xf]
  %v132 = vld [vmem:[%s1 + $0x94] sm:$0xf]
  %v133 = vld [vmem:[%s1 + $0x98] sm:$0xf]
  %v134 = vld [vmem:[%s1 + $0x9c] sm:$0xf]
  %v135 = vld [vmem:[%s1 + $0xa0] sm:$0xf]
  %v136 = vld [vmem:[%s1 + $0xa4] sm:$0xf]
  %v137 = vld [vmem:[%s1 + $0xa8] sm:$0xf]
  %v138 = vld [vmem:[%s1 + $0xac] sm:$0xf]
  %v139 = vld [vmem:[%s1 + $0xb0] sm:$0xf]
  %v140 = vld [vmem:[%s1 + $0xb4] sm:$0xf]
  %v141 = vld [vmem:[%s1 + $0xb8] sm:$0xf]
  %v142 = vld [vmem:[%s1 + $0xbc] sm:$0xf]
  %v143 = vld [vmem:[%s1 + $0xc0] sm:$0xf]
  %v144 = vld [vmem:[%s1 + $0xc4] sm:$0xf]
  %v145 = vld [vmem:[%s1 + $0xc8] sm:$0xf]
  %v146 = vld [vmem:[%s1 + $0xcc] sm:$0xf]
  %v147 = vld [vmem:[%s1 + $0xd0] sm:$0xf]
  %v148 = vld [vmem:[%s1 + $0xd4] sm:$0xf]
  %v149 = vld [vmem:[%s1 + $0xd8] sm:$0xf]
  %v150 = vld [vmem:[%s1 + $0xdc] sm:$0xf]
  %v151 = vld [vmem:[%s1 + $0xe0] sm:$0xf]
  %v152 = vld [vmem:[%s1 + $0xe4] sm:$0xf]
  %v153 = vld [vmem:[%s1 + $0xe8] sm:$0xf]
  %v154 = vld [vmem:[%s1 + $0xec] sm:$0xf]
  %v155 = vld [vmem:[%s1 + $0xf0] sm:$0xf]
  %v156 = vld [vmem:[%s1 + $0xf4] sm:$0xf]
  %v157 = vld [vmem:[%s1 + $0xf8] sm:$0xf]
  %v158 = vld [vmem:[%s1 + $0xfc] sm:$0xf]
  %v159 = vld [vmem:[%s1 + $0x100] sm:$0xf]
  %v160 = vld [vmem:[%s1 + $0x104] sm:$0xf]
  %v161 = vld [vmem:[%s1 + $0x108] sm:$0xf]
  %v162 = vld [vmem:[%s1 + $0x10c] sm:$0xf]
  %v163 = vld [vmem:[%s1 + $0x110] sm:$0xf]
  %v164 = vld [vmem:[%s1 + $0x114] sm:$0xf]
  %v165 = vld [vmem:[%s1 + $0x118] sm:$0xf]
  %v166 = vld [vmem:[%s1 + $0x11c] sm:$0xf]
  %v167 = vld [vmem:[%s1 + $0x120] sm:$0xf]
  %v168 = vld [vmem:[%s1 + $0x124] sm:$0xf]
  %v169 = vld [vmem:[%s1 + $0x128] sm:$0xf]
  %v170 = vld [vmem:[%s1 + $0x12c] sm:$0xf]
  %v171 = vld [vmem:[%s1 + $0x130] sm:$0xf]
  %v172 = vld [vmem:[%s1 + $0x134] sm:$0xf]
  %v173 = vld [vmem:[%s1 + $0x138] sm:$0xf]
  %v174 = vld [vmem:[%s1 + $0x13c] sm:$0xf]
  %v175 = vld [vmem:[%s1 + $0x140] sm:$0xf]
  %v176 = vld [vmem:[%s1 + $0x144] sm:$0xf]
  %v177 = vld [vmem:[%s1 + $0x148] sm:$0xf]
  %v178 = vld [vmem:[%s1 + $0x14c] sm:$0xf]
  %v179 = vld [vmem:[%s1 + $0x150] sm:$0xf]
  %v180 = vld [vmem:[%s1 + $0x154] sm:$0xf]
  %v181 = vld [vmem:[%s1 + $0x158] sm:$0xf]
  %v182 = vld [vmem:[%s1 + $0x15c] sm:$0xf]
  %v183 = vld [vmem:[%s1 + $0x160] sm:$0xf]
  %v184 = vld [vmem:[%s1 + $0x164] sm:$0xf]
  %v185 = vld [vmem:[%s1 + $0x168] sm:$0xf]
  %v186 = vld [vmem:[%s1 + $0x16c] sm:$0xf]
  %v187 = vld [vmem:[%s1 + $0x170] sm:$0xf]
  %v188 = vld [vmem:[%s1 + $0x174] sm:$0xf]
  %v189 = vld [vmem:[%s1 + $0x178] sm:$0xf]
  %v190 = vld [vmem:[%s1 + $0x17c] sm:$0xf]
  %v191 = vld [vmem:[%s1 + $0x180] sm:$0xf]
  %v192 = vld [vmem:[%s1 + $0x184] sm:$0xf]
  %v193 = vld [vmem:[%s1 + $0x188] sm:$0xf]
  %v194 = vld [vmem:[%s1 + $0x18c] sm:$0xf]
  %v195 = vld [vmem:[%s1 + $0x190] sm:$0xf]
  %v196 = vld [vmem:[%s1 + $0x194] sm:$0xf]
  %v197 = vld [vmem:[%s1 + $0x198] sm:$0xf]
  %v198 = vld [vmem:[%s1 + $0x19c] sm:$0xf]
  %v199 = vld [vmem:[%s1 + $0x1a0] sm:$0xf]
  %v200 = vld [vmem:[%s1 + $0x1a4] sm:$0xf]
  %v201 = vld [vmem:[%s1 + $0x1a8] sm:$0xf]
  %v202 = vld [vmem:[%s1 + $0x1ac] sm:$0xf]
  %v203 = vld [vmem:[%s1 + $0x1b0] sm:$0xf]
  %v204 = vld [vmem:[%s1 + $0x1b4] sm:$0xf]
  %v205 = vld [vmem:[%s1 + $0x1b8] sm:$0xf]
  %v206 = vld [vmem:[%s1 + $0x1bc] sm:$0xf]
  %v207 = vld [vmem:[%s1 + $0x1c0] sm:$0xf]
  %v208 = vld [vmem:[%s1 + $0x1c4] sm:$0xf]
  %v209 = vld [vmem:[%s1 + $0x1c8] sm:$0xf]
  %v210 = vld [vmem:[%s1 + $0x1cc] sm:$0xf]
  %v211 = vld [vmem:[%s1 + $0x1d0] sm:$0xf]
  %v212 = vld [vmem:[%s1 + $0x1d4] sm:$0xf]
  %v213 = vld [vmem:[%s1 + $0x1d8] sm:$0xf]
  %v214 = vld [vmem:[%s1 + $0x1dc] sm:$0xf]
  %v215 = vld [vmem:[%s1 + $0x1e0] sm:$0xf]
  %v216 = vld [vmem:[%s1 + $0x1e4] sm:$0xf]
  %v217 = vld [vmem:[%s1 + $0x1e8] sm:$0xf]
  %v218 = vld [vmem:[%s1 + $0x1ec] sm:$0xf]
  %v219 = vld [vmem:[%s1 + $0x1f0] sm:$0xf]
  %v220 = vld [vmem:[%s1 + $0x1f4] sm:$0xf]
  %v221 = vld [vmem:[%s1 + $0x1f8] sm:$0xf]
  %v222 = vld [vmem:[%s1 + $0x1fc] sm:$0xf]
  %v223 = vld [vmem:[%s1 + $0x200] sm:$0xf]
  %v224 = vld [vmem:[%s1 + $0x204] sm:$0xf]
  %v225 = vld [vmem:[%s1 + $0x208] sm:$0xf]
  %v226 = vld [vmem:[%s1 + $0x20c] sm:$0xf]
  %v227 = vld [vmem:[%s1 + $0x210] sm:$0xf]
  %v228 = vld [vmem:[%s1 + $0x214] sm:$0xf]
  %v229 = vld [vmem:[%s1 + $0x218] sm:$0xf]
  %v230 = vld [vmem:[%s1 + $0x21c] sm:$0xf]
  %v231 = vld [vmem:[%s1 + $0x220] sm:$0xf]
  %v232 = vld [vmem:[%s1 + $0x224] sm:$0xf]
  %v233 = vld [vmem:[%s1 + $0x228] sm:$0xf]
  %v234 = vld [vmem:[%s1 + $0x22c] sm:$0xf]
  %v235 = vld [vmem:[%s1 + $0x230] sm:$0xf]
  %v236 = vld [vmem:[%s1 + $0x234] sm:$0xf]
  %v237 = vld [vmem:[%s1 + $0x238] sm:$0xf]
  %v238 = vld [vmem:[%s1 + $0x23c] sm:$0xf]
  %v239 = vld [vmem:[%s2] sm:$0x1]
  %v241 = vlaneseq
  %v242 = vshrl.u32 %v241, 7
  %v243 = vsub.s32 0, %v242
  %v244 = vrot.slane %v239, %v243
  %v326 = vunpack.c.l.b16 %v15
  %v327 = vunpack.c.h.b16 %v15
  %v328 = vunpack.c.l.b16 %v16
  %v329 = vunpack.c.h.b16 %v16
  %v330 = vunpack.c.l.b16 %v17
  %v331 = vunpack.c.h.b16 %v17
  %v332 = vunpack.c.l.b16 %v18
  %v333 = vunpack.c.h.b16 %v18
  %v334 = vunpack.c.l.b16 %v19
  %v335 = vunpack.c.l.b16 %v20
  %v336 = vunpack.c.h.b16 %v20
  %v337 = vunpack.c.l.b16 %v21
  %v338 = vunpack.c.h.b16 %v21
  %v339 = vunpack.c.l.b16 %v22
  %v340 = vunpack.c.h.b16 %v22
  %v341 = vunpack.c.l.b16 %v23
  %v342 = vunpack.c.h.b16 %v23
  %v343 = vunpack.c.l.b16 %v24
  %v344 = vunpack.c.l.b16 %v25
  %v345 = vunpack.c.h.b16 %v25
  %v346 = vunpack.c.l.b16 %v26
  %v347 = vunpack.c.h.b16 %v26
  %v348 = vunpack.c.l.b16 %v27
  %v349 = vunpack.c.h.b16 %v27
  %v350 = vunpack.c.l.b16 %v28
  %v351 = vunpack.c.h.b16 %v28
  %v352 = vunpack.c.l.b16 %v29
  %v353 = vunpack.c.l.b16 %v30
  %v354 = vunpack.c.h.b16 %v30
  %v355 = vunpack.c.l.b16 %v31
  %v356 = vunpack.c.h.b16 %v31
  %v357 = vunpack.c.l.b16 %v32
  %v358 = vunpack.c.h.b16 %v32
  %v359 = vunpack.c.l.b16 %v33
  %v360 = vunpack.c.h.b16 %v33
  %v361 = vunpack.c.l.b16 %v34
  %v362 = vunpack.c.l.b16 %v35
  %v363 = vunpack.c.h.b16 %v35
  %v364 = vunpack.c.l.b16 %v36
  %v365 = vunpack.c.h.b16 %v36
  %v366 = vunpack.c.l.b16 %v37
  %v367 = vunpack.c.h.b16 %v37
  %v368 = vunpack.c.l.b16 %v38
  %v369 = vunpack.c.h.b16 %v38
  %v370 = vunpack.c.l.b16 %v39
  %v371 = vunpack.c.l.b16 %v40
  %v372 = vunpack.c.h.b16 %v40
  %v373 = vunpack.c.l.b16 %v41
  %v374 = vunpack.c.h.b16 %v41
  %v375 = vunpack.c.l.b16 %v42
  %v376 = vunpack.c.h.b16 %v42
  %v377 = vunpack.c.l.b16 %v43
  %v378 = vunpack.c.h.b16 %v43
  %v379 = vunpack.c.l.b16 %v44
  %v380 = vunpack.c.l.b16 %v45
  %v381 = vunpack.c.h.b16 %v45
  %v382 = vunpack.c.l.b16 %v46
  %v383 = vunpack.c.h.b16 %v46
  %v384 = vunpack.c.l.b16 %v47
  %v385 = vunpack.c.h.b16 %v47
  %v386 = vunpack.c.l.b16 %v48
  %v387 = vunpack.c.h.b16 %v48
  %v388 = vunpack.c.l.b16 %v49
  %v389 = vunpack.c.l.b16 %v50
  %v390 = vunpack.c.h.b16 %v50
  %v391 = vunpack.c.l.b16 %v51
  %v392 = vunpack.c.h.b16 %v51
  %v393 = vunpack.c.l.b16 %v52
  %v394 = vunpack.c.h.b16 %v52
  %v395 = vunpack.c.l.b16 %v53
  %v396 = vunpack.c.h.b16 %v53
  %v397 = vunpack.c.l.b16 %v54
  %v398 = vunpack.c.l.b16 %v55
  %v399 = vunpack.c.h.b16 %v55
  %v400 = vunpack.c.l.b16 %v56
  %v401 = vunpack.c.h.b16 %v56
  %v402 = vunpack.c.l.b16 %v57
  %v403 = vunpack.c.h.b16 %v57
  %v404 = vunpack.c.l.b16 %v58
  %v405 = vunpack.c.h.b16 %v58
  %v406 = vunpack.c.l.b16 %v59
  %v407 = vunpack.c.l.b16 %v60
  %v408 = vunpack.c.h.b16 %v60
  %v409 = vunpack.c.l.b16 %v61
  %v410 = vunpack.c.h.b16 %v61
  %v411 = vunpack.c.l.b16 %v62
  %v412 = vunpack.c.h.b16 %v62
  %v413 = vunpack.c.l.b16 %v63
  %v414 = vunpack.c.h.b16 %v63
  %v415 = vunpack.c.l.b16 %v64
  %v416 = vunpack.c.l.b16 %v65
  %v417 = vunpack.c.h.b16 %v65
  %v418 = vunpack.c.l.b16 %v66
  %v419 = vunpack.c.h.b16 %v66
  %v420 = vunpack.c.l.b16 %v67
  %v421 = vunpack.c.h.b16 %v67
  %v422 = vunpack.c.l.b16 %v68
  %v423 = vunpack.c.h.b16 %v68
  %v424 = vunpack.c.l.b16 %v69
  %v425 = vunpack.c.l.b16 %v70
  %v426 = vunpack.c.h.b16 %v70
  %v427 = vunpack.c.l.b16 %v71
  %v428 = vunpack.c.h.b16 %v71
  %v429 = vunpack.c.l.b16 %v72
  %v430 = vunpack.c.h.b16 %v72
  %v431 = vunpack.c.l.b16 %v73
  %v432 = vunpack.c.h.b16 %v73
  %v433 = vunpack.c.l.b16 %v74
  %v434 = vunpack.c.l.b16 %v75
  %v435 = vunpack.c.h.b16 %v75
  %v436 = vunpack.c.l.b16 %v76
  %v437 = vunpack.c.h.b16 %v76
  %v438 = vunpack.c.l.b16 %v77
  %v439 = vunpack.c.h.b16 %v77
  %v440 = vunpack.c.l.b16 %v78
  %v441 = vunpack.c.h.b16 %v78
  %v442 = vunpack.c.l.b16 %v79
  %v443 = vunpack.c.l.b16 %v80
  %v444 = vunpack.c.h.b16 %v80
  %v445 = vunpack.c.l.b16 %v81
  %v446 = vunpack.c.h.b16 %v81
  %v447 = vunpack.c.l.b16 %v82
  %v448 = vunpack.c.h.b16 %v82
  %v449 = vunpack.c.l.b16 %v83
  %v450 = vunpack.c.h.b16 %v83
  %v451 = vunpack.c.l.b16 %v84
  %v452 = vunpack.c.l.b16 %v85
  %v453 = vunpack.c.h.b16 %v85
  %v454 = vunpack.c.l.b16 %v86
  %v455 = vunpack.c.h.b16 %v86
  %v456 = vunpack.c.l.b16 %v87
  %v457 = vunpack.c.h.b16 %v87
  %v458 = vunpack.c.l.b16 %v88
  %v459 = vunpack.c.h.b16 %v88
  %v460 = vunpack.c.l.b16 %v89
  %v461 = vunpack.c.l.b16 %v90
  %v462 = vunpack.c.h.b16 %v90
  %v463 = vunpack.c.l.b16 %v91
  %v464 = vunpack.c.h.b16 %v91
  %v465 = vunpack.c.l.b16 %v92
  %v466 = vunpack.c.h.b16 %v92
  %v467 = vunpack.c.l.b16 %v93
  %v468 = vunpack.c.h.b16 %v93
  %v469 = vunpack.c.l.b16 %v94
  %v470 = vpack.c.b16 %v335, %v326
  %v471 = vpack.c.b16 %v336, %v327
  %v472 = vpack.c.b16 %v337, %v328
  %v473 = vpack.c.b16 %v338, %v329
  %v474 = vpack.c.b16 %v339, %v330
  %v475 = vpack.c.b16 %v340, %v331
  %v476 = vpack.c.b16 %v341, %v332
  %v477 = vpack.c.b16 %v342, %v333
  %v478 = vpack.c.b16 %v343, %v334
  %v479 = vpack.c.b16 %v353, %v344
  %v480 = vpack.c.b16 %v354, %v345
  %v481 = vpack.c.b16 %v355, %v346
  %v482 = vpack.c.b16 %v356, %v347
  %v483 = vpack.c.b16 %v357, %v348
  %v484 = vpack.c.b16 %v358, %v349
  %v485 = vpack.c.b16 %v359, %v350
  %v486 = vpack.c.b16 %v360, %v351
  %v487 = vpack.c.b16 %v361, %v352
  %v488 = vpack.c.b16 %v371, %v362
  %v489 = vpack.c.b16 %v372, %v363
  %v490 = vpack.c.b16 %v373, %v364
  %v491 = vpack.c.b16 %v374, %v365
  %v492 = vpack.c.b16 %v375, %v366
  %v493 = vpack.c.b16 %v376, %v367
  %v494 = vpack.c.b16 %v377, %v368
  %v495 = vpack.c.b16 %v378, %v369
  %v496 = vpack.c.b16 %v379, %v370
  %v497 = vpack.c.b16 %v389, %v380
  %v498 = vpack.c.b16 %v390, %v381
  %v499 = vpack.c.b16 %v391, %v382
  %v500 = vpack.c.b16 %v392, %v383
  %v501 = vpack.c.b16 %v393, %v384
  %v502 = vpack.c.b16 %v394, %v385
  %v503 = vpack.c.b16 %v395, %v386
  %v504 = vpack.c.b16 %v396, %v387
  %v505 = vpack.c.b16 %v397, %v388
  %v506 = vpack.c.b16 %v407, %v398
  %v507 = vpack.c.b16 %v408, %v399
  %v508 = vpack.c.b16 %v409, %v400
  %v509 = vpack.c.b16 %v410, %v401
  %v510 = vpack.c.b16 %v411, %v402
  %v511 = vpack.c.b16 %v412, %v403
  %v512 = vpack.c.b16 %v413, %v404
  %v513 = vpack.c.b16 %v414, %v405
  %v514 = vpack.c.b16 %v415, %v406
  %v515 = vpack.c.b16 %v425, %v416
  %v516 = vpack.c.b16 %v426, %v417
  %v517 = vpack.c.b16 %v427, %v418
  %v518 = vpack.c.b16 %v428, %v419
  %v519 = vpack.c.b16 %v429, %v420
  %v520 = vpack.c.b16 %v430, %v421
  %v521 = vpack.c.b16 %v431, %v422
  %v522 = vpack.c.b16 %v432, %v423
  %v523 = vpack.c.b16 %v433, %v424
  %v524 = vpack.c.b16 %v443, %v434
  %v525 = vpack.c.b16 %v444, %v435
  %v526 = vpack.c.b16 %v445, %v436
  %v527 = vpack.c.b16 %v446, %v437
  %v528 = vpack.c.b16 %v447, %v438
  %v529 = vpack.c.b16 %v448, %v439
  %v530 = vpack.c.b16 %v449, %v440
  %v531 = vpack.c.b16 %v450, %v441
  %v532 = vpack.c.b16 %v451, %v442
  %v533 = vpack.c.b16 %v461, %v452
  %v534 = vpack.c.b16 %v462, %v453
  %v535 = vpack.c.b16 %v463, %v454
  %v536 = vpack.c.b16 %v464, %v455
  %v537 = vpack.c.b16 %v465, %v456
  %v538 = vpack.c.b16 %v466, %v457
  %v539 = vpack.c.b16 %v467, %v458
  %v540 = vpack.c.b16 %v468, %v459
  %v541 = vpack.c.b16 %v469, %v460
  %v758 = vunpack.c.l.b16 %v95
  %v759 = vunpack.c.l.b16 %v96
  %v760 = vunpack.c.l.b16 %v97
  %v761 = vunpack.c.l.b16 %v98
  %v762 = vunpack.c.l.b16 %v99
  %v763 = vunpack.c.l.b16 %v100
  %v764 = vunpack.c.l.b16 %v101
  %v765 = vunpack.c.l.b16 %v102
  %v766 = vunpack.c.l.b16 %v103
  %v767 = vunpack.c.l.b16 %v104
  %v768 = vunpack.c.l.b16 %v105
  %v769 = vunpack.c.l.b16 %v106
  %v770 = vunpack.c.l.b16 %v107
  %v771 = vunpack.c.l.b16 %v108
  %v772 = vunpack.c.l.b16 %v109
  %v773 = vunpack.c.l.b16 %v110
  %v774 = vunpack.c.l.b16 %v111
  %v775 = vunpack.c.l.b16 %v112
  %v776 = vunpack.c.l.b16 %v113
  %v777 = vunpack.c.l.b16 %v114
  %v778 = vunpack.c.l.b16 %v115
  %v779 = vunpack.c.l.b16 %v116
  %v780 = vunpack.c.l.b16 %v117
  %v781 = vunpack.c.l.b16 %v118
  %v782 = vunpack.c.l.b16 %v119
  %v783 = vunpack.c.l.b16 %v120
  %v784 = vunpack.c.l.b16 %v121
  %v785 = vunpack.c.l.b16 %v122
  %v786 = vunpack.c.l.b16 %v123
  %v787 = vunpack.c.l.b16 %v124
  %v788 = vunpack.c.l.b16 %v125
  %v789 = vunpack.c.l.b16 %v126
  %v790 = vunpack.c.l.b16 %v127
  %v791 = vunpack.c.l.b16 %v128
  %v792 = vunpack.c.l.b16 %v129
  %v793 = vunpack.c.l.b16 %v130
  %v794 = vunpack.c.l.b16 %v131
  %v795 = vunpack.c.l.b16 %v132
  %v796 = vunpack.c.l.b16 %v133
  %v797 = vunpack.c.l.b16 %v134
  %v798 = vunpack.c.l.b16 %v135
  %v799 = vunpack.c.l.b16 %v136
  %v800 = vunpack.c.l.b16 %v137
  %v801 = vunpack.c.l.b16 %v138
  %v802 = vunpack.c.l.b16 %v139
  %v803 = vunpack.c.l.b16 %v140
  %v804 = vunpack.c.l.b16 %v141
  %v805 = vunpack.c.l.b16 %v142
  %v806 = vunpack.c.l.b16 %v143
  %v807 = vunpack.c.l.b16 %v144
  %v808 = vunpack.c.l.b16 %v145
  %v809 = vunpack.c.l.b16 %v146
  %v810 = vunpack.c.l.b16 %v147
  %v811 = vunpack.c.l.b16 %v148
  %v812 = vunpack.c.l.b16 %v149
  %v813 = vunpack.c.l.b16 %v150
  %v814 = vunpack.c.l.b16 %v151
  %v815 = vunpack.c.l.b16 %v152
  %v816 = vunpack.c.l.b16 %v153
  %v817 = vunpack.c.l.b16 %v154
  %v818 = vunpack.c.l.b16 %v155
  %v819 = vunpack.c.l.b16 %v156
  %v820 = vunpack.c.l.b16 %v157
  %v821 = vunpack.c.l.b16 %v158
  %v822 = vunpack.c.l.b16 %v159
  %v823 = vunpack.c.l.b16 %v160
  %v824 = vunpack.c.l.b16 %v161
  %v825 = vunpack.c.l.b16 %v162
  %v826 = vunpack.c.l.b16 %v163
  %v827 = vunpack.c.l.b16 %v164
  %v828 = vunpack.c.l.b16 %v165
  %v829 = vunpack.c.l.b16 %v166
  %v830 = vunpack.c.l.b16 %v167
  %v831 = vunpack.c.l.b16 %v168
  %v832 = vunpack.c.l.b16 %v169
  %v833 = vunpack.c.l.b16 %v170
  %v834 = vunpack.c.l.b16 %v171
  %v835 = vunpack.c.l.b16 %v172
  %v836 = vunpack.c.l.b16 %v173
  %v837 = vunpack.c.l.b16 %v174
  %v838 = vunpack.c.l.b16 %v175
  %v839 = vunpack.c.l.b16 %v176
  %v840 = vunpack.c.l.b16 %v177
  %v841 = vunpack.c.l.b16 %v178
  %v842 = vunpack.c.l.b16 %v179
  %v843 = vunpack.c.l.b16 %v180
  %v844 = vunpack.c.l.b16 %v181
  %v845 = vunpack.c.l.b16 %v182
  %v846 = vunpack.c.l.b16 %v183
  %v847 = vunpack.c.l.b16 %v184
  %v848 = vunpack.c.l.b16 %v185
  %v849 = vunpack.c.l.b16 %v186
  %v850 = vunpack.c.l.b16 %v187
  %v851 = vunpack.c.l.b16 %v188
  %v852 = vunpack.c.l.b16 %v189
  %v853 = vunpack.c.l.b16 %v190
  %v854 = vunpack.c.l.b16 %v191
  %v855 = vunpack.c.l.b16 %v192
  %v856 = vunpack.c.l.b16 %v193
  %v857 = vunpack.c.l.b16 %v194
  %v858 = vunpack.c.l.b16 %v195
  %v859 = vunpack.c.l.b16 %v196
  %v860 = vunpack.c.l.b16 %v197
  %v861 = vunpack.c.l.b16 %v198
  %v862 = vunpack.c.l.b16 %v199
  %v863 = vunpack.c.l.b16 %v200
  %v864 = vunpack.c.l.b16 %v201
  %v865 = vunpack.c.l.b16 %v202
  %v866 = vunpack.c.l.b16 %v203
  %v867 = vunpack.c.l.b16 %v204
  %v868 = vunpack.c.l.b16 %v205
  %v869 = vunpack.c.l.b16 %v206
  %v870 = vunpack.c.l.b16 %v207
  %v871 = vunpack.c.l.b16 %v208
  %v872 = vunpack.c.l.b16 %v209
  %v873 = vunpack.c.l.b16 %v210
  %v874 = vunpack.c.l.b16 %v211
  %v875 = vunpack.c.l.b16 %v212
  %v876 = vunpack.c.l.b16 %v213
  %v877 = vunpack.c.l.b16 %v214
  %v878 = vunpack.c.l.b16 %v215
  %v879 = vunpack.c.l.b16 %v216
  %v880 = vunpack.c.l.b16 %v217
  %v881 = vunpack.c.l.b16 %v218
  %v882 = vunpack.c.l.b16 %v219
  %v883 = vunpack.c.l.b16 %v220
  %v884 = vunpack.c.l.b16 %v221
  %v885 = vunpack.c.l.b16 %v222
  %v886 = vunpack.c.l.b16 %v223
  %v887 = vunpack.c.l.b16 %v224
  %v888 = vunpack.c.l.b16 %v225
  %v889 = vunpack.c.l.b16 %v226
  %v890 = vunpack.c.l.b16 %v227
  %v891 = vunpack.c.l.b16 %v228
  %v892 = vunpack.c.l.b16 %v229
  %v893 = vunpack.c.l.b16 %v230
  %v894 = vunpack.c.l.b16 %v231
  %v895 = vunpack.c.l.b16 %v232
  %v896 = vunpack.c.l.b16 %v233
  %v897 = vunpack.c.l.b16 %v234
  %v898 = vunpack.c.l.b16 %v235
  %v899 = vunpack.c.l.b16 %v236
  %v900 = vunpack.c.l.b16 %v237
  %v901 = vunpack.c.l.b16 %v238
  %v902 = vpack.c.b16 %v759, %v758
  %v903 = vpack.c.b16 %v761, %v760
  %v904 = vpack.c.b16 %v763, %v762
  %v905 = vpack.c.b16 %v765, %v764
  %v906 = vpack.c.b16 %v767, %v766
  %v907 = vpack.c.b16 %v769, %v768
  %v908 = vpack.c.b16 %v771, %v770
  %v909 = vpack.c.b16 %v773, %v772
  %v910 = vpack.c.b16 %v775, %v774
  %v911 = vpack.c.b16 %v777, %v776
  %v912 = vpack.c.b16 %v779, %v778
  %v913 = vpack.c.b16 %v781, %v780
  %v914 = vpack.c.b16 %v783, %v782
  %v915 = vpack.c.b16 %v785, %v784
  %v916 = vpack.c.b16 %v787, %v786
  %v917 = vpack.c.b16 %v789, %v788
  %v918 = vpack.c.b16 %v791, %v790
  %v919 = vpack.c.b16 %v793, %v792
  %v920 = vpack.c.b16 %v795, %v794
  %v921 = vpack.c.b16 %v797, %v796
  %v922 = vpack.c.b16 %v799, %v798
  %v923 = vpack.c.b16 %v801, %v800
  %v924 = vpack.c.b16 %v803, %v802
  %v925 = vpack.c.b16 %v805, %v804
  %v926 = vpack.c.b16 %v807, %v806
  %v927 = vpack.c.b16 %v809, %v808
  %v928 = vpack.c.b16 %v811, %v810
  %v929 = vpack.c.b16 %v813, %v812
  %v930 = vpack.c.b16 %v815, %v814
  %v931 = vpack.c.b16 %v817, %v816
  %v932 = vpack.c.b16 %v819, %v818
  %v933 = vpack.c.b16 %v821, %v820
  %v934 = vpack.c.b16 %v823, %v822
  %v935 = vpack.c.b16 %v825, %v824
  %v936 = vpack.c.b16 %v827, %v826
  %v937 = vpack.c.b16 %v829, %v828
  %v938 = vpack.c.b16 %v831, %v830
  %v939 = vpack.c.b16 %v833, %v832
  %v940 = vpack.c.b16 %v835, %v834
  %v941 = vpack.c.b16 %v837, %v836
  %v942 = vpack.c.b16 %v839, %v838
  %v943 = vpack.c.b16 %v841, %v840
  %v944 = vpack.c.b16 %v843, %v842
  %v945 = vpack.c.b16 %v845, %v844
  %v946 = vpack.c.b16 %v847, %v846
  %v947 = vpack.c.b16 %v849, %v848
  %v948 = vpack.c.b16 %v851, %v850
  %v949 = vpack.c.b16 %v853, %v852
  %v950 = vpack.c.b16 %v855, %v854
  %v951 = vpack.c.b16 %v857, %v856
  %v952 = vpack.c.b16 %v859, %v858
  %v953 = vpack.c.b16 %v861, %v860
  %v954 = vpack.c.b16 %v863, %v862
  %v955 = vpack.c.b16 %v865, %v864
  %v956 = vpack.c.b16 %v867, %v866
  %v957 = vpack.c.b16 %v869, %v868
  %v958 = vpack.c.b16 %v871, %v870
  %v959 = vpack.c.b16 %v873, %v872
  %v960 = vpack.c.b16 %v875, %v874
  %v961 = vpack.c.b16 %v877, %v876
  %v962 = vpack.c.b16 %v879, %v878
  %v963 = vpack.c.b16 %v881, %v880
  %v964 = vpack.c.b16 %v883, %v882
  %v965 = vpack.c.b16 %v885, %v884
  %v966 = vpack.c.b16 %v887, %v886
  %v967 = vpack.c.b16 %v889, %v888
  %v968 = vpack.c.b16 %v891, %v890
  %v969 = vpack.c.b16 %v893, %v892
  %v970 = vpack.c.b16 %v895, %v894
  %v971 = vpack.c.b16 %v897, %v896
  %v972 = vpack.c.b16 %v899, %v898
  %v973 = vpack.c.b16 %v901, %v900
  %1046 = vmatprep.subr.bf16.mxu0 0
  %1047 = vmatpush1.bf16.msra.mxu0 %v902
  %1048 = vmatprep.subr.bf16.mxu0 0
  %1049 = vmatpush1.bf16.msra.mxu0 %v903
  %1050 = vmatprep.subr.bf16.mxu0 0
  %1051 = vmatpush1.bf16.msra.mxu0 %v904
  %1052 = vmatprep.subr.bf16.mxu0 0
  %1053 = vmatpush1.bf16.msra.mxu0 %v905
  %1054 = vmatprep.subr.bf16.mxu0 0
  %1055 = vmatpush1.bf16.msra.mxu0 %v906
  %1056 = vmatprep.subr.bf16.mxu0 0
  %1057 = vmatpush1.bf16.msra.mxu0 %v907
  %1058 = vmatprep.subr.bf16.mxu0 0
  %1059 = vmatpush1.bf16.msra.mxu0 %v908
  %1060 = vmatprep.subr.bf16.mxu0 0
  %1061 = vmatpush1.bf16.msra.mxu0 %v909
  %1062 = vmatprep.subr.bf16.mxu0 0
  %1063 = vmatpush1.bf16.msra.mxu0 %v910
  %1064 = vmatprep.subr.bf16.mxu0 0
  %1065 = vmatpush1.bf16.msra.mxu0 %v911
  %1066 = vmatprep.subr.bf16.mxu0 0
  %1067 = vmatpush1.bf16.msra.mxu0 %v912
  %1068 = vmatprep.subr.bf16.mxu0 0
  %1069 = vmatpush1.bf16.msra.mxu0 %v913
  %1070 = vmatprep.subr.bf16.mxu0 0
  %1071 = vmatpush1.bf16.msra.mxu0 %v914
  %1072 = vmatprep.subr.bf16.mxu0 0
  %1073 = vmatpush1.bf16.msra.mxu0 %v915
  %1074 = vmatprep.subr.bf16.mxu0 0
  %1075 = vmatpush1.bf16.msra.mxu0 %v916
  %1076 = vmatprep.subr.bf16.mxu0 0
  %1077 = vmatpush1.bf16.msra.mxu0 %v917
  %1078 = vmatprep.mubr.bf16.mxu0 %v471
  %1079 = vmatmul.mubr.bf16.gmra.mrb[0].mxu0 %v470
  %v1080 = vpop.f32.mrb[0].mxu0
  %v1081 = vadd.f32 %v244, %v1080
  %v1082 = vpop.f32.mrb[0].mxu0
  %v1083 = vpop.f32.mrb[0].mxu0
  %v1084 = vadd.f32 %v244, %v1083
  %v1085 = vpop.f32.mrb[0].mxu0
  %1086 = vmatprep.mubr.bf16.mxu0 %v480
  %1087 = vmatmul.mubr.bf16.gmra.mrb[0].mxu0 %v479
  %v1088 = vpop.f32.mrb[0].mxu0
  %v1089 = vadd.f32 %v244, %v1088
  %v1090 = vpop.f32.mrb[0].mxu0
  %v1091 = vpop.f32.mrb[0].mxu0
  %v1092 = vadd.f32 %v244, %v1091
  %v1093 = vpop.f32.mrb[0].mxu0
  %1094 = vmatprep.mubr.bf16.mxu0 %v489
  %1095 = vmatmul.mubr.bf16.gmra.mrb[0].mxu0 %v488
  %v1096 = vpop.f32.mrb[0].mxu0
  %v1097 = vadd.f32 %v244, %v1096
  %v1098 = vpop.f32.mrb[0].mxu0
  %v1099 = vpop.f32.mrb[0].mxu0
  %v1100 = vadd.f32 %v244, %v1099
  %v1101 = vpop.f32.mrb[0].mxu0
  %1102 = vmatprep.mubr.bf16.mxu0 %v498
  %1103 = vmatmul.mubr.bf16.gmra.mrb[0].mxu0 %v497
  %v1104 = vpop.f32.mrb[0].mxu0
  %v1105 = vadd.f32 %v244, %v1104
  %v1106 = vpop.f32.mrb[0].mxu0
  %v1107 = vpop.f32.mrb[0].mxu0
  %v1108 = vadd.f32 %v244, %v1107
  %v1109 = vpop.f32.mrb[0].mxu0
  %1110 = vmatprep.mubr.bf16.mxu0 %v507
  %1111 = vmatmul.mubr.bf16.gmra.mrb[0].mxu0 %v506
  %v1112 = vpop.f32.mrb[0].mxu0
  %v1113 = vadd.f32 %v244, %v1112
  %v1114 = vpop.f32.mrb[0].mxu0
  %v1115 = vpop.f32.mrb[0].mxu0
  %v1116 = vadd.f32 %v244, %v1115
  %v1117 = vpop.f32.mrb[0].mxu0
  %1118 = vmatprep.mubr.bf16.mxu0 %v516
  %1119 = vmatmul.mubr.bf16.gmra.mrb[0].mxu0 %v515
  %v1120 = vpop.f32.mrb[0].mxu0
  %v1121 = vadd.f32 %v244, %v1120
  %v1122 = vpop.f32.mrb[0].mxu0
  %v1123 = vpop.f32.mrb[0].mxu0
  %v1124 = vadd.f32 %v244, %v1123
  %v1125 = vpop.f32.mrb[0].mxu0
  %1126 = vmatprep.mubr.bf16.mxu0 %v525
  %1127 = vmatmul.mubr.bf16.gmra.mrb[0].mxu0 %v524
  %v1128 = vpop.f32.mrb[0].mxu0
  %v1129 = vadd.f32 %v244, %v1128
  %v1130 = vpop.f32.mrb[0].mxu0
  %v1131 = vpop.f32.mrb[0].mxu0
  %v1132 = vadd.f32 %v244, %v1131
  %v1133 = vpop.f32.mrb[0].mxu0
  %1134 = vmatprep.mubr.bf16.mxu0 %v534
  %1135 = vmatmul.mubr.bf16.gmra.mrb[0].mxu0 %v533
  %v1136 = vpop.f32.mrb[0].mxu0
  %v1137 = vadd.f32 %v244, %v1136
  %v1138 = vpop.f32.mrb[0].mxu0
  %v1139 = vpop.f32.mrb[0].mxu0
  %v1140 = vadd.f32 %v244, %v1139
  %v1141 = vpop.f32.mrb[0].mxu0
  %1142 = vdwg.mxu0
  %1143 = vmatprep.subr.bf16.mxu0 0
  %1144 = vmatpush1.bf16.msra.mxu0 %v918
  %1145 = vmatprep.subr.bf16.mxu0 0
  %1146 = vmatpush1.bf16.msra.mxu0 %v919
  %1147 = vmatprep.subr.bf16.mxu0 0
  %1148 = vmatpush1.bf16.msra.mxu0 %v920
  %1149 = vmatprep.subr.bf16.mxu0 0
  %1150 = vmatpush1.bf16.msra.mxu0 %v921
  %1151 = vmatprep.subr.bf16.mxu0 0
  %1152 = vmatpush1.bf16.msra.mxu0 %v922
  %1153 = vmatprep.subr.bf16.mxu0 0
  %1154 = vmatpush1.bf16.msra.mxu0 %v923
  %1155 = vmatprep.subr.bf16.mxu0 0
  %1156 = vmatpush1.bf16.msra.mxu0 %v924
  %1157 = vmatprep.subr.bf16.mxu0 0
  %1158 = vmatpush1.bf16.msra.mxu0 %v925
  %1159 = vmatprep.subr.bf16.mxu0 0
  %1160 = vmatpush1.bf16.msra.mxu0 %v926
  %1161 = vmatprep.subr.bf16.mxu0 0
  %1162 = vmatpush1.bf16.msra.mxu0 %v927
  %1163 = vmatprep.subr.bf16.mxu0 0
  %1164 = vmatpush1.bf16.msra.mxu0 %v928
  %1165 = vmatprep.subr.bf16.mxu0 0
  %1166 = vmatpush1.bf16.msra.mxu0 %v929
  %1167 = vmatprep.subr.bf16.mxu0 0
  %1168 = vmatpush1.bf16.msra.mxu0 %v930
  %1169 = vmatprep.subr.bf16.mxu0 0
  %1170 = vmatpush1.bf16.msra.mxu0 %v931
  %1171 = vmatprep.subr.bf16.mxu0 0
  %1172 = vmatpush1.bf16.msra.mxu0 %v932
  %1173 = vmatprep.subr.bf16.mxu0 0
  %1174 = vmatpush1.bf16.msra.mxu0 %v933
  %1175 = vmatprep.mubr.bf16.mxu0 %v473
  %1176 = vmatmul.mubr.bf16.gmra.mrb[0].mxu0 %v472
  %v1177 = vpop.f32.mrb[0].mxu0
  %v1178 = vadd.f32 %v1081, %v1177
  %v1179 = vpop.f32.mrb[0].mxu0
  %v1180 = vpop.f32.mrb[0].mxu0
  %v1181 = vadd.f32 %v1084, %v1180
  %v1182 = vpop.f32.mrb[0].mxu0
  %1183 = vmatprep.mubr.bf16.mxu0 %v482
  %1184 = vmatmul.mubr.bf16.gmra.mrb[0].mxu0 %v481
  %v1185 = vpop.f32.mrb[0].mxu0
  %v1186 = vadd.f32 %v1089, %v1185
  %v1187 = vpop.f32.mrb[0].mxu0
  %v1188 = vpop.f32.mrb[0].mxu0
  %v1189 = vadd.f32 %v1092, %v1188
  %v1190 = vpop.f32.mrb[0].mxu0
  %1191 = vmatprep.mubr.bf16.mxu0 %v491
  %1192 = vmatmul.mubr.bf16.gmra.mrb[0].mxu0 %v490
  %v1193 = vpop.f32.mrb[0].mxu0
  %v1194 = vadd.f32 %v1097, %v1193
  %v1195 = vpop.f32.mrb[0].mxu0
  %v1196 = vpop.f32.mrb[0].mxu0
  %v1197 = vadd.f32 %v1100, %v1196
  %v1198 = vpop.f32.mrb[0].mxu0
  %1199 = vmatprep.mubr.bf16.mxu0 %v500
  %1200 = vmatmul.mubr.bf16.gmra.mrb[0].mxu0 %v499
  %v1201 = vpop.f32.mrb[0].mxu0
  %v1202 = vadd.f32 %v1105, %v1201
  %v1203 = vpop.f32.mrb[0].mxu0
  %v1204 = vpop.f32.mrb[0].mxu0
  %v1205 = vadd.f32 %v1108, %v1204
  %v1206 = vpop.f32.mrb[0].mxu0
  %1207 = vmatprep.mubr.bf16.mxu0 %v509
  %1208 = vmatmul.mubr.bf16.gmra.mrb[0].mxu0 %v508
  %v1209 = vpop.f32.mrb[0].mxu0
  %v1210 = vadd.f32 %v1113, %v1209
  %v1211 = vpop.f32.mrb[0].mxu0
  %v1212 = vpop.f32.mrb[0].mxu0
  %v1213 = vadd.f32 %v1116, %v1212
  %v1214 = vpop.f32.mrb[0].mxu0
  %1215 = vmatprep.mubr.bf16.mxu0 %v518
  %1216 = vmatmul.mubr.bf16.gmra.mrb[0].mxu0 %v517
  %v1217 = vpop.f32.mrb[0].mxu0
  %v1218 = vadd.f32 %v1121, %v1217
  %v1219 = vpop.f32.mrb[0].mxu0
  %v1220 = vpop.f32.mrb[0].mxu0
  %v1221 = vadd.f32 %v1124, %v1220
  %v1222 = vpop.f32.mrb[0].mxu0
  %1223 = vmatprep.mubr.bf16.mxu0 %v527
  %1224 = vmatmul.mubr.bf16.gmra.mrb[0].mxu0 %v526
  %v1225 = vpop.f32.mrb[0].mxu0
  %v1226 = vadd.f32 %v1129, %v1225
  %v1227 = vpop.f32.mrb[0].mxu0
  %v1228 = vpop.f32.mrb[0].mxu0
  %v1229 = vadd.f32 %v1132, %v1228
  %v1230 = vpop.f32.mrb[0].mxu0
  %1231 = vmatprep.mubr.bf16.mxu0 %v536
  %1232 = vmatmul.mubr.bf16.gmra.mrb[0].mxu0 %v535
  %v1233 = vpop.f32.mrb[0].mxu0
  %v1234 = vadd.f32 %v1137, %v1233
  %v1235 = vpop.f32.mrb[0].mxu0
  %v1236 = vpop.f32.mrb[0].mxu0
  %v1237 = vadd.f32 %v1140, %v1236
  %v1238 = vpop.f32.mrb[0].mxu0
  %1239 = vdwg.mxu0
  %1240 = vmatprep.subr.bf16.mxu0 0
  %1241 = vmatpush1.bf16.msra.mxu0 %v934
  %1242 = vmatprep.subr.bf16.mxu0 0
  %1243 = vmatpush1.bf16.msra.mxu0 %v935
  %1244 = vmatprep.subr.bf16.mxu0 0
  %1245 = vmatpush1.bf16.msra.mxu0 %v936
  %1246 = vmatprep.subr.bf16.mxu0 0
  %1247 = vmatpush1.bf16.msra.mxu0 %v937
  %1248 = vmatprep.subr.bf16.mxu0 0
  %1249 = vmatpush1.bf16.msra.mxu0 %v938
  %1250 = vmatprep.subr.bf16.mxu0 0
  %1251 = vmatpush1.bf16.msra.mxu0 %v939
  %1252 = vmatprep.subr.bf16.mxu0 0
  %1253 = vmatpush1.bf16.msra.mxu0 %v940
  %1254 = vmatprep.subr.bf16.mxu0 0
  %1255 = vmatpush1.bf16.msra.mxu0 %v941
  %1256 = vmatprep.subr.bf16.mxu0 0
  %1257 = vmatpush1.bf16.msra.mxu0 %v942
  %1258 = vmatprep.subr.bf16.mxu0 0
  %1259 = vmatpush1.bf16.msra.mxu0 %v943
  %1260 = vmatprep.subr.bf16.mxu0 0
  %1261 = vmatpush1.bf16.msra.mxu0 %v944
  %1262 = vmatprep.subr.bf16.mxu0 0
  %1263 = vmatpush1.bf16.msra.mxu0 %v945
  %1264 = vmatprep.subr.bf16.mxu0 0
  %1265 = vmatpush1.bf16.msra.mxu0 %v946
  %1266 = vmatprep.subr.bf16.mxu0 0
  %1267 = vmatpush1.bf16.msra.mxu0 %v947
  %1268 = vmatprep.subr.bf16.mxu0 0
  %1269 = vmatpush1.bf16.msra.mxu0 %v948
  %1270 = vmatprep.subr.bf16.mxu0 0
  %1271 = vmatpush1.bf16.msra.mxu0 %v949
  %1272 = vmatprep.mubr.bf16.mxu0 %v475
  %1273 = vmatmul.mubr.bf16.gmra.mrb[0].mxu0 %v474
  %v1274 = vpop.f32.mrb[0].mxu0
  %v1275 = vadd.f32 %v1178, %v1274
  %v1276 = vpop.f32.mrb[0].mxu0
  %v1277 = vpop.f32.mrb[0].mxu0
  %v1278 = vadd.f32 %v1181, %v1277
  %v1279 = vpop.f32.mrb[0].mxu0
  %1280 = vmatprep.mubr.bf16.mxu0 %v484
  %1281 = vmatmul.mubr.bf16.gmra.mrb[0].mxu0 %v483
  %v1282 = vpop.f32.mrb[0].mxu0
  %v1283 = vadd.f32 %v1186, %v1282
  %v1284 = vpop.f32.mrb[0].mxu0
  %v1285 = vpop.f32.mrb[0].mxu0
  %v1286 = vadd.f32 %v1189, %v1285
  %v1287 = vpop.f32.mrb[0].mxu0
  %1288 = vmatprep.mubr.bf16.mxu0 %v493
  %1289 = vmatmul.mubr.bf16.gmra.mrb[0].mxu0 %v492
  %v1290 = vpop.f32.mrb[0].mxu0
  %v1291 = vadd.f32 %v1194, %v1290
  %v1292 = vpop.f32.mrb[0].mxu0
  %v1293 = vpop.f32.mrb[0].mxu0
  %v1294 = vadd.f32 %v1197, %v1293
  %v1295 = vpop.f32.mrb[0].mxu0
  %1296 = vmatprep.mubr.bf16.mxu0 %v502
  %1297 = vmatmul.mubr.bf16.gmra.mrb[0].mxu0 %v501
  %v1298 = vpop.f32.mrb[0].mxu0
  %v1299 = vadd.f32 %v1202, %v1298
  %v1300 = vpop.f32.mrb[0].mxu0
  %v1301 = vpop.f32.mrb[0].mxu0
  %v1302 = vadd.f32 %v1205, %v1301
  %v1303 = vpop.f32.mrb[0].mxu0
  %1304 = vmatprep.mubr.bf16.mxu0 %v511
  %1305 = vmatmul.mubr.bf16.gmra.mrb[0].mxu0 %v510
  %v1306 = vpop.f32.mrb[0].mxu0
  %v1307 = vadd.f32 %v1210, %v1306
  %v1308 = vpop.f32.mrb[0].mxu0
  %v1309 = vpop.f32.mrb[0].mxu0
  %v1310 = vadd.f32 %v1213, %v1309
  %v1311 = vpop.f32.mrb[0].mxu0
  %1312 = vmatprep.mubr.bf16.mxu0 %v520
  %1313 = vmatmul.mubr.bf16.gmra.mrb[0].mxu0 %v519
  %v1314 = vpop.f32.mrb[0].mxu0
  %v1315 = vadd.f32 %v1218, %v1314
  %v1316 = vpop.f32.mrb[0].mxu0
  %v1317 = vpop.f32.mrb[0].mxu0
  %v1318 = vadd.f32 %v1221, %v1317
  %v1319 = vpop.f32.mrb[0].mxu0
  %1320 = vmatprep.mubr.bf16.mxu0 %v529
  %1321 = vmatmul.mubr.bf16.gmra.mrb[0].mxu0 %v528
  %v1322 = vpop.f32.mrb[0].mxu0
  %v1323 = vadd.f32 %v1226, %v1322
  %v1324 = vpop.f32.mrb[0].mxu0
  %v1325 = vpop.f32.mrb[0].mxu0
  %v1326 = vadd.f32 %v1229, %v1325
  %v1327 = vpop.f32.mrb[0].mxu0
  %1328 = vmatprep.mubr.bf16.mxu0 %v538
  %1329 = vmatmul.mubr.bf16.gmra.mrb[0].mxu0 %v537
  %v1330 = vpop.f32.mrb[0].mxu0
  %v1331 = vadd.f32 %v1234, %v1330
  %v1332 = vpop.f32.mrb[0].mxu0
  %v1333 = vpop.f32.mrb[0].mxu0
  %v1334 = vadd.f32 %v1237, %v1333
  %v1335 = vpop.f32.mrb[0].mxu0
  %1336 = vdwg.mxu0
  %1337 = vmatprep.subr.bf16.mxu0 0
  %1338 = vmatpush1.bf16.msra.mxu0 %v950
  %1339 = vmatprep.subr.bf16.mxu0 0
  %1340 = vmatpush1.bf16.msra.mxu0 %v951
  %1341 = vmatprep.subr.bf16.mxu0 0
  %1342 = vmatpush1.bf16.msra.mxu0 %v952
  %1343 = vmatprep.subr.bf16.mxu0 0
  %1344 = vmatpush1.bf16.msra.mxu0 %v953
  %1345 = vmatprep.subr.bf16.mxu0 0
  %1346 = vmatpush1.bf16.msra.mxu0 %v954
  %1347 = vmatprep.subr.bf16.mxu0 0
  %1348 = vmatpush1.bf16.msra.mxu0 %v955
  %1349 = vmatprep.subr.bf16.mxu0 0
  %1350 = vmatpush1.bf16.msra.mxu0 %v956
  %1351 = vmatprep.subr.bf16.mxu0 0
  %1352 = vmatpush1.bf16.msra.mxu0 %v957
  %1353 = vmatprep.subr.bf16.mxu0 0
  %1354 = vmatpush1.bf16.msra.mxu0 %v958
  %1355 = vmatprep.subr.bf16.mxu0 0
  %1356 = vmatpush1.bf16.msra.mxu0 %v959
  %1357 = vmatprep.subr.bf16.mxu0 0
  %1358 = vmatpush1.bf16.msra.mxu0 %v960
  %1359 = vmatprep.subr.bf16.mxu0 0
  %1360 = vmatpush1.bf16.msra.mxu0 %v961
  %1361 = vmatprep.subr.bf16.mxu0 0
  %1362 = vmatpush1.bf16.msra.mxu0 %v962
  %1363 = vmatprep.subr.bf16.mxu0 0
  %1364 = vmatpush1.bf16.msra.mxu0 %v963
  %1365 = vmatprep.subr.bf16.mxu0 0
  %1366 = vmatpush1.bf16.msra.mxu0 %v964
  %1367 = vmatprep.subr.bf16.mxu0 0
  %1368 = vmatpush1.bf16.msra.mxu0 %v965
  %1369 = vmatprep.mubr.bf16.mxu0 %v477
  %1370 = vmatmul.mubr.bf16.gmra.mrb[0].mxu0 %v476
  %v1371 = vpop.f32.mrb[0].mxu0
  %v1372 = vadd.f32 %v1275, %v1371
  %v1373 = vpop.f32.mrb[0].mxu0
  %v1374 = vpop.f32.mrb[0].mxu0
  %v1375 = vadd.f32 %v1278, %v1374
  %v1376 = vpop.f32.mrb[0].mxu0
  %1377 = vmatprep.mubr.bf16.mxu0 %v486
  %1378 = vmatmul.mubr.bf16.gmra.mrb[0].mxu0 %v485
  %v1379 = vpop.f32.mrb[0].mxu0
  %v1380 = vadd.f32 %v1283, %v1379
  %v1381 = vpop.f32.mrb[0].mxu0
  %v1382 = vpop.f32.mrb[0].mxu0
  %v1383 = vadd.f32 %v1286, %v1382
  %v1384 = vpop.f32.mrb[0].mxu0
  %1385 = vmatprep.mubr.bf16.mxu0 %v495
  %1386 = vmatmul.mubr.bf16.gmra.mrb[0].mxu0 %v494
  %v1387 = vpop.f32.mrb[0].mxu0
  %v1388 = vadd.f32 %v1291, %v1387
  %v1389 = vpop.f32.mrb[0].mxu0
  %v1390 = vpop.f32.mrb[0].mxu0
  %v1391 = vadd.f32 %v1294, %v1390
  %v1392 = vpop.f32.mrb[0].mxu0
  %1393 = vmatprep.mubr.bf16.mxu0 %v504
  %1394 = vmatmul.mubr.bf16.gmra.mrb[0].mxu0 %v503
  %v1395 = vpop.f32.mrb[0].mxu0
  %v1396 = vadd.f32 %v1299, %v1395
  %v1397 = vpop.f32.mrb[0].mxu0
  %v1398 = vpop.f32.mrb[0].mxu0
  %v1399 = vadd.f32 %v1302, %v1398
  %v1400 = vpop.f32.mrb[0].mxu0
  %1401 = vmatprep.mubr.bf16.mxu0 %v513
  %1402 = vmatmul.mubr.bf16.gmra.mrb[0].mxu0 %v512
  %v1403 = vpop.f32.mrb[0].mxu0
  %v1404 = vadd.f32 %v1307, %v1403
  %v1405 = vpop.f32.mrb[0].mxu0
  %v1406 = vpop.f32.mrb[0].mxu0
  %v1407 = vadd.f32 %v1310, %v1406
  %v1408 = vpop.f32.mrb[0].mxu0
  %1409 = vmatprep.mubr.bf16.mxu0 %v522
  %1410 = vmatmul.mubr.bf16.gmra.mrb[0].mxu0 %v521
  %v1411 = vpop.f32.mrb[0].mxu0
  %v1412 = vadd.f32 %v1315, %v1411
  %v1413 = vpop.f32.mrb[0].mxu0
  %v1414 = vpop.f32.mrb[0].mxu0
  %v1415 = vadd.f32 %v1318, %v1414
  %v1416 = vpop.f32.mrb[0].mxu0
  %1417 = vmatprep.mubr.bf16.mxu0 %v531
  %1418 = vmatmul.mubr.bf16.gmra.mrb[0].mxu0 %v530
  %v1419 = vpop.f32.mrb[0].mxu0
  %v1420 = vadd.f32 %v1323, %v1419
  %v1421 = vpop.f32.mrb[0].mxu0
  %v1422 = vpop.f32.mrb[0].mxu0
  %v1423 = vadd.f32 %v1326, %v1422
  %v1424 = vpop.f32.mrb[0].mxu0
  %1425 = vmatprep.mubr.bf16.mxu0 %v540
  %1426 = vmatmul.mubr.bf16.gmra.mrb[0].mxu0 %v539
  %v1427 = vpop.f32.mrb[0].mxu0
  %v1428 = vadd.f32 %v1331, %v1427
  %v1429 = vpop.f32.mrb[0].mxu0
  %v1430 = vpop.f32.mrb[0].mxu0
  %v1431 = vadd.f32 %v1334, %v1430
  %v1432 = vpop.f32.mrb[0].mxu0
  %1433 = vdwg.mxu0
  %1434 = vmatprep.subr.bf16.mxu0 0
  %1435 = vmatpush1.bf16.msra.mxu0 %v966
  %1436 = vmatprep.subr.bf16.mxu0 0
  %1437 = vmatpush1.bf16.msra.mxu0 %v967
  %1438 = vmatprep.subr.bf16.mxu0 0
  %1439 = vmatpush1.bf16.msra.mxu0 %v968
  %1440 = vmatprep.subr.bf16.mxu0 0
  %1441 = vmatpush1.bf16.msra.mxu0 %v969
  %1442 = vmatprep.subr.bf16.mxu0 0
  %1443 = vmatpush1.bf16.msra.mxu0 %v970
  %1444 = vmatprep.subr.bf16.mxu0 0
  %1445 = vmatpush1.bf16.msra.mxu0 %v971
  %1446 = vmatprep.subr.bf16.mxu0 0
  %1447 = vmatpush1.bf16.msra.mxu0 %v972
  %1448 = vmatprep.subr.bf16.mxu0 0
  %1449 = vmatpush1.bf16.msra.mxu0 %v973
  %1450 = vmatprep.subr.bf16.mxu0 0
  %1451 = vmatpush1.bf16.msra.mxu0 0
  %1452 = vmatprep.subr.bf16.mxu0 0
  %1453 = vmatpush1.bf16.msra.mxu0 0
  %1454 = vmatprep.subr.bf16.mxu0 0
  %1455 = vmatpush1.bf16.msra.mxu0 0
  %1456 = vmatprep.subr.bf16.mxu0 0
  %1457 = vmatpush1.bf16.msra.mxu0 0
  %1458 = vmatprep.subr.bf16.mxu0 0
  %1459 = vmatpush1.bf16.msra.mxu0 0
  %1460 = vmatprep.subr.bf16.mxu0 0
  %1461 = vmatpush1.bf16.msra.mxu0 0
  %1462 = vmatprep.subr.bf16.mxu0 0
  %1463 = vmatpush1.bf16.msra.mxu0 0
  %1464 = vmatprep.subr.bf16.mxu0 0
  %1465 = vmatpush1.bf16.msra.mxu0 0
  %1466 = vmatprep.mubr.bf16.mxu0 0
  %1467 = vmatmul.mubr.bf16.gmra.mrb[0].mxu0 %v478
  %v1468 = vpop.f32.mrb[0].mxu0
  %v1469 = vadd.f32 %v1372, %v1468
  %v1470 = vpop.f32.mrb[0].mxu0
  %v1471 = vpop.f32.mrb[0].mxu0
  %v1472 = vadd.f32 %v1375, %v1471
  %v1473 = vpop.f32.mrb[0].mxu0
  %1474 = vmatprep.mubr.bf16.mxu0 0
  %1475 = vmatmul.mubr.bf16.gmra.mrb[0].mxu0 %v487
  %v1476 = vpop.f32.mrb[0].mxu0
  %v1477 = vadd.f32 %v1380, %v1476
  %v1478 = vpop.f32.mrb[0].mxu0
  %v1479 = vpop.f32.mrb[0].mxu0
  %v1480 = vadd.f32 %v1383, %v1479
  %v1481 = vpop.f32.mrb[0].mxu0
  %1482 = vmatprep.mubr.bf16.mxu0 0
  %1483 = vmatmul.mubr.bf16.gmra.mrb[0].mxu0 %v496
  %v1484 = vpop.f32.mrb[0].mxu0
  %v1485 = vadd.f32 %v1388, %v1484
  %v1486 = vpop.f32.mrb[0].mxu0
  %v1487 = vpop.f32.mrb[0].mxu0
  %v1488 = vadd.f32 %v1391, %v1487
  %v1489 = vpop.f32.mrb[0].mxu0
  %1490 = vmatprep.mubr.bf16.mxu0 0
  %1491 = vmatmul.mubr.bf16.gmra.mrb[0].mxu0 %v505
  %v1492 = vpop.f32.mrb[0].mxu0
  %v1493 = vadd.f32 %v1396, %v1492
  %v1494 = vpop.f32.mrb[0].mxu0
  %v1495 = vpop.f32.mrb[0].mxu0
  %v1496 = vadd.f32 %v1399, %v1495
  %v1497 = vpop.f32.mrb[0].mxu0
  %1498 = vmatprep.mubr.bf16.mxu0 0
  %1499 = vmatmul.mubr.bf16.gmra.mrb[0].mxu0 %v514
  %v1500 = vpop.f32.mrb[0].mxu0
  %v1501 = vadd.f32 %v1404, %v1500
  %v1502 = vpop.f32.mrb[0].mxu0
  %v1503 = vpop.f32.mrb[0].mxu0
  %v1504 = vadd.f32 %v1407, %v1503
  %v1505 = vpop.f32.mrb[0].mxu0
  %1506 = vmatprep.mubr.bf16.mxu0 0
  %1507 = vmatmul.mubr.bf16.gmra.mrb[0].mxu0 %v523
  %v1508 = vpop.f32.mrb[0].mxu0
  %v1509 = vadd.f32 %v1412, %v1508
  %v1510 = vpop.f32.mrb[0].mxu0
  %v1511 = vpop.f32.mrb[0].mxu0
  %v1512 = vadd.f32 %v1415, %v1511
  %v1513 = vpop.f32.mrb[0].mxu0
  %1514 = vmatprep.mubr.bf16.mxu0 0
  %1515 = vmatmul.mubr.bf16.gmra.mrb[0].mxu0 %v532
  %v1516 = vpop.f32.mrb[0].mxu0
  %v1517 = vadd.f32 %v1420, %v1516
  %v1518 = vpop.f32.mrb[0].mxu0
  %v1519 = vpop.f32.mrb[0].mxu0
  %v1520 = vadd.f32 %v1423, %v1519
  %v1521 = vpop.f32.mrb[0].mxu0
  %1522 = vmatprep.mubr.bf16.mxu0 0
  %1523 = vmatmul.mubr.bf16.gmra.mrb[0].mxu0 %v541
  %v1524 = vpop.f32.mrb[0].mxu0
  %v1525 = vadd.f32 %v1428, %v1524
  %v1526 = vpop.f32.mrb[0].mxu0
  %v1527 = vpop.f32.mrb[0].mxu0
  %v1528 = vadd.f32 %v1431, %v1527
  %v1529 = vpop.f32.mrb[0].mxu0
  %1530 = vdwg.mxu0
  %v1531 = vtanh.pop %v1469
  %v1532 = vtanh.pop %v1472
  %v1533 = vtanh.pop %v1477
  %v1534 = vtanh.pop %v1480
  %v1535 = vtanh.pop %v1485
  %v1536 = vtanh.pop %v1488
  %v1537 = vtanh.pop %v1493
  %v1538 = vtanh.pop %v1496
  %v1539 = vtanh.pop %v1501
  %v1540 = vtanh.pop %v1504
  %v1541 = vtanh.pop %v1509
  %v1542 = vtanh.pop %v1512
  %v1543 = vtanh.pop %v1517
  %v1544 = vtanh.pop %v1520
  %v1545 = vtanh.pop %v1525
  %v1546 = vtanh.pop %v1528
  %v1547 = vmul.f32 %v1531, 0.0234375
  %v1548 = vmul.f32 %v1532, 0.0234375
  %v1549 = vmul.f32 %v1533, 0.0234375
  %v1550 = vmul.f32 %v1534, 0.0234375
  %v1551 = vmul.f32 %v1535, 0.0234375
  %v1552 = vmul.f32 %v1536, 0.0234375
  %v1553 = vmul.f32 %v1537, 0.0234375
  %v1554 = vmul.f32 %v1538, 0.0234375
  %v1555 = vmul.f32 %v1539, 0.0234375
  %v1556 = vmul.f32 %v1540, 0.0234375
  %v1557 = vmul.f32 %v1541, 0.0234375
  %v1558 = vmul.f32 %v1542, 0.0234375
  %v1559 = vmul.f32 %v1543, 0.0234375
  %v1560 = vmul.f32 %v1544, 0.0234375
  %v1561 = vmul.f32 %v1545, 0.0234375
  %v1562 = vmul.f32 %v1546, 0.0234375
  %1563 = vst [vmem:[%s3] sm:$0xff] %v1547
  %1564 = vst [vmem:[%s3 + $0x8] sm:$0xff] %v1548
  %1565 = vst [vmem:[%s3 + $0x10] sm:$0xff] %v1549
  %1566 = vst [vmem:[%s3 + $0x18] sm:$0xff] %v1550
  %1567 = vst [vmem:[%s3 + $0x20] sm:$0xff] %v1551
  %1568 = vst [vmem:[%s3 + $0x28] sm:$0xff] %v1552
  %1569 = vst [vmem:[%s3 + $0x30] sm:$0xff] %v1553
  %1570 = vst [vmem:[%s3 + $0x38] sm:$0xff] %v1554
  %1571 = vst [vmem:[%s3 + $0x40] sm:$0xff] %v1555
  %1572 = vst [vmem:[%s3 + $0x48] sm:$0xff] %v1556
  %1573 = vst [vmem:[%s3 + $0x50] sm:$0xff] %v1557
  %1574 = vst [vmem:[%s3 + $0x58] sm:$0xff] %v1558
  %1575 = vst [vmem:[%s3 + $0x60] sm:$0xff] %v1559
  %1576 = vst [vmem:[%s3 + $0x68] sm:$0xff] %v1560
  %1577 = vst [vmem:[%s3 + $0x70] sm:$0xff] %v1561
  %1578 = vst [vmem:[%s3 + $0x78] sm:$0xff] %v1562
  // Predicated region
  $region14: #{_lambda_.17} parent=0 // pred_check
    _
  $region15: #{_lambda_.17} parent=0 // pred_check_branch
    %1580 = sbr.rel (0) target = $region17
  $region16: #{_lambda_.17} parent=0 // pred_region
    _
  $region17: #{_lambda_.17} parent=0 // pred_fallthru
    _
  // Predicated region
  $region18: #{_lambda_.17} parent=0 // pred_check
    _
  $region19: #{_lambda_.17} parent=0 // pred_check_branch
    %1582 = sbr.rel (0) target = $region21
  $region20: #{_lambda_.17} parent=0 // pred_region
    _
  $region21: #{_lambda_.17} parent=0 // pred_fallthru
    _

</llo_original>
